<compile_context>
chip_gen: v7x
topology: tpu7x:2x2x1
jax: 0.10.0
libtpu: 0.0.40
codegen_flags: <defaults>
</compile_context>

<pallas_src>
import itertools
from typing import NamedTuple

import numpy as np
import jax
import jax.numpy as jnp
from jax.experimental import pallas as pl
from jax.experimental.pallas import tpu as pltpu

_BN_EPS = 1e-3          # DPN uses eps=0.001 in all BatchNorm2d layers.
_LANES = 128            # lane-dense channel padding granularity
_VMEM_LIMIT = 32 * 1024 * 1024   # explicit & portable (v5e/v6e/v7x)


# ----------------------------------------------------------------------------
# Channel-layout bookkeeping: every padded activation is described by a layout
# = tuple of (real_channels, padded_width) segments; padded lanes are zero.
# ----------------------------------------------------------------------------
def _pad_lanes(c):
    return max(_LANES, ((c + _LANES - 1) // _LANES) * _LANES)


def _seg(real, width=None):
    return (real, _pad_lanes(real) if width is None else width)


def _layout_width(layout):
    return sum(w for _, w in layout)


def _layout_positions(layout):
    pos, off = [], 0
    for real, width in layout:
        pos.extend(range(off, off + real))
        off += width
    return pos


class PT(NamedTuple):            # padded tensor: NHWC array + channel layout
    arr: jax.Array
    layout: tuple


def _bn_affine(bn):
    gamma, beta, mean, var = bn
    scale = gamma * jax.lax.rsqrt(var + _BN_EPS)
    return scale, beta - mean * scale


def _pack_channel_vec(v, layout):
    """Scatter a per-real-channel vector into the padded lane layout (pad=0)."""
    pos = np.asarray(_layout_positions(layout), np.int32)
    out = jnp.zeros((_layout_width(layout),), jnp.float32)
    return out.at[pos].set(v.astype(jnp.float32))


def _pack_weight(w, groups, in_layout, out_layout):
    """Pack an OIHW (possibly grouped) conv weight into a single padded,
    block-diagonal matmul matrix of shape (kh*kw*Kp, Np) matching the
    tap-major, channel-padded im2col layout."""
    Cout, Cin_g, kh, kw = w.shape
    Cin = Cin_g * groups
    Cout_g = Cout // groups
    in_pos = np.asarray(_layout_positions(in_layout), np.int32)
    out_pos = np.asarray(_layout_positions(out_layout), np.int32)
    assert in_pos.size == Cin and out_pos.size == Cout
    Kp = _layout_width(in_layout)
    Np = _layout_width(out_layout)
    wt = jnp.transpose(w, (2, 3, 1, 0)).astype(jnp.float32)  # (kh, kw, Cin_g, Cout)
    mat = jnp.zeros((kh * kw * Kp, Np), jnp.float32)
    for t in range(kh * kw):
        ih, iw = divmod(t, kw)
        for g in range(groups):
            rows = t * Kp + in_pos[g * Cin_g:(g + 1) * Cin_g]
            cols = out_pos[g * Cout_g:(g + 1) * Cout_g]
            blk = wt[ih, iw, :, g * Cout_g:(g + 1) * Cout_g]
            mat = mat.at[rows[:, None], cols[None, :]].set(blk)
    return mat


# ----------------------------------------------------------------------------
# Pallas kernels
# ----------------------------------------------------------------------------
def _make_conv_kernel(has_pre, has_post, post_relu, res_width, out_width):
    """Fused [BN+ReLU prologue] -> matmul -> [BN(+ReLU) epilogue | residual add]."""
    def kernel(*refs):
        i = 0
        a_ref = refs[i]; i += 1
        b_ref = refs[i]; i += 1
        if has_pre:
            ps_ref, pb_ref = refs[i], refs[i + 1]; i += 2
        if has_post:
            es_ref, eb_ref = refs[i], refs[i + 1]; i += 2
        if res_width:
            r_ref = refs[i]; i += 1
        o_ref = refs[i]

        a = a_ref[...]
        if has_pre:                       # fused BatchNorm(eval)+ReLU prologue
            a = jnp.maximum(a * ps_ref[...] + pb_ref[...], 0.0)
        acc = jnp.dot(a, b_ref[...], preferred_element_type=jnp.float32)
        if has_post:                      # fused BatchNorm(eval) epilogue
            acc = acc * es_ref[...] + eb_ref[...]
        if post_relu:
            acc = jnp.maximum(acc, 0.0)
        if res_width:                     # fused dual-path residual add
            o_ref[:, :res_width] = acc[:, :res_width] + r_ref[...]
            if res_width < out_width:
                o_ref[:, res_width:] = acc[:, res_width:]
        else:
            o_ref[...] = acc
    return kernel


def _affine_relu_kernel(x_ref, s_ref, b_ref, o_ref):   # final CatBnAct only
    o_ref[...] = jnp.maximum(x_ref[...] * s_ref[...] + b_ref[...], 0.0)


def _pool3_s2_kernel(x_ref, o_ref):
    """3-tap / stride-2 max along dim 1 of a (1, Q+1, 2, S, C) block
    (leading-dim slicing only -> cheap, layout-safe)."""
    x = x_ref[...]
    q = o_ref.shape[1]
    a = x[:, :q, 0]
    b = x[:, :q, 1]
    c = x[:, 1:, 0]
    o_ref[...] = jnp.maximum(jnp.maximum(a, b), c)


def _choose_row_tile(m):
    for t in (256, 128, 64, 32, 16, 8):
        if m % t == 0:
            return t
    return m


_COMPILER_PARAMS_1D = pltpu.CompilerParams(
    dimension_semantics=("parallel",),        # lets v7x shard M over its 2 TCs
    vmem_limit_bytes=_VMEM_LIMIT)


# ----------------------------------------------------------------------------
# Fused conv (im2col only for k>1; 1x1 is a pure reshape) as one pallas_call
# ----------------------------------------------------------------------------
def _im2col(x, kh, kw, stride, padding, dilation):
    N, H, W, C = x.shape
    sh, sw = stride
    ph, pw = padding
    dh, dw = dilation
    xp = jnp.pad(x, ((0, 0), (ph, ph), (pw, pw), (0, 0)))
    Hp, Wp = H + 2 * ph, W + 2 * pw
    Ho = (Hp - (dh * (kh - 1) + 1)) // sh + 1
    Wo = (Wp - (dw * (kw - 1) + 1)) // sw + 1
    cols = []
    for ih in range(kh):
        for iw in range(kw):
            h0, w0 = ih * dh, iw * dw
            sl = jax.lax.slice(
                xp, (0, h0, w0, 0),
                (N, h0 + sh * (Ho - 1) + 1, w0 + sw * (Wo - 1) + 1, C),
                (1, sh, sw, 1))
            cols.append(sl)
    # TODO(synk): replace the materialized patch matrix with a tap grid axis +
    # in-kernel accumulator for large feature maps (fine at these sizes).
    return jnp.concatenate(cols, axis=-1), Ho, Wo


def fused_conv(x, w, *, in_layout, out_layout, groups=1, stride=(1, 1),
               padding=(0, 0), dilation=(1, 1), pre_bn=None, post_bn=None,
               post_relu=False, residual=None):
    """Conv (as MXU matmul) with optionally fused BN+ReLU prologue/epilogue and
    fused residual add into the first output segment.  x is channel-padded
    NHWC with layout `in_layout`; returns channel-padded NHWC (`out_layout`)."""
    N, H, W, Cp = x.shape
    _, _, kh, kw = w.shape
    assert Cp == _layout_width(in_layout)
    Np = _layout_width(out_layout)

    if kh == 1 and kw == 1:
        assert padding == (0, 0) and dilation == (1, 1)
        if stride != (1, 1):
            x = x[:, ::stride[0], ::stride[1], :]
        N, Ho, Wo, _ = x.shape
        a = x.reshape(N * Ho * Wo, Cp)          # no im2col for 1x1 convs
        K = Cp
    else:
        # BN before a spatially padded conv must already be applied (it is
        # fused as the epilogue of the preceding conv), so the zero spatial
        # padding here matches PyTorch semantics exactly.
        assert pre_bn is None
        patches, Ho, Wo = _im2col(x, kh, kw, stride, padding, dilation)
        K = kh * kw * Cp
        a = patches.reshape(N * Ho * Wo, K)

    bmat = _pack_weight(w, groups, in_layout, out_layout)   # (K, Np), padded
    inputs = [a, bmat]
    if pre_bn is not None:
        s, b = _bn_affine(pre_bn)
        inputs += [_pack_channel_vec(s, in_layout).reshape(1, K),
                   _pack_channel_vec(b, in_layout).reshape(1, K)]
    if post_bn is not None:
        s, b = _bn_affine(post_bn)
        inputs += [_pack_channel_vec(s, out_layout).reshape(1, Np),
                   _pack_channel_vec(b, out_layout).reshape(1, Np)]
    rw = 0
    if residual is not None:
        rw = residual.shape[-1]
        assert rw == out_layout[0][1]
        inputs.append(residual.reshape(-1, rw))

    M = a.shape[0]
    tm = _choose_row_tile(M)
    in_specs = [pl.BlockSpec((tm, K), lambda i: (i, 0)),
                pl.BlockSpec((K, Np), lambda i: (0, 0))]      # B stays resident
    if pre_bn is not None:
        in_specs += [pl.BlockSpec((1, K), lambda i: (0, 0))] * 2
    if post_bn is not None:
        in_specs += [pl.BlockSpec((1, Np), lambda i: (0, 0))] * 2
    if residual is not None:
        in_specs.append(pl.BlockSpec((tm, rw), lambda i: (i, 0)))

    kernel = _make_conv_kernel(pre_bn is not None, post_bn is not None,
                               post_relu, rw, Np)
    out = pl.pallas_call(
        kernel,
        out_shape=jax.ShapeDtypeStruct((M, Np), jnp.float32),
        grid=(M // tm,),
        in_specs=in_specs,
        out_specs=pl.BlockSpec((tm, Np), lambda i: (i, 0)),
        compiler_params=_COMPILER_PARAMS_1D,
    )(*inputs)
    return out.reshape(N, Ho, Wo, Np)


# ----------------------------------------------------------------------------
# Max-pool 3x3 / stride 2 / pad 1 (PyTorch MaxPool2d semantics)
# ----------------------------------------------------------------------------
def _pool_dim1(xp):
    """3-tap / stride-2 max reduction along dim 1 of (N, Dp, S, C), Dp=2Q+2."""
    N, Dp, S, C = xp.shape
    Q = (Dp - 3) // 2 + 1
    assert Dp == 2 * (Q + 1)
    xr = xp.reshape(N, Q + 1, 2, S, C)          # free row-major parity split
    return pl.pallas_call(
        _pool3_s2_kernel,
        out_shape=jax.ShapeDtypeStruct((N, Q, S, C), jnp.float32),
        grid=(N,),
        in_specs=[pl.BlockSpec((1, Q + 1, 2, S, C),
                               lambda n: (n, 0, 0, 0, 0))],
        out_specs=pl.BlockSpec((1, Q, S, C), lambda n: (n, 0, 0, 0)),
        compiler_params=_COMPILER_PARAMS_1D,
    )(xr)


def maxpool_3x3_s2_p1(x):
    N, H, W, C = x.shape
    neg = -3.0e38                                # acts like -inf padding
    xp = jnp.pad(x, ((0, 0), (1, 1), (1, 1), (0, 0)), constant_values=neg)
    h = _pool_dim1(xp)                           # reduce H: (N, H//2, W+2, C)
    h = jnp.transpose(h, (0, 2, 1, 3))           # (N, W+2, H//2, C)
    h = _pool_dim1(h)                            # reduce W: (N, W//2, H//2, C)
    return jnp.transpose(h, (0, 2, 1, 3))        # (N, H//2, W//2, C)


# ----------------------------------------------------------------------------
# Final CatBnAct (standalone affine+ReLU, tiled over rows)
# ----------------------------------------------------------------------------
def padded_bn_relu(x, bn, layout):
    N, H, W, Cp = x.shape
    s, b = _bn_affine(bn)
    sv = _pack_channel_vec(s, layout).reshape(1, Cp)
    bv = _pack_channel_vec(b, layout).reshape(1, Cp)
    M = N * H * W
    tm = _choose_row_tile(M)
    y = pl.pallas_call(
        _affine_relu_kernel,
        out_shape=jax.ShapeDtypeStruct((M, Cp), jnp.float32),
        grid=(M // tm,),
        in_specs=[pl.BlockSpec((tm, Cp), lambda i: (i, 0)),
                  pl.BlockSpec((1, Cp), lambda i: (0, 0)),
                  pl.BlockSpec((1, Cp), lambda i: (0, 0))],
        out_specs=pl.BlockSpec((tm, Cp), lambda i: (i, 0)),
        compiler_params=_COMPILER_PARAMS_1D,
    )(x.reshape(M, Cp), sv, bv)
    return y.reshape(N, H, W, Cp)


def _compact_channels(x, layout):
    parts, off = [], 0
    for real, width in layout:
        parts.append(x[..., off:off + real])
        off += width
    return jnp.concatenate(parts, axis=-1)


# ----------------------------------------------------------------------------
# Deterministic synthetic parameter init
# ----------------------------------------------------------------------------
_PARAM_KEY = jax.random.PRNGKey(0)
_param_counter = itertools.count()


def _next_key():
    return jax.random.fold_in(_PARAM_KEY, next(_param_counter))


def init_conv_weight(cout, cin_g, kh, kw):
    fan_in = cin_g * kh * kw
    return jax.random.normal(_next_key(), (cout, cin_g, kh, kw),
                             jnp.float32) * (fan_in ** -0.5)


def init_bn(c):
    gamma = 1.0 + 0.1 * jax.random.normal(_next_key(), (c,), jnp.float32)
    beta = 0.1 * jax.random.normal(_next_key(), (c,), jnp.float32)
    mean = 0.1 * jax.random.normal(_next_key(), (c,), jnp.float32)
    var = 1.0 + 0.5 * jax.random.uniform(_next_key(), (c,), jnp.float32)
    return (gamma, beta, mean, var)


def make_bn_act_conv(in_chs, out_chs, k, stride,
                     padding=(0, 0), dilation=(1, 1), groups=1):
    return dict(bn=init_bn(in_chs),
                w=init_conv_weight(out_chs, in_chs // groups, k, k),
                stride=stride, padding=padding, dilation=dilation, groups=groups)


def make_dual_path_block(in_chs, r, bw, inc, groups, block_type, dilate):
    key_stride = 2 if block_type == 'down' else 1
    has_proj = block_type in ('proj', 'down')
    # DPNBackbone modification for conv4_* / conv5_*: conv strides -> (1,1);
    # 3x3 convs get dilation/padding (2,2) [block 4] or (4,4) [block 5].
    s = (1, 1) if dilate else (key_stride, key_stride)
    d = (dilate, dilate) if dilate else (1, 1)
    p = dict(bw=bw, inc=inc, r=r, has_proj=has_proj)
    if has_proj:
        p['c1x1_w'] = make_bn_act_conv(in_chs, bw + 2 * inc, 1, s)
    p['c1x1_a'] = make_bn_act_conv(in_chs, r, 1, (1, 1))
    p['c3x3_b'] = make_bn_act_conv(r, r, 3, s, d, d, groups)
    p['c1x1_c'] = make_bn_act_conv(r, bw + inc, 1, (1, 1))
    return p


def build_params():
    # TODO(synk): real dpn92 is num_init_features=64, k_r=96, groups=32,
    # k_sec=(3,4,20,3), inc_sec=(16,32,24,128) with pretrained weights; this is
    # a structurally identical scaled-down synthetic config (no checkpoint).
    groups = 2
    num_init_features = 8
    stage_cfg = [
        (16, 8, 4, 1, 'proj', None),   # conv2_*  (stride 1)
        (32, 16, 8, 1, 'down', None),  # conv3_*  (stride 2)
        (64, 32, 8, 2, 'down', 2),     # conv4_*  (stride removed, dilation 2)
        (128, 64, 16, 1, 'down', 4),   # conv5_*  (stride removed, dilation 4)
    ]
    params = dict(conv1=dict(w=init_conv_weight(num_init_features, 3, 7, 7),
                             bn=init_bn(num_init_features)))
    stages = []
    in_chs = num_init_features
    for bw, r, inc, n, first_type, dilate in stage_cfg:
        blocks = [make_dual_path_block(in_chs, r, bw, inc, groups,
                                       first_type, dilate)]
        in_chs = bw + 3 * inc
        for _ in range(1, n):
            blocks.append(make_dual_path_block(in_chs, r, bw, inc, groups,
                                               'normal', dilate))
            in_chs += inc
        stages.append(blocks)
    params['stages'] = stages
    params['conv5_bn_ac'] = init_bn(in_chs)
    return params, in_chs


# ----------------------------------------------------------------------------
# Backbone forward (Pallas path, channel-padded NHWC internally)
# ----------------------------------------------------------------------------
def apply_input_block(p, x_img):
    nif = p['w'].shape[0]
    out_layout = (_seg(nif),)
    # conv 7x7/s2/p3 with the block's own BN+ReLU fused as epilogue
    h = fused_conv(x_img, p['w'], in_layout=((3, 3),), out_layout=out_layout,
                   stride=(2, 2), padding=(3, 3),
                   post_bn=p['bn'], post_relu=True)
    return PT(maxpool_3x3_s2_p1(h), out_layout)


def apply_dual_path_block(p, state):
    if isinstance(state, PT):
        x_in = state
    else:
        r_pt, d_pt = state
        x_in = PT(jnp.concatenate([r_pt.arr, d_pt.arr], axis=-1),
                  r_pt.layout + d_pt.layout)
    bw, inc, rch = p['bw'], p['inc'], p['r']
    pbw = _pad_lanes(bw)

    if p['has_proj']:
        cw = p['c1x1_w']
        xs = fused_conv(x_in.arr, cw['w'], in_layout=x_in.layout,
                        out_layout=(_seg(bw), _seg(2 * inc)),
                        stride=cw['stride'], pre_bn=cw['bn'])   # BN_w fused as prologue
        x_s1 = PT(xs[..., :pbw], (_seg(bw),))
        x_s2 = PT(xs[..., pbw:], (_seg(2 * inc),))
    else:
        x_s1, x_s2 = state

    ca, cb, cc = p['c1x1_a'], p['c3x3_b'], p['c1x1_c']
    # c1x1_a: prologue BN_a+ReLU, epilogue = BN_b+ReLU of the following 3x3
    h = fused_conv(x_in.arr, ca['w'], in_layout=x_in.layout,
                   out_layout=(_seg(rch),), stride=ca['stride'],
                   pre_bn=ca['bn'], post_bn=cb['bn'], post_relu=True)
    # c3x3_b: grouped (block-diagonal weight), epilogue = BN_c+ReLU of c1x1_c
    h = fused_conv(h, cb['w'], in_layout=(_seg(rch),), out_layout=(_seg(rch),),
                   groups=cb['groups'], stride=cb['stride'],
                   padding=cb['padding'], dilation=cb['dilation'],
                   post_bn=cc['bn'], post_relu=True)
    # c1x1_c: residual add of x_s1 fused into the first output segment
    out = fused_conv(h, cc['w'], in_layout=(_seg(rch),),
                     out_layout=(_seg(bw), _seg(inc)), residual=x_s1.arr)

    resid = PT(out[..., :pbw], (_seg(bw),))
    out2 = PT(out[..., pbw:], (_seg(inc),))
    dense = PT(jnp.concatenate([x_s2.arr, out2.arr], axis=-1),
               x_s2.layout + out2.layout)
    return (resid, dense)


def dpn_backbone_forward(params, x_nchw):
    x = jnp.transpose(x_nchw.astype(jnp.float32), (0, 2, 3, 1))  # NCHW -> NHWC
    state = apply_input_block(params['conv1'], x)
    for blocks in params['stages']:
        for blk in blocks:
            state = apply_dual_path_block(blk, state)
    r_pt, d_pt = state
    cat = PT(jnp.concatenate([r_pt.arr, d_pt.arr], axis=-1),
             r_pt.layout + d_pt.layout)
    out = padded_bn_relu(cat.arr, params['conv5_bn_ac'], cat.layout)  # CatBnAct
    out = _compact_channels(out, cat.layout)     # drop padded lanes (only here)
    return jnp.transpose(out, (0, 3, 1, 2))      # NHWC -> NCHW


# ----------------------------------------------------------------------------
# Pure-JAX reference (unpadded, lax.conv) for numerical cross-checking
# ----------------------------------------------------------------------------
def _ref_bn_relu(x, bn):
    gamma, beta, mean, var = bn
    return jnp.maximum((x - mean) * jax.lax.rsqrt(var + _BN_EPS) * gamma + beta,
                       0.0)


def _ref_conv(x, w, stride, padding, dilation, groups):
    return jax.lax.conv_general_dilated(
        x, jnp.transpose(w, (2, 3, 1, 0)),
        window_strides=stride,
        padding=[(padding[0], padding[0]), (padding[1], padding[1])],
        rhs_dilation=dilation, feature_group_count=groups,
        dimension_numbers=('NHWC', 'HWIO', 'NHWC'),
        precision=jax.lax.Precision.HIGHEST)


def _ref_bn_act_conv(p, x):
    h = _ref_bn_relu(x, p['bn'])
    return _ref_conv(h, p['w'], p['stride'], p['padding'], p['dilation'],
                     p['groups'])


def _ref_block(p, x):
    x_in = jnp.concatenate(x, axis=-1) if isinstance(x, tuple) else x
    bw = p['bw']
    if p['has_proj']:
        x_s = _ref_bn_act_conv(p['c1x1_w'], x_in)
        x_s1, x_s2 = x_s[..., :bw], x_s[..., bw:]
    else:
        x_s1, x_s2 = x
    h = _ref_bn_act_conv(p['c1x1_a'], x_in)
    h = _ref_bn_act_conv(p['c3x3_b'], h)
    h = _ref_bn_act_conv(p['c1x1_c'], h)
    return (x_s1 + h[..., :bw], jnp.concatenate([x_s2, h[..., bw:]], axis=-1))


def reference_forward(params, x_nchw):
    x = jnp.transpose(x_nchw.astype(jnp.float32), (0, 2, 3, 1))
    c1 = params['conv1']
    h = _ref_conv(x, c1['w'], (2, 2), (3, 3), (1, 1), 1)
    h = _ref_bn_relu(h, c1['bn'])
    h = jax.lax.reduce_window(h, -jnp.inf, jax.lax.max,
                              (1, 3, 3, 1), (1, 2, 2, 1),
                              [(0, 0), (1, 1), (1, 1), (0, 0)])
    st = h
    for blocks in params['stages']:
        for blk in blocks:
            st = _ref_block(blk, st)
    out = jnp.concatenate(st, axis=-1)
    out = _ref_bn_relu(out, params['conv5_bn_ac'])
    return jnp.transpose(out, (0, 3, 1, 2))


# ----------------------------------------------------------------------------
if __name__ == "__main__":
    params, out_ch = build_params()
    x = jax.random.normal(jax.random.PRNGKey(0), (2, 3, 32, 32), jnp.float32)

    fwd = jax.jit(lambda inp: dpn_backbone_forward(params, inp))
    y = fwd(x)
    jax.block_until_ready(y)
    # input 32x32 -> stride-8 feature map (strides of blocks 4/5 removed): 4x4
    assert y.shape == (2, out_ch, 4, 4), y.shape
    assert bool(jnp.all(jnp.isfinite(y)))

    # Cross-check the fused / channel-padded Pallas path against a plain JAX
    # reference of the same network (loose tolerance for MXU f32 precision).
    y_ref = jax.jit(lambda inp: reference_forward(params, inp))(x)
    jax.block_until_ready(y_ref)
    scale = float(jnp.max(jnp.abs(y_ref)))
    err = float(jnp.max(jnp.abs(y - y_ref)))
    assert err <= 0.1 * scale + 1e-4, (err, scale)

    print("KERNEL_OK")
</pallas_src>

<mosaic_0001>
module attributes {stable_mosaic.version = 11 : i64} {
  func.func @kernel(%arg0: i32, %arg1: memref<256x147xf32, #tpu.memory_space<vmem>>, %arg2: memref<147x128xf32, #tpu.memory_space<vmem>>, %arg3: memref<1x128xf32, #tpu.memory_space<vmem>>, %arg4: memref<1x128xf32, #tpu.memory_space<vmem>>, %arg5: memref<256x128xf32, #tpu.memory_space<vmem>>) attributes {dimension_semantics = [#tpu.dimension_semantics<parallel>], iteration_bounds = array<i64: 2>, scalar_prefetch = 0 : i64, scratch_operands = 0 : i64, tpu.core_type = #tpu.core_type<tc>, window_params = [{transform_indices = @transform_0, window_bounds = array<i64: 256, 147>}, {pipeline_mode = #tpu.pipeline_mode<synchronous>, transform_indices = @transform_1, window_bounds = array<i64: 147, 128>}, {pipeline_mode = #tpu.pipeline_mode<synchronous>, transform_indices = @transform_2, window_bounds = array<i64: 1, 128>}, {pipeline_mode = #tpu.pipeline_mode<synchronous>, transform_indices = @transform_3, window_bounds = array<i64: 1, 128>}, {transform_indices = @transform_4, window_bounds = array<i64: 256, 128>}]} {
    %c0 = arith.constant 0 : index
    %c0_0 = arith.constant 0 : index
    %0 = vector.load %arg1[%c0, %c0_0] : memref<256x147xf32, #tpu.memory_space<vmem>>, vector<256x147xf32>
    %c0_1 = arith.constant 0 : index
    %c0_2 = arith.constant 0 : index
    %1 = vector.load %arg2[%c0_1, %c0_2] : memref<147x128xf32, #tpu.memory_space<vmem>>, vector<147x128xf32>
    %cst = arith.constant dense<0.000000e+00> : vector<256x128xf32>
    %2 = tpu.matmul %0, %1, %cst {dimension_numbers = #tpu.dot_dimension_numbers<[1], [0], [0], [1], [0, 0, 1, 1], [], []>} : vector<256x147xf32>, vector<147x128xf32>, vector<256x128xf32> -> vector<256x128xf32>
    %c0_3 = arith.constant 0 : index
    %c0_4 = arith.constant 0 : index
    %3 = vector.load %arg3[%c0_3, %c0_4] : memref<1x128xf32, #tpu.memory_space<vmem>>, vector<1x128xf32>
    %4 = vector.broadcast %3 : vector<1x128xf32> to vector<256x128xf32>
    %5 = arith.mulf %2, %4 : vector<256x128xf32>
    %c0_5 = arith.constant 0 : index
    %c0_6 = arith.constant 0 : index
    %6 = vector.load %arg4[%c0_5, %c0_6] : memref<1x128xf32, #tpu.memory_space<vmem>>, vector<1x128xf32>
    %7 = vector.broadcast %6 : vector<1x128xf32> to vector<256x128xf32>
    %8 = arith.addf %5, %7 : vector<256x128xf32>
    %cst_7 = arith.constant 0.000000e+00 : f32
    %9 = vector.broadcast %cst_7 : f32 to vector<256x128xf32>
    %10 = arith.maximumf %8, %9 : vector<256x128xf32>
    %c0_8 = arith.constant 0 : index
    %c0_9 = arith.constant 0 : index
    %11 = vector.load %arg5[%c0_8, %c0_9] : memref<256x128xf32, #tpu.memory_space<vmem>>, vector<256x128xf32>
    tpu.vector_store %arg5[%c0_8, %c0_9], %10 {strides = array<i32>} : memref<256x128xf32, #tpu.memory_space<vmem>>, vector<256x128xf32>,
    return
  }
  func.func @transform_0(%arg0: i32) -> (i32, i32) {
    %c0_i32 = arith.constant 0 : i32
    %c0_i32_0 = arith.constant 0 : i32
    return %arg0, %c0_i32 : i32, i32
  }
  func.func @transform_1(%arg0: i32) -> (i32, i32) {
    %c0_i32 = arith.constant 0 : i32
    %c0_i32_0 = arith.constant 0 : i32
    %c0_i32_1 = arith.constant 0 : i32
    return %c0_i32, %c0_i32_0 : i32, i32
  }
  func.func @transform_2(%arg0: i32) -> (i32, i32) {
    %c0_i32 = arith.constant 0 : i32
    %c0_i32_0 = arith.constant 0 : i32
    %c0_i32_1 = arith.constant 0 : i32
    return %c0_i32, %c0_i32_0 : i32, i32
  }
  func.func @transform_3(%arg0: i32) -> (i32, i32) {
    %c0_i32 = arith.constant 0 : i32
    %c0_i32_0 = arith.constant 0 : i32
    %c0_i32_1 = arith.constant 0 : i32
    return %c0_i32, %c0_i32_0 : i32, i32
  }
  func.func @transform_4(%arg0: i32) -> (i32, i32) {
    %c0_i32 = arith.constant 0 : i32
    %c0_i32_0 = arith.constant 0 : i32
    return %arg0, %c0_i32 : i32, i32
  }
}

module attributes {stable_mosaic.version = 11 : i64} {
  func.func @_pool3_s2_kernel(%arg0: i32, %arg1: memref<1x9x2x18x128xf32, #tpu.memory_space<vmem>>, %arg2: memref<1x8x18x128xf32, #tpu.memory_space<vmem>>) attributes {dimension_semantics = [#tpu.dimension_semantics<parallel>], iteration_bounds = array<i64: 2>, scalar_prefetch = 0 : i64, scratch_operands = 0 : i64, tpu.core_type = #tpu.core_type<tc>, window_params = [{transform_indices = @transform_0, window_bounds = array<i64: 1, 9, 2, 18, 128>}, {transform_indices = @transform_1, window_bounds = array<i64: 1, 8, 18, 128>}]} {
    %c0 = arith.constant 0 : index
    %c0_0 = arith.constant 0 : index
    %c0_1 = arith.constant 0 : index
    %c0_2 = arith.constant 0 : index
    %c0_3 = arith.constant 0 : index
    %0 = vector.load %arg1[%c0, %c0_0, %c0_1, %c0_2, %c0_3] : memref<1x9x2x18x128xf32, #tpu.memory_space<vmem>>, vector<1x9x2x18x128xf32>
    %1 = vector.extract_strided_slice %0 {offsets = [0, 0, 0, 0, 0], sizes = [1, 8, 1, 18, 128], strides = [1, 1, 1, 1, 1]} : vector<1x9x2x18x128xf32> to vector<1x8x1x18x128xf32>
    %2 = vector.shape_cast %1 : vector<1x8x1x18x128xf32> to vector<1x8x18x128xf32>
    %3 = vector.extract_strided_slice %0 {offsets = [0, 0, 1, 0, 0], sizes = [1, 8, 1, 18, 128], strides = [1, 1, 1, 1, 1]} : vector<1x9x2x18x128xf32> to vector<1x8x1x18x128xf32>
    %4 = vector.shape_cast %3 : vector<1x8x1x18x128xf32> to vector<1x8x18x128xf32>
    %5 = vector.extract_strided_slice %0 {offsets = [0, 1, 0, 0, 0], sizes = [1, 8, 1, 18, 128], strides = [1, 1, 1, 1, 1]} : vector<1x9x2x18x128xf32> to vector<1x8x1x18x128xf32>
    %6 = vector.shape_cast %5 : vector<1x8x1x18x128xf32> to vector<1x8x18x128xf32>
    %7 = arith.maximumf %2, %4 : vector<1x8x18x128xf32>
    %8 = arith.maximumf %7, %6 : vector<1x8x18x128xf32>
    %c0_4 = arith.constant 0 : index
    %c0_5 = arith.constant 0 : index
    %c0_6 = arith.constant 0 : index
    %c0_7 = arith.constant 0 : index
    %9 = vector.load %arg2[%c0_4, %c0_5, %c0_6, %c0_7] : memref<1x8x18x128xf32, #tpu.memory_space<vmem>>, vector<1x8x18x128xf32>
    tpu.vector_store %arg2[%c0_4, %c0_5, %c0_6, %c0_7], %8 {strides = array<i32>} : memref<1x8x18x128xf32, #tpu.memory_space<vmem>>, vector<1x8x18x128xf32>,
    return
  }
  func.func @transform_0(%arg0: i32) -> (i32, i32, i32, i32, i32) {
    %c0_i32 = arith.constant 0 : i32
    %c0_i32_0 = arith.constant 0 : i32
    %c0_i32_1 = arith.constant 0 : i32
    %c0_i32_2 = arith.constant 0 : i32
    %c0_i32_3 = arith.constant 0 : i32
    return %arg0, %c0_i32, %c0_i32_0, %c0_i32_1, %c0_i32_2 : i32, i32, i32, i32, i32
  }
  func.func @transform_1(%arg0: i32) -> (i32, i32, i32, i32) {
    %c0_i32 = arith.constant 0 : i32
    %c0_i32_0 = arith.constant 0 : i32
    %c0_i32_1 = arith.constant 0 : i32
    %c0_i32_2 = arith.constant 0 : i32
    return %arg0, %c0_i32, %c0_i32_0, %c0_i32_1 : i32, i32, i32, i32
  }
}

module attributes {stable_mosaic.version = 11 : i64} {
  func.func @_pool3_s2_kernel(%arg0: i32, %arg1: memref<1x9x2x8x128xf32, #tpu.memory_space<vmem>>, %arg2: memref<1x8x8x128xf32, #tpu.memory_space<vmem>>) attributes {dimension_semantics = [#tpu.dimension_semantics<parallel>], iteration_bounds = array<i64: 2>, scalar_prefetch = 0 : i64, scratch_operands = 0 : i64, tpu.core_type = #tpu.core_type<tc>, window_params = [{transform_indices = @transform_0, window_bounds = array<i64: 1, 9, 2, 8, 128>}, {transform_indices = @transform_1, window_bounds = array<i64: 1, 8, 8, 128>}]} {
    %c0 = arith.constant 0 : index
    %c0_0 = arith.constant 0 : index
    %c0_1 = arith.constant 0 : index
    %c0_2 = arith.constant 0 : index
    %c0_3 = arith.constant 0 : index
    %0 = vector.load %arg1[%c0, %c0_0, %c0_1, %c0_2, %c0_3] : memref<1x9x2x8x128xf32, #tpu.memory_space<vmem>>, vector<1x9x2x8x128xf32>
    %1 = vector.extract_strided_slice %0 {offsets = [0, 0, 0, 0, 0], sizes = [1, 8, 1, 8, 128], strides = [1, 1, 1, 1, 1]} : vector<1x9x2x8x128xf32> to vector<1x8x1x8x128xf32>
    %2 = vector.shape_cast %1 : vector<1x8x1x8x128xf32> to vector<1x8x8x128xf32>
    %3 = vector.extract_strided_slice %0 {offsets = [0, 0, 1, 0, 0], sizes = [1, 8, 1, 8, 128], strides = [1, 1, 1, 1, 1]} : vector<1x9x2x8x128xf32> to vector<1x8x1x8x128xf32>
    %4 = vector.shape_cast %3 : vector<1x8x1x8x128xf32> to vector<1x8x8x128xf32>
    %5 = vector.extract_strided_slice %0 {offsets = [0, 1, 0, 0, 0], sizes = [1, 8, 1, 8, 128], strides = [1, 1, 1, 1, 1]} : vector<1x9x2x8x128xf32> to vector<1x8x1x8x128xf32>
    %6 = vector.shape_cast %5 : vector<1x8x1x8x128xf32> to vector<1x8x8x128xf32>
    %7 = arith.maximumf %2, %4 : vector<1x8x8x128xf32>
    %8 = arith.maximumf %7, %6 : vector<1x8x8x128xf32>
    %c0_4 = arith.constant 0 : index
    %c0_5 = arith.constant 0 : index
    %c0_6 = arith.constant 0 : index
    %c0_7 = arith.constant 0 : index
    %9 = vector.load %arg2[%c0_4, %c0_5, %c0_6, %c0_7] : memref<1x8x8x128xf32, #tpu.memory_space<vmem>>, vector<1x8x8x128xf32>
    tpu.vector_store %arg2[%c0_4, %c0_5, %c0_6, %c0_7], %8 {strides = array<i32>} : memref<1x8x8x128xf32, #tpu.memory_space<vmem>>, vector<1x8x8x128xf32>,
    return
  }
  func.func @transform_0(%arg0: i32) -> (i32, i32, i32, i32, i32) {
    %c0_i32 = arith.constant 0 : i32
    %c0_i32_0 = arith.constant 0 : i32
    %c0_i32_1 = arith.constant 0 : i32
    %c0_i32_2 = arith.constant 0 : i32
    %c0_i32_3 = arith.constant 0 : i32
    return %arg0, %c0_i32, %c0_i32_0, %c0_i32_1, %c0_i32_2 : i32, i32, i32, i32, i32
  }
  func.func @transform_1(%arg0: i32) -> (i32, i32, i32, i32) {
    %c0_i32 = arith.constant 0 : i32
    %c0_i32_0 = arith.constant 0 : i32
    %c0_i32_1 = arith.constant 0 : i32
    %c0_i32_2 = arith.constant 0 : i32
    return %arg0, %c0_i32, %c0_i32_0, %c0_i32_1 : i32, i32, i32, i32
  }
}

module attributes {stable_mosaic.version = 11 : i64} {
  func.func @kernel(%arg0: i32, %arg1: memref<128x128xf32, #tpu.memory_space<vmem>>, %arg2: memref<128x128xf32, #tpu.memory_space<vmem>>, %arg3: memref<1x128xf32, #tpu.memory_space<vmem>>, %arg4: memref<1x128xf32, #tpu.memory_space<vmem>>, %arg5: memref<1x128xf32, #tpu.memory_space<vmem>>, %arg6: memref<1x128xf32, #tpu.memory_space<vmem>>, %arg7: memref<128x128xf32, #tpu.memory_space<vmem>>) attributes {dimension_semantics = [#tpu.dimension_semantics<parallel>], iteration_bounds = array<i64: 1>, scalar_prefetch = 0 : i64, scratch_operands = 0 : i64, tpu.core_type = #tpu.core_type<tc>, window_params = [{transform_indices = @transform_0, window_bounds = array<i64: 128, 128>}, {pipeline_mode = #tpu.pipeline_mode<synchronous>, transform_indices = @transform_1, window_bounds = array<i64: 128, 128>}, {pipeline_mode = #tpu.pipeline_mode<synchronous>, transform_indices = @transform_2, window_bounds = array<i64: 1, 128>}, {pipeline_mode = #tpu.pipeline_mode<synchronous>, transform_indices = @transform_3, window_bounds = array<i64: 1, 128>}, {pipeline_mode = #tpu.pipeline_mode<synchronous>, transform_indices = @transform_4, window_bounds = array<i64: 1, 128>}, {pipeline_mode = #tpu.pipeline_mode<synchronous>, transform_indices = @transform_5, window_bounds = array<i64: 1, 128>}, {transform_indices = @transform_6, window_bounds = array<i64: 128, 128>}]} {
    %c0 = arith.constant 0 : index
    %c0_0 = arith.constant 0 : index
    %0 = vector.load %arg1[%c0, %c0_0] : memref<128x128xf32, #tpu.memory_space<vmem>>, vector<128x128xf32>
    %c0_1 = arith.constant 0 : index
    %c0_2 = arith.constant 0 : index
    %1 = vector.load %arg3[%c0_1, %c0_2] : memref<1x128xf32, #tpu.memory_space<vmem>>, vector<1x128xf32>
    %2 = vector.broadcast %1 : vector<1x128xf32> to vector<128x128xf32>
    %3 = arith.mulf %0, %2 : vector<128x128xf32>
    %c0_3 = arith.constant 0 : index
    %c0_4 = arith.constant 0 : index
    %4 = vector.load %arg4[%c0_3, %c0_4] : memref<1x128xf32, #tpu.memory_space<vmem>>, vector<1x128xf32>
    %5 = vector.broadcast %4 : vector<1x128xf32> to vector<128x128xf32>
    %6 = arith.addf %3, %5 : vector<128x128xf32>
    %cst = arith.constant 0.000000e+00 : f32
    %7 = vector.broadcast %cst : f32 to vector<128x128xf32>
    %8 = arith.maximumf %6, %7 : vector<128x128xf32>
    %c0_5 = arith.constant 0 : index
    %c0_6 = arith.constant 0 : index
    %9 = vector.load %arg2[%c0_5, %c0_6] : memref<128x128xf32, #tpu.memory_space<vmem>>, vector<128x128xf32>
    %cst_7 = arith.constant dense<0.000000e+00> : vector<128x128xf32>
    %10 = tpu.matmul %8, %9, %cst_7 {dimension_numbers = #tpu.dot_dimension_numbers<[1], [0], [0], [1], [0, 0, 1, 1], [], []>} : vector<128x128xf32>, vector<128x128xf32>, vector<128x128xf32> -> vector<128x128xf32>
    %c0_8 = arith.constant 0 : index
    %c0_9 = arith.constant 0 : index
    %11 = vector.load %arg5[%c0_8, %c0_9] : memref<1x128xf32, #tpu.memory_space<vmem>>, vector<1x128xf32>
    %12 = vector.broadcast %11 : vector<1x128xf32> to vector<128x128xf32>
    %13 = arith.mulf %10, %12 : vector<128x128xf32>
    %c0_10 = arith.constant 0 : index
    %c0_11 = arith.constant 0 : index
    %14 = vector.load %arg6[%c0_10, %c0_11] : memref<1x128xf32, #tpu.memory_space<vmem>>, vector<1x128xf32>
    %15 = vector.broadcast %14 : vector<1x128xf32> to vector<128x128xf32>
    %16 = arith.addf %13, %15 : vector<128x128xf32>
    %cst_12 = arith.constant 0.000000e+00 : f32
    %17 = vector.broadcast %cst_12 : f32 to vector<128x128xf32>
    %18 = arith.maximumf %16, %17 : vector<128x128xf32>
    %c0_13 = arith.constant 0 : index
    %c0_14 = arith.constant 0 : index
    %19 = vector.load %arg7[%c0_13, %c0_14] : memref<128x128xf32, #tpu.memory_space<vmem>>, vector<128x128xf32>
    tpu.vector_store %arg7[%c0_13, %c0_14], %18 {strides = array<i32>} : memref<128x128xf32, #tpu.memory_space<vmem>>, vector<128x128xf32>,
    return
  }
  func.func @transform_0(%arg0: i32) -> (i32, i32) {
    %c0_i32 = arith.constant 0 : i32
    %c0_i32_0 = arith.constant 0 : i32
    return %arg0, %c0_i32 : i32, i32
  }
  func.func @transform_1(%arg0: i32) -> (i32, i32) {
    %c0_i32 = arith.constant 0 : i32
    %c0_i32_0 = arith.constant 0 : i32
    %c0_i32_1 = arith.constant 0 : i32
    return %c0_i32, %c0_i32_0 : i32, i32
  }
  func.func @transform_2(%arg0: i32) -> (i32, i32) {
    %c0_i32 = arith.constant 0 : i32
    %c0_i32_0 = arith.constant 0 : i32
    %c0_i32_1 = arith.constant 0 : i32
    return %c0_i32, %c0_i32_0 : i32, i32
  }
  func.func @transform_3(%arg0: i32) -> (i32, i32) {
    %c0_i32 = arith.constant 0 : i32
    %c0_i32_0 = arith.constant 0 : i32
    %c0_i32_1 = arith.constant 0 : i32
    return %c0_i32, %c0_i32_0 : i32, i32
  }
  func.func @transform_4(%arg0: i32) -> (i32, i32) {
    %c0_i32 = arith.constant 0 : i32
    %c0_i32_0 = arith.constant 0 : i32
    %c0_i32_1 = arith.constant 0 : i32
    return %c0_i32, %c0_i32_0 : i32, i32
  }
  func.func @transform_5(%arg0: i32) -> (i32, i32) {
    %c0_i32 = arith.constant 0 : i32
    %c0_i32_0 = arith.constant 0 : i32
    %c0_i32_1 = arith.constant 0 : i32
    return %c0_i32, %c0_i32_0 : i32, i32
  }
  func.func @transform_6(%arg0: i32) -> (i32, i32) {
    %c0_i32 = arith.constant 0 : i32
    %c0_i32_0 = arith.constant 0 : i32
    return %arg0, %c0_i32 : i32, i32
  }
}

module attributes {stable_mosaic.version = 11 : i64} {
  func.func @kernel(%arg0: i32, %arg1: memref<128x1152xf32, #tpu.memory_space<vmem>>, %arg2: memref<1152x128xf32, #tpu.memory_space<vmem>>, %arg3: memref<1x128xf32, #tpu.memory_space<vmem>>, %arg4: memref<1x128xf32, #tpu.memory_space<vmem>>, %arg5: memref<128x128xf32, #tpu.memory_space<vmem>>) attributes {dimension_semantics = [#tpu.dimension_semantics<parallel>], iteration_bounds = array<i64: 1>, scalar_prefetch = 0 : i64, scratch_operands = 0 : i64, tpu.core_type = #tpu.core_type<tc>, window_params = [{transform_indices = @transform_0, window_bounds = array<i64: 128, 1152>}, {pipeline_mode = #tpu.pipeline_mode<synchronous>, transform_indices = @transform_1, window_bounds = array<i64: 1152, 128>}, {pipeline_mode = #tpu.pipeline_mode<synchronous>, transform_indices = @transform_2, window_bounds = array<i64: 1, 128>}, {pipeline_mode = #tpu.pipeline_mode<synchronous>, transform_indices = @transform_3, window_bounds = array<i64: 1, 128>}, {transform_indices = @transform_4, window_bounds = array<i64: 128, 128>}]} {
    %c0 = arith.constant 0 : index
    %c0_0 = arith.constant 0 : index
    %0 = vector.load %arg1[%c0, %c0_0] : memref<128x1152xf32, #tpu.memory_space<vmem>>, vector<128x1152xf32>
    %c0_1 = arith.constant 0 : index
    %c0_2 = arith.constant 0 : index
    %1 = vector.load %arg2[%c0_1, %c0_2] : memref<1152x128xf32, #tpu.memory_space<vmem>>, vector<1152x128xf32>
    %cst = arith.constant dense<0.000000e+00> : vector<128x128xf32>
    %2 = tpu.matmul %0, %1, %cst {dimension_numbers = #tpu.dot_dimension_numbers<[1], [0], [0], [1], [0, 0, 1, 1], [], []>} : vector<128x1152xf32>, vector<1152x128xf32>, vector<128x128xf32> -> vector<128x128xf32>
    %c0_3 = arith.constant 0 : index
    %c0_4 = arith.constant 0 : index
    %3 = vector.load %arg3[%c0_3, %c0_4] : memref<1x128xf32, #tpu.memory_space<vmem>>, vector<1x128xf32>
    %4 = vector.broadcast %3 : vector<1x128xf32> to vector<128x128xf32>
    %5 = arith.mulf %2, %4 : vector<128x128xf32>
    %c0_5 = arith.constant 0 : index
    %c0_6 = arith.constant 0 : index
    %6 = vector.load %arg4[%c0_5, %c0_6] : memref<1x128xf32, #tpu.memory_space<vmem>>, vector<1x128xf32>
    %7 = vector.broadcast %6 : vector<1x128xf32> to vector<128x128xf32>
    %8 = arith.addf %5, %7 : vector<128x128xf32>
    %cst_7 = arith.constant 0.000000e+00 : f32
    %9 = vector.broadcast %cst_7 : f32 to vector<128x128xf32>
    %10 = arith.maximumf %8, %9 : vector<128x128xf32>
    %c0_8 = arith.constant 0 : index
    %c0_9 = arith.constant 0 : index
    %11 = vector.load %arg5[%c0_8, %c0_9] : memref<128x128xf32, #tpu.memory_space<vmem>>, vector<128x128xf32>
    tpu.vector_store %arg5[%c0_8, %c0_9], %10 {strides = array<i32>} : memref<128x128xf32, #tpu.memory_space<vmem>>, vector<128x128xf32>,
    return
  }
  func.func @transform_0(%arg0: i32) -> (i32, i32) {
    %c0_i32 = arith.constant 0 : i32
    %c0_i32_0 = arith.constant 0 : i32
    return %arg0, %c0_i32 : i32, i32
  }
  func.func @transform_1(%arg0: i32) -> (i32, i32) {
    %c0_i32 = arith.constant 0 : i32
    %c0_i32_0 = arith.constant 0 : i32
    %c0_i32_1 = arith.constant 0 : i32
    return %c0_i32, %c0_i32_0 : i32, i32
  }
  func.func @transform_2(%arg0: i32) -> (i32, i32) {
    %c0_i32 = arith.constant 0 : i32
    %c0_i32_0 = arith.constant 0 : i32
    %c0_i32_1 = arith.constant 0 : i32
    return %c0_i32, %c0_i32_0 : i32, i32
  }
  func.func @transform_3(%arg0: i32) -> (i32, i32) {
    %c0_i32 = arith.constant 0 : i32
    %c0_i32_0 = arith.constant 0 : i32
    %c0_i32_1 = arith.constant 0 : i32
    return %c0_i32, %c0_i32_0 : i32, i32
  }
  func.func @transform_4(%arg0: i32) -> (i32, i32) {
    %c0_i32 = arith.constant 0 : i32
    %c0_i32_0 = arith.constant 0 : i32
    return %arg0, %c0_i32 : i32, i32
  }
}

module attributes {stable_mosaic.version = 11 : i64} {
  func.func @kernel(%arg0: i32, %arg1: memref<128x128xf32, #tpu.memory_space<vmem>>, %arg2: memref<128x256xf32, #tpu.memory_space<vmem>>, %arg3: memref<1x128xf32, #tpu.memory_space<vmem>>, %arg4: memref<1x128xf32, #tpu.memory_space<vmem>>, %arg5: memref<128x256xf32, #tpu.memory_space<vmem>>) attributes {dimension_semantics = [#tpu.dimension_semantics<parallel>], iteration_bounds = array<i64: 1>, scalar_prefetch = 0 : i64, scratch_operands = 0 : i64, tpu.core_type = #tpu.core_type<tc>, window_params = [{transform_indices = @transform_0, window_bounds = array<i64: 128, 128>}, {pipeline_mode = #tpu.pipeline_mode<synchronous>, transform_indices = @transform_1, window_bounds = array<i64: 128, 256>}, {pipeline_mode = #tpu.pipeline_mode<synchronous>, transform_indices = @transform_2, window_bounds = array<i64: 1, 128>}, {pipeline_mode = #tpu.pipeline_mode<synchronous>, transform_indices = @transform_3, window_bounds = array<i64: 1, 128>}, {transform_indices = @transform_4, window_bounds = array<i64: 128, 256>}]} {
    %c0 = arith.constant 0 : index
    %c0_0 = arith.constant 0 : index
    %0 = vector.load %arg1[%c0, %c0_0] : memref<128x128xf32, #tpu.memory_space<vmem>>, vector<128x128xf32>
    %c0_1 = arith.constant 0 : index
    %c0_2 = arith.constant 0 : index
    %1 = vector.load %arg3[%c0_1, %c0_2] : memref<1x128xf32, #tpu.memory_space<vmem>>, vector<1x128xf32>
    %2 = vector.broadcast %1 : vector<1x128xf32> to vector<128x128xf32>
    %3 = arith.mulf %0, %2 : vector<128x128xf32>
    %c0_3 = arith.constant 0 : index
    %c0_4 = arith.constant 0 : index
    %4 = vector.load %arg4[%c0_3, %c0_4] : memref<1x128xf32, #tpu.memory_space<vmem>>, vector<1x128xf32>
    %5 = vector.broadcast %4 : vector<1x128xf32> to vector<128x128xf32>
    %6 = arith.addf %3, %5 : vector<128x128xf32>
    %cst = arith.constant 0.000000e+00 : f32
    %7 = vector.broadcast %cst : f32 to vector<128x128xf32>
    %8 = arith.maximumf %6, %7 : vector<128x128xf32>
    %c0_5 = arith.constant 0 : index
    %c0_6 = arith.constant 0 : index
    %9 = vector.load %arg2[%c0_5, %c0_6] : memref<128x256xf32, #tpu.memory_space<vmem>>, vector<128x256xf32>
    %cst_7 = arith.constant dense<0.000000e+00> : vector<128x256xf32>
    %10 = tpu.matmul %8, %9, %cst_7 {dimension_numbers = #tpu.dot_dimension_numbers<[1], [0], [0], [1], [0, 0, 1, 1], [], []>} : vector<128x128xf32>, vector<128x256xf32>, vector<128x256xf32> -> vector<128x256xf32>
    %c0_8 = arith.constant 0 : index
    %c0_9 = arith.constant 0 : index
    %11 = vector.load %arg5[%c0_8, %c0_9] : memref<128x256xf32, #tpu.memory_space<vmem>>, vector<128x256xf32>
    tpu.vector_store %arg5[%c0_8, %c0_9], %10 {strides = array<i32>} : memref<128x256xf32, #tpu.memory_space<vmem>>, vector<128x256xf32>,
    return
  }
  func.func @transform_0(%arg0: i32) -> (i32, i32) {
    %c0_i32 = arith.constant 0 : i32
    %c0_i32_0 = arith.constant 0 : i32
    return %arg0, %c0_i32 : i32, i32
  }
  func.func @transform_1(%arg0: i32) -> (i32, i32) {
    %c0_i32 = arith.constant 0 : i32
    %c0_i32_0 = arith.constant 0 : i32
    %c0_i32_1 = arith.constant 0 : i32
    return %c0_i32, %c0_i32_0 : i32, i32
  }
  func.func @transform_2(%arg0: i32) -> (i32, i32) {
    %c0_i32 = arith.constant 0 : i32
    %c0_i32_0 = arith.constant 0 : i32
    %c0_i32_1 = arith.constant 0 : i32
    return %c0_i32, %c0_i32_0 : i32, i32
  }
  func.func @transform_3(%arg0: i32) -> (i32, i32) {
    %c0_i32 = arith.constant 0 : i32
    %c0_i32_0 = arith.constant 0 : i32
    %c0_i32_1 = arith.constant 0 : i32
    return %c0_i32, %c0_i32_0 : i32, i32
  }
  func.func @transform_4(%arg0: i32) -> (i32, i32) {
    %c0_i32 = arith.constant 0 : i32
    %c0_i32_0 = arith.constant 0 : i32
    return %arg0, %c0_i32 : i32, i32
  }
}

module attributes {stable_mosaic.version = 11 : i64} {
  func.func @kernel(%arg0: i32, %arg1: memref<128x128xf32, #tpu.memory_space<vmem>>, %arg2: memref<128x256xf32, #tpu.memory_space<vmem>>, %arg3: memref<128x128xf32, #tpu.memory_space<vmem>>, %arg4: memref<128x256xf32, #tpu.memory_space<vmem>>) attributes {dimension_semantics = [#tpu.dimension_semantics<parallel>], iteration_bounds = array<i64: 1>, scalar_prefetch = 0 : i64, scratch_operands = 0 : i64, tpu.core_type = #tpu.core_type<tc>, window_params = [{transform_indices = @transform_0, window_bounds = array<i64: 128, 128>}, {pipeline_mode = #tpu.pipeline_mode<synchronous>, transform_indices = @transform_1, window_bounds = array<i64: 128, 256>}, {transform_indices = @transform_2, window_bounds = array<i64: 128, 128>}, {transform_indices = @transform_3, window_bounds = array<i64: 128, 256>}]} {
    %c0 = arith.constant 0 : index
    %c0_0 = arith.constant 0 : index
    %0 = vector.load %arg1[%c0, %c0_0] : memref<128x128xf32, #tpu.memory_space<vmem>>, vector<128x128xf32>
    %c0_1 = arith.constant 0 : index
    %c0_2 = arith.constant 0 : index
    %1 = vector.load %arg2[%c0_1, %c0_2] : memref<128x256xf32, #tpu.memory_space<vmem>>, vector<128x256xf32>
    %cst = arith.constant dense<0.000000e+00> : vector<128x256xf32>
    %2 = tpu.matmul %0, %1, %cst {dimension_numbers = #tpu.dot_dimension_numbers<[1], [0], [0], [1], [0, 0, 1, 1], [], []>} : vector<128x128xf32>, vector<128x256xf32>, vector<128x256xf32> -> vector<128x256xf32>
    %3 = vector.extract_strided_slice %2 {offsets = [0, 0], sizes = [128, 128], strides = [1, 1]} : vector<128x256xf32> to vector<128x128xf32>
    %c0_3 = arith.constant 0 : index
    %c0_4 = arith.constant 0 : index
    %4 = vector.load %arg3[%c0_3, %c0_4] : memref<128x128xf32, #tpu.memory_space<vmem>>, vector<128x128xf32>
    %5 = arith.addf %3, %4 : vector<128x128xf32>
    %c0_5 = arith.constant 0 : index
    %c0_6 = arith.constant 0 : index
    %6 = vector.load %arg4[%c0_5, %c0_6] : memref<128x256xf32, #tpu.memory_space<vmem>>, vector<128x128xf32>
    tpu.vector_store %arg4[%c0_5, %c0_6], %5 {strides = array<i32>} : memref<128x256xf32, #tpu.memory_space<vmem>>, vector<128x128xf32>,
    %7 = vector.extract_strided_slice %2 {offsets = [0, 128], sizes = [128, 128], strides = [1, 1]} : vector<128x256xf32> to vector<128x128xf32>
    %c0_7 = arith.constant 0 : index
    %c128 = arith.constant 128 : index
    %8 = vector.load %arg4[%c0_7, %c128] : memref<128x256xf32, #tpu.memory_space<vmem>>, vector<128x128xf32>
    tpu.vector_store %arg4[%c0_7, %c128], %7 {strides = array<i32>} : memref<128x256xf32, #tpu.memory_space<vmem>>, vector<128x128xf32>,
    return
  }
  func.func @transform_0(%arg0: i32) -> (i32, i32) {
    %c0_i32 = arith.constant 0 : i32
    %c0_i32_0 = arith.constant 0 : i32
    return %arg0, %c0_i32 : i32, i32
  }
  func.func @transform_1(%arg0: i32) -> (i32, i32) {
    %c0_i32 = arith.constant 0 : i32
    %c0_i32_0 = arith.constant 0 : i32
    %c0_i32_1 = arith.constant 0 : i32
    return %c0_i32, %c0_i32_0 : i32, i32
  }
  func.func @transform_2(%arg0: i32) -> (i32, i32) {
    %c0_i32 = arith.constant 0 : i32
    %c0_i32_0 = arith.constant 0 : i32
    return %arg0, %c0_i32 : i32, i32
  }
  func.func @transform_3(%arg0: i32) -> (i32, i32) {
    %c0_i32 = arith.constant 0 : i32
    %c0_i32_0 = arith.constant 0 : i32
    return %arg0, %c0_i32 : i32, i32
  }
}

module attributes {stable_mosaic.version = 11 : i64} {
  func.func @kernel(%arg0: i32, %arg1: memref<128x384xf32, #tpu.memory_space<vmem>>, %arg2: memref<384x128xf32, #tpu.memory_space<vmem>>, %arg3: memref<1x384xf32, #tpu.memory_space<vmem>>, %arg4: memref<1x384xf32, #tpu.memory_space<vmem>>, %arg5: memref<1x128xf32, #tpu.memory_space<vmem>>, %arg6: memref<1x128xf32, #tpu.memory_space<vmem>>, %arg7: memref<128x128xf32, #tpu.memory_space<vmem>>) attributes {dimension_semantics = [#tpu.dimension_semantics<parallel>], iteration_bounds = array<i64: 1>, scalar_prefetch = 0 : i64, scratch_operands = 0 : i64, tpu.core_type = #tpu.core_type<tc>, window_params = [{transform_indices = @transform_0, window_bounds = array<i64: 128, 384>}, {pipeline_mode = #tpu.pipeline_mode<synchronous>, transform_indices = @transform_1, window_bounds = array<i64: 384, 128>}, {pipeline_mode = #tpu.pipeline_mode<synchronous>, transform_indices = @transform_2, window_bounds = array<i64: 1, 384>}, {pipeline_mode = #tpu.pipeline_mode<synchronous>, transform_indices = @transform_3, window_bounds = array<i64: 1, 384>}, {pipeline_mode = #tpu.pipeline_mode<synchronous>, transform_indices = @transform_4, window_bounds = array<i64: 1, 128>}, {pipeline_mode = #tpu.pipeline_mode<synchronous>, transform_indices = @transform_5, window_bounds = array<i64: 1, 128>}, {transform_indices = @transform_6, window_bounds = array<i64: 128, 128>}]} {
    %c0 = arith.constant 0 : index
    %c0_0 = arith.constant 0 : index
    %0 = vector.load %arg1[%c0, %c0_0] : memref<128x384xf32, #tpu.memory_space<vmem>>, vector<128x384xf32>
    %c0_1 = arith.constant 0 : index
    %c0_2 = arith.constant 0 : index
    %1 = vector.load %arg3[%c0_1, %c0_2] : memref<1x384xf32, #tpu.memory_space<vmem>>, vector<1x384xf32>
    %2 = vector.broadcast %1 : vector<1x384xf32> to vector<128x384xf32>
    %3 = arith.mulf %0, %2 : vector<128x384xf32>
    %c0_3 = arith.constant 0 : index
    %c0_4 = arith.constant 0 : index
    %4 = vector.load %arg4[%c0_3, %c0_4] : memref<1x384xf32, #tpu.memory_space<vmem>>, vector<1x384xf32>
    %5 = vector.broadcast %4 : vector<1x384xf32> to vector<128x384xf32>
    %6 = arith.addf %3, %5 : vector<128x384xf32>
    %cst = arith.constant 0.000000e+00 : f32
    %7 = vector.broadcast %cst : f32 to vector<128x384xf32>
    %8 = arith.maximumf %6, %7 : vector<128x384xf32>
    %c0_5 = arith.constant 0 : index
    %c0_6 = arith.constant 0 : index
    %9 = vector.load %arg2[%c0_5, %c0_6] : memref<384x128xf32, #tpu.memory_space<vmem>>, vector<384x128xf32>
    %cst_7 = arith.constant dense<0.000000e+00> : vector<128x128xf32>
    %10 = tpu.matmul %8, %9, %cst_7 {dimension_numbers = #tpu.dot_dimension_numbers<[1], [0], [0], [1], [0, 0, 1, 1], [], []>} : vector<128x384xf32>, vector<384x128xf32>, vector<128x128xf32> -> vector<128x128xf32>
    %c0_8 = arith.constant 0 : index
    %c0_9 = arith.constant 0 : index
    %11 = vector.load %arg5[%c0_8, %c0_9] : memref<1x128xf32, #tpu.memory_space<vmem>>, vector<1x128xf32>
    %12 = vector.broadcast %11 : vector<1x128xf32> to vector<128x128xf32>
    %13 = arith.mulf %10, %12 : vector<128x128xf32>
    %c0_10 = arith.constant 0 : index
    %c0_11 = arith.constant 0 : index
    %14 = vector.load %arg6[%c0_10, %c0_11] : memref<1x128xf32, #tpu.memory_space<vmem>>, vector<1x128xf32>
    %15 = vector.broadcast %14 : vector<1x128xf32> to vector<128x128xf32>
    %16 = arith.addf %13, %15 : vector<128x128xf32>
    %cst_12 = arith.constant 0.000000e+00 : f32
    %17 = vector.broadcast %cst_12 : f32 to vector<128x128xf32>
    %18 = arith.maximumf %16, %17 : vector<128x128xf32>
    %c0_13 = arith.constant 0 : index
    %c0_14 = arith.constant 0 : index
    %19 = vector.load %arg7[%c0_13, %c0_14] : memref<128x128xf32, #tpu.memory_space<vmem>>, vector<128x128xf32>
    tpu.vector_store %arg7[%c0_13, %c0_14], %18 {strides = array<i32>} : memref<128x128xf32, #tpu.memory_space<vmem>>, vector<128x128xf32>,
    return
  }
  func.func @transform_0(%arg0: i32) -> (i32, i32) {
    %c0_i32 = arith.constant 0 : i32
    %c0_i32_0 = arith.constant 0 : i32
    return %arg0, %c0_i32 : i32, i32
  }
  func.func @transform_1(%arg0: i32) -> (i32, i32) {
    %c0_i32 = arith.constant 0 : i32
    %c0_i32_0 = arith.constant 0 : i32
    %c0_i32_1 = arith.constant 0 : i32
    return %c0_i32, %c0_i32_0 : i32, i32
  }
  func.func @transform_2(%arg0: i32) -> (i32, i32) {
    %c0_i32 = arith.constant 0 : i32
    %c0_i32_0 = arith.constant 0 : i32
    %c0_i32_1 = arith.constant 0 : i32
    return %c0_i32, %c0_i32_0 : i32, i32
  }
  func.func @transform_3(%arg0: i32) -> (i32, i32) {
    %c0_i32 = arith.constant 0 : i32
    %c0_i32_0 = arith.constant 0 : i32
    %c0_i32_1 = arith.constant 0 : i32
    return %c0_i32, %c0_i32_0 : i32, i32
  }
  func.func @transform_4(%arg0: i32) -> (i32, i32) {
    %c0_i32 = arith.constant 0 : i32
    %c0_i32_0 = arith.constant 0 : i32
    %c0_i32_1 = arith.constant 0 : i32
    return %c0_i32, %c0_i32_0 : i32, i32
  }
  func.func @transform_5(%arg0: i32) -> (i32, i32) {
    %c0_i32 = arith.constant 0 : i32
    %c0_i32_0 = arith.constant 0 : i32
    %c0_i32_1 = arith.constant 0 : i32
    return %c0_i32, %c0_i32_0 : i32, i32
  }
  func.func @transform_6(%arg0: i32) -> (i32, i32) {
    %c0_i32 = arith.constant 0 : i32
    %c0_i32_0 = arith.constant 0 : i32
    return %arg0, %c0_i32 : i32, i32
  }
}

module attributes {stable_mosaic.version = 11 : i64} {
  func.func @kernel(%arg0: i32, %arg1: memref<32x1152xf32, #tpu.memory_space<vmem>>, %arg2: memref<1152x128xf32, #tpu.memory_space<vmem>>, %arg3: memref<1x128xf32, #tpu.memory_space<vmem>>, %arg4: memref<1x128xf32, #tpu.memory_space<vmem>>, %arg5: memref<32x128xf32, #tpu.memory_space<vmem>>) attributes {dimension_semantics = [#tpu.dimension_semantics<parallel>], iteration_bounds = array<i64: 1>, scalar_prefetch = 0 : i64, scratch_operands = 0 : i64, tpu.core_type = #tpu.core_type<tc>, window_params = [{transform_indices = @transform_0, window_bounds = array<i64: 32, 1152>}, {pipeline_mode = #tpu.pipeline_mode<synchronous>, transform_indices = @transform_1, window_bounds = array<i64: 1152, 128>}, {pipeline_mode = #tpu.pipeline_mode<synchronous>, transform_indices = @transform_2, window_bounds = array<i64: 1, 128>}, {pipeline_mode = #tpu.pipeline_mode<synchronous>, transform_indices = @transform_3, window_bounds = array<i64: 1, 128>}, {transform_indices = @transform_4, window_bounds = array<i64: 32, 128>}]} {
    %c0 = arith.constant 0 : index
    %c0_0 = arith.constant 0 : index
    %0 = vector.load %arg1[%c0, %c0_0] : memref<32x1152xf32, #tpu.memory_space<vmem>>, vector<32x1152xf32>
    %c0_1 = arith.constant 0 : index
    %c0_2 = arith.constant 0 : index
    %1 = vector.load %arg2[%c0_1, %c0_2] : memref<1152x128xf32, #tpu.memory_space<vmem>>, vector<1152x128xf32>
    %cst = arith.constant dense<0.000000e+00> : vector<32x128xf32>
    %2 = tpu.matmul %0, %1, %cst {dimension_numbers = #tpu.dot_dimension_numbers<[1], [0], [0], [1], [0, 0, 1, 1], [], []>} : vector<32x1152xf32>, vector<1152x128xf32>, vector<32x128xf32> -> vector<32x128xf32>
    %c0_3 = arith.constant 0 : index
    %c0_4 = arith.constant 0 : index
    %3 = vector.load %arg3[%c0_3, %c0_4] : memref<1x128xf32, #tpu.memory_space<vmem>>, vector<1x128xf32>
    %4 = vector.broadcast %3 : vector<1x128xf32> to vector<32x128xf32>
    %5 = arith.mulf %2, %4 : vector<32x128xf32>
    %c0_5 = arith.constant 0 : index
    %c0_6 = arith.constant 0 : index
    %6 = vector.load %arg4[%c0_5, %c0_6] : memref<1x128xf32, #tpu.memory_space<vmem>>, vector<1x128xf32>
    %7 = vector.broadcast %6 : vector<1x128xf32> to vector<32x128xf32>
    %8 = arith.addf %5, %7 : vector<32x128xf32>
    %cst_7 = arith.constant 0.000000e+00 : f32
    %9 = vector.broadcast %cst_7 : f32 to vector<32x128xf32>
    %10 = arith.maximumf %8, %9 : vector<32x128xf32>
    %c0_8 = arith.constant 0 : index
    %c0_9 = arith.constant 0 : index
    %11 = vector.load %arg5[%c0_8, %c0_9] : memref<32x128xf32, #tpu.memory_space<vmem>>, vector<32x128xf32>
    tpu.vector_store %arg5[%c0_8, %c0_9], %10 {strides = array<i32>} : memref<32x128xf32, #tpu.memory_space<vmem>>, vector<32x128xf32>,
    return
  }
  func.func @transform_0(%arg0: i32) -> (i32, i32) {
    %c0_i32 = arith.constant 0 : i32
    %c0_i32_0 = arith.constant 0 : i32
    return %arg0, %c0_i32 : i32, i32
  }
  func.func @transform_1(%arg0: i32) -> (i32, i32) {
    %c0_i32 = arith.constant 0 : i32
    %c0_i32_0 = arith.constant 0 : i32
    %c0_i32_1 = arith.constant 0 : i32
    return %c0_i32, %c0_i32_0 : i32, i32
  }
  func.func @transform_2(%arg0: i32) -> (i32, i32) {
    %c0_i32 = arith.constant 0 : i32
    %c0_i32_0 = arith.constant 0 : i32
    %c0_i32_1 = arith.constant 0 : i32
    return %c0_i32, %c0_i32_0 : i32, i32
  }
  func.func @transform_3(%arg0: i32) -> (i32, i32) {
    %c0_i32 = arith.constant 0 : i32
    %c0_i32_0 = arith.constant 0 : i32
    %c0_i32_1 = arith.constant 0 : i32
    return %c0_i32, %c0_i32_0 : i32, i32
  }
  func.func @transform_4(%arg0: i32) -> (i32, i32) {
    %c0_i32 = arith.constant 0 : i32
    %c0_i32_0 = arith.constant 0 : i32
    return %arg0, %c0_i32 : i32, i32
  }
}

module attributes {stable_mosaic.version = 11 : i64} {
  func.func @kernel(%arg0: i32, %arg1: memref<32x384xf32, #tpu.memory_space<vmem>>, %arg2: memref<384x256xf32, #tpu.memory_space<vmem>>, %arg3: memref<1x384xf32, #tpu.memory_space<vmem>>, %arg4: memref<1x384xf32, #tpu.memory_space<vmem>>, %arg5: memref<32x256xf32, #tpu.memory_space<vmem>>) attributes {dimension_semantics = [#tpu.dimension_semantics<parallel>], iteration_bounds = array<i64: 1>, scalar_prefetch = 0 : i64, scratch_operands = 0 : i64, tpu.core_type = #tpu.core_type<tc>, window_params = [{transform_indices = @transform_0, window_bounds = array<i64: 32, 384>}, {pipeline_mode = #tpu.pipeline_mode<synchronous>, transform_indices = @transform_1, window_bounds = array<i64: 384, 256>}, {pipeline_mode = #tpu.pipeline_mode<synchronous>, transform_indices = @transform_2, window_bounds = array<i64: 1, 384>}, {pipeline_mode = #tpu.pipeline_mode<synchronous>, transform_indices = @transform_3, window_bounds = array<i64: 1, 384>}, {transform_indices = @transform_4, window_bounds = array<i64: 32, 256>}]} {
    %c0 = arith.constant 0 : index
    %c0_0 = arith.constant 0 : index
    %0 = vector.load %arg1[%c0, %c0_0] : memref<32x384xf32, #tpu.memory_space<vmem>>, vector<32x384xf32>
    %c0_1 = arith.constant 0 : index
    %c0_2 = arith.constant 0 : index
    %1 = vector.load %arg3[%c0_1, %c0_2] : memref<1x384xf32, #tpu.memory_space<vmem>>, vector<1x384xf32>
    %2 = vector.broadcast %1 : vector<1x384xf32> to vector<32x384xf32>
    %3 = arith.mulf %0, %2 : vector<32x384xf32>
    %c0_3 = arith.constant 0 : index
    %c0_4 = arith.constant 0 : index
    %4 = vector.load %arg4[%c0_3, %c0_4] : memref<1x384xf32, #tpu.memory_space<vmem>>, vector<1x384xf32>
    %5 = vector.broadcast %4 : vector<1x384xf32> to vector<32x384xf32>
    %6 = arith.addf %3, %5 : vector<32x384xf32>
    %cst = arith.constant 0.000000e+00 : f32
    %7 = vector.broadcast %cst : f32 to vector<32x384xf32>
    %8 = arith.maximumf %6, %7 : vector<32x384xf32>
    %c0_5 = arith.constant 0 : index
    %c0_6 = arith.constant 0 : index
    %9 = vector.load %arg2[%c0_5, %c0_6] : memref<384x256xf32, #tpu.memory_space<vmem>>, vector<384x256xf32>
    %cst_7 = arith.constant dense<0.000000e+00> : vector<32x256xf32>
    %10 = tpu.matmul %8, %9, %cst_7 {dimension_numbers = #tpu.dot_dimension_numbers<[1], [0], [0], [1], [0, 0, 1, 1], [], []>} : vector<32x384xf32>, vector<384x256xf32>, vector<32x256xf32> -> vector<32x256xf32>
    %c0_8 = arith.constant 0 : index
    %c0_9 = arith.constant 0 : index
    %11 = vector.load %arg5[%c0_8, %c0_9] : memref<32x256xf32, #tpu.memory_space<vmem>>, vector<32x256xf32>
    tpu.vector_store %arg5[%c0_8, %c0_9], %10 {strides = array<i32>} : memref<32x256xf32, #tpu.memory_space<vmem>>, vector<32x256xf32>,
    return
  }
  func.func @transform_0(%arg0: i32) -> (i32, i32) {
    %c0_i32 = arith.constant 0 : i32
    %c0_i32_0 = arith.constant 0 : i32
    return %arg0, %c0_i32 : i32, i32
  }
  func.func @transform_1(%arg0: i32) -> (i32, i32) {
    %c0_i32 = arith.constant 0 : i32
    %c0_i32_0 = arith.constant 0 : i32
    %c0_i32_1 = arith.constant 0 : i32
    return %c0_i32, %c0_i32_0 : i32, i32
  }
  func.func @transform_2(%arg0: i32) -> (i32, i32) {
    %c0_i32 = arith.constant 0 : i32
    %c0_i32_0 = arith.constant 0 : i32
    %c0_i32_1 = arith.constant 0 : i32
    return %c0_i32, %c0_i32_0 : i32, i32
  }
  func.func @transform_3(%arg0: i32) -> (i32, i32) {
    %c0_i32 = arith.constant 0 : i32
    %c0_i32_0 = arith.constant 0 : i32
    %c0_i32_1 = arith.constant 0 : i32
    return %c0_i32, %c0_i32_0 : i32, i32
  }
  func.func @transform_4(%arg0: i32) -> (i32, i32) {
    %c0_i32 = arith.constant 0 : i32
    %c0_i32_0 = arith.constant 0 : i32
    return %arg0, %c0_i32 : i32, i32
  }
}

module attributes {stable_mosaic.version = 11 : i64} {
  func.func @kernel(%arg0: i32, %arg1: memref<32x128xf32, #tpu.memory_space<vmem>>, %arg2: memref<128x256xf32, #tpu.memory_space<vmem>>, %arg3: memref<32x128xf32, #tpu.memory_space<vmem>>, %arg4: memref<32x256xf32, #tpu.memory_space<vmem>>) attributes {dimension_semantics = [#tpu.dimension_semantics<parallel>], iteration_bounds = array<i64: 1>, scalar_prefetch = 0 : i64, scratch_operands = 0 : i64, tpu.core_type = #tpu.core_type<tc>, window_params = [{transform_indices = @transform_0, window_bounds = array<i64: 32, 128>}, {pipeline_mode = #tpu.pipeline_mode<synchronous>, transform_indices = @transform_1, window_bounds = array<i64: 128, 256>}, {transform_indices = @transform_2, window_bounds = array<i64: 32, 128>}, {transform_indices = @transform_3, window_bounds = array<i64: 32, 256>}]} {
    %c0 = arith.constant 0 : index
    %c0_0 = arith.constant 0 : index
    %0 = vector.load %arg1[%c0, %c0_0] : memref<32x128xf32, #tpu.memory_space<vmem>>, vector<32x128xf32>
    %c0_1 = arith.constant 0 : index
    %c0_2 = arith.constant 0 : index
    %1 = vector.load %arg2[%c0_1, %c0_2] : memref<128x256xf32, #tpu.memory_space<vmem>>, vector<128x256xf32>
    %cst = arith.constant dense<0.000000e+00> : vector<32x256xf32>
    %2 = tpu.matmul %0, %1, %cst {dimension_numbers = #tpu.dot_dimension_numbers<[1], [0], [0], [1], [0, 0, 1, 1], [], []>} : vector<32x128xf32>, vector<128x256xf32>, vector<32x256xf32> -> vector<32x256xf32>
    %3 = vector.extract_strided_slice %2 {offsets = [0, 0], sizes = [32, 128], strides = [1, 1]} : vector<32x256xf32> to vector<32x128xf32>
    %c0_3 = arith.constant 0 : index
    %c0_4 = arith.constant 0 : index
    %4 = vector.load %arg3[%c0_3, %c0_4] : memref<32x128xf32, #tpu.memory_space<vmem>>, vector<32x128xf32>
    %5 = arith.addf %3, %4 : vector<32x128xf32>
    %c0_5 = arith.constant 0 : index
    %c0_6 = arith.constant 0 : index
    %6 = vector.load %arg4[%c0_5, %c0_6] : memref<32x256xf32, #tpu.memory_space<vmem>>, vector<32x128xf32>
    tpu.vector_store %arg4[%c0_5, %c0_6], %5 {strides = array<i32>} : memref<32x256xf32, #tpu.memory_space<vmem>>, vector<32x128xf32>,
    %7 = vector.extract_strided_slice %2 {offsets = [0, 128], sizes = [32, 128], strides = [1, 1]} : vector<32x256xf32> to vector<32x128xf32>
    %c0_7 = arith.constant 0 : index
    %c128 = arith.constant 128 : index
    %8 = vector.load %arg4[%c0_7, %c128] : memref<32x256xf32, #tpu.memory_space<vmem>>, vector<32x128xf32>
    tpu.vector_store %arg4[%c0_7, %c128], %7 {strides = array<i32>} : memref<32x256xf32, #tpu.memory_space<vmem>>, vector<32x128xf32>,
    return
  }
  func.func @transform_0(%arg0: i32) -> (i32, i32) {
    %c0_i32 = arith.constant 0 : i32
    %c0_i32_0 = arith.constant 0 : i32
    return %arg0, %c0_i32 : i32, i32
  }
  func.func @transform_1(%arg0: i32) -> (i32, i32) {
    %c0_i32 = arith.constant 0 : i32
    %c0_i32_0 = arith.constant 0 : i32
    %c0_i32_1 = arith.constant 0 : i32
    return %c0_i32, %c0_i32_0 : i32, i32
  }
  func.func @transform_2(%arg0: i32) -> (i32, i32) {
    %c0_i32 = arith.constant 0 : i32
    %c0_i32_0 = arith.constant 0 : i32
    return %arg0, %c0_i32 : i32, i32
  }
  func.func @transform_3(%arg0: i32) -> (i32, i32) {
    %c0_i32 = arith.constant 0 : i32
    %c0_i32_0 = arith.constant 0 : i32
    return %arg0, %c0_i32 : i32, i32
  }
}

module attributes {stable_mosaic.version = 11 : i64} {
  func.func @kernel(%arg0: i32, %arg1: memref<32x384xf32, #tpu.memory_space<vmem>>, %arg2: memref<384x128xf32, #tpu.memory_space<vmem>>, %arg3: memref<1x384xf32, #tpu.memory_space<vmem>>, %arg4: memref<1x384xf32, #tpu.memory_space<vmem>>, %arg5: memref<1x128xf32, #tpu.memory_space<vmem>>, %arg6: memref<1x128xf32, #tpu.memory_space<vmem>>, %arg7: memref<32x128xf32, #tpu.memory_space<vmem>>) attributes {dimension_semantics = [#tpu.dimension_semantics<parallel>], iteration_bounds = array<i64: 1>, scalar_prefetch = 0 : i64, scratch_operands = 0 : i64, tpu.core_type = #tpu.core_type<tc>, window_params = [{transform_indices = @transform_0, window_bounds = array<i64: 32, 384>}, {pipeline_mode = #tpu.pipeline_mode<synchronous>, transform_indices = @transform_1, window_bounds = array<i64: 384, 128>}, {pipeline_mode = #tpu.pipeline_mode<synchronous>, transform_indices = @transform_2, window_bounds = array<i64: 1, 384>}, {pipeline_mode = #tpu.pipeline_mode<synchronous>, transform_indices = @transform_3, window_bounds = array<i64: 1, 384>}, {pipeline_mode = #tpu.pipeline_mode<synchronous>, transform_indices = @transform_4, window_bounds = array<i64: 1, 128>}, {pipeline_mode = #tpu.pipeline_mode<synchronous>, transform_indices = @transform_5, window_bounds = array<i64: 1, 128>}, {transform_indices = @transform_6, window_bounds = array<i64: 32, 128>}]} {
    %c0 = arith.constant 0 : index
    %c0_0 = arith.constant 0 : index
    %0 = vector.load %arg1[%c0, %c0_0] : memref<32x384xf32, #tpu.memory_space<vmem>>, vector<32x384xf32>
    %c0_1 = arith.constant 0 : index
    %c0_2 = arith.constant 0 : index
    %1 = vector.load %arg3[%c0_1, %c0_2] : memref<1x384xf32, #tpu.memory_space<vmem>>, vector<1x384xf32>
    %2 = vector.broadcast %1 : vector<1x384xf32> to vector<32x384xf32>
    %3 = arith.mulf %0, %2 : vector<32x384xf32>
    %c0_3 = arith.constant 0 : index
    %c0_4 = arith.constant 0 : index
    %4 = vector.load %arg4[%c0_3, %c0_4] : memref<1x384xf32, #tpu.memory_space<vmem>>, vector<1x384xf32>
    %5 = vector.broadcast %4 : vector<1x384xf32> to vector<32x384xf32>
    %6 = arith.addf %3, %5 : vector<32x384xf32>
    %cst = arith.constant 0.000000e+00 : f32
    %7 = vector.broadcast %cst : f32 to vector<32x384xf32>
    %8 = arith.maximumf %6, %7 : vector<32x384xf32>
    %c0_5 = arith.constant 0 : index
    %c0_6 = arith.constant 0 : index
    %9 = vector.load %arg2[%c0_5, %c0_6] : memref<384x128xf32, #tpu.memory_space<vmem>>, vector<384x128xf32>
    %cst_7 = arith.constant dense<0.000000e+00> : vector<32x128xf32>
    %10 = tpu.matmul %8, %9, %cst_7 {dimension_numbers = #tpu.dot_dimension_numbers<[1], [0], [0], [1], [0, 0, 1, 1], [], []>} : vector<32x384xf32>, vector<384x128xf32>, vector<32x128xf32> -> vector<32x128xf32>
    %c0_8 = arith.constant 0 : index
    %c0_9 = arith.constant 0 : index
    %11 = vector.load %arg5[%c0_8, %c0_9] : memref<1x128xf32, #tpu.memory_space<vmem>>, vector<1x128xf32>
    %12 = vector.broadcast %11 : vector<1x128xf32> to vector<32x128xf32>
    %13 = arith.mulf %10, %12 : vector<32x128xf32>
    %c0_10 = arith.constant 0 : index
    %c0_11 = arith.constant 0 : index
    %14 = vector.load %arg6[%c0_10, %c0_11] : memref<1x128xf32, #tpu.memory_space<vmem>>, vector<1x128xf32>
    %15 = vector.broadcast %14 : vector<1x128xf32> to vector<32x128xf32>
    %16 = arith.addf %13, %15 : vector<32x128xf32>
    %cst_12 = arith.constant 0.000000e+00 : f32
    %17 = vector.broadcast %cst_12 : f32 to vector<32x128xf32>
    %18 = arith.maximumf %16, %17 : vector<32x128xf32>
    %c0_13 = arith.constant 0 : index
    %c0_14 = arith.constant 0 : index
    %19 = vector.load %arg7[%c0_13, %c0_14] : memref<32x128xf32, #tpu.memory_space<vmem>>, vector<32x128xf32>
    tpu.vector_store %arg7[%c0_13, %c0_14], %18 {strides = array<i32>} : memref<32x128xf32, #tpu.memory_space<vmem>>, vector<32x128xf32>,
    return
  }
  func.func @transform_0(%arg0: i32) -> (i32, i32) {
    %c0_i32 = arith.constant 0 : i32
    %c0_i32_0 = arith.constant 0 : i32
    return %arg0, %c0_i32 : i32, i32
  }
  func.func @transform_1(%arg0: i32) -> (i32, i32) {
    %c0_i32 = arith.constant 0 : i32
    %c0_i32_0 = arith.constant 0 : i32
    %c0_i32_1 = arith.constant 0 : i32
    return %c0_i32, %c0_i32_0 : i32, i32
  }
  func.func @transform_2(%arg0: i32) -> (i32, i32) {
    %c0_i32 = arith.constant 0 : i32
    %c0_i32_0 = arith.constant 0 : i32
    %c0_i32_1 = arith.constant 0 : i32
    return %c0_i32, %c0_i32_0 : i32, i32
  }
  func.func @transform_3(%arg0: i32) -> (i32, i32) {
    %c0_i32 = arith.constant 0 : i32
    %c0_i32_0 = arith.constant 0 : i32
    %c0_i32_1 = arith.constant 0 : i32
    return %c0_i32, %c0_i32_0 : i32, i32
  }
  func.func @transform_4(%arg0: i32) -> (i32, i32) {
    %c0_i32 = arith.constant 0 : i32
    %c0_i32_0 = arith.constant 0 : i32
    %c0_i32_1 = arith.constant 0 : i32
    return %c0_i32, %c0_i32_0 : i32, i32
  }
  func.func @transform_5(%arg0: i32) -> (i32, i32) {
    %c0_i32 = arith.constant 0 : i32
    %c0_i32_0 = arith.constant 0 : i32
    %c0_i32_1 = arith.constant 0 : i32
    return %c0_i32, %c0_i32_0 : i32, i32
  }
  func.func @transform_6(%arg0: i32) -> (i32, i32) {
    %c0_i32 = arith.constant 0 : i32
    %c0_i32_0 = arith.constant 0 : i32
    return %arg0, %c0_i32 : i32, i32
  }
}

module attributes {stable_mosaic.version = 11 : i64} {
  func.func @kernel(%arg0: i32, %arg1: memref<32x512xf32, #tpu.memory_space<vmem>>, %arg2: memref<512x128xf32, #tpu.memory_space<vmem>>, %arg3: memref<1x512xf32, #tpu.memory_space<vmem>>, %arg4: memref<1x512xf32, #tpu.memory_space<vmem>>, %arg5: memref<1x128xf32, #tpu.memory_space<vmem>>, %arg6: memref<1x128xf32, #tpu.memory_space<vmem>>, %arg7: memref<32x128xf32, #tpu.memory_space<vmem>>) attributes {dimension_semantics = [#tpu.dimension_semantics<parallel>], iteration_bounds = array<i64: 1>, scalar_prefetch = 0 : i64, scratch_operands = 0 : i64, tpu.core_type = #tpu.core_type<tc>, window_params = [{transform_indices = @transform_0, window_bounds = array<i64: 32, 512>}, {pipeline_mode = #tpu.pipeline_mode<synchronous>, transform_indices = @transform_1, window_bounds = array<i64: 512, 128>}, {pipeline_mode = #tpu.pipeline_mode<synchronous>, transform_indices = @transform_2, window_bounds = array<i64: 1, 512>}, {pipeline_mode = #tpu.pipeline_mode<synchronous>, transform_indices = @transform_3, window_bounds = array<i64: 1, 512>}, {pipeline_mode = #tpu.pipeline_mode<synchronous>, transform_indices = @transform_4, window_bounds = array<i64: 1, 128>}, {pipeline_mode = #tpu.pipeline_mode<synchronous>, transform_indices = @transform_5, window_bounds = array<i64: 1, 128>}, {transform_indices = @transform_6, window_bounds = array<i64: 32, 128>}]} {
    %c0 = arith.constant 0 : index
    %c0_0 = arith.constant 0 : index
    %0 = vector.load %arg1[%c0, %c0_0] : memref<32x512xf32, #tpu.memory_space<vmem>>, vector<32x512xf32>
    %c0_1 = arith.constant 0 : index
    %c0_2 = arith.constant 0 : index
    %1 = vector.load %arg3[%c0_1, %c0_2] : memref<1x512xf32, #tpu.memory_space<vmem>>, vector<1x512xf32>
    %2 = vector.broadcast %1 : vector<1x512xf32> to vector<32x512xf32>
    %3 = arith.mulf %0, %2 : vector<32x512xf32>
    %c0_3 = arith.constant 0 : index
    %c0_4 = arith.constant 0 : index
    %4 = vector.load %arg4[%c0_3, %c0_4] : memref<1x512xf32, #tpu.memory_space<vmem>>, vector<1x512xf32>
    %5 = vector.broadcast %4 : vector<1x512xf32> to vector<32x512xf32>
    %6 = arith.addf %3, %5 : vector<32x512xf32>
    %cst = arith.constant 0.000000e+00 : f32
    %7 = vector.broadcast %cst : f32 to vector<32x512xf32>
    %8 = arith.maximumf %6, %7 : vector<32x512xf32>
    %c0_5 = arith.constant 0 : index
    %c0_6 = arith.constant 0 : index
    %9 = vector.load %arg2[%c0_5, %c0_6] : memref<512x128xf32, #tpu.memory_space<vmem>>, vector<512x128xf32>
    %cst_7 = arith.constant dense<0.000000e+00> : vector<32x128xf32>
    %10 = tpu.matmul %8, %9, %cst_7 {dimension_numbers = #tpu.dot_dimension_numbers<[1], [0], [0], [1], [0, 0, 1, 1], [], []>} : vector<32x512xf32>, vector<512x128xf32>, vector<32x128xf32> -> vector<32x128xf32>
    %c0_8 = arith.constant 0 : index
    %c0_9 = arith.constant 0 : index
    %11 = vector.load %arg5[%c0_8, %c0_9] : memref<1x128xf32, #tpu.memory_space<vmem>>, vector<1x128xf32>
    %12 = vector.broadcast %11 : vector<1x128xf32> to vector<32x128xf32>
    %13 = arith.mulf %10, %12 : vector<32x128xf32>
    %c0_10 = arith.constant 0 : index
    %c0_11 = arith.constant 0 : index
    %14 = vector.load %arg6[%c0_10, %c0_11] : memref<1x128xf32, #tpu.memory_space<vmem>>, vector<1x128xf32>
    %15 = vector.broadcast %14 : vector<1x128xf32> to vector<32x128xf32>
    %16 = arith.addf %13, %15 : vector<32x128xf32>
    %cst_12 = arith.constant 0.000000e+00 : f32
    %17 = vector.broadcast %cst_12 : f32 to vector<32x128xf32>
    %18 = arith.maximumf %16, %17 : vector<32x128xf32>
    %c0_13 = arith.constant 0 : index
    %c0_14 = arith.constant 0 : index
    %19 = vector.load %arg7[%c0_13, %c0_14] : memref<32x128xf32, #tpu.memory_space<vmem>>, vector<32x128xf32>
    tpu.vector_store %arg7[%c0_13, %c0_14], %18 {strides = array<i32>} : memref<32x128xf32, #tpu.memory_space<vmem>>, vector<32x128xf32>,
    return
  }
  func.func @transform_0(%arg0: i32) -> (i32, i32) {
    %c0_i32 = arith.constant 0 : i32
    %c0_i32_0 = arith.constant 0 : i32
    return %arg0, %c0_i32 : i32, i32
  }
  func.func @transform_1(%arg0: i32) -> (i32, i32) {
    %c0_i32 = arith.constant 0 : i32
    %c0_i32_0 = arith.constant 0 : i32
    %c0_i32_1 = arith.constant 0 : i32
    return %c0_i32, %c0_i32_0 : i32, i32
  }
  func.func @transform_2(%arg0: i32) -> (i32, i32) {
    %c0_i32 = arith.constant 0 : i32
    %c0_i32_0 = arith.constant 0 : i32
    %c0_i32_1 = arith.constant 0 : i32
    return %c0_i32, %c0_i32_0 : i32, i32
  }
  func.func @transform_3(%arg0: i32) -> (i32, i32) {
    %c0_i32 = arith.constant 0 : i32
    %c0_i32_0 = arith.constant 0 : i32
    %c0_i32_1 = arith.constant 0 : i32
    return %c0_i32, %c0_i32_0 : i32, i32
  }
  func.func @transform_4(%arg0: i32) -> (i32, i32) {
    %c0_i32 = arith.constant 0 : i32
    %c0_i32_0 = arith.constant 0 : i32
    %c0_i32_1 = arith.constant 0 : i32
    return %c0_i32, %c0_i32_0 : i32, i32
  }
  func.func @transform_5(%arg0: i32) -> (i32, i32) {
    %c0_i32 = arith.constant 0 : i32
    %c0_i32_0 = arith.constant 0 : i32
    %c0_i32_1 = arith.constant 0 : i32
    return %c0_i32, %c0_i32_0 : i32, i32
  }
  func.func @transform_6(%arg0: i32) -> (i32, i32) {
    %c0_i32 = arith.constant 0 : i32
    %c0_i32_0 = arith.constant 0 : i32
    return %arg0, %c0_i32 : i32, i32
  }
}

module attributes {stable_mosaic.version = 11 : i64} {
  func.func @kernel(%arg0: i32, %arg1: memref<32x1152xf32, #tpu.memory_space<vmem>>, %arg2: memref<1152x128xf32, #tpu.memory_space<vmem>>, %arg3: memref<1x128xf32, #tpu.memory_space<vmem>>, %arg4: memref<1x128xf32, #tpu.memory_space<vmem>>, %arg5: memref<32x128xf32, #tpu.memory_space<vmem>>) attributes {dimension_semantics = [#tpu.dimension_semantics<parallel>], iteration_bounds = array<i64: 1>, scalar_prefetch = 0 : i64, scratch_operands = 0 : i64, tpu.core_type = #tpu.core_type<tc>, window_params = [{transform_indices = @transform_0, window_bounds = array<i64: 32, 1152>}, {pipeline_mode = #tpu.pipeline_mode<synchronous>, transform_indices = @transform_1, window_bounds = array<i64: 1152, 128>}, {pipeline_mode = #tpu.pipeline_mode<synchronous>, transform_indices = @transform_2, window_bounds = array<i64: 1, 128>}, {pipeline_mode = #tpu.pipeline_mode<synchronous>, transform_indices = @transform_3, window_bounds = array<i64: 1, 128>}, {transform_indices = @transform_4, window_bounds = array<i64: 32, 128>}]} {
    %c0 = arith.constant 0 : index
    %c0_0 = arith.constant 0 : index
    %0 = vector.load %arg1[%c0, %c0_0] : memref<32x1152xf32, #tpu.memory_space<vmem>>, vector<32x1152xf32>
    %c0_1 = arith.constant 0 : index
    %c0_2 = arith.constant 0 : index
    %1 = vector.load %arg2[%c0_1, %c0_2] : memref<1152x128xf32, #tpu.memory_space<vmem>>, vector<1152x128xf32>
    %cst = arith.constant dense<0.000000e+00> : vector<32x128xf32>
    %2 = tpu.matmul %0, %1, %cst {dimension_numbers = #tpu.dot_dimension_numbers<[1], [0], [0], [1], [0, 0, 1, 1], [], []>} : vector<32x1152xf32>, vector<1152x128xf32>, vector<32x128xf32> -> vector<32x128xf32>
    %c0_3 = arith.constant 0 : index
    %c0_4 = arith.constant 0 : index
    %3 = vector.load %arg3[%c0_3, %c0_4] : memref<1x128xf32, #tpu.memory_space<vmem>>, vector<1x128xf32>
    %4 = vector.broadcast %3 : vector<1x128xf32> to vector<32x128xf32>
    %5 = arith.mulf %2, %4 : vector<32x128xf32>
    %c0_5 = arith.constant 0 : index
    %c0_6 = arith.constant 0 : index
    %6 = vector.load %arg4[%c0_5, %c0_6] : memref<1x128xf32, #tpu.memory_space<vmem>>, vector<1x128xf32>
    %7 = vector.broadcast %6 : vector<1x128xf32> to vector<32x128xf32>
    %8 = arith.addf %5, %7 : vector<32x128xf32>
    %cst_7 = arith.constant 0.000000e+00 : f32
    %9 = vector.broadcast %cst_7 : f32 to vector<32x128xf32>
    %10 = arith.maximumf %8, %9 : vector<32x128xf32>
    %c0_8 = arith.constant 0 : index
    %c0_9 = arith.constant 0 : index
    %11 = vector.load %arg5[%c0_8, %c0_9] : memref<32x128xf32, #tpu.memory_space<vmem>>, vector<32x128xf32>
    tpu.vector_store %arg5[%c0_8, %c0_9], %10 {strides = array<i32>} : memref<32x128xf32, #tpu.memory_space<vmem>>, vector<32x128xf32>,
    return
  }
  func.func @transform_0(%arg0: i32) -> (i32, i32) {
    %c0_i32 = arith.constant 0 : i32
    %c0_i32_0 = arith.constant 0 : i32
    return %arg0, %c0_i32 : i32, i32
  }
  func.func @transform_1(%arg0: i32) -> (i32, i32) {
    %c0_i32 = arith.constant 0 : i32
    %c0_i32_0 = arith.constant 0 : i32
    %c0_i32_1 = arith.constant 0 : i32
    return %c0_i32, %c0_i32_0 : i32, i32
  }
  func.func @transform_2(%arg0: i32) -> (i32, i32) {
    %c0_i32 = arith.constant 0 : i32
    %c0_i32_0 = arith.constant 0 : i32
    %c0_i32_1 = arith.constant 0 : i32
    return %c0_i32, %c0_i32_0 : i32, i32
  }
  func.func @transform_3(%arg0: i32) -> (i32, i32) {
    %c0_i32 = arith.constant 0 : i32
    %c0_i32_0 = arith.constant 0 : i32
    %c0_i32_1 = arith.constant 0 : i32
    return %c0_i32, %c0_i32_0 : i32, i32
  }
  func.func @transform_4(%arg0: i32) -> (i32, i32) {
    %c0_i32 = arith.constant 0 : i32
    %c0_i32_0 = arith.constant 0 : i32
    return %arg0, %c0_i32 : i32, i32
  }
}

module attributes {stable_mosaic.version = 11 : i64} {
  func.func @kernel(%arg0: i32, %arg1: memref<32x512xf32, #tpu.memory_space<vmem>>, %arg2: memref<512x256xf32, #tpu.memory_space<vmem>>, %arg3: memref<1x512xf32, #tpu.memory_space<vmem>>, %arg4: memref<1x512xf32, #tpu.memory_space<vmem>>, %arg5: memref<32x256xf32, #tpu.memory_space<vmem>>) attributes {dimension_semantics = [#tpu.dimension_semantics<parallel>], iteration_bounds = array<i64: 1>, scalar_prefetch = 0 : i64, scratch_operands = 0 : i64, tpu.core_type = #tpu.core_type<tc>, window_params = [{transform_indices = @transform_0, window_bounds = array<i64: 32, 512>}, {pipeline_mode = #tpu.pipeline_mode<synchronous>, transform_indices = @transform_1, window_bounds = array<i64: 512, 256>}, {pipeline_mode = #tpu.pipeline_mode<synchronous>, transform_indices = @transform_2, window_bounds = array<i64: 1, 512>}, {pipeline_mode = #tpu.pipeline_mode<synchronous>, transform_indices = @transform_3, window_bounds = array<i64: 1, 512>}, {transform_indices = @transform_4, window_bounds = array<i64: 32, 256>}]} {
    %c0 = arith.constant 0 : index
    %c0_0 = arith.constant 0 : index
    %0 = vector.load %arg1[%c0, %c0_0] : memref<32x512xf32, #tpu.memory_space<vmem>>, vector<32x512xf32>
    %c0_1 = arith.constant 0 : index
    %c0_2 = arith.constant 0 : index
    %1 = vector.load %arg3[%c0_1, %c0_2] : memref<1x512xf32, #tpu.memory_space<vmem>>, vector<1x512xf32>
    %2 = vector.broadcast %1 : vector<1x512xf32> to vector<32x512xf32>
    %3 = arith.mulf %0, %2 : vector<32x512xf32>
    %c0_3 = arith.constant 0 : index
    %c0_4 = arith.constant 0 : index
    %4 = vector.load %arg4[%c0_3, %c0_4] : memref<1x512xf32, #tpu.memory_space<vmem>>, vector<1x512xf32>
    %5 = vector.broadcast %4 : vector<1x512xf32> to vector<32x512xf32>
    %6 = arith.addf %3, %5 : vector<32x512xf32>
    %cst = arith.constant 0.000000e+00 : f32
    %7 = vector.broadcast %cst : f32 to vector<32x512xf32>
    %8 = arith.maximumf %6, %7 : vector<32x512xf32>
    %c0_5 = arith.constant 0 : index
    %c0_6 = arith.constant 0 : index
    %9 = vector.load %arg2[%c0_5, %c0_6] : memref<512x256xf32, #tpu.memory_space<vmem>>, vector<512x256xf32>
    %cst_7 = arith.constant dense<0.000000e+00> : vector<32x256xf32>
    %10 = tpu.matmul %8, %9, %cst_7 {dimension_numbers = #tpu.dot_dimension_numbers<[1], [0], [0], [1], [0, 0, 1, 1], [], []>} : vector<32x512xf32>, vector<512x256xf32>, vector<32x256xf32> -> vector<32x256xf32>
    %c0_8 = arith.constant 0 : index
    %c0_9 = arith.constant 0 : index
    %11 = vector.load %arg5[%c0_8, %c0_9] : memref<32x256xf32, #tpu.memory_space<vmem>>, vector<32x256xf32>
    tpu.vector_store %arg5[%c0_8, %c0_9], %10 {strides = array<i32>} : memref<32x256xf32, #tpu.memory_space<vmem>>, vector<32x256xf32>,
    return
  }
  func.func @transform_0(%arg0: i32) -> (i32, i32) {
    %c0_i32 = arith.constant 0 : i32
    %c0_i32_0 = arith.constant 0 : i32
    return %arg0, %c0_i32 : i32, i32
  }
  func.func @transform_1(%arg0: i32) -> (i32, i32) {
    %c0_i32 = arith.constant 0 : i32
    %c0_i32_0 = arith.constant 0 : i32
    %c0_i32_1 = arith.constant 0 : i32
    return %c0_i32, %c0_i32_0 : i32, i32
  }
  func.func @transform_2(%arg0: i32) -> (i32, i32) {
    %c0_i32 = arith.constant 0 : i32
    %c0_i32_0 = arith.constant 0 : i32
    %c0_i32_1 = arith.constant 0 : i32
    return %c0_i32, %c0_i32_0 : i32, i32
  }
  func.func @transform_3(%arg0: i32) -> (i32, i32) {
    %c0_i32 = arith.constant 0 : i32
    %c0_i32_0 = arith.constant 0 : i32
    %c0_i32_1 = arith.constant 0 : i32
    return %c0_i32, %c0_i32_0 : i32, i32
  }
  func.func @transform_4(%arg0: i32) -> (i32, i32) {
    %c0_i32 = arith.constant 0 : i32
    %c0_i32_0 = arith.constant 0 : i32
    return %arg0, %c0_i32 : i32, i32
  }
}

module attributes {stable_mosaic.version = 11 : i64} {
  func.func @_affine_relu_kernel(%arg0: i32, %arg1: memref<32x384xf32, #tpu.memory_space<vmem>>, %arg2: memref<1x384xf32, #tpu.memory_space<vmem>>, %arg3: memref<1x384xf32, #tpu.memory_space<vmem>>, %arg4: memref<32x384xf32, #tpu.memory_space<vmem>>) attributes {dimension_semantics = [#tpu.dimension_semantics<parallel>], iteration_bounds = array<i64: 1>, scalar_prefetch = 0 : i64, scratch_operands = 0 : i64, tpu.core_type = #tpu.core_type<tc>, window_params = [{transform_indices = @transform_0, window_bounds = array<i64: 32, 384>}, {pipeline_mode = #tpu.pipeline_mode<synchronous>, transform_indices = @transform_1, window_bounds = array<i64: 1, 384>}, {pipeline_mode = #tpu.pipeline_mode<synchronous>, transform_indices = @transform_2, window_bounds = array<i64: 1, 384>}, {transform_indices = @transform_3, window_bounds = array<i64: 32, 384>}]} {
    %c0 = arith.constant 0 : index
    %c0_0 = arith.constant 0 : index
    %0 = vector.load %arg1[%c0, %c0_0] : memref<32x384xf32, #tpu.memory_space<vmem>>, vector<32x384xf32>
    %c0_1 = arith.constant 0 : index
    %c0_2 = arith.constant 0 : index
    %1 = vector.load %arg2[%c0_1, %c0_2] : memref<1x384xf32, #tpu.memory_space<vmem>>, vector<1x384xf32>
    %2 = vector.broadcast %1 : vector<1x384xf32> to vector<32x384xf32>
    %3 = arith.mulf %0, %2 : vector<32x384xf32>
    %c0_3 = arith.constant 0 : index
    %c0_4 = arith.constant 0 : index
    %4 = vector.load %arg3[%c0_3, %c0_4] : memref<1x384xf32, #tpu.memory_space<vmem>>, vector<1x384xf32>
    %5 = vector.broadcast %4 : vector<1x384xf32> to vector<32x384xf32>
    %6 = arith.addf %3, %5 : vector<32x384xf32>
    %cst = arith.constant 0.000000e+00 : f32
    %7 = vector.broadcast %cst : f32 to vector<32x384xf32>
    %8 = arith.maximumf %6, %7 : vector<32x384xf32>
    %c0_5 = arith.constant 0 : index
    %c0_6 = arith.constant 0 : index
    %9 = vector.load %arg4[%c0_5, %c0_6] : memref<32x384xf32, #tpu.memory_space<vmem>>, vector<32x384xf32>
    tpu.vector_store %arg4[%c0_5, %c0_6], %8 {strides = array<i32>} : memref<32x384xf32, #tpu.memory_space<vmem>>, vector<32x384xf32>,
    return
  }
  func.func @transform_0(%arg0: i32) -> (i32, i32) {
    %c0_i32 = arith.constant 0 : i32
    %c0_i32_0 = arith.constant 0 : i32
    return %arg0, %c0_i32 : i32, i32
  }
  func.func @transform_1(%arg0: i32) -> (i32, i32) {
    %c0_i32 = arith.constant 0 : i32
    %c0_i32_0 = arith.constant 0 : i32
    %c0_i32_1 = arith.constant 0 : i32
    return %c0_i32, %c0_i32_0 : i32, i32
  }
  func.func @transform_2(%arg0: i32) -> (i32, i32) {
    %c0_i32 = arith.constant 0 : i32
    %c0_i32_0 = arith.constant 0 : i32
    %c0_i32_1 = arith.constant 0 : i32
    return %c0_i32, %c0_i32_0 : i32, i32
  }
  func.func @transform_3(%arg0: i32) -> (i32, i32) {
    %c0_i32 = arith.constant 0 : i32
    %c0_i32_0 = arith.constant 0 : i32
    return %arg0, %c0_i32 : i32, i32
  }
}

</mosaic_0001>

<llo_original>
// kernel: _lambda_.24
$region0: #{_lambda_.24}
  #allocation0 [shape = 'u32[]', space=smem, size = 0x4, offset = 0x4, fixed_abs, tag = 'smem constant byte address 0x4 - core index']
  #allocation1 [shape = 'u32[144,128]{1,0:T(1,128)}', space=vmem, size = 0x12000, scoped, tag = 'internal scratch']
  %s0 = inlined_call_operand.vmem [shape: f32[2,9,2,18,128], index: 0, kind: input, shape index: {}]
  %s1 = inlined_call_operand.vmem [shape: f32[2,8,18,128], index: 1, kind: output, shape index: {}]
  %s2 = sld [smem:[#allocation0]]
  $region37: #{_lambda_.24} parent=0
    _
  %s4 = ssub.s32 1, %s2
  %s5 = scalar_select 0, %s4, %s2
  loop: start=0, step=1, limit=4
  $region2: #{_lambda_.24} parent=0 // loop_pre_header
    _
  $region3: #{_lambda_.24} parent=0 // loop_header
    %s7 = sphi 0, %s11
    %p8 = scmp.ge.s32.totalorder %s7, 4
    %s17 = sphi 0, %s19
    %s20 = sphi 0, %s17
    %s21 = sphi 0, %s20
    %s37 = sphi 0, %s21
    %s43 = sphi 0, %s45
    %s46 = sphi 0, %s43
    %s47 = sphi 0, %s46
    %s63 = sphi 0, %s47
  $region4: #{_lambda_.24} parent=0 // loop_header_branch
    %10 = sbr.rel (%p8) target = $region8
  $region5: #{_lambda_.24} parent=0 // loop_body
    %s12 = ssub.s32 %s7, 1
    %s13 = ssub.s32 %s7, 2
    %s14 = sadd.s32 %s7, 1
    %s15 = ssub.s32 %s7, %s14
    %p16 = scmp.eq.s32.totalorder %s15, 0
    %s18 = sadd.s32 %s17, 1
    %s19 = scalar_select %p16, %s17, %s18
    %p22 = pneg %p16
    %p23 = scmp.eq.s32.totalorder %s7, 1
    %p24 = por %p22, %p23
    %p25 = scmp.ne.s32.totalorder %s17, %s20
    %p26 = scmp.eq.s32.totalorder %s7, 0
    %p27 = por %p25, %p26
    %p28 = scmp.ne.s32.totalorder %s17, %s20
    %p29 = scmp.eq.s32.totalorder %s12, 1
    %p30 = por %p28, %p29
    %p31 = scmp.ne.s32.totalorder %s20, %s21
    %p32 = scmp.eq.s32.totalorder %s12, 0
    %p33 = por %p31, %p32
    %p34 = scmp.ne.s32.totalorder %s20, %s21
    %p35 = scmp.eq.s32.totalorder %s13, 1
    %p36 = por %p34, %p35
    %p38 = scmp.ne.s32.totalorder %s21, %s37
    %p39 = scmp.eq.s32.totalorder %s13, 0
    %p40 = por %p38, %p39
    %s41 = ssub.s32 %s7, %s14
    %p42 = scmp.eq.s32.totalorder %s41, 0
    %s44 = sadd.s32 %s43, 1
    %s45 = scalar_select %p42, %s43, %s44
    %p48 = pneg %p42
    %p49 = scmp.eq.s32.totalorder %s7, 1
    %p50 = por %p48, %p49
    %p51 = scmp.ne.s32.totalorder %s43, %s46
    %p52 = scmp.eq.s32.totalorder %s7, 0
    %p53 = por %p51, %p52
    %p54 = scmp.ne.s32.totalorder %s43, %s46
    %p55 = scmp.eq.s32.totalorder %s12, 1
    %p56 = por %p54, %p55
    %p57 = scmp.ne.s32.totalorder %s46, %s47
    %p58 = scmp.eq.s32.totalorder %s12, 0
    %p59 = por %p57, %p58
    %p60 = scmp.ne.s32.totalorder %s46, %s47
    %p61 = scmp.eq.s32.totalorder %s13, 1
    %p62 = por %p60, %p61
    %p64 = scmp.ne.s32.totalorder %s47, %s63
    %p65 = scmp.eq.s32.totalorder %s13, 0
    %p66 = por %p64, %p65
    %p67 = scmp.le.s32.totalorder 1, %s7
    %p68 = scmp.lt.s32.totalorder %s7, 3
    %p69 = pnand %p67, %p68
    %p70 = pneg %p69
    // Predicated region
    $region9: #{_lambda_.24} parent=5 // pred_check
      _
    $region10: #{_lambda_.24} parent=5 // pred_check_branch
      %72 = sbr.rel (%p69) target = $region12
    $region11: #{_lambda_.24} parent=5 // pred_region
      %s73 = ssub.s32 %s7, 1
    $region12: #{_lambda_.24} parent=5 // pred_fallthru
      _
    %p74 = scmp.lt.s32.totalorder %s7, 2
    // Predicated region
    $region13: #{_lambda_.24} parent=5 // pred_check
      %p75 = pneg %p74
    $region14: #{_lambda_.24} parent=5 // pred_check_branch
      %77 = sbr.rel (%p75) target = $region16
    $region15: #{_lambda_.24} parent=5 // pred_region
      // Predicated region
      $region17: #{_lambda_.24} parent=15 // pred_check
        %p78 = pneg %p27
      $region18: #{_lambda_.24} parent=15 // pred_check_branch
        %80 = sbr.rel (%p78) target = $region20
      $region19: #{_lambda_.24} parent=15 // pred_region
        %p81 = scmp.lt.s32.totalorder %s7, 1
        %s82 = scalar_select %p81, %s7, 1
        %s83 = smul.addr %s82, 54
        %s84 = smul.addr %s83, 8
        %s85 = scalar_lea.vmem %s0, %s84
      $region20: #{_lambda_.24} parent=15 // pred_fallthru
        _
    $region16: #{_lambda_.24} parent=5 // pred_fallthru
      _
    %p86 = scmp.le.s32.totalorder 1, %s7
    %p87 = scmp.lt.s32.totalorder %s7, 3
    %p88 = pnand %p86, %p87
    %p89 = pneg %p88
    // Predicated region
    $region21: #{_lambda_.24} parent=5 // pred_check
      _
    $region22: #{_lambda_.24} parent=5 // pred_check_branch
      %91 = sbr.rel (%p88) target = $region24
    $region23: #{_lambda_.24} parent=5 // pred_region
      %s92 = ssub.s32 %s7, 1
      %p93 = scmp.lt.s32.totalorder %s12, 1
      %s94 = scalar_select %p93, %s12, 1
      %s95 = smul.addr %s94, 54
      %s96 = smul.addr %s95, 8
      %s97 = scalar_lea.vmem %s0, %s96
      %p98 = pneg %p33
      %p99 = pneg %p30
      %p100 = pneg %p59
      %p101 = pneg %p56
      %p102 = scmp.lt.s32.totalorder %s12, 1
      %s103 = scalar_select %p102, %s12, 1
      %s104 = smul.addr %s103, 24
      %s105 = smul.addr %s104, 8
      %s106 = scalar_lea.vmem %s1, %s105
      %p107 = scmp.lt.s32.totalorder %s12, 1
      %s108 = scalar_select %p107, %s12, 1
      %s109 = smul.addr %s108, 54
      %s110 = smul.addr %s109, 8
      %s111 = scalar_lea.vmem %s0, %s110
      %p112 = scmp.lt.s32.totalorder %s12, 1
      %s113 = scalar_select %p112, %s12, 1
      %s114 = smul.addr %s113, 24
      %s115 = smul.addr %s114, 8
      %s116 = scalar_lea.vmem %s1, %s115
      %v117 = vld [vmem:[%s111] sm:$0xff]
      %v118 = vld [vmem:[%s111 + $0x8] sm:$0xff]
      %v119 = vld [vmem:[%s111 + $0x10] sm:$0x3]
      %v120 = vld [vmem:[%s111 + $0x18] sm:$0xff]
      %v121 = vld [vmem:[%s111 + $0x20] sm:$0xff]
      %v122 = vld [vmem:[%s111 + $0x28] sm:$0x3]
      %v123 = vld [vmem:[%s111 + $0x30] sm:$0xff]
      %v124 = vld [vmem:[%s111 + $0x38] sm:$0xff]
      %v125 = vld [vmem:[%s111 + $0x40] sm:$0x3]
      %v126 = vld [vmem:[%s111 + $0x48] sm:$0xff]
      %v127 = vld [vmem:[%s111 + $0x50] sm:$0xff]
      %v128 = vld [vmem:[%s111 + $0x58] sm:$0x3]
      %v129 = vld [vmem:[%s111 + $0x60] sm:$0xff]
      %v130 = vld [vmem:[%s111 + $0x68] sm:$0xff]
      %v131 = vld [vmem:[%s111 + $0x70] sm:$0x3]
      %v132 = vld [vmem:[%s111 + $0x78] sm:$0xff]
      %v133 = vld [vmem:[%s111 + $0x80] sm:$0xff]
      %v134 = vld [vmem:[%s111 + $0x88] sm:$0x3]
      %v135 = vld [vmem:[%s111 + $0x90] sm:$0xff]
      %v136 = vld [vmem:[%s111 + $0x98] sm:$0xff]
      %v137 = vld [vmem:[%s111 + $0xa0] sm:$0x3]
      %v138 = vld [vmem:[%s111 + $0xa8] sm:$0xff]
      %v139 = vld [vmem:[%s111 + $0xb0] sm:$0xff]
      %v140 = vld [vmem:[%s111 + $0xb8] sm:$0x3]
      %v141 = vld [vmem:[%s111 + $0xc0] sm:$0xff]
      %v142 = vld [vmem:[%s111 + $0xc8] sm:$0xff]
      %v143 = vld [vmem:[%s111 + $0xd0] sm:$0x3]
      %v144 = vld [vmem:[%s111 + $0xd8] sm:$0xff]
      %v145 = vld [vmem:[%s111 + $0xe0] sm:$0xff]
      %v146 = vld [vmem:[%s111 + $0xe8] sm:$0x3]
      %v147 = vld [vmem:[%s111 + $0xf0] sm:$0xff]
      %v148 = vld [vmem:[%s111 + $0xf8] sm:$0xff]
      %v149 = vld [vmem:[%s111 + $0x100] sm:$0x3]
      %v150 = vld [vmem:[%s111 + $0x108] sm:$0xff]
      %v151 = vld [vmem:[%s111 + $0x110] sm:$0xff]
      %v152 = vld [vmem:[%s111 + $0x118] sm:$0x3]
      %v153 = vld [vmem:[%s111 + $0x120] sm:$0xff]
      %v154 = vld [vmem:[%s111 + $0x128] sm:$0xff]
      %v155 = vld [vmem:[%s111 + $0x130] sm:$0x3]
      %v156 = vld [vmem:[%s111 + $0x138] sm:$0xff]
      %v157 = vld [vmem:[%s111 + $0x140] sm:$0xff]
      %v158 = vld [vmem:[%s111 + $0x148] sm:$0x3]
      %v159 = vld [vmem:[%s111 + $0x150] sm:$0xff]
      %v160 = vld [vmem:[%s111 + $0x158] sm:$0xff]
      %v161 = vld [vmem:[%s111 + $0x160] sm:$0x3]
      %v162 = vld [vmem:[%s111 + $0x168] sm:$0xff]
      %v163 = vld [vmem:[%s111 + $0x170] sm:$0xff]
      %v164 = vld [vmem:[%s111 + $0x178] sm:$0x3]
      %v165 = vld [vmem:[%s111 + $0x180] sm:$0xff]
      %v166 = vld [vmem:[%s111 + $0x188] sm:$0xff]
      %v167 = vld [vmem:[%s111 + $0x190] sm:$0x3]
      %v168 = vmax.f32 %v117, %v120
      %v169 = vmax.f32 %v118, %v121
      %v170 = vmax.f32 %v119, %v122
      %v171 = vmax.f32 %v123, %v126
      %v172 = vmax.f32 %v124, %v127
      %v173 = vmax.f32 %v125, %v128
      %v174 = vmax.f32 %v129, %v132
      %v175 = vmax.f32 %v130, %v133
      %v176 = vmax.f32 %v131, %v134
      %v177 = vmax.f32 %v135, %v138
      %v178 = vmax.f32 %v136, %v139
      %v179 = vmax.f32 %v137, %v140
      %v180 = vmax.f32 %v141, %v144
      %v181 = vmax.f32 %v142, %v145
      %v182 = vmax.f32 %v143, %v146
      %v183 = vmax.f32 %v147, %v150
      %v184 = vmax.f32 %v148, %v151
      %v185 = vmax.f32 %v149, %v152
      %v186 = vmax.f32 %v153, %v156
      %v187 = vmax.f32 %v154, %v157
      %v188 = vmax.f32 %v155, %v158
      %v189 = vmax.f32 %v159, %v162
      %v190 = vmax.f32 %v160, %v163
      %v191 = vmax.f32 %v161, %v164
      %v192 = vmax.f32 %v168, %v123
      %v193 = vmax.f32 %v169, %v124
      %v194 = vmax.f32 %v170, %v125
      %v195 = vmax.f32 %v171, %v129
      %v196 = vmax.f32 %v172, %v130
      %v197 = vmax.f32 %v173, %v131
      %v198 = vmax.f32 %v174, %v135
      %v199 = vmax.f32 %v175, %v136
      %v200 = vmax.f32 %v176, %v137
      %v201 = vmax.f32 %v177, %v141
      %v202 = vmax.f32 %v178, %v142
      %v203 = vmax.f32 %v179, %v143
      %v204 = vmax.f32 %v180, %v147
      %v205 = vmax.f32 %v181, %v148
      %v206 = vmax.f32 %v182, %v149
      %v207 = vmax.f32 %v183, %v153
      %v208 = vmax.f32 %v184, %v154
      %v209 = vmax.f32 %v185, %v155
      %v210 = vmax.f32 %v186, %v159
      %v211 = vmax.f32 %v187, %v160
      %v212 = vmax.f32 %v188, %v161
      %v213 = vmax.f32 %v189, %v165
      %v214 = vmax.f32 %v190, %v166
      %v215 = vmax.f32 %v191, %v167
      %216 = vst [vmem:[%s116] sm:$0xff] %v192
      %217 = vst [vmem:[%s116 + $0x8] sm:$0xff] %v193
      %218 = vst [vmem:[%s116 + $0x10] sm:$0x3] %v194
      %219 = vst [vmem:[%s116 + $0x18] sm:$0xff] %v195
      %220 = vst [vmem:[%s116 + $0x20] sm:$0xff] %v196
      %221 = vst [vmem:[%s116 + $0x28] sm:$0x3] %v197
      %222 = vst [vmem:[%s116 + $0x30] sm:$0xff] %v198
      %223 = vst [vmem:[%s116 + $0x38] sm:$0xff] %v199
      %224 = vst [vmem:[%s116 + $0x40] sm:$0x3] %v200
      %225 = vst [vmem:[%s116 + $0x48] sm:$0xff] %v201
      %226 = vst [vmem:[%s116 + $0x50] sm:$0xff] %v202
      %227 = vst [vmem:[%s116 + $0x58] sm:$0x3] %v203
      %228 = vst [vmem:[%s116 + $0x60] sm:$0xff] %v204
      %229 = vst [vmem:[%s116 + $0x68] sm:$0xff] %v205
      %230 = vst [vmem:[%s116 + $0x70] sm:$0x3] %v206
      %231 = vst [vmem:[%s116 + $0x78] sm:$0xff] %v207
      %232 = vst [vmem:[%s116 + $0x80] sm:$0xff] %v208
      %233 = vst [vmem:[%s116 + $0x88] sm:$0x3] %v209
      %234 = vst [vmem:[%s116 + $0x90] sm:$0xff] %v210
      %235 = vst [vmem:[%s116 + $0x98] sm:$0xff] %v211
      %236 = vst [vmem:[%s116 + $0xa0] sm:$0x3] %v212
      %237 = vst [vmem:[%s116 + $0xa8] sm:$0xff] %v213
      %238 = vst [vmem:[%s116 + $0xb0] sm:$0xff] %v214
      %239 = vst [vmem:[%s116 + $0xb8] sm:$0x3] %v215
      %p240 = scmp.lt.s32.totalorder %s12, 1
      %s241 = scalar_select %p240, %s12, 1
      %s242 = smul.addr %s241, 24
      %s243 = smul.addr %s242, 8
      %s244 = scalar_lea.vmem %s1, %s243
      // Predicated region
      $region25: #{_lambda_.24} parent=23 // pred_check
        %p245 = pneg %p56
      $region26: #{_lambda_.24} parent=23 // pred_check_branch
        %247 = sbr.rel (%p245) target = $region28
      $region27: #{_lambda_.24} parent=23 // pred_region
        _
      $region28: #{_lambda_.24} parent=23 // pred_fallthru
        _
    $region24: #{_lambda_.24} parent=5 // pred_fallthru
      _
    %p248 = scmp.le.s32.totalorder 2, %s7
    // Predicated region
    $region29: #{_lambda_.24} parent=5 // pred_check
      %p249 = pneg %p248
    $region30: #{_lambda_.24} parent=5 // pred_check_branch
      %251 = sbr.rel (%p249) target = $region32
    $region31: #{_lambda_.24} parent=5 // pred_region
      %s252 = ssub.s32 %s7, 2
      // Predicated region
      $region33: #{_lambda_.24} parent=31 // pred_check
        %p253 = pneg %p62
      $region34: #{_lambda_.24} parent=31 // pred_check_branch
        %255 = sbr.rel (%p253) target = $region36
      $region35: #{_lambda_.24} parent=31 // pred_region
        %p256 = scmp.lt.s32.totalorder %s13, 1
        %s257 = scalar_select %p256, %s13, 1
        %s258 = smul.addr %s257, 24
        %s259 = smul.addr %s258, 8
        %s260 = scalar_lea.vmem %s1, %s259
      $region36: #{_lambda_.24} parent=31 // pred_fallthru
        _
    $region32: #{_lambda_.24} parent=5 // pred_fallthru
      _
  $region6: #{_lambda_.24} parent=0 // loop_footer
    %s11 = sadd.s32 1, %s7
  $region7: #{_lambda_.24} parent=0 // loop_footer_branch
    %6 = sbr.rel target = $region3
  $region8: #{_lambda_.24} parent=0 // loop_exit
    _

// kernel: _lambda_.25
$region0: #{_lambda_.25}
  #allocation0 [shape = 'u32[]', space=smem, size = 0x4, offset = 0x4, fixed_abs, tag = 'smem constant byte address 0x4 - core index']
  #allocation1 [shape = 'u32[144,128]{1,0:T(1,128)}', space=vmem, size = 0x12000, scoped, tag = 'internal scratch']
  %s0 = inlined_call_operand.vmem [shape: f32[2,9,2,8,128], index: 0, kind: input, shape index: {}]
  %s1 = inlined_call_operand.vmem [shape: f32[2,8,8,128], index: 1, kind: output, shape index: {}]
  %s2 = sld [smem:[#allocation0]]
  $region37: #{_lambda_.25} parent=0
    _
  %s4 = ssub.s32 1, %s2
  %s5 = scalar_select 0, %s4, %s2
  loop: start=0, step=1, limit=4
  $region2: #{_lambda_.25} parent=0 // loop_pre_header
    _
  $region3: #{_lambda_.25} parent=0 // loop_header
    %s7 = sphi 0, %s11
    %p8 = scmp.ge.s32.totalorder %s7, 4
    %s17 = sphi 0, %s19
    %s20 = sphi 0, %s17
    %s21 = sphi 0, %s20
    %s37 = sphi 0, %s21
    %s43 = sphi 0, %s45
    %s46 = sphi 0, %s43
    %s47 = sphi 0, %s46
    %s63 = sphi 0, %s47
  $region4: #{_lambda_.25} parent=0 // loop_header_branch
    %10 = sbr.rel (%p8) target = $region8
  $region5: #{_lambda_.25} parent=0 // loop_body
    %s12 = ssub.s32 %s7, 1
    %s13 = ssub.s32 %s7, 2
    %s14 = sadd.s32 %s7, 1
    %s15 = ssub.s32 %s7, %s14
    %p16 = scmp.eq.s32.totalorder %s15, 0
    %s18 = sadd.s32 %s17, 1
    %s19 = scalar_select %p16, %s17, %s18
    %p22 = pneg %p16
    %p23 = scmp.eq.s32.totalorder %s7, 1
    %p24 = por %p22, %p23
    %p25 = scmp.ne.s32.totalorder %s17, %s20
    %p26 = scmp.eq.s32.totalorder %s7, 0
    %p27 = por %p25, %p26
    %p28 = scmp.ne.s32.totalorder %s17, %s20
    %p29 = scmp.eq.s32.totalorder %s12, 1
    %p30 = por %p28, %p29
    %p31 = scmp.ne.s32.totalorder %s20, %s21
    %p32 = scmp.eq.s32.totalorder %s12, 0
    %p33 = por %p31, %p32
    %p34 = scmp.ne.s32.totalorder %s20, %s21
    %p35 = scmp.eq.s32.totalorder %s13, 1
    %p36 = por %p34, %p35
    %p38 = scmp.ne.s32.totalorder %s21, %s37
    %p39 = scmp.eq.s32.totalorder %s13, 0
    %p40 = por %p38, %p39
    %s41 = ssub.s32 %s7, %s14
    %p42 = scmp.eq.s32.totalorder %s41, 0
    %s44 = sadd.s32 %s43, 1
    %s45 = scalar_select %p42, %s43, %s44
    %p48 = pneg %p42
    %p49 = scmp.eq.s32.totalorder %s7, 1
    %p50 = por %p48, %p49
    %p51 = scmp.ne.s32.totalorder %s43, %s46
    %p52 = scmp.eq.s32.totalorder %s7, 0
    %p53 = por %p51, %p52
    %p54 = scmp.ne.s32.totalorder %s43, %s46
    %p55 = scmp.eq.s32.totalorder %s12, 1
    %p56 = por %p54, %p55
    %p57 = scmp.ne.s32.totalorder %s46, %s47
    %p58 = scmp.eq.s32.totalorder %s12, 0
    %p59 = por %p57, %p58
    %p60 = scmp.ne.s32.totalorder %s46, %s47
    %p61 = scmp.eq.s32.totalorder %s13, 1
    %p62 = por %p60, %p61
    %p64 = scmp.ne.s32.totalorder %s47, %s63
    %p65 = scmp.eq.s32.totalorder %s13, 0
    %p66 = por %p64, %p65
    %p67 = scmp.le.s32.totalorder 1, %s7
    %p68 = scmp.lt.s32.totalorder %s7, 3
    %p69 = pnand %p67, %p68
    %p70 = pneg %p69
    // Predicated region
    $region9: #{_lambda_.25} parent=5 // pred_check
      _
    $region10: #{_lambda_.25} parent=5 // pred_check_branch
      %72 = sbr.rel (%p69) target = $region12
    $region11: #{_lambda_.25} parent=5 // pred_region
      %s73 = ssub.s32 %s7, 1
    $region12: #{_lambda_.25} parent=5 // pred_fallthru
      _
    %p74 = scmp.lt.s32.totalorder %s7, 2
    // Predicated region
    $region13: #{_lambda_.25} parent=5 // pred_check
      %p75 = pneg %p74
    $region14: #{_lambda_.25} parent=5 // pred_check_branch
      %77 = sbr.rel (%p75) target = $region16
    $region15: #{_lambda_.25} parent=5 // pred_region
      // Predicated region
      $region17: #{_lambda_.25} parent=15 // pred_check
        %p78 = pneg %p27
      $region18: #{_lambda_.25} parent=15 // pred_check_branch
        %80 = sbr.rel (%p78) target = $region20
      $region19: #{_lambda_.25} parent=15 // pred_region
        %p81 = scmp.lt.s32.totalorder %s7, 1
        %s82 = scalar_select %p81, %s7, 1
        %s83 = smul.addr %s82, 18
        %s84 = smul.addr %s83, 8
        %s85 = scalar_lea.vmem %s0, %s84
      $region20: #{_lambda_.25} parent=15 // pred_fallthru
        _
    $region16: #{_lambda_.25} parent=5 // pred_fallthru
      _
    %p86 = scmp.le.s32.totalorder 1, %s7
    %p87 = scmp.lt.s32.totalorder %s7, 3
    %p88 = pnand %p86, %p87
    %p89 = pneg %p88
    // Predicated region
    $region21: #{_lambda_.25} parent=5 // pred_check
      _
    $region22: #{_lambda_.25} parent=5 // pred_check_branch
      %91 = sbr.rel (%p88) target = $region24
    $region23: #{_lambda_.25} parent=5 // pred_region
      %s92 = ssub.s32 %s7, 1
      %p93 = scmp.lt.s32.totalorder %s12, 1
      %s94 = scalar_select %p93, %s12, 1
      %s95 = smul.addr %s94, 18
      %s96 = smul.addr %s95, 8
      %s97 = scalar_lea.vmem %s0, %s96
      %p98 = pneg %p33
      %p99 = pneg %p30
      %p100 = pneg %p59
      %p101 = pneg %p56
      %p102 = scmp.lt.s32.totalorder %s12, 1
      %s103 = scalar_select %p102, %s12, 1
      %s104 = smul.addr %s103, 8
      %s105 = smul.addr %s104, 8
      %s106 = scalar_lea.vmem %s1, %s105
      %p107 = scmp.lt.s32.totalorder %s12, 1
      %s108 = scalar_select %p107, %s12, 1
      %s109 = smul.addr %s108, 18
      %s110 = smul.addr %s109, 8
      %s111 = scalar_lea.vmem %s0, %s110
      %p112 = scmp.lt.s32.totalorder %s12, 1
      %s113 = scalar_select %p112, %s12, 1
      %s114 = smul.addr %s113, 8
      %s115 = smul.addr %s114, 8
      %s116 = scalar_lea.vmem %s1, %s115
      %v117 = vld [vmem:[%s111] sm:$0xff]
      %v118 = vld [vmem:[%s111 + $0x8] sm:$0xff]
      %v119 = vld [vmem:[%s111 + $0x10] sm:$0xff]
      %v120 = vld [vmem:[%s111 + $0x18] sm:$0xff]
      %v121 = vld [vmem:[%s111 + $0x20] sm:$0xff]
      %v122 = vld [vmem:[%s111 + $0x28] sm:$0xff]
      %v123 = vld [vmem:[%s111 + $0x30] sm:$0xff]
      %v124 = vld [vmem:[%s111 + $0x38] sm:$0xff]
      %v125 = vld [vmem:[%s111 + $0x40] sm:$0xff]
      %v126 = vld [vmem:[%s111 + $0x48] sm:$0xff]
      %v127 = vld [vmem:[%s111 + $0x50] sm:$0xff]
      %v128 = vld [vmem:[%s111 + $0x58] sm:$0xff]
      %v129 = vld [vmem:[%s111 + $0x60] sm:$0xff]
      %v130 = vld [vmem:[%s111 + $0x68] sm:$0xff]
      %v131 = vld [vmem:[%s111 + $0x70] sm:$0xff]
      %v132 = vld [vmem:[%s111 + $0x78] sm:$0xff]
      %v133 = vld [vmem:[%s111 + $0x80] sm:$0xff]
      %v134 = vmax.f32 %v117, %v118
      %v135 = vmax.f32 %v119, %v120
      %v136 = vmax.f32 %v121, %v122
      %v137 = vmax.f32 %v123, %v124
      %v138 = vmax.f32 %v125, %v126
      %v139 = vmax.f32 %v127, %v128
      %v140 = vmax.f32 %v129, %v130
      %v141 = vmax.f32 %v131, %v132
      %v142 = vmax.f32 %v134, %v119
      %v143 = vmax.f32 %v135, %v121
      %v144 = vmax.f32 %v136, %v123
      %v145 = vmax.f32 %v137, %v125
      %v146 = vmax.f32 %v138, %v127
      %v147 = vmax.f32 %v139, %v129
      %v148 = vmax.f32 %v140, %v131
      %v149 = vmax.f32 %v141, %v133
      %150 = vst [vmem:[%s116] sm:$0xff] %v142
      %151 = vst [vmem:[%s116 + $0x8] sm:$0xff] %v143
      %152 = vst [vmem:[%s116 + $0x10] sm:$0xff] %v144
      %153 = vst [vmem:[%s116 + $0x18] sm:$0xff] %v145
      %154 = vst [vmem:[%s116 + $0x20] sm:$0xff] %v146
      %155 = vst [vmem:[%s116 + $0x28] sm:$0xff] %v147
      %156 = vst [vmem:[%s116 + $0x30] sm:$0xff] %v148
      %157 = vst [vmem:[%s116 + $0x38] sm:$0xff] %v149
      %p158 = scmp.lt.s32.totalorder %s12, 1
      %s159 = scalar_select %p158, %s12, 1
      %s160 = smul.addr %s159, 8
      %s161 = smul.addr %s160, 8
      %s162 = scalar_lea.vmem %s1, %s161
      // Predicated region
      $region25: #{_lambda_.25} parent=23 // pred_check
        %p163 = pneg %p56
      $region26: #{_lambda_.25} parent=23 // pred_check_branch
        %165 = sbr.rel (%p163) target = $region28
      $region27: #{_lambda_.25} parent=23 // pred_region
        _
      $region28: #{_lambda_.25} parent=23 // pred_fallthru
        _
    $region24: #{_lambda_.25} parent=5 // pred_fallthru
      _
    %p166 = scmp.le.s32.totalorder 2, %s7
    // Predicated region
    $region29: #{_lambda_.25} parent=5 // pred_check
      %p167 = pneg %p166
    $region30: #{_lambda_.25} parent=5 // pred_check_branch
      %169 = sbr.rel (%p167) target = $region32
    $region31: #{_lambda_.25} parent=5 // pred_region
      %s170 = ssub.s32 %s7, 2
      // Predicated region
      $region33: #{_lambda_.25} parent=31 // pred_check
        %p171 = pneg %p62
      $region34: #{_lambda_.25} parent=31 // pred_check_branch
        %173 = sbr.rel (%p171) target = $region36
      $region35: #{_lambda_.25} parent=31 // pred_region
        %p174 = scmp.lt.s32.totalorder %s13, 1
        %s175 = scalar_select %p174, %s13, 1
        %s176 = smul.addr %s175, 8
        %s177 = smul.addr %s176, 8
        %s178 = scalar_lea.vmem %s1, %s177
      $region36: #{_lambda_.25} parent=31 // pred_fallthru
        _
    $region32: #{_lambda_.25} parent=5 // pred_fallthru
      _
  $region6: #{_lambda_.25} parent=0 // loop_footer
    %s11 = sadd.s32 1, %s7
  $region7: #{_lambda_.25} parent=0 // loop_footer_branch
    %6 = sbr.rel target = $region3
  $region8: #{_lambda_.25} parent=0 // loop_exit
    _

// kernel: _lambda_.23
$region0: #{_lambda_.23}
  #allocation0 [shape = 'u32[]', space=smem, size = 0x4, offset = 0x4, fixed_abs, tag = 'smem constant byte address 0x4 - core index']
  #allocation1 [shape = 'u32[144,128]{1,0:T(1,128)}', space=vmem, size = 0x12000, scoped, tag = 'internal scratch']
  %s0 = inlined_call_operand.vmem [shape: f32[512,147], index: 0, kind: input, shape index: {}]
  %s1 = inlined_call_operand.vmem [shape: f32[147,128], index: 1, kind: input, shape index: {}]
  %s2 = inlined_call_operand.vmem [shape: f32[1,128], index: 2, kind: input, shape index: {}]
  %s3 = inlined_call_operand.vmem [shape: f32[1,128], index: 3, kind: input, shape index: {}]
  %s4 = inlined_call_operand.vmem [shape: f32[512,128], index: 4, kind: output, shape index: {}]
  %s5 = sld [smem:[#allocation0]]
  $region49: #{_lambda_.23} parent=0
    _
  %s7 = ssub.s32 1, %s5
  %s8 = scalar_select 0, %s7, %s5
  loop: start=0, step=1, limit=4
  $region2: #{_lambda_.23} parent=0 // loop_pre_header
    _
  $region3: #{_lambda_.23} parent=0 // loop_header
    %s10 = sphi 0, %s14
    %p11 = scmp.ge.s32.totalorder %s10, 4
    %s20 = sphi 0, %s22
    %s23 = sphi 0, %s20
    %s24 = sphi 0, %s23
    %s40 = sphi 0, %s24
    %s44 = sphi 0, %s44
    %s46 = sphi 0, %s44
    %s47 = sphi 0, %s46
    %s61 = sphi 0, %s47
    %s65 = sphi 0, %s65
    %s67 = sphi 0, %s65
    %s68 = sphi 0, %s67
    %s82 = sphi 0, %s68
    %s86 = sphi 0, %s86
    %s88 = sphi 0, %s86
    %s89 = sphi 0, %s88
    %s103 = sphi 0, %s89
    %s109 = sphi 0, %s111
    %s112 = sphi 0, %s109
    %s113 = sphi 0, %s112
    %s129 = sphi 0, %s113
  $region4: #{_lambda_.23} parent=0 // loop_header_branch
    %13 = sbr.rel (%p11) target = $region8
  $region5: #{_lambda_.23} parent=0 // loop_body
    %s15 = ssub.s32 %s10, 1
    %s16 = ssub.s32 %s10, 2
    %s17 = sadd.s32 %s10, 1
    %s18 = ssub.s32 %s10, %s17
    %p19 = scmp.eq.s32.totalorder %s18, 0
    %s21 = sadd.s32 %s20, 1
    %s22 = scalar_select %p19, %s20, %s21
    %p25 = pneg %p19
    %p26 = scmp.eq.s32.totalorder %s10, 1
    %p27 = por %p25, %p26
    %p28 = scmp.ne.s32.totalorder %s20, %s23
    %p29 = scmp.eq.s32.totalorder %s10, 0
    %p30 = por %p28, %p29
    %p31 = scmp.ne.s32.totalorder %s20, %s23
    %p32 = scmp.eq.s32.totalorder %s15, 1
    %p33 = por %p31, %p32
    %p34 = scmp.ne.s32.totalorder %s23, %s24
    %p35 = scmp.eq.s32.totalorder %s15, 0
    %p36 = por %p34, %p35
    %p37 = scmp.ne.s32.totalorder %s23, %s24
    %p38 = scmp.eq.s32.totalorder %s16, 1
    %p39 = por %p37, %p38
    %p41 = scmp.ne.s32.totalorder %s24, %s40
    %p42 = scmp.eq.s32.totalorder %s16, 0
    %p43 = por %p41, %p42
    %s45 = sadd.s32 %s44, 1
    %p48 = scmp.eq.s32.totalorder %s10, 1
    %p49 = scmp.ne.s32.totalorder %s44, %s46
    %p50 = scmp.eq.s32.totalorder %s10, 0
    %p51 = por %p49, %p50
    %p52 = scmp.ne.s32.totalorder %s44, %s46
    %p53 = scmp.eq.s32.totalorder %s15, 1
    %p54 = por %p52, %p53
    %p55 = scmp.ne.s32.totalorder %s46, %s47
    %p56 = scmp.eq.s32.totalorder %s15, 0
    %p57 = por %p55, %p56
    %p58 = scmp.ne.s32.totalorder %s46, %s47
    %p59 = scmp.eq.s32.totalorder %s16, 1
    %p60 = por %p58, %p59
    %p62 = scmp.ne.s32.totalorder %s47, %s61
    %p63 = scmp.eq.s32.totalorder %s16, 0
    %p64 = por %p62, %p63
    %s66 = sadd.s32 %s65, 1
    %p69 = scmp.eq.s32.totalorder %s10, 1
    %p70 = scmp.ne.s32.totalorder %s65, %s67
    %p71 = scmp.eq.s32.totalorder %s10, 0
    %p72 = por %p70, %p71
    %p73 = scmp.ne.s32.totalorder %s65, %s67
    %p74 = scmp.eq.s32.totalorder %s15, 1
    %p75 = por %p73, %p74
    %p76 = scmp.ne.s32.totalorder %s67, %s68
    %p77 = scmp.eq.s32.totalorder %s15, 0
    %p78 = por %p76, %p77
    %p79 = scmp.ne.s32.totalorder %s67, %s68
    %p80 = scmp.eq.s32.totalorder %s16, 1
    %p81 = por %p79, %p80
    %p83 = scmp.ne.s32.totalorder %s68, %s82
    %p84 = scmp.eq.s32.totalorder %s16, 0
    %p85 = por %p83, %p84
    %s87 = sadd.s32 %s86, 1
    %p90 = scmp.eq.s32.totalorder %s10, 1
    %p91 = scmp.ne.s32.totalorder %s86, %s88
    %p92 = scmp.eq.s32.totalorder %s10, 0
    %p93 = por %p91, %p92
    %p94 = scmp.ne.s32.totalorder %s86, %s88
    %p95 = scmp.eq.s32.totalorder %s15, 1
    %p96 = por %p94, %p95
    %p97 = scmp.ne.s32.totalorder %s88, %s89
    %p98 = scmp.eq.s32.totalorder %s15, 0
    %p99 = por %p97, %p98
    %p100 = scmp.ne.s32.totalorder %s88, %s89
    %p101 = scmp.eq.s32.totalorder %s16, 1
    %p102 = por %p100, %p101
    %p104 = scmp.ne.s32.totalorder %s89, %s103
    %p105 = scmp.eq.s32.totalorder %s16, 0
    %p106 = por %p104, %p105
    %s107 = ssub.s32 %s10, %s17
    %p108 = scmp.eq.s32.totalorder %s107, 0
    %s110 = sadd.s32 %s109, 1
    %s111 = scalar_select %p108, %s109, %s110
    %p114 = pneg %p108
    %p115 = scmp.eq.s32.totalorder %s10, 1
    %p116 = por %p114, %p115
    %p117 = scmp.ne.s32.totalorder %s109, %s112
    %p118 = scmp.eq.s32.totalorder %s10, 0
    %p119 = por %p117, %p118
    %p120 = scmp.ne.s32.totalorder %s109, %s112
    %p121 = scmp.eq.s32.totalorder %s15, 1
    %p122 = por %p120, %p121
    %p123 = scmp.ne.s32.totalorder %s112, %s113
    %p124 = scmp.eq.s32.totalorder %s15, 0
    %p125 = por %p123, %p124
    %p126 = scmp.ne.s32.totalorder %s112, %s113
    %p127 = scmp.eq.s32.totalorder %s16, 1
    %p128 = por %p126, %p127
    %p130 = scmp.ne.s32.totalorder %s113, %s129
    %p131 = scmp.eq.s32.totalorder %s16, 0
    %p132 = por %p130, %p131
    %p133 = scmp.le.s32.totalorder 1, %s10
    %p134 = scmp.lt.s32.totalorder %s10, 3
    %p135 = pnand %p133, %p134
    %p136 = pneg %p135
    // Predicated region
    $region9: #{_lambda_.23} parent=5 // pred_check
      _
    $region10: #{_lambda_.23} parent=5 // pred_check_branch
      %138 = sbr.rel (%p135) target = $region12
    $region11: #{_lambda_.23} parent=5 // pred_region
      %s139 = ssub.s32 %s10, 1
      // Predicated region
      $region13: #{_lambda_.23} parent=11 // pred_check
        %p140 = pneg %p57
      $region14: #{_lambda_.23} parent=11 // pred_check_branch
        %142 = sbr.rel (%p140) target = $region16
      $region15: #{_lambda_.23} parent=11 // pred_region
        _
      $region16: #{_lambda_.23} parent=11 // pred_fallthru
        _
      // Predicated region
      $region17: #{_lambda_.23} parent=11 // pred_check
        %p143 = pneg %p78
      $region18: #{_lambda_.23} parent=11 // pred_check_branch
        %145 = sbr.rel (%p143) target = $region20
      $region19: #{_lambda_.23} parent=11 // pred_region
        _
      $region20: #{_lambda_.23} parent=11 // pred_fallthru
        _
      // Predicated region
      $region21: #{_lambda_.23} parent=11 // pred_check
        %p146 = pneg %p99
      $region22: #{_lambda_.23} parent=11 // pred_check_branch
        %148 = sbr.rel (%p146) target = $region24
      $region23: #{_lambda_.23} parent=11 // pred_region
        _
      $region24: #{_lambda_.23} parent=11 // pred_fallthru
        _
    $region12: #{_lambda_.23} parent=5 // pred_fallthru
      _
    %p149 = scmp.lt.s32.totalorder %s10, 2
    // Predicated region
    $region25: #{_lambda_.23} parent=5 // pred_check
      %p150 = pneg %p149
    $region26: #{_lambda_.23} parent=5 // pred_check_branch
      %152 = sbr.rel (%p150) target = $region28
    $region27: #{_lambda_.23} parent=5 // pred_region
      // Predicated region
      $region29: #{_lambda_.23} parent=27 // pred_check
        %p153 = pneg %p30
      $region30: #{_lambda_.23} parent=27 // pred_check_branch
        %155 = sbr.rel (%p153) target = $region32
      $region31: #{_lambda_.23} parent=27 // pred_region
        %s156 = smul.u32 32, %s10
        %p157 = scmp.lt.s32.totalorder %s156, 63
        %s158 = scalar_select %p157, %s156, 63
        %s159 = smul.addr %s158, 2
        %s160 = smul.addr %s159, 8
        %s161 = scalar_lea.vmem %s0, %s160
        %s162 = smul.u32 32, %s10
      $region32: #{_lambda_.23} parent=27 // pred_fallthru
        _
    $region28: #{_lambda_.23} parent=5 // pred_fallthru
      _
    %p163 = scmp.le.s32.totalorder 1, %s10
    %p164 = scmp.lt.s32.totalorder %s10, 3
    %p165 = pnand %p163, %p164
    %p166 = pneg %p165
    // Predicated region
    $region33: #{_lambda_.23} parent=5 // pred_check
      _
    $region34: #{_lambda_.23} parent=5 // pred_check_branch
      %168 = sbr.rel (%p165) target = $region36
    $region35: #{_lambda_.23} parent=5 // pred_region
      %s169 = ssub.s32 %s10, 1
      %s170 = smul.u32 32, %s15
      %p171 = scmp.lt.s32.totalorder %s170, 63
      %s172 = scalar_select %p171, %s170, 63
      %s173 = smul.addr %s172, 2
      %s174 = smul.addr %s173, 8
      %s175 = scalar_lea.vmem %s0, %s174
      %p176 = pneg %p36
      %p177 = pneg %p33
      %p178 = pneg %p57
      %p179 = pneg %p54
      %p180 = pneg %p78
      %p181 = pneg %p75
      %p182 = pneg %p99
      %p183 = pneg %p96
      %p184 = pneg %p125
      %p185 = pneg %p122
      %s186 = smul.u32 32, %s15
      %p187 = scmp.lt.s32.totalorder %s186, 63
      %s188 = scalar_select %p187, %s186, 63
      %s189 = smul.addr %s188, 8
      %s190 = scalar_lea.vmem %s4, %s189
      %s191 = smul.u32 32, %s15
      %p192 = scmp.lt.s32.totalorder %s191, 63
      %s193 = scalar_select %p192, %s191, 63
      %s194 = smul.addr %s193, 2
      %s195 = smul.addr %s194, 8
      %s196 = scalar_lea.vmem %s0, %s195
      %s197 = smul.u32 32, %s15
      %s198 = smul.u32 32, %s15
      %p199 = scmp.lt.s32.totalorder %s198, 63
      %s200 = scalar_select %p199, %s198, 63
      %s201 = smul.addr %s200, 8
      %s202 = scalar_lea.vmem %s4, %s201
      %s203 = smul.u32 32, %s15
      %v204 = vld [vmem:[%s196] sm:$0xff]
      %v205 = vld [vmem:[%s196 + $0x8] sm:$0xff]
      %v206 = vld [vmem:[%s196 + $0x10] sm:$0xff]
      %v207 = vld [vmem:[%s196 + $0x18] sm:$0xff]
      %v208 = vld [vmem:[%s196 + $0x20] sm:$0xff]
      %v209 = vld [vmem:[%s196 + $0x28] sm:$0xff]
      %v210 = vld [vmem:[%s196 + $0x30] sm:$0xff]
      %v211 = vld [vmem:[%s196 + $0x38] sm:$0xff]
      %v212 = vld [vmem:[%s196 + $0x40] sm:$0xff]
      %v213 = vld [vmem:[%s196 + $0x48] sm:$0xff]
      %v214 = vld [vmem:[%s196 + $0x50] sm:$0xff]
      %v215 = vld [vmem:[%s196 + $0x58] sm:$0xff]
      %v216 = vld [vmem:[%s196 + $0x60] sm:$0xff]
      %v217 = vld [vmem:[%s196 + $0x68] sm:$0xff]
      %v218 = vld [vmem:[%s196 + $0x70] sm:$0xff]
      %v219 = vld [vmem:[%s196 + $0x78] sm:$0xff]
      %v220 = vld [vmem:[%s196 + $0x80] sm:$0xff]
      %v221 = vld [vmem:[%s196 + $0x88] sm:$0xff]
      %v222 = vld [vmem:[%s196 + $0x90] sm:$0xff]
      %v223 = vld [vmem:[%s196 + $0x98] sm:$0xff]
      %v224 = vld [vmem:[%s196 + $0xa0] sm:$0xff]
      %v225 = vld [vmem:[%s196 + $0xa8] sm:$0xff]
      %v226 = vld [vmem:[%s196 + $0xb0] sm:$0xff]
      %v227 = vld [vmem:[%s196 + $0xb8] sm:$0xff]
      %v228 = vld [vmem:[%s196 + $0xc0] sm:$0xff]
      %v229 = vld [vmem:[%s196 + $0xc8] sm:$0xff]
      %v230 = vld [vmem:[%s196 + $0xd0] sm:$0xff]
      %v231 = vld [vmem:[%s196 + $0xd8] sm:$0xff]
      %v232 = vld [vmem:[%s196 + $0xe0] sm:$0xff]
      %v233 = vld [vmem:[%s196 + $0xe8] sm:$0xff]
      %v234 = vld [vmem:[%s196 + $0xf0] sm:$0xff]
      %v235 = vld [vmem:[%s196 + $0xf8] sm:$0xff]
      %v236 = vld [vmem:[%s196 + $0x100] sm:$0xff]
      %v237 = vld [vmem:[%s196 + $0x108] sm:$0xff]
      %v238 = vld [vmem:[%s196 + $0x110] sm:$0xff]
      %v239 = vld [vmem:[%s196 + $0x118] sm:$0xff]
      %v240 = vld [vmem:[%s196 + $0x120] sm:$0xff]
      %v241 = vld [vmem:[%s196 + $0x128] sm:$0xff]
      %v242 = vld [vmem:[%s196 + $0x130] sm:$0xff]
      %v243 = vld [vmem:[%s196 + $0x138] sm:$0xff]
      %v244 = vld [vmem:[%s196 + $0x140] sm:$0xff]
      %v245 = vld [vmem:[%s196 + $0x148] sm:$0xff]
      %v246 = vld [vmem:[%s196 + $0x150] sm:$0xff]
      %v247 = vld [vmem:[%s196 + $0x158] sm:$0xff]
      %v248 = vld [vmem:[%s196 + $0x160] sm:$0xff]
      %v249 = vld [vmem:[%s196 + $0x168] sm:$0xff]
      %v250 = vld [vmem:[%s196 + $0x170] sm:$0xff]
      %v251 = vld [vmem:[%s196 + $0x178] sm:$0xff]
      %v252 = vld [vmem:[%s196 + $0x180] sm:$0xff]
      %v253 = vld [vmem:[%s196 + $0x188] sm:$0xff]
      %v254 = vld [vmem:[%s196 + $0x190] sm:$0xff]
      %v255 = vld [vmem:[%s196 + $0x198] sm:$0xff]
      %v256 = vld [vmem:[%s196 + $0x1a0] sm:$0xff]
      %v257 = vld [vmem:[%s196 + $0x1a8] sm:$0xff]
      %v258 = vld [vmem:[%s196 + $0x1b0] sm:$0xff]
      %v259 = vld [vmem:[%s196 + $0x1b8] sm:$0xff]
      %v260 = vld [vmem:[%s196 + $0x1c0] sm:$0xff]
      %v261 = vld [vmem:[%s196 + $0x1c8] sm:$0xff]
      %v262 = vld [vmem:[%s196 + $0x1d0] sm:$0xff]
      %v263 = vld [vmem:[%s196 + $0x1d8] sm:$0xff]
      %v264 = vld [vmem:[%s196 + $0x1e0] sm:$0xff]
      %v265 = vld [vmem:[%s196 + $0x1e8] sm:$0xff]
      %v266 = vld [vmem:[%s196 + $0x1f0] sm:$0xff]
      %v267 = vld [vmem:[%s196 + $0x1f8] sm:$0xff]
      %v268 = vld [vmem:[%s1] sm:$0xff]
      %v269 = vld [vmem:[%s1 + $0x8] sm:$0xff]
      %v270 = vld [vmem:[%s1 + $0x10] sm:$0xff]
      %v271 = vld [vmem:[%s1 + $0x18] sm:$0xff]
      %v272 = vld [vmem:[%s1 + $0x20] sm:$0xff]
      %v273 = vld [vmem:[%s1 + $0x28] sm:$0xff]
      %v274 = vld [vmem:[%s1 + $0x30] sm:$0xff]
      %v275 = vld [vmem:[%s1 + $0x38] sm:$0xff]
      %v276 = vld [vmem:[%s1 + $0x40] sm:$0xff]
      %v277 = vld [vmem:[%s1 + $0x48] sm:$0xff]
      %v278 = vld [vmem:[%s1 + $0x50] sm:$0xff]
      %v279 = vld [vmem:[%s1 + $0x58] sm:$0xff]
      %v280 = vld [vmem:[%s1 + $0x60] sm:$0xff]
      %v281 = vld [vmem:[%s1 + $0x68] sm:$0xff]
      %v282 = vld [vmem:[%s1 + $0x70] sm:$0xff]
      %v283 = vld [vmem:[%s1 + $0x78] sm:$0xff]
      %v284 = vld [vmem:[%s1 + $0x80] sm:$0xff]
      %v285 = vld [vmem:[%s1 + $0x88] sm:$0xff]
      %v286 = vld [vmem:[%s1 + $0x90] sm:$0x7]
      %vm287 = vcmask 154624
      %v289 = vsel %vm287, %v205, 0
      %v292 = vsel %vm287, %v207, 0
      %v295 = vsel %vm287, %v209, 0
      %v298 = vsel %vm287, %v211, 0
      %v301 = vsel %vm287, %v213, 0
      %v304 = vsel %vm287, %v215, 0
      %v307 = vsel %vm287, %v217, 0
      %v310 = vsel %vm287, %v219, 0
      %v313 = vsel %vm287, %v221, 0
      %v316 = vsel %vm287, %v223, 0
      %v319 = vsel %vm287, %v225, 0
      %v322 = vsel %vm287, %v227, 0
      %v325 = vsel %vm287, %v229, 0
      %v328 = vsel %vm287, %v231, 0
      %v331 = vsel %vm287, %v233, 0
      %v334 = vsel %vm287, %v235, 0
      %v337 = vsel %vm287, %v237, 0
      %v340 = vsel %vm287, %v239, 0
      %v343 = vsel %vm287, %v241, 0
      %v346 = vsel %vm287, %v243, 0
      %v349 = vsel %vm287, %v245, 0
      %v352 = vsel %vm287, %v247, 0
      %v355 = vsel %vm287, %v249, 0
      %v358 = vsel %vm287, %v251, 0
      %v361 = vsel %vm287, %v253, 0
      %v364 = vsel %vm287, %v255, 0
      %v367 = vsel %vm287, %v257, 0
      %v370 = vsel %vm287, %v259, 0
      %v373 = vsel %vm287, %v261, 0
      %v376 = vsel %vm287, %v263, 0
      %v379 = vsel %vm287, %v265, 0
      %v382 = vsel %vm287, %v267, 0
      %vm384 = vcmask 1042432
      %v386 = vsel %vm384, %v286, 0
      %388 = vmatprep.subr.mxu0 0.0
      %389 = vmatpush1.msra.mxu0 %v268
      %390 = vmatprep.subr.mxu0 0.0
      %391 = vmatpush1.msra.mxu0 %v269
      %392 = vmatprep.subr.mxu0 0.0
      %393 = vmatpush1.msra.mxu0 %v270
      %394 = vmatprep.subr.mxu0 0.0
      %395 = vmatpush1.msra.mxu0 %v271
      %396 = vmatprep.subr.mxu0 0.0
      %397 = vmatpush1.msra.mxu0 %v272
      %398 = vmatprep.subr.mxu0 0.0
      %399 = vmatpush1.msra.mxu0 %v273
      %400 = vmatprep.subr.mxu0 0.0
      %401 = vmatpush1.msra.mxu0 %v274
      %402 = vmatprep.subr.mxu0 0.0
      %403 = vmatpush1.msra.mxu0 %v275
      %404 = vmatprep.subr.mxu0 0.0
      %405 = vmatpush1.msra.mxu0 %v276
      %406 = vmatprep.subr.mxu0 0.0
      %407 = vmatpush1.msra.mxu0 %v277
      %408 = vmatprep.subr.mxu0 0.0
      %409 = vmatpush1.msra.mxu0 %v278
      %410 = vmatprep.subr.mxu0 0.0
      %411 = vmatpush1.msra.mxu0 %v279
      %412 = vmatprep.subr.mxu0 0.0
      %413 = vmatpush1.msra.mxu0 %v280
      %414 = vmatprep.subr.mxu0 0.0
      %415 = vmatpush1.msra.mxu0 %v281
      %416 = vmatprep.subr.mxu0 0.0
      %417 = vmatpush1.msra.mxu0 %v282
      %418 = vmatprep.subr.mxu0 0.0
      %419 = vmatpush1.msra.mxu0 %v283
      %420 = vmatprep.subr.mxu0 0.0
      %421 = vmatpush1.msra.mxu0 %v284
      %422 = vmatprep.subr.mxu0 0.0
      %423 = vmatpush1.msra.mxu0 %v285
      %424 = vmatprep.subr.mxu0 0.0
      %425 = vmatpush1.msra.mxu0 %v386
      %426 = vmatprep.subr.mxu0 0.0
      %427 = vmatpush1.msra.mxu0 0.0
      %428 = vmatprep.subr.mxu0 0.0
      %429 = vmatpush1.msra.mxu0 0.0
      %430 = vmatprep.subr.mxu0 0.0
      %431 = vmatpush1.msra.mxu0 0.0
      %432 = vmatprep.subr.mxu0 0.0
      %433 = vmatpush1.msra.mxu0 0.0
      %434 = vmatprep.subr.mxu0 0.0
      %435 = vmatpush1.msra.mxu0 0.0
      %436 = vmatprep.subr.mxu0 0.0
      %437 = vmatpush1.msra.mxu0 0.0
      %438 = vmatprep.subr.mxu0 0.0
      %439 = vmatpush1.msra.mxu0 0.0
      %440 = vmatprep.subr.mxu0 0.0
      %441 = vmatpush1.msra.mxu0 0.0
      %442 = vmatprep.subr.mxu0 0.0
      %443 = vmatpush1.msra.mxu0 0.0
      %444 = vmatprep.subr.mxu0 0.0
      %445 = vmatpush1.msra.mxu0 0.0
      %446 = vmatprep.subr.mxu0 0.0
      %447 = vmatpush1.msra.mxu0 0.0
      %448 = vmatprep.subr.mxu0 0.0
      %449 = vmatpush1.msra.mxu0 0.0
      %450 = vmatprep.subr.mxu0 0.0
      %451 = vmatpush1.msra.mxu0 0.0
      %452 = vmatprep.mubr.f32.mxu0 %v289
      %453 = vmatmul.mubr.f32.gmra.mrb[0].mxu0 %v204
      %v454 = vpop.f32.mrb[0].mxu0
      %v455 = vadd.f32 0.0, %v454
      %v456 = vpop.f32.mrb[0].mxu0
      %457 = vmatprep.mubr.f32.mxu0 %v292
      %458 = vmatmul.mubr.f32.gmra.mrb[0].mxu0 %v206
      %v459 = vpop.f32.mrb[0].mxu0
      %v460 = vadd.f32 0.0, %v459
      %v461 = vpop.f32.mrb[0].mxu0
      %462 = vmatprep.mubr.f32.mxu0 %v295
      %463 = vmatmul.mubr.f32.gmra.mrb[0].mxu0 %v208
      %v464 = vpop.f32.mrb[0].mxu0
      %v465 = vadd.f32 0.0, %v464
      %v466 = vpop.f32.mrb[0].mxu0
      %467 = vmatprep.mubr.f32.mxu0 %v298
      %468 = vmatmul.mubr.f32.gmra.mrb[0].mxu0 %v210
      %v469 = vpop.f32.mrb[0].mxu0
      %v470 = vadd.f32 0.0, %v469
      %v471 = vpop.f32.mrb[0].mxu0
      %472 = vmatprep.mubr.f32.mxu0 %v301
      %473 = vmatmul.mubr.f32.gmra.mrb[0].mxu0 %v212
      %v474 = vpop.f32.mrb[0].mxu0
      %v475 = vadd.f32 0.0, %v474
      %v476 = vpop.f32.mrb[0].mxu0
      %477 = vmatprep.mubr.f32.mxu0 %v304
      %478 = vmatmul.mubr.f32.gmra.mrb[0].mxu0 %v214
      %v479 = vpop.f32.mrb[0].mxu0
      %v480 = vadd.f32 0.0, %v479
      %v481 = vpop.f32.mrb[0].mxu0
      %482 = vmatprep.mubr.f32.mxu0 %v307
      %483 = vmatmul.mubr.f32.gmra.mrb[0].mxu0 %v216
      %v484 = vpop.f32.mrb[0].mxu0
      %v485 = vadd.f32 0.0, %v484
      %v486 = vpop.f32.mrb[0].mxu0
      %487 = vmatprep.mubr.f32.mxu0 %v310
      %488 = vmatmul.mubr.f32.gmra.mrb[0].mxu0 %v218
      %v489 = vpop.f32.mrb[0].mxu0
      %v490 = vadd.f32 0.0, %v489
      %v491 = vpop.f32.mrb[0].mxu0
      %492 = vmatprep.mubr.f32.mxu0 %v313
      %493 = vmatmul.mubr.f32.gmra.mrb[0].mxu0 %v220
      %v494 = vpop.f32.mrb[0].mxu0
      %v495 = vadd.f32 0.0, %v494
      %v496 = vpop.f32.mrb[0].mxu0
      %497 = vmatprep.mubr.f32.mxu0 %v316
      %498 = vmatmul.mubr.f32.gmra.mrb[0].mxu0 %v222
      %v499 = vpop.f32.mrb[0].mxu0
      %v500 = vadd.f32 0.0, %v499
      %v501 = vpop.f32.mrb[0].mxu0
      %502 = vmatprep.mubr.f32.mxu0 %v319
      %503 = vmatmul.mubr.f32.gmra.mrb[0].mxu0 %v224
      %v504 = vpop.f32.mrb[0].mxu0
      %v505 = vadd.f32 0.0, %v504
      %v506 = vpop.f32.mrb[0].mxu0
      %507 = vmatprep.mubr.f32.mxu0 %v322
      %508 = vmatmul.mubr.f32.gmra.mrb[0].mxu0 %v226
      %v509 = vpop.f32.mrb[0].mxu0
      %v510 = vadd.f32 0.0, %v509
      %v511 = vpop.f32.mrb[0].mxu0
      %512 = vmatprep.mubr.f32.mxu0 %v325
      %513 = vmatmul.mubr.f32.gmra.mrb[0].mxu0 %v228
      %v514 = vpop.f32.mrb[0].mxu0
      %v515 = vadd.f32 0.0, %v514
      %v516 = vpop.f32.mrb[0].mxu0
      %517 = vmatprep.mubr.f32.mxu0 %v328
      %518 = vmatmul.mubr.f32.gmra.mrb[0].mxu0 %v230
      %v519 = vpop.f32.mrb[0].mxu0
      %v520 = vadd.f32 0.0, %v519
      %v521 = vpop.f32.mrb[0].mxu0
      %522 = vmatprep.mubr.f32.mxu0 %v331
      %523 = vmatmul.mubr.f32.gmra.mrb[0].mxu0 %v232
      %v524 = vpop.f32.mrb[0].mxu0
      %v525 = vadd.f32 0.0, %v524
      %v526 = vpop.f32.mrb[0].mxu0
      %527 = vmatprep.mubr.f32.mxu0 %v334
      %528 = vmatmul.mubr.f32.gmra.mrb[0].mxu0 %v234
      %v529 = vpop.f32.mrb[0].mxu0
      %v530 = vadd.f32 0.0, %v529
      %v531 = vpop.f32.mrb[0].mxu0
      %532 = vmatprep.mubr.f32.mxu0 %v337
      %533 = vmatmul.mubr.f32.gmra.mrb[0].mxu0 %v236
      %v534 = vpop.f32.mrb[0].mxu0
      %v535 = vadd.f32 0.0, %v534
      %v536 = vpop.f32.mrb[0].mxu0
      %537 = vmatprep.mubr.f32.mxu0 %v340
      %538 = vmatmul.mubr.f32.gmra.mrb[0].mxu0 %v238
      %v539 = vpop.f32.mrb[0].mxu0
      %v540 = vadd.f32 0.0, %v539
      %v541 = vpop.f32.mrb[0].mxu0
      %542 = vmatprep.mubr.f32.mxu0 %v343
      %543 = vmatmul.mubr.f32.gmra.mrb[0].mxu0 %v240
      %v544 = vpop.f32.mrb[0].mxu0
      %v545 = vadd.f32 0.0, %v544
      %v546 = vpop.f32.mrb[0].mxu0
      %547 = vmatprep.mubr.f32.mxu0 %v346
      %548 = vmatmul.mubr.f32.gmra.mrb[0].mxu0 %v242
      %v549 = vpop.f32.mrb[0].mxu0
      %v550 = vadd.f32 0.0, %v549
      %v551 = vpop.f32.mrb[0].mxu0
      %552 = vmatprep.mubr.f32.mxu0 %v349
      %553 = vmatmul.mubr.f32.gmra.mrb[0].mxu0 %v244
      %v554 = vpop.f32.mrb[0].mxu0
      %v555 = vadd.f32 0.0, %v554
      %v556 = vpop.f32.mrb[0].mxu0
      %557 = vmatprep.mubr.f32.mxu0 %v352
      %558 = vmatmul.mubr.f32.gmra.mrb[0].mxu0 %v246
      %v559 = vpop.f32.mrb[0].mxu0
      %v560 = vadd.f32 0.0, %v559
      %v561 = vpop.f32.mrb[0].mxu0
      %562 = vmatprep.mubr.f32.mxu0 %v355
      %563 = vmatmul.mubr.f32.gmra.mrb[0].mxu0 %v248
      %v564 = vpop.f32.mrb[0].mxu0
      %v565 = vadd.f32 0.0, %v564
      %v566 = vpop.f32.mrb[0].mxu0
      %567 = vmatprep.mubr.f32.mxu0 %v358
      %568 = vmatmul.mubr.f32.gmra.mrb[0].mxu0 %v250
      %v569 = vpop.f32.mrb[0].mxu0
      %v570 = vadd.f32 0.0, %v569
      %v571 = vpop.f32.mrb[0].mxu0
      %572 = vmatprep.mubr.f32.mxu0 %v361
      %573 = vmatmul.mubr.f32.gmra.mrb[0].mxu0 %v252
      %v574 = vpop.f32.mrb[0].mxu0
      %v575 = vadd.f32 0.0, %v574
      %v576 = vpop.f32.mrb[0].mxu0
      %577 = vmatprep.mubr.f32.mxu0 %v364
      %578 = vmatmul.mubr.f32.gmra.mrb[0].mxu0 %v254
      %v579 = vpop.f32.mrb[0].mxu0
      %v580 = vadd.f32 0.0, %v579
      %v581 = vpop.f32.mrb[0].mxu0
      %582 = vmatprep.mubr.f32.mxu0 %v367
      %583 = vmatmul.mubr.f32.gmra.mrb[0].mxu0 %v256
      %v584 = vpop.f32.mrb[0].mxu0
      %v585 = vadd.f32 0.0, %v584
      %v586 = vpop.f32.mrb[0].mxu0
      %587 = vmatprep.mubr.f32.mxu0 %v370
      %588 = vmatmul.mubr.f32.gmra.mrb[0].mxu0 %v258
      %v589 = vpop.f32.mrb[0].mxu0
      %v590 = vadd.f32 0.0, %v589
      %v591 = vpop.f32.mrb[0].mxu0
      %592 = vmatprep.mubr.f32.mxu0 %v373
      %593 = vmatmul.mubr.f32.gmra.mrb[0].mxu0 %v260
      %v594 = vpop.f32.mrb[0].mxu0
      %v595 = vadd.f32 0.0, %v594
      %v596 = vpop.f32.mrb[0].mxu0
      %597 = vmatprep.mubr.f32.mxu0 %v376
      %598 = vmatmul.mubr.f32.gmra.mrb[0].mxu0 %v262
      %v599 = vpop.f32.mrb[0].mxu0
      %v600 = vadd.f32 0.0, %v599
      %v601 = vpop.f32.mrb[0].mxu0
      %602 = vmatprep.mubr.f32.mxu0 %v379
      %603 = vmatmul.mubr.f32.gmra.mrb[0].mxu0 %v264
      %v604 = vpop.f32.mrb[0].mxu0
      %v605 = vadd.f32 0.0, %v604
      %v606 = vpop.f32.mrb[0].mxu0
      %607 = vmatprep.mubr.f32.mxu0 %v382
      %608 = vmatmul.mubr.f32.gmra.mrb[0].mxu0 %v266
      %v609 = vpop.f32.mrb[0].mxu0
      %v610 = vadd.f32 0.0, %v609
      %v611 = vpop.f32.mrb[0].mxu0
      %612 = vdwg.mxu0
      %v613 = vld [vmem:[%s2] sm:$0x1]
      %v615 = vlaneseq
      %v616 = vshrl.u32 %v615, 7
      %v617 = vsub.s32 0, %v616
      %v618 = vrot.slane %v613, %v617
      %v620 = vmul.f32 %v455, %v618
      %v621 = vmul.f32 %v460, %v618
      %v622 = vmul.f32 %v465, %v618
      %v623 = vmul.f32 %v470, %v618
      %v624 = vmul.f32 %v475, %v618
      %v625 = vmul.f32 %v480, %v618
      %v626 = vmul.f32 %v485, %v618
      %v627 = vmul.f32 %v490, %v618
      %v628 = vmul.f32 %v495, %v618
      %v629 = vmul.f32 %v500, %v618
      %v630 = vmul.f32 %v505, %v618
      %v631 = vmul.f32 %v510, %v618
      %v632 = vmul.f32 %v515, %v618
      %v633 = vmul.f32 %v520, %v618
      %v634 = vmul.f32 %v525, %v618
      %v635 = vmul.f32 %v530, %v618
      %v636 = vmul.f32 %v535, %v618
      %v637 = vmul.f32 %v540, %v618
      %v638 = vmul.f32 %v545, %v618
      %v639 = vmul.f32 %v550, %v618
      %v640 = vmul.f32 %v555, %v618
      %v641 = vmul.f32 %v560, %v618
      %v642 = vmul.f32 %v565, %v618
      %v643 = vmul.f32 %v570, %v618
      %v644 = vmul.f32 %v575, %v618
      %v645 = vmul.f32 %v580, %v618
      %v646 = vmul.f32 %v585, %v618
      %v647 = vmul.f32 %v590, %v618
      %v648 = vmul.f32 %v595, %v618
      %v649 = vmul.f32 %v600, %v618
      %v650 = vmul.f32 %v605, %v618
      %v651 = vmul.f32 %v610, %v618
      %v652 = vld [vmem:[%s3] sm:$0x1]
      %v654 = vlaneseq
      %v655 = vshrl.u32 %v654, 7
      %v656 = vsub.s32 0, %v655
      %v657 = vrot.slane %v652, %v656
      %v659 = vadd.f32 %v620, %v657
      %v660 = vadd.f32 %v621, %v657
      %v661 = vadd.f32 %v622, %v657
      %v662 = vadd.f32 %v623, %v657
      %v663 = vadd.f32 %v624, %v657
      %v664 = vadd.f32 %v625, %v657
      %v665 = vadd.f32 %v626, %v657
      %v666 = vadd.f32 %v627, %v657
      %v667 = vadd.f32 %v628, %v657
      %v668 = vadd.f32 %v629, %v657
      %v669 = vadd.f32 %v630, %v657
      %v670 = vadd.f32 %v631, %v657
      %v671 = vadd.f32 %v632, %v657
      %v672 = vadd.f32 %v633, %v657
      %v673 = vadd.f32 %v634, %v657
      %v674 = vadd.f32 %v635, %v657
      %v675 = vadd.f32 %v636, %v657
      %v676 = vadd.f32 %v637, %v657
      %v677 = vadd.f32 %v638, %v657
      %v678 = vadd.f32 %v639, %v657
      %v679 = vadd.f32 %v640, %v657
      %v680 = vadd.f32 %v641, %v657
      %v681 = vadd.f32 %v642, %v657
      %v682 = vadd.f32 %v643, %v657
      %v683 = vadd.f32 %v644, %v657
      %v684 = vadd.f32 %v645, %v657
      %v685 = vadd.f32 %v646, %v657
      %v686 = vadd.f32 %v647, %v657
      %v687 = vadd.f32 %v648, %v657
      %v688 = vadd.f32 %v649, %v657
      %v689 = vadd.f32 %v650, %v657
      %v690 = vadd.f32 %v651, %v657
      %v691 = vmax.f32 %v659, 0.0
      %v692 = vmax.f32 %v660, 0.0
      %v693 = vmax.f32 %v661, 0.0
      %v694 = vmax.f32 %v662, 0.0
      %v695 = vmax.f32 %v663, 0.0
      %v696 = vmax.f32 %v664, 0.0
      %v697 = vmax.f32 %v665, 0.0
      %v698 = vmax.f32 %v666, 0.0
      %v699 = vmax.f32 %v667, 0.0
      %v700 = vmax.f32 %v668, 0.0
      %v701 = vmax.f32 %v669, 0.0
      %v702 = vmax.f32 %v670, 0.0
      %v703 = vmax.f32 %v671, 0.0
      %v704 = vmax.f32 %v672, 0.0
      %v705 = vmax.f32 %v673, 0.0
      %v706 = vmax.f32 %v674, 0.0
      %v707 = vmax.f32 %v675, 0.0
      %v708 = vmax.f32 %v676, 0.0
      %v709 = vmax.f32 %v677, 0.0
      %v710 = vmax.f32 %v678, 0.0
      %v711 = vmax.f32 %v679, 0.0
      %v712 = vmax.f32 %v680, 0.0
      %v713 = vmax.f32 %v681, 0.0
      %v714 = vmax.f32 %v682, 0.0
      %v715 = vmax.f32 %v683, 0.0
      %v716 = vmax.f32 %v684, 0.0
      %v717 = vmax.f32 %v685, 0.0
      %v718 = vmax.f32 %v686, 0.0
      %v719 = vmax.f32 %v687, 0.0
      %v720 = vmax.f32 %v688, 0.0
      %v721 = vmax.f32 %v689, 0.0
      %v722 = vmax.f32 %v690, 0.0
      %723 = vst [vmem:[%s202] sm:$0xff] %v691
      %724 = vst [vmem:[%s202 + $0x8] sm:$0xff] %v692
      %725 = vst [vmem:[%s202 + $0x10] sm:$0xff] %v693
      %726 = vst [vmem:[%s202 + $0x18] sm:$0xff] %v694
      %727 = vst [vmem:[%s202 + $0x20] sm:$0xff] %v695
      %728 = vst [vmem:[%s202 + $0x28] sm:$0xff] %v696
      %729 = vst [vmem:[%s202 + $0x30] sm:$0xff] %v697
      %730 = vst [vmem:[%s202 + $0x38] sm:$0xff] %v698
      %731 = vst [vmem:[%s202 + $0x40] sm:$0xff] %v699
      %732 = vst [vmem:[%s202 + $0x48] sm:$0xff] %v700
      %733 = vst [vmem:[%s202 + $0x50] sm:$0xff] %v701
      %734 = vst [vmem:[%s202 + $0x58] sm:$0xff] %v702
      %735 = vst [vmem:[%s202 + $0x60] sm:$0xff] %v703
      %736 = vst [vmem:[%s202 + $0x68] sm:$0xff] %v704
      %737 = vst [vmem:[%s202 + $0x70] sm:$0xff] %v705
      %738 = vst [vmem:[%s202 + $0x78] sm:$0xff] %v706
      %739 = vst [vmem:[%s202 + $0x80] sm:$0xff] %v707
      %740 = vst [vmem:[%s202 + $0x88] sm:$0xff] %v708
      %741 = vst [vmem:[%s202 + $0x90] sm:$0xff] %v709
      %742 = vst [vmem:[%s202 + $0x98] sm:$0xff] %v710
      %743 = vst [vmem:[%s202 + $0xa0] sm:$0xff] %v711
      %744 = vst [vmem:[%s202 + $0xa8] sm:$0xff] %v712
      %745 = vst [vmem:[%s202 + $0xb0] sm:$0xff] %v713
      %746 = vst [vmem:[%s202 + $0xb8] sm:$0xff] %v714
      %747 = vst [vmem:[%s202 + $0xc0] sm:$0xff] %v715
      %748 = vst [vmem:[%s202 + $0xc8] sm:$0xff] %v716
      %749 = vst [vmem:[%s202 + $0xd0] sm:$0xff] %v717
      %750 = vst [vmem:[%s202 + $0xd8] sm:$0xff] %v718
      %751 = vst [vmem:[%s202 + $0xe0] sm:$0xff] %v719
      %752 = vst [vmem:[%s202 + $0xe8] sm:$0xff] %v720
      %753 = vst [vmem:[%s202 + $0xf0] sm:$0xff] %v721
      %754 = vst [vmem:[%s202 + $0xf8] sm:$0xff] %v722
      %s755 = smul.u32 32, %s15
      %p756 = scmp.lt.s32.totalorder %s755, 63
      %s757 = scalar_select %p756, %s755, 63
      %s758 = smul.addr %s757, 8
      %s759 = scalar_lea.vmem %s4, %s758
      // Predicated region
      $region37: #{_lambda_.23} parent=35 // pred_check
        %p760 = pneg %p122
      $region38: #{_lambda_.23} parent=35 // pred_check_branch
        %762 = sbr.rel (%p760) target = $region40
      $region39: #{_lambda_.23} parent=35 // pred_region
        %s763 = smul.u32 32, %s15
      $region40: #{_lambda_.23} parent=35 // pred_fallthru
        _
    $region36: #{_lambda_.23} parent=5 // pred_fallthru
      _
    %p764 = scmp.le.s32.totalorder 2, %s10
    // Predicated region
    $region41: #{_lambda_.23} parent=5 // pred_check
      %p765 = pneg %p764
    $region42: #{_lambda_.23} parent=5 // pred_check_branch
      %767 = sbr.rel (%p765) target = $region44
    $region43: #{_lambda_.23} parent=5 // pred_region
      %s768 = ssub.s32 %s10, 2
      // Predicated region
      $region45: #{_lambda_.23} parent=43 // pred_check
        %p769 = pneg %p128
      $region46: #{_lambda_.23} parent=43 // pred_check_branch
        %771 = sbr.rel (%p769) target = $region48
      $region47: #{_lambda_.23} parent=43 // pred_region
        %s772 = smul.u32 32, %s16
        %p773 = scmp.lt.s32.totalorder %s772, 63
        %s774 = scalar_select %p773, %s772, 63
        %s775 = smul.addr %s774, 8
        %s776 = scalar_lea.vmem %s4, %s775
      $region48: #{_lambda_.23} parent=43 // pred_fallthru
        _
    $region44: #{_lambda_.23} parent=5 // pred_fallthru
      _
  $region6: #{_lambda_.23} parent=0 // loop_footer
    %s14 = sadd.s32 1, %s10
  $region7: #{_lambda_.23} parent=0 // loop_footer_branch
    %9 = sbr.rel target = $region3
  $region8: #{_lambda_.23} parent=0 // loop_exit
    _

// kernel: _lambda_.27
$region0: #{_lambda_.27}
  #allocation0 [shape = 'u32[]', space=smem, size = 0x4, offset = 0x4, fixed_abs, tag = 'smem constant byte address 0x4 - core index']
  #allocation1 [shape = 'u32[144,128]{1,0:T(1,128)}', space=vmem, size = 0x12000, scoped, tag = 'internal scratch']
  %s0 = inlined_call_operand.vmem [shape: f32[128,128], index: 0, kind: input, shape index: {}]
  %s1 = inlined_call_operand.vmem [shape: f32[128,128], index: 1, kind: input, shape index: {}]
  %s2 = inlined_call_operand.vmem [shape: f32[1,128], index: 2, kind: input, shape index: {}]
  %s3 = inlined_call_operand.vmem [shape: f32[1,128], index: 3, kind: input, shape index: {}]
  %s4 = inlined_call_operand.vmem [shape: f32[1,128], index: 4, kind: input, shape index: {}]
  %s5 = inlined_call_operand.vmem [shape: f32[1,128], index: 5, kind: input, shape index: {}]
  %s6 = inlined_call_operand.vmem [shape: f32[128,128], index: 6, kind: output, shape index: {}]
  %s7 = sld [smem:[#allocation0]]
  $region34: #{_lambda_.27} parent=0
    _
  %s9 = ssub.s32 1, %s7
  %s10 = scalar_select 0, %s9, %s7
  // Predicated region
  $region2: #{_lambda_.27} parent=0 // pred_check
    _
  $region3: #{_lambda_.27} parent=0 // pred_check_branch
    %12 = sbr.rel (0) target = $region5
  $region4: #{_lambda_.27} parent=0 // pred_region
    _
  $region5: #{_lambda_.27} parent=0 // pred_fallthru
    _
  // Predicated region
  $region6: #{_lambda_.27} parent=0 // pred_check
    _
  $region7: #{_lambda_.27} parent=0 // pred_check_branch
    %14 = sbr.rel (0) target = $region9
  $region8: #{_lambda_.27} parent=0 // pred_region
    _
  $region9: #{_lambda_.27} parent=0 // pred_fallthru
    _
  // Predicated region
  $region10: #{_lambda_.27} parent=0 // pred_check
    _
  $region11: #{_lambda_.27} parent=0 // pred_check_branch
    %16 = sbr.rel (0) target = $region13
  $region12: #{_lambda_.27} parent=0 // pred_region
    _
  $region13: #{_lambda_.27} parent=0 // pred_fallthru
    _
  // Predicated region
  $region14: #{_lambda_.27} parent=0 // pred_check
    _
  $region15: #{_lambda_.27} parent=0 // pred_check_branch
    %18 = sbr.rel (0) target = $region17
  $region16: #{_lambda_.27} parent=0 // pred_region
    _
  $region17: #{_lambda_.27} parent=0 // pred_fallthru
    _
  // Predicated region
  $region18: #{_lambda_.27} parent=0 // pred_check
    _
  $region19: #{_lambda_.27} parent=0 // pred_check_branch
    %20 = sbr.rel (0) target = $region21
  $region20: #{_lambda_.27} parent=0 // pred_region
    _
  $region21: #{_lambda_.27} parent=0 // pred_fallthru
    _
  // Predicated region
  $region22: #{_lambda_.27} parent=0 // pred_check
    _
  $region23: #{_lambda_.27} parent=0 // pred_check_branch
    %22 = sbr.rel (0) target = $region25
  $region24: #{_lambda_.27} parent=0 // pred_region
    _
  $region25: #{_lambda_.27} parent=0 // pred_fallthru
    _
  %v23 = vld [vmem:[%s0] sm:$0xff]
  %v24 = vld [vmem:[%s0 + $0x8] sm:$0xff]
  %v25 = vld [vmem:[%s0 + $0x10] sm:$0xff]
  %v26 = vld [vmem:[%s0 + $0x18] sm:$0xff]
  %v27 = vld [vmem:[%s0 + $0x20] sm:$0xff]
  %v28 = vld [vmem:[%s0 + $0x28] sm:$0xff]
  %v29 = vld [vmem:[%s0 + $0x30] sm:$0xff]
  %v30 = vld [vmem:[%s0 + $0x38] sm:$0xff]
  %v31 = vld [vmem:[%s0 + $0x40] sm:$0xff]
  %v32 = vld [vmem:[%s0 + $0x48] sm:$0xff]
  %v33 = vld [vmem:[%s0 + $0x50] sm:$0xff]
  %v34 = vld [vmem:[%s0 + $0x58] sm:$0xff]
  %v35 = vld [vmem:[%s0 + $0x60] sm:$0xff]
  %v36 = vld [vmem:[%s0 + $0x68] sm:$0xff]
  %v37 = vld [vmem:[%s0 + $0x70] sm:$0xff]
  %v38 = vld [vmem:[%s0 + $0x78] sm:$0xff]
  %v39 = vld [vmem:[%s2] sm:$0x1]
  %v41 = vlaneseq
  %v42 = vshrl.u32 %v41, 7
  %v43 = vsub.s32 0, %v42
  %v44 = vrot.slane %v39, %v43
  %v46 = vmul.f32 %v23, %v44
  %v47 = vmul.f32 %v24, %v44
  %v48 = vmul.f32 %v25, %v44
  %v49 = vmul.f32 %v26, %v44
  %v50 = vmul.f32 %v27, %v44
  %v51 = vmul.f32 %v28, %v44
  %v52 = vmul.f32 %v29, %v44
  %v53 = vmul.f32 %v30, %v44
  %v54 = vmul.f32 %v31, %v44
  %v55 = vmul.f32 %v32, %v44
  %v56 = vmul.f32 %v33, %v44
  %v57 = vmul.f32 %v34, %v44
  %v58 = vmul.f32 %v35, %v44
  %v59 = vmul.f32 %v36, %v44
  %v60 = vmul.f32 %v37, %v44
  %v61 = vmul.f32 %v38, %v44
  %v62 = vld [vmem:[%s3] sm:$0x1]
  %v64 = vlaneseq
  %v65 = vshrl.u32 %v64, 7
  %v66 = vsub.s32 0, %v65
  %v67 = vrot.slane %v62, %v66
  %v69 = vadd.f32 %v46, %v67
  %v70 = vadd.f32 %v47, %v67
  %v71 = vadd.f32 %v48, %v67
  %v72 = vadd.f32 %v49, %v67
  %v73 = vadd.f32 %v50, %v67
  %v74 = vadd.f32 %v51, %v67
  %v75 = vadd.f32 %v52, %v67
  %v76 = vadd.f32 %v53, %v67
  %v77 = vadd.f32 %v54, %v67
  %v78 = vadd.f32 %v55, %v67
  %v79 = vadd.f32 %v56, %v67
  %v80 = vadd.f32 %v57, %v67
  %v81 = vadd.f32 %v58, %v67
  %v82 = vadd.f32 %v59, %v67
  %v83 = vadd.f32 %v60, %v67
  %v84 = vadd.f32 %v61, %v67
  %v85 = vmax.f32 %v69, 0.0
  %v86 = vmax.f32 %v70, 0.0
  %v87 = vmax.f32 %v71, 0.0
  %v88 = vmax.f32 %v72, 0.0
  %v89 = vmax.f32 %v73, 0.0
  %v90 = vmax.f32 %v74, 0.0
  %v91 = vmax.f32 %v75, 0.0
  %v92 = vmax.f32 %v76, 0.0
  %v93 = vmax.f32 %v77, 0.0
  %v94 = vmax.f32 %v78, 0.0
  %v95 = vmax.f32 %v79, 0.0
  %v96 = vmax.f32 %v80, 0.0
  %v97 = vmax.f32 %v81, 0.0
  %v98 = vmax.f32 %v82, 0.0
  %v99 = vmax.f32 %v83, 0.0
  %v100 = vmax.f32 %v84, 0.0
  %v101 = vld [vmem:[%s1] sm:$0xff]
  %v102 = vld [vmem:[%s1 + $0x8] sm:$0xff]
  %v103 = vld [vmem:[%s1 + $0x10] sm:$0xff]
  %v104 = vld [vmem:[%s1 + $0x18] sm:$0xff]
  %v105 = vld [vmem:[%s1 + $0x20] sm:$0xff]
  %v106 = vld [vmem:[%s1 + $0x28] sm:$0xff]
  %v107 = vld [vmem:[%s1 + $0x30] sm:$0xff]
  %v108 = vld [vmem:[%s1 + $0x38] sm:$0xff]
  %v109 = vld [vmem:[%s1 + $0x40] sm:$0xff]
  %v110 = vld [vmem:[%s1 + $0x48] sm:$0xff]
  %v111 = vld [vmem:[%s1 + $0x50] sm:$0xff]
  %v112 = vld [vmem:[%s1 + $0x58] sm:$0xff]
  %v113 = vld [vmem:[%s1 + $0x60] sm:$0xff]
  %v114 = vld [vmem:[%s1 + $0x68] sm:$0xff]
  %v115 = vld [vmem:[%s1 + $0x70] sm:$0xff]
  %v116 = vld [vmem:[%s1 + $0x78] sm:$0xff]
  %117 = vmatprep.subr.mxu0 0.0
  %118 = vmatpush1.msra.mxu0 %v101
  %119 = vmatprep.subr.mxu0 0.0
  %120 = vmatpush1.msra.mxu0 %v102
  %121 = vmatprep.subr.mxu0 0.0
  %122 = vmatpush1.msra.mxu0 %v103
  %123 = vmatprep.subr.mxu0 0.0
  %124 = vmatpush1.msra.mxu0 %v104
  %125 = vmatprep.subr.mxu0 0.0
  %126 = vmatpush1.msra.mxu0 %v105
  %127 = vmatprep.subr.mxu0 0.0
  %128 = vmatpush1.msra.mxu0 %v106
  %129 = vmatprep.subr.mxu0 0.0
  %130 = vmatpush1.msra.mxu0 %v107
  %131 = vmatprep.subr.mxu0 0.0
  %132 = vmatpush1.msra.mxu0 %v108
  %133 = vmatprep.subr.mxu0 0.0
  %134 = vmatpush1.msra.mxu0 %v109
  %135 = vmatprep.subr.mxu0 0.0
  %136 = vmatpush1.msra.mxu0 %v110
  %137 = vmatprep.subr.mxu0 0.0
  %138 = vmatpush1.msra.mxu0 %v111
  %139 = vmatprep.subr.mxu0 0.0
  %140 = vmatpush1.msra.mxu0 %v112
  %141 = vmatprep.subr.mxu0 0.0
  %142 = vmatpush1.msra.mxu0 %v113
  %143 = vmatprep.subr.mxu0 0.0
  %144 = vmatpush1.msra.mxu0 %v114
  %145 = vmatprep.subr.mxu0 0.0
  %146 = vmatpush1.msra.mxu0 %v115
  %147 = vmatprep.subr.mxu0 0.0
  %148 = vmatpush1.msra.mxu0 %v116
  %149 = vmatprep.subr.mxu0 0.0
  %150 = vmatpush1.msra.mxu0 0.0
  %151 = vmatprep.subr.mxu0 0.0
  %152 = vmatpush1.msra.mxu0 0.0
  %153 = vmatprep.subr.mxu0 0.0
  %154 = vmatpush1.msra.mxu0 0.0
  %155 = vmatprep.subr.mxu0 0.0
  %156 = vmatpush1.msra.mxu0 0.0
  %157 = vmatprep.subr.mxu0 0.0
  %158 = vmatpush1.msra.mxu0 0.0
  %159 = vmatprep.subr.mxu0 0.0
  %160 = vmatpush1.msra.mxu0 0.0
  %161 = vmatprep.subr.mxu0 0.0
  %162 = vmatpush1.msra.mxu0 0.0
  %163 = vmatprep.subr.mxu0 0.0
  %164 = vmatpush1.msra.mxu0 0.0
  %165 = vmatprep.subr.mxu0 0.0
  %166 = vmatpush1.msra.mxu0 0.0
  %167 = vmatprep.subr.mxu0 0.0
  %168 = vmatpush1.msra.mxu0 0.0
  %169 = vmatprep.subr.mxu0 0.0
  %170 = vmatpush1.msra.mxu0 0.0
  %171 = vmatprep.subr.mxu0 0.0
  %172 = vmatpush1.msra.mxu0 0.0
  %173 = vmatprep.subr.mxu0 0.0
  %174 = vmatpush1.msra.mxu0 0.0
  %175 = vmatprep.subr.mxu0 0.0
  %176 = vmatpush1.msra.mxu0 0.0
  %177 = vmatprep.subr.mxu0 0.0
  %178 = vmatpush1.msra.mxu0 0.0
  %179 = vmatprep.subr.mxu0 0.0
  %180 = vmatpush1.msra.mxu0 0.0
  %181 = vmatprep.mubr.f32.mxu0 0.0
  %182 = vmatmul.mubr.f32.gmra.mrb[0].mxu0 %v85
  %v183 = vpop.f32.mrb[0].mxu0
  %v184 = vadd.f32 0.0, %v183
  %v185 = vpop.f32.mrb[0].mxu0
  %186 = vmatprep.mubr.f32.mxu0 0.0
  %187 = vmatmul.mubr.f32.gmra.mrb[0].mxu0 %v86
  %v188 = vpop.f32.mrb[0].mxu0
  %v189 = vadd.f32 0.0, %v188
  %v190 = vpop.f32.mrb[0].mxu0
  %191 = vmatprep.mubr.f32.mxu0 0.0
  %192 = vmatmul.mubr.f32.gmra.mrb[0].mxu0 %v87
  %v193 = vpop.f32.mrb[0].mxu0
  %v194 = vadd.f32 0.0, %v193
  %v195 = vpop.f32.mrb[0].mxu0
  %196 = vmatprep.mubr.f32.mxu0 0.0
  %197 = vmatmul.mubr.f32.gmra.mrb[0].mxu0 %v88
  %v198 = vpop.f32.mrb[0].mxu0
  %v199 = vadd.f32 0.0, %v198
  %v200 = vpop.f32.mrb[0].mxu0
  %201 = vmatprep.mubr.f32.mxu0 0.0
  %202 = vmatmul.mubr.f32.gmra.mrb[0].mxu0 %v89
  %v203 = vpop.f32.mrb[0].mxu0
  %v204 = vadd.f32 0.0, %v203
  %v205 = vpop.f32.mrb[0].mxu0
  %206 = vmatprep.mubr.f32.mxu0 0.0
  %207 = vmatmul.mubr.f32.gmra.mrb[0].mxu0 %v90
  %v208 = vpop.f32.mrb[0].mxu0
  %v209 = vadd.f32 0.0, %v208
  %v210 = vpop.f32.mrb[0].mxu0
  %211 = vmatprep.mubr.f32.mxu0 0.0
  %212 = vmatmul.mubr.f32.gmra.mrb[0].mxu0 %v91
  %v213 = vpop.f32.mrb[0].mxu0
  %v214 = vadd.f32 0.0, %v213
  %v215 = vpop.f32.mrb[0].mxu0
  %216 = vmatprep.mubr.f32.mxu0 0.0
  %217 = vmatmul.mubr.f32.gmra.mrb[0].mxu0 %v92
  %v218 = vpop.f32.mrb[0].mxu0
  %v219 = vadd.f32 0.0, %v218
  %v220 = vpop.f32.mrb[0].mxu0
  %221 = vmatprep.mubr.f32.mxu0 0.0
  %222 = vmatmul.mubr.f32.gmra.mrb[0].mxu0 %v93
  %v223 = vpop.f32.mrb[0].mxu0
  %v224 = vadd.f32 0.0, %v223
  %v225 = vpop.f32.mrb[0].mxu0
  %226 = vmatprep.mubr.f32.mxu0 0.0
  %227 = vmatmul.mubr.f32.gmra.mrb[0].mxu0 %v94
  %v228 = vpop.f32.mrb[0].mxu0
  %v229 = vadd.f32 0.0, %v228
  %v230 = vpop.f32.mrb[0].mxu0
  %231 = vmatprep.mubr.f32.mxu0 0.0
  %232 = vmatmul.mubr.f32.gmra.mrb[0].mxu0 %v95
  %v233 = vpop.f32.mrb[0].mxu0
  %v234 = vadd.f32 0.0, %v233
  %v235 = vpop.f32.mrb[0].mxu0
  %236 = vmatprep.mubr.f32.mxu0 0.0
  %237 = vmatmul.mubr.f32.gmra.mrb[0].mxu0 %v96
  %v238 = vpop.f32.mrb[0].mxu0
  %v239 = vadd.f32 0.0, %v238
  %v240 = vpop.f32.mrb[0].mxu0
  %241 = vmatprep.mubr.f32.mxu0 0.0
  %242 = vmatmul.mubr.f32.gmra.mrb[0].mxu0 %v97
  %v243 = vpop.f32.mrb[0].mxu0
  %v244 = vadd.f32 0.0, %v243
  %v245 = vpop.f32.mrb[0].mxu0
  %246 = vmatprep.mubr.f32.mxu0 0.0
  %247 = vmatmul.mubr.f32.gmra.mrb[0].mxu0 %v98
  %v248 = vpop.f32.mrb[0].mxu0
  %v249 = vadd.f32 0.0, %v248
  %v250 = vpop.f32.mrb[0].mxu0
  %251 = vmatprep.mubr.f32.mxu0 0.0
  %252 = vmatmul.mubr.f32.gmra.mrb[0].mxu0 %v99
  %v253 = vpop.f32.mrb[0].mxu0
  %v254 = vadd.f32 0.0, %v253
  %v255 = vpop.f32.mrb[0].mxu0
  %256 = vmatprep.mubr.f32.mxu0 0.0
  %257 = vmatmul.mubr.f32.gmra.mrb[0].mxu0 %v100
  %v258 = vpop.f32.mrb[0].mxu0
  %v259 = vadd.f32 0.0, %v258
  %v260 = vpop.f32.mrb[0].mxu0
  %261 = vdwg.mxu0
  %v262 = vld [vmem:[%s4] sm:$0x1]
  %v264 = vlaneseq
  %v265 = vshrl.u32 %v264, 7
  %v266 = vsub.s32 0, %v265
  %v267 = vrot.slane %v262, %v266
  %v269 = vmul.f32 %v184, %v267
  %v270 = vmul.f32 %v189, %v267
  %v271 = vmul.f32 %v194, %v267
  %v272 = vmul.f32 %v199, %v267
  %v273 = vmul.f32 %v204, %v267
  %v274 = vmul.f32 %v209, %v267
  %v275 = vmul.f32 %v214, %v267
  %v276 = vmul.f32 %v219, %v267
  %v277 = vmul.f32 %v224, %v267
  %v278 = vmul.f32 %v229, %v267
  %v279 = vmul.f32 %v234, %v267
  %v280 = vmul.f32 %v239, %v267
  %v281 = vmul.f32 %v244, %v267
  %v282 = vmul.f32 %v249, %v267
  %v283 = vmul.f32 %v254, %v267
  %v284 = vmul.f32 %v259, %v267
  %v285 = vld [vmem:[%s5] sm:$0x1]
  %v287 = vlaneseq
  %v288 = vshrl.u32 %v287, 7
  %v289 = vsub.s32 0, %v288
  %v290 = vrot.slane %v285, %v289
  %v292 = vadd.f32 %v269, %v290
  %v293 = vadd.f32 %v270, %v290
  %v294 = vadd.f32 %v271, %v290
  %v295 = vadd.f32 %v272, %v290
  %v296 = vadd.f32 %v273, %v290
  %v297 = vadd.f32 %v274, %v290
  %v298 = vadd.f32 %v275, %v290
  %v299 = vadd.f32 %v276, %v290
  %v300 = vadd.f32 %v277, %v290
  %v301 = vadd.f32 %v278, %v290
  %v302 = vadd.f32 %v279, %v290
  %v303 = vadd.f32 %v280, %v290
  %v304 = vadd.f32 %v281, %v290
  %v305 = vadd.f32 %v282, %v290
  %v306 = vadd.f32 %v283, %v290
  %v307 = vadd.f32 %v284, %v290
  %v308 = vmax.f32 %v292, 0.0
  %v309 = vmax.f32 %v293, 0.0
  %v310 = vmax.f32 %v294, 0.0
  %v311 = vmax.f32 %v295, 0.0
  %v312 = vmax.f32 %v296, 0.0
  %v313 = vmax.f32 %v297, 0.0
  %v314 = vmax.f32 %v298, 0.0
  %v315 = vmax.f32 %v299, 0.0
  %v316 = vmax.f32 %v300, 0.0
  %v317 = vmax.f32 %v301, 0.0
  %v318 = vmax.f32 %v302, 0.0
  %v319 = vmax.f32 %v303, 0.0
  %v320 = vmax.f32 %v304, 0.0
  %v321 = vmax.f32 %v305, 0.0
  %v322 = vmax.f32 %v306, 0.0
  %v323 = vmax.f32 %v307, 0.0
  %324 = vst [vmem:[%s6] sm:$0xff] %v308
  %325 = vst [vmem:[%s6 + $0x8] sm:$0xff] %v309
  %326 = vst [vmem:[%s6 + $0x10] sm:$0xff] %v310
  %327 = vst [vmem:[%s6 + $0x18] sm:$0xff] %v311
  %328 = vst [vmem:[%s6 + $0x20] sm:$0xff] %v312
  %329 = vst [vmem:[%s6 + $0x28] sm:$0xff] %v313
  %330 = vst [vmem:[%s6 + $0x30] sm:$0xff] %v314
  %331 = vst [vmem:[%s6 + $0x38] sm:$0xff] %v315
  %332 = vst [vmem:[%s6 + $0x40] sm:$0xff] %v316
  %333 = vst [vmem:[%s6 + $0x48] sm:$0xff] %v317
  %334 = vst [vmem:[%s6 + $0x50] sm:$0xff] %v318
  %335 = vst [vmem:[%s6 + $0x58] sm:$0xff] %v319
  %336 = vst [vmem:[%s6 + $0x60] sm:$0xff] %v320
  %337 = vst [vmem:[%s6 + $0x68] sm:$0xff] %v321
  %338 = vst [vmem:[%s6 + $0x70] sm:$0xff] %v322
  %339 = vst [vmem:[%s6 + $0x78] sm:$0xff] %v323
  // Predicated region
  $region26: #{_lambda_.27} parent=0 // pred_check
    _
  $region27: #{_lambda_.27} parent=0 // pred_check_branch
    %341 = sbr.rel (0) target = $region29
  $region28: #{_lambda_.27} parent=0 // pred_region
    _
  $region29: #{_lambda_.27} parent=0 // pred_fallthru
    _
  // Predicated region
  $region30: #{_lambda_.27} parent=0 // pred_check
    _
  $region31: #{_lambda_.27} parent=0 // pred_check_branch
    %343 = sbr.rel (0) target = $region33
  $region32: #{_lambda_.27} parent=0 // pred_region
    _
  $region33: #{_lambda_.27} parent=0 // pred_fallthru
    _

// kernel: _lambda_.26
$region0: #{_lambda_.26}
  #allocation0 [shape = 'u32[]', space=smem, size = 0x4, offset = 0x4, fixed_abs, tag = 'smem constant byte address 0x4 - core index']
  #allocation1 [shape = 'u32[144,128]{1,0:T(1,128)}', space=vmem, size = 0x12000, scoped, tag = 'internal scratch']
  %s0 = inlined_call_operand.vmem [shape: f32[128,128], index: 0, kind: input, shape index: {}]
  %s1 = inlined_call_operand.vmem [shape: f32[128,256], index: 1, kind: input, shape index: {}]
  %s2 = inlined_call_operand.vmem [shape: f32[1,128], index: 2, kind: input, shape index: {}]
  %s3 = inlined_call_operand.vmem [shape: f32[1,128], index: 3, kind: input, shape index: {}]
  %s4 = inlined_call_operand.vmem [shape: f32[128,256], index: 4, kind: output, shape index: {}]
  %s5 = sld [smem:[#allocation0]]
  $region26: #{_lambda_.26} parent=0
    _
  %s7 = ssub.s32 1, %s5
  %s8 = scalar_select 0, %s7, %s5
  // Predicated region
  $region2: #{_lambda_.26} parent=0 // pred_check
    _
  $region3: #{_lambda_.26} parent=0 // pred_check_branch
    %10 = sbr.rel (0) target = $region5
  $region4: #{_lambda_.26} parent=0 // pred_region
    _
  $region5: #{_lambda_.26} parent=0 // pred_fallthru
    _
  // Predicated region
  $region6: #{_lambda_.26} parent=0 // pred_check
    _
  $region7: #{_lambda_.26} parent=0 // pred_check_branch
    %12 = sbr.rel (0) target = $region9
  $region8: #{_lambda_.26} parent=0 // pred_region
    _
  $region9: #{_lambda_.26} parent=0 // pred_fallthru
    _
  // Predicated region
  $region10: #{_lambda_.26} parent=0 // pred_check
    _
  $region11: #{_lambda_.26} parent=0 // pred_check_branch
    %14 = sbr.rel (0) target = $region13
  $region12: #{_lambda_.26} parent=0 // pred_region
    _
  $region13: #{_lambda_.26} parent=0 // pred_fallthru
    _
  // Predicated region
  $region14: #{_lambda_.26} parent=0 // pred_check
    _
  $region15: #{_lambda_.26} parent=0 // pred_check_branch
    %16 = sbr.rel (0) target = $region17
  $region16: #{_lambda_.26} parent=0 // pred_region
    _
  $region17: #{_lambda_.26} parent=0 // pred_fallthru
    _
  %v17 = vld [vmem:[%s0] sm:$0xff]
  %v18 = vld [vmem:[%s0 + $0x8] sm:$0xff]
  %v19 = vld [vmem:[%s0 + $0x10] sm:$0xff]
  %v20 = vld [vmem:[%s0 + $0x18] sm:$0xff]
  %v21 = vld [vmem:[%s0 + $0x20] sm:$0xff]
  %v22 = vld [vmem:[%s0 + $0x28] sm:$0xff]
  %v23 = vld [vmem:[%s0 + $0x30] sm:$0xff]
  %v24 = vld [vmem:[%s0 + $0x38] sm:$0xff]
  %v25 = vld [vmem:[%s0 + $0x40] sm:$0xff]
  %v26 = vld [vmem:[%s0 + $0x48] sm:$0xff]
  %v27 = vld [vmem:[%s0 + $0x50] sm:$0xff]
  %v28 = vld [vmem:[%s0 + $0x58] sm:$0xff]
  %v29 = vld [vmem:[%s0 + $0x60] sm:$0xff]
  %v30 = vld [vmem:[%s0 + $0x68] sm:$0xff]
  %v31 = vld [vmem:[%s0 + $0x70] sm:$0xff]
  %v32 = vld [vmem:[%s0 + $0x78] sm:$0xff]
  %v33 = vld [vmem:[%s2] sm:$0x1]
  %v35 = vlaneseq
  %v36 = vshrl.u32 %v35, 7
  %v37 = vsub.s32 0, %v36
  %v38 = vrot.slane %v33, %v37
  %v40 = vmul.f32 %v17, %v38
  %v41 = vmul.f32 %v18, %v38
  %v42 = vmul.f32 %v19, %v38
  %v43 = vmul.f32 %v20, %v38
  %v44 = vmul.f32 %v21, %v38
  %v45 = vmul.f32 %v22, %v38
  %v46 = vmul.f32 %v23, %v38
  %v47 = vmul.f32 %v24, %v38
  %v48 = vmul.f32 %v25, %v38
  %v49 = vmul.f32 %v26, %v38
  %v50 = vmul.f32 %v27, %v38
  %v51 = vmul.f32 %v28, %v38
  %v52 = vmul.f32 %v29, %v38
  %v53 = vmul.f32 %v30, %v38
  %v54 = vmul.f32 %v31, %v38
  %v55 = vmul.f32 %v32, %v38
  %v56 = vld [vmem:[%s3] sm:$0x1]
  %v58 = vlaneseq
  %v59 = vshrl.u32 %v58, 7
  %v60 = vsub.s32 0, %v59
  %v61 = vrot.slane %v56, %v60
  %v63 = vadd.f32 %v40, %v61
  %v64 = vadd.f32 %v41, %v61
  %v65 = vadd.f32 %v42, %v61
  %v66 = vadd.f32 %v43, %v61
  %v67 = vadd.f32 %v44, %v61
  %v68 = vadd.f32 %v45, %v61
  %v69 = vadd.f32 %v46, %v61
  %v70 = vadd.f32 %v47, %v61
  %v71 = vadd.f32 %v48, %v61
  %v72 = vadd.f32 %v49, %v61
  %v73 = vadd.f32 %v50, %v61
  %v74 = vadd.f32 %v51, %v61
  %v75 = vadd.f32 %v52, %v61
  %v76 = vadd.f32 %v53, %v61
  %v77 = vadd.f32 %v54, %v61
  %v78 = vadd.f32 %v55, %v61
  %v79 = vmax.f32 %v63, 0.0
  %v80 = vmax.f32 %v64, 0.0
  %v81 = vmax.f32 %v65, 0.0
  %v82 = vmax.f32 %v66, 0.0
  %v83 = vmax.f32 %v67, 0.0
  %v84 = vmax.f32 %v68, 0.0
  %v85 = vmax.f32 %v69, 0.0
  %v86 = vmax.f32 %v70, 0.0
  %v87 = vmax.f32 %v71, 0.0
  %v88 = vmax.f32 %v72, 0.0
  %v89 = vmax.f32 %v73, 0.0
  %v90 = vmax.f32 %v74, 0.0
  %v91 = vmax.f32 %v75, 0.0
  %v92 = vmax.f32 %v76, 0.0
  %v93 = vmax.f32 %v77, 0.0
  %v94 = vmax.f32 %v78, 0.0
  %v95 = vld [vmem:[%s1] sm:$0xff]
  %v96 = vld [vmem:[%s1 + $0x8] sm:$0xff]
  %v97 = vld [vmem:[%s1 + $0x10] sm:$0xff]
  %v98 = vld [vmem:[%s1 + $0x18] sm:$0xff]
  %v99 = vld [vmem:[%s1 + $0x20] sm:$0xff]
  %v100 = vld [vmem:[%s1 + $0x28] sm:$0xff]
  %v101 = vld [vmem:[%s1 + $0x30] sm:$0xff]
  %v102 = vld [vmem:[%s1 + $0x38] sm:$0xff]
  %v103 = vld [vmem:[%s1 + $0x40] sm:$0xff]
  %v104 = vld [vmem:[%s1 + $0x48] sm:$0xff]
  %v105 = vld [vmem:[%s1 + $0x50] sm:$0xff]
  %v106 = vld [vmem:[%s1 + $0x58] sm:$0xff]
  %v107 = vld [vmem:[%s1 + $0x60] sm:$0xff]
  %v108 = vld [vmem:[%s1 + $0x68] sm:$0xff]
  %v109 = vld [vmem:[%s1 + $0x70] sm:$0xff]
  %v110 = vld [vmem:[%s1 + $0x78] sm:$0xff]
  %v111 = vld [vmem:[%s1 + $0x80] sm:$0xff]
  %v112 = vld [vmem:[%s1 + $0x88] sm:$0xff]
  %v113 = vld [vmem:[%s1 + $0x90] sm:$0xff]
  %v114 = vld [vmem:[%s1 + $0x98] sm:$0xff]
  %v115 = vld [vmem:[%s1 + $0xa0] sm:$0xff]
  %v116 = vld [vmem:[%s1 + $0xa8] sm:$0xff]
  %v117 = vld [vmem:[%s1 + $0xb0] sm:$0xff]
  %v118 = vld [vmem:[%s1 + $0xb8] sm:$0xff]
  %v119 = vld [vmem:[%s1 + $0xc0] sm:$0xff]
  %v120 = vld [vmem:[%s1 + $0xc8] sm:$0xff]
  %v121 = vld [vmem:[%s1 + $0xd0] sm:$0xff]
  %v122 = vld [vmem:[%s1 + $0xd8] sm:$0xff]
  %v123 = vld [vmem:[%s1 + $0xe0] sm:$0xff]
  %v124 = vld [vmem:[%s1 + $0xe8] sm:$0xff]
  %v125 = vld [vmem:[%s1 + $0xf0] sm:$0xff]
  %v126 = vld [vmem:[%s1 + $0xf8] sm:$0xff]
  %127 = vmatprep.subr.mxu0 %v96
  %128 = vmatpush1.msra.mxu0 %v95
  %129 = vmatprep.subr.mxu0 %v98
  %130 = vmatpush1.msra.mxu0 %v97
  %131 = vmatprep.subr.mxu0 %v100
  %132 = vmatpush1.msra.mxu0 %v99
  %133 = vmatprep.subr.mxu0 %v102
  %134 = vmatpush1.msra.mxu0 %v101
  %135 = vmatprep.subr.mxu0 %v104
  %136 = vmatpush1.msra.mxu0 %v103
  %137 = vmatprep.subr.mxu0 %v106
  %138 = vmatpush1.msra.mxu0 %v105
  %139 = vmatprep.subr.mxu0 %v108
  %140 = vmatpush1.msra.mxu0 %v107
  %141 = vmatprep.subr.mxu0 %v110
  %142 = vmatpush1.msra.mxu0 %v109
  %143 = vmatprep.subr.mxu0 %v112
  %144 = vmatpush1.msra.mxu0 %v111
  %145 = vmatprep.subr.mxu0 %v114
  %146 = vmatpush1.msra.mxu0 %v113
  %147 = vmatprep.subr.mxu0 %v116
  %148 = vmatpush1.msra.mxu0 %v115
  %149 = vmatprep.subr.mxu0 %v118
  %150 = vmatpush1.msra.mxu0 %v117
  %151 = vmatprep.subr.mxu0 %v120
  %152 = vmatpush1.msra.mxu0 %v119
  %153 = vmatprep.subr.mxu0 %v122
  %154 = vmatpush1.msra.mxu0 %v121
  %155 = vmatprep.subr.mxu0 %v124
  %156 = vmatpush1.msra.mxu0 %v123
  %157 = vmatprep.subr.mxu0 %v126
  %158 = vmatpush1.msra.mxu0 %v125
  %159 = vmatprep.subr.mxu0 0.0
  %160 = vmatpush1.msra.mxu0 0.0
  %161 = vmatprep.subr.mxu0 0.0
  %162 = vmatpush1.msra.mxu0 0.0
  %163 = vmatprep.subr.mxu0 0.0
  %164 = vmatpush1.msra.mxu0 0.0
  %165 = vmatprep.subr.mxu0 0.0
  %166 = vmatpush1.msra.mxu0 0.0
  %167 = vmatprep.subr.mxu0 0.0
  %168 = vmatpush1.msra.mxu0 0.0
  %169 = vmatprep.subr.mxu0 0.0
  %170 = vmatpush1.msra.mxu0 0.0
  %171 = vmatprep.subr.mxu0 0.0
  %172 = vmatpush1.msra.mxu0 0.0
  %173 = vmatprep.subr.mxu0 0.0
  %174 = vmatpush1.msra.mxu0 0.0
  %175 = vmatprep.subr.mxu0 0.0
  %176 = vmatpush1.msra.mxu0 0.0
  %177 = vmatprep.subr.mxu0 0.0
  %178 = vmatpush1.msra.mxu0 0.0
  %179 = vmatprep.subr.mxu0 0.0
  %180 = vmatpush1.msra.mxu0 0.0
  %181 = vmatprep.subr.mxu0 0.0
  %182 = vmatpush1.msra.mxu0 0.0
  %183 = vmatprep.subr.mxu0 0.0
  %184 = vmatpush1.msra.mxu0 0.0
  %185 = vmatprep.subr.mxu0 0.0
  %186 = vmatpush1.msra.mxu0 0.0
  %187 = vmatprep.subr.mxu0 0.0
  %188 = vmatpush1.msra.mxu0 0.0
  %189 = vmatprep.subr.mxu0 0.0
  %190 = vmatpush1.msra.mxu0 0.0
  %191 = vmatprep.mubr.f32.mxu0 0.0
  %192 = vmatmul.mubr.f32.gmra.mrb[0].mxu0 %v79
  %v193 = vpop.f32.mrb[0].mxu0
  %v194 = vadd.f32 0.0, %v193
  %v195 = vpop.f32.mrb[0].mxu0
  %v196 = vadd.f32 0.0, %v195
  %197 = vmatprep.mubr.f32.mxu0 0.0
  %198 = vmatmul.mubr.f32.gmra.mrb[0].mxu0 %v80
  %v199 = vpop.f32.mrb[0].mxu0
  %v200 = vadd.f32 0.0, %v199
  %v201 = vpop.f32.mrb[0].mxu0
  %v202 = vadd.f32 0.0, %v201
  %203 = vmatprep.mubr.f32.mxu0 0.0
  %204 = vmatmul.mubr.f32.gmra.mrb[0].mxu0 %v81
  %v205 = vpop.f32.mrb[0].mxu0
  %v206 = vadd.f32 0.0, %v205
  %v207 = vpop.f32.mrb[0].mxu0
  %v208 = vadd.f32 0.0, %v207
  %209 = vmatprep.mubr.f32.mxu0 0.0
  %210 = vmatmul.mubr.f32.gmra.mrb[0].mxu0 %v82
  %v211 = vpop.f32.mrb[0].mxu0
  %v212 = vadd.f32 0.0, %v211
  %v213 = vpop.f32.mrb[0].mxu0
  %v214 = vadd.f32 0.0, %v213
  %215 = vmatprep.mubr.f32.mxu0 0.0
  %216 = vmatmul.mubr.f32.gmra.mrb[0].mxu0 %v83
  %v217 = vpop.f32.mrb[0].mxu0
  %v218 = vadd.f32 0.0, %v217
  %v219 = vpop.f32.mrb[0].mxu0
  %v220 = vadd.f32 0.0, %v219
  %221 = vmatprep.mubr.f32.mxu0 0.0
  %222 = vmatmul.mubr.f32.gmra.mrb[0].mxu0 %v84
  %v223 = vpop.f32.mrb[0].mxu0
  %v224 = vadd.f32 0.0, %v223
  %v225 = vpop.f32.mrb[0].mxu0
  %v226 = vadd.f32 0.0, %v225
  %227 = vmatprep.mubr.f32.mxu0 0.0
  %228 = vmatmul.mubr.f32.gmra.mrb[0].mxu0 %v85
  %v229 = vpop.f32.mrb[0].mxu0
  %v230 = vadd.f32 0.0, %v229
  %v231 = vpop.f32.mrb[0].mxu0
  %v232 = vadd.f32 0.0, %v231
  %233 = vmatprep.mubr.f32.mxu0 0.0
  %234 = vmatmul.mubr.f32.gmra.mrb[0].mxu0 %v86
  %v235 = vpop.f32.mrb[0].mxu0
  %v236 = vadd.f32 0.0, %v235
  %v237 = vpop.f32.mrb[0].mxu0
  %v238 = vadd.f32 0.0, %v237
  %239 = vmatprep.mubr.f32.mxu0 0.0
  %240 = vmatmul.mubr.f32.gmra.mrb[0].mxu0 %v87
  %v241 = vpop.f32.mrb[0].mxu0
  %v242 = vadd.f32 0.0, %v241
  %v243 = vpop.f32.mrb[0].mxu0
  %v244 = vadd.f32 0.0, %v243
  %245 = vmatprep.mubr.f32.mxu0 0.0
  %246 = vmatmul.mubr.f32.gmra.mrb[0].mxu0 %v88
  %v247 = vpop.f32.mrb[0].mxu0
  %v248 = vadd.f32 0.0, %v247
  %v249 = vpop.f32.mrb[0].mxu0
  %v250 = vadd.f32 0.0, %v249
  %251 = vmatprep.mubr.f32.mxu0 0.0
  %252 = vmatmul.mubr.f32.gmra.mrb[0].mxu0 %v89
  %v253 = vpop.f32.mrb[0].mxu0
  %v254 = vadd.f32 0.0, %v253
  %v255 = vpop.f32.mrb[0].mxu0
  %v256 = vadd.f32 0.0, %v255
  %257 = vmatprep.mubr.f32.mxu0 0.0
  %258 = vmatmul.mubr.f32.gmra.mrb[0].mxu0 %v90
  %v259 = vpop.f32.mrb[0].mxu0
  %v260 = vadd.f32 0.0, %v259
  %v261 = vpop.f32.mrb[0].mxu0
  %v262 = vadd.f32 0.0, %v261
  %263 = vmatprep.mubr.f32.mxu0 0.0
  %264 = vmatmul.mubr.f32.gmra.mrb[0].mxu0 %v91
  %v265 = vpop.f32.mrb[0].mxu0
  %v266 = vadd.f32 0.0, %v265
  %v267 = vpop.f32.mrb[0].mxu0
  %v268 = vadd.f32 0.0, %v267
  %269 = vmatprep.mubr.f32.mxu0 0.0
  %270 = vmatmul.mubr.f32.gmra.mrb[0].mxu0 %v92
  %v271 = vpop.f32.mrb[0].mxu0
  %v272 = vadd.f32 0.0, %v271
  %v273 = vpop.f32.mrb[0].mxu0
  %v274 = vadd.f32 0.0, %v273
  %275 = vmatprep.mubr.f32.mxu0 0.0
  %276 = vmatmul.mubr.f32.gmra.mrb[0].mxu0 %v93
  %v277 = vpop.f32.mrb[0].mxu0
  %v278 = vadd.f32 0.0, %v277
  %v279 = vpop.f32.mrb[0].mxu0
  %v280 = vadd.f32 0.0, %v279
  %281 = vmatprep.mubr.f32.mxu0 0.0
  %282 = vmatmul.mubr.f32.gmra.mrb[0].mxu0 %v94
  %v283 = vpop.f32.mrb[0].mxu0
  %v284 = vadd.f32 0.0, %v283
  %v285 = vpop.f32.mrb[0].mxu0
  %v286 = vadd.f32 0.0, %v285
  %287 = vdwg.mxu0
  %288 = vst [vmem:[%s4] sm:$0xff] %v194
  %289 = vst [vmem:[%s4 + $0x8] sm:$0xff] %v196
  %290 = vst [vmem:[%s4 + $0x10] sm:$0xff] %v200
  %291 = vst [vmem:[%s4 + $0x18] sm:$0xff] %v202
  %292 = vst [vmem:[%s4 + $0x20] sm:$0xff] %v206
  %293 = vst [vmem:[%s4 + $0x28] sm:$0xff] %v208
  %294 = vst [vmem:[%s4 + $0x30] sm:$0xff] %v212
  %295 = vst [vmem:[%s4 + $0x38] sm:$0xff] %v214
  %296 = vst [vmem:[%s4 + $0x40] sm:$0xff] %v218
  %297 = vst [vmem:[%s4 + $0x48] sm:$0xff] %v220
  %298 = vst [vmem:[%s4 + $0x50] sm:$0xff] %v224
  %299 = vst [vmem:[%s4 + $0x58] sm:$0xff] %v226
  %300 = vst [vmem:[%s4 + $0x60] sm:$0xff] %v230
  %301 = vst [vmem:[%s4 + $0x68] sm:$0xff] %v232
  %302 = vst [vmem:[%s4 + $0x70] sm:$0xff] %v236
  %303 = vst [vmem:[%s4 + $0x78] sm:$0xff] %v238
  %304 = vst [vmem:[%s4 + $0x80] sm:$0xff] %v242
  %305 = vst [vmem:[%s4 + $0x88] sm:$0xff] %v244
  %306 = vst [vmem:[%s4 + $0x90] sm:$0xff] %v248
  %307 = vst [vmem:[%s4 + $0x98] sm:$0xff] %v250
  %308 = vst [vmem:[%s4 + $0xa0] sm:$0xff] %v254
  %309 = vst [vmem:[%s4 + $0xa8] sm:$0xff] %v256
  %310 = vst [vmem:[%s4 + $0xb0] sm:$0xff] %v260
  %311 = vst [vmem:[%s4 + $0xb8] sm:$0xff] %v262
  %312 = vst [vmem:[%s4 + $0xc0] sm:$0xff] %v266
  %313 = vst [vmem:[%s4 + $0xc8] sm:$0xff] %v268
  %314 = vst [vmem:[%s4 + $0xd0] sm:$0xff] %v272
  %315 = vst [vmem:[%s4 + $0xd8] sm:$0xff] %v274
  %316 = vst [vmem:[%s4 + $0xe0] sm:$0xff] %v278
  %317 = vst [vmem:[%s4 + $0xe8] sm:$0xff] %v280
  %318 = vst [vmem:[%s4 + $0xf0] sm:$0xff] %v284
  %319 = vst [vmem:[%s4 + $0xf8] sm:$0xff] %v286
  // Predicated region
  $region18: #{_lambda_.26} parent=0 // pred_check
    _
  $region19: #{_lambda_.26} parent=0 // pred_check_branch
    %321 = sbr.rel (0) target = $region21
  $region20: #{_lambda_.26} parent=0 // pred_region
    _
  $region21: #{_lambda_.26} parent=0 // pred_fallthru
    _
  // Predicated region
  $region22: #{_lambda_.26} parent=0 // pred_check
    _
  $region23: #{_lambda_.26} parent=0 // pred_check_branch
    %323 = sbr.rel (0) target = $region25
  $region24: #{_lambda_.26} parent=0 // pred_region
    _
  $region25: #{_lambda_.26} parent=0 // pred_fallthru
    _

// kernel: _lambda_.28
$region0: #{_lambda_.28}
  #allocation0 [shape = 'u32[]', space=smem, size = 0x4, offset = 0x4, fixed_abs, tag = 'smem constant byte address 0x4 - core index']
  #allocation1 [shape = 'u32[144,128]{1,0:T(1,128)}', space=vmem, size = 0x12000, scoped, tag = 'internal scratch']
  %s0 = inlined_call_operand.vmem [shape: f32[128,1152], index: 0, kind: input, shape index: {}]
  %s1 = inlined_call_operand.vmem [shape: f32[1152,128], index: 1, kind: input, shape index: {}]
  %s2 = inlined_call_operand.vmem [shape: f32[1,128], index: 2, kind: input, shape index: {}]
  %s3 = inlined_call_operand.vmem [shape: f32[1,128], index: 3, kind: input, shape index: {}]
  %s4 = inlined_call_operand.vmem [shape: f32[128,128], index: 4, kind: output, shape index: {}]
  %s5 = sld [smem:[#allocation0]]
  $region26: #{_lambda_.28} parent=0
    _
  %s7 = ssub.s32 1, %s5
  %s8 = scalar_select 0, %s7, %s5
  // Predicated region
  $region2: #{_lambda_.28} parent=0 // pred_check
    _
  $region3: #{_lambda_.28} parent=0 // pred_check_branch
    %10 = sbr.rel (0) target = $region5
  $region4: #{_lambda_.28} parent=0 // pred_region
    _
  $region5: #{_lambda_.28} parent=0 // pred_fallthru
    _
  // Predicated region
  $region6: #{_lambda_.28} parent=0 // pred_check
    _
  $region7: #{_lambda_.28} parent=0 // pred_check_branch
    %12 = sbr.rel (0) target = $region9
  $region8: #{_lambda_.28} parent=0 // pred_region
    _
  $region9: #{_lambda_.28} parent=0 // pred_fallthru
    _
  // Predicated region
  $region10: #{_lambda_.28} parent=0 // pred_check
    _
  $region11: #{_lambda_.28} parent=0 // pred_check_branch
    %14 = sbr.rel (0) target = $region13
  $region12: #{_lambda_.28} parent=0 // pred_region
    _
  $region13: #{_lambda_.28} parent=0 // pred_fallthru
    _
  // Predicated region
  $region14: #{_lambda_.28} parent=0 // pred_check
    _
  $region15: #{_lambda_.28} parent=0 // pred_check_branch
    %16 = sbr.rel (0) target = $region17
  $region16: #{_lambda_.28} parent=0 // pred_region
    _
  $region17: #{_lambda_.28} parent=0 // pred_fallthru
    _
  %v17 = vld [vmem:[%s0] sm:$0xff]
  %v18 = vld [vmem:[%s0 + $0x8] sm:$0xff]
  %v19 = vld [vmem:[%s0 + $0x10] sm:$0xff]
  %v20 = vld [vmem:[%s0 + $0x18] sm:$0xff]
  %v21 = vld [vmem:[%s0 + $0x20] sm:$0xff]
  %v22 = vld [vmem:[%s0 + $0x28] sm:$0xff]
  %v23 = vld [vmem:[%s0 + $0x30] sm:$0xff]
  %v24 = vld [vmem:[%s0 + $0x38] sm:$0xff]
  %v25 = vld [vmem:[%s0 + $0x40] sm:$0xff]
  %v26 = vld [vmem:[%s0 + $0x48] sm:$0xff]
  %v27 = vld [vmem:[%s0 + $0x50] sm:$0xff]
  %v28 = vld [vmem:[%s0 + $0x58] sm:$0xff]
  %v29 = vld [vmem:[%s0 + $0x60] sm:$0xff]
  %v30 = vld [vmem:[%s0 + $0x68] sm:$0xff]
  %v31 = vld [vmem:[%s0 + $0x70] sm:$0xff]
  %v32 = vld [vmem:[%s0 + $0x78] sm:$0xff]
  %v33 = vld [vmem:[%s0 + $0x80] sm:$0xff]
  %v34 = vld [vmem:[%s0 + $0x88] sm:$0xff]
  %v35 = vld [vmem:[%s0 + $0x90] sm:$0xff]
  %v36 = vld [vmem:[%s0 + $0x98] sm:$0xff]
  %v37 = vld [vmem:[%s0 + $0xa0] sm:$0xff]
  %v38 = vld [vmem:[%s0 + $0xa8] sm:$0xff]
  %v39 = vld [vmem:[%s0 + $0xb0] sm:$0xff]
  %v40 = vld [vmem:[%s0 + $0xb8] sm:$0xff]
  %v41 = vld [vmem:[%s0 + $0xc0] sm:$0xff]
  %v42 = vld [vmem:[%s0 + $0xc8] sm:$0xff]
  %v43 = vld [vmem:[%s0 + $0xd0] sm:$0xff]
  %v44 = vld [vmem:[%s0 + $0xd8] sm:$0xff]
  %v45 = vld [vmem:[%s0 + $0xe0] sm:$0xff]
  %v46 = vld [vmem:[%s0 + $0xe8] sm:$0xff]
  %v47 = vld [vmem:[%s0 + $0xf0] sm:$0xff]
  %v48 = vld [vmem:[%s0 + $0xf8] sm:$0xff]
  %v49 = vld [vmem:[%s0 + $0x100] sm:$0xff]
  %v50 = vld [vmem:[%s0 + $0x108] sm:$0xff]
  %v51 = vld [vmem:[%s0 + $0x110] sm:$0xff]
  %v52 = vld [vmem:[%s0 + $0x118] sm:$0xff]
  %v53 = vld [vmem:[%s0 + $0x120] sm:$0xff]
  %v54 = vld [vmem:[%s0 + $0x128] sm:$0xff]
  %v55 = vld [vmem:[%s0 + $0x130] sm:$0xff]
  %v56 = vld [vmem:[%s0 + $0x138] sm:$0xff]
  %v57 = vld [vmem:[%s0 + $0x140] sm:$0xff]
  %v58 = vld [vmem:[%s0 + $0x148] sm:$0xff]
  %v59 = vld [vmem:[%s0 + $0x150] sm:$0xff]
  %v60 = vld [vmem:[%s0 + $0x158] sm:$0xff]
  %v61 = vld [vmem:[%s0 + $0x160] sm:$0xff]
  %v62 = vld [vmem:[%s0 + $0x168] sm:$0xff]
  %v63 = vld [vmem:[%s0 + $0x170] sm:$0xff]
  %v64 = vld [vmem:[%s0 + $0x178] sm:$0xff]
  %v65 = vld [vmem:[%s0 + $0x180] sm:$0xff]
  %v66 = vld [vmem:[%s0 + $0x188] sm:$0xff]
  %v67 = vld [vmem:[%s0 + $0x190] sm:$0xff]
  %v68 = vld [vmem:[%s0 + $0x198] sm:$0xff]
  %v69 = vld [vmem:[%s0 + $0x1a0] sm:$0xff]
  %v70 = vld [vmem:[%s0 + $0x1a8] sm:$0xff]
  %v71 = vld [vmem:[%s0 + $0x1b0] sm:$0xff]
  %v72 = vld [vmem:[%s0 + $0x1b8] sm:$0xff]
  %v73 = vld [vmem:[%s0 + $0x1c0] sm:$0xff]
  %v74 = vld [vmem:[%s0 + $0x1c8] sm:$0xff]
  %v75 = vld [vmem:[%s0 + $0x1d0] sm:$0xff]
  %v76 = vld [vmem:[%s0 + $0x1d8] sm:$0xff]
  %v77 = vld [vmem:[%s0 + $0x1e0] sm:$0xff]
  %v78 = vld [vmem:[%s0 + $0x1e8] sm:$0xff]
  %v79 = vld [vmem:[%s0 + $0x1f0] sm:$0xff]
  %v80 = vld [vmem:[%s0 + $0x1f8] sm:$0xff]
  %v81 = vld [vmem:[%s0 + $0x200] sm:$0xff]
  %v82 = vld [vmem:[%s0 + $0x208] sm:$0xff]
  %v83 = vld [vmem:[%s0 + $0x210] sm:$0xff]
  %v84 = vld [vmem:[%s0 + $0x218] sm:$0xff]
  %v85 = vld [vmem:[%s0 + $0x220] sm:$0xff]
  %v86 = vld [vmem:[%s0 + $0x228] sm:$0xff]
  %v87 = vld [vmem:[%s0 + $0x230] sm:$0xff]
  %v88 = vld [vmem:[%s0 + $0x238] sm:$0xff]
  %v89 = vld [vmem:[%s0 + $0x240] sm:$0xff]
  %v90 = vld [vmem:[%s0 + $0x248] sm:$0xff]
  %v91 = vld [vmem:[%s0 + $0x250] sm:$0xff]
  %v92 = vld [vmem:[%s0 + $0x258] sm:$0xff]
  %v93 = vld [vmem:[%s0 + $0x260] sm:$0xff]
  %v94 = vld [vmem:[%s0 + $0x268] sm:$0xff]
  %v95 = vld [vmem:[%s0 + $0x270] sm:$0xff]
  %v96 = vld [vmem:[%s0 + $0x278] sm:$0xff]
  %v97 = vld [vmem:[%s0 + $0x280] sm:$0xff]
  %v98 = vld [vmem:[%s0 + $0x288] sm:$0xff]
  %v99 = vld [vmem:[%s0 + $0x290] sm:$0xff]
  %v100 = vld [vmem:[%s0 + $0x298] sm:$0xff]
  %v101 = vld [vmem:[%s0 + $0x2a0] sm:$0xff]
  %v102 = vld [vmem:[%s0 + $0x2a8] sm:$0xff]
  %v103 = vld [vmem:[%s0 + $0x2b0] sm:$0xff]
  %v104 = vld [vmem:[%s0 + $0x2b8] sm:$0xff]
  %v105 = vld [vmem:[%s0 + $0x2c0] sm:$0xff]
  %v106 = vld [vmem:[%s0 + $0x2c8] sm:$0xff]
  %v107 = vld [vmem:[%s0 + $0x2d0] sm:$0xff]
  %v108 = vld [vmem:[%s0 + $0x2d8] sm:$0xff]
  %v109 = vld [vmem:[%s0 + $0x2e0] sm:$0xff]
  %v110 = vld [vmem:[%s0 + $0x2e8] sm:$0xff]
  %v111 = vld [vmem:[%s0 + $0x2f0] sm:$0xff]
  %v112 = vld [vmem:[%s0 + $0x2f8] sm:$0xff]
  %v113 = vld [vmem:[%s0 + $0x300] sm:$0xff]
  %v114 = vld [vmem:[%s0 + $0x308] sm:$0xff]
  %v115 = vld [vmem:[%s0 + $0x310] sm:$0xff]
  %v116 = vld [vmem:[%s0 + $0x318] sm:$0xff]
  %v117 = vld [vmem:[%s0 + $0x320] sm:$0xff]
  %v118 = vld [vmem:[%s0 + $0x328] sm:$0xff]
  %v119 = vld [vmem:[%s0 + $0x330] sm:$0xff]
  %v120 = vld [vmem:[%s0 + $0x338] sm:$0xff]
  %v121 = vld [vmem:[%s0 + $0x340] sm:$0xff]
  %v122 = vld [vmem:[%s0 + $0x348] sm:$0xff]
  %v123 = vld [vmem:[%s0 + $0x350] sm:$0xff]
  %v124 = vld [vmem:[%s0 + $0x358] sm:$0xff]
  %v125 = vld [vmem:[%s0 + $0x360] sm:$0xff]
  %v126 = vld [vmem:[%s0 + $0x368] sm:$0xff]
  %v127 = vld [vmem:[%s0 + $0x370] sm:$0xff]
  %v128 = vld [vmem:[%s0 + $0x378] sm:$0xff]
  %v129 = vld [vmem:[%s0 + $0x380] sm:$0xff]
  %v130 = vld [vmem:[%s0 + $0x388] sm:$0xff]
  %v131 = vld [vmem:[%s0 + $0x390] sm:$0xff]
  %v132 = vld [vmem:[%s0 + $0x398] sm:$0xff]
  %v133 = vld [vmem:[%s0 + $0x3a0] sm:$0xff]
  %v134 = vld [vmem:[%s0 + $0x3a8] sm:$0xff]
  %v135 = vld [vmem:[%s0 + $0x3b0] sm:$0xff]
  %v136 = vld [vmem:[%s0 + $0x3b8] sm:$0xff]
  %v137 = vld [vmem:[%s0 + $0x3c0] sm:$0xff]
  %v138 = vld [vmem:[%s0 + $0x3c8] sm:$0xff]
  %v139 = vld [vmem:[%s0 + $0x3d0] sm:$0xff]
  %v140 = vld [vmem:[%s0 + $0x3d8] sm:$0xff]
  %v141 = vld [vmem:[%s0 + $0x3e0] sm:$0xff]
  %v142 = vld [vmem:[%s0 + $0x3e8] sm:$0xff]
  %v143 = vld [vmem:[%s0 + $0x3f0] sm:$0xff]
  %v144 = vld [vmem:[%s0 + $0x3f8] sm:$0xff]
  %v145 = vld [vmem:[%s0 + $0x400] sm:$0xff]
  %v146 = vld [vmem:[%s0 + $0x408] sm:$0xff]
  %v147 = vld [vmem:[%s0 + $0x410] sm:$0xff]
  %v148 = vld [vmem:[%s0 + $0x418] sm:$0xff]
  %v149 = vld [vmem:[%s0 + $0x420] sm:$0xff]
  %v150 = vld [vmem:[%s0 + $0x428] sm:$0xff]
  %v151 = vld [vmem:[%s0 + $0x430] sm:$0xff]
  %v152 = vld [vmem:[%s0 + $0x438] sm:$0xff]
  %v153 = vld [vmem:[%s0 + $0x440] sm:$0xff]
  %v154 = vld [vmem:[%s0 + $0x448] sm:$0xff]
  %v155 = vld [vmem:[%s0 + $0x450] sm:$0xff]
  %v156 = vld [vmem:[%s0 + $0x458] sm:$0xff]
  %v157 = vld [vmem:[%s0 + $0x460] sm:$0xff]
  %v158 = vld [vmem:[%s0 + $0x468] sm:$0xff]
  %v159 = vld [vmem:[%s0 + $0x470] sm:$0xff]
  %v160 = vld [vmem:[%s0 + $0x478] sm:$0xff]
  %v161 = vld [vmem:[%s1] sm:$0xff]
  %v162 = vld [vmem:[%s1 + $0x8] sm:$0xff]
  %v163 = vld [vmem:[%s1 + $0x10] sm:$0xff]
  %v164 = vld [vmem:[%s1 + $0x18] sm:$0xff]
  %v165 = vld [vmem:[%s1 + $0x20] sm:$0xff]
  %v166 = vld [vmem:[%s1 + $0x28] sm:$0xff]
  %v167 = vld [vmem:[%s1 + $0x30] sm:$0xff]
  %v168 = vld [vmem:[%s1 + $0x38] sm:$0xff]
  %v169 = vld [vmem:[%s1 + $0x40] sm:$0xff]
  %v170 = vld [vmem:[%s1 + $0x48] sm:$0xff]
  %v171 = vld [vmem:[%s1 + $0x50] sm:$0xff]
  %v172 = vld [vmem:[%s1 + $0x58] sm:$0xff]
  %v173 = vld [vmem:[%s1 + $0x60] sm:$0xff]
  %v174 = vld [vmem:[%s1 + $0x68] sm:$0xff]
  %v175 = vld [vmem:[%s1 + $0x70] sm:$0xff]
  %v176 = vld [vmem:[%s1 + $0x78] sm:$0xff]
  %v177 = vld [vmem:[%s1 + $0x80] sm:$0xff]
  %v178 = vld [vmem:[%s1 + $0x88] sm:$0xff]
  %v179 = vld [vmem:[%s1 + $0x90] sm:$0xff]
  %v180 = vld [vmem:[%s1 + $0x98] sm:$0xff]
  %v181 = vld [vmem:[%s1 + $0xa0] sm:$0xff]
  %v182 = vld [vmem:[%s1 + $0xa8] sm:$0xff]
  %v183 = vld [vmem:[%s1 + $0xb0] sm:$0xff]
  %v184 = vld [vmem:[%s1 + $0xb8] sm:$0xff]
  %v185 = vld [vmem:[%s1 + $0xc0] sm:$0xff]
  %v186 = vld [vmem:[%s1 + $0xc8] sm:$0xff]
  %v187 = vld [vmem:[%s1 + $0xd0] sm:$0xff]
  %v188 = vld [vmem:[%s1 + $0xd8] sm:$0xff]
  %v189 = vld [vmem:[%s1 + $0xe0] sm:$0xff]
  %v190 = vld [vmem:[%s1 + $0xe8] sm:$0xff]
  %v191 = vld [vmem:[%s1 + $0xf0] sm:$0xff]
  %v192 = vld [vmem:[%s1 + $0xf8] sm:$0xff]
  %v193 = vld [vmem:[%s1 + $0x100] sm:$0xff]
  %v194 = vld [vmem:[%s1 + $0x108] sm:$0xff]
  %v195 = vld [vmem:[%s1 + $0x110] sm:$0xff]
  %v196 = vld [vmem:[%s1 + $0x118] sm:$0xff]
  %v197 = vld [vmem:[%s1 + $0x120] sm:$0xff]
  %v198 = vld [vmem:[%s1 + $0x128] sm:$0xff]
  %v199 = vld [vmem:[%s1 + $0x130] sm:$0xff]
  %v200 = vld [vmem:[%s1 + $0x138] sm:$0xff]
  %v201 = vld [vmem:[%s1 + $0x140] sm:$0xff]
  %v202 = vld [vmem:[%s1 + $0x148] sm:$0xff]
  %v203 = vld [vmem:[%s1 + $0x150] sm:$0xff]
  %v204 = vld [vmem:[%s1 + $0x158] sm:$0xff]
  %v205 = vld [vmem:[%s1 + $0x160] sm:$0xff]
  %v206 = vld [vmem:[%s1 + $0x168] sm:$0xff]
  %v207 = vld [vmem:[%s1 + $0x170] sm:$0xff]
  %v208 = vld [vmem:[%s1 + $0x178] sm:$0xff]
  %v209 = vld [vmem:[%s1 + $0x180] sm:$0xff]
  %v210 = vld [vmem:[%s1 + $0x188] sm:$0xff]
  %v211 = vld [vmem:[%s1 + $0x190] sm:$0xff]
  %v212 = vld [vmem:[%s1 + $0x198] sm:$0xff]
  %v213 = vld [vmem:[%s1 + $0x1a0] sm:$0xff]
  %v214 = vld [vmem:[%s1 + $0x1a8] sm:$0xff]
  %v215 = vld [vmem:[%s1 + $0x1b0] sm:$0xff]
  %v216 = vld [vmem:[%s1 + $0x1b8] sm:$0xff]
  %v217 = vld [vmem:[%s1 + $0x1c0] sm:$0xff]
  %v218 = vld [vmem:[%s1 + $0x1c8] sm:$0xff]
  %v219 = vld [vmem:[%s1 + $0x1d0] sm:$0xff]
  %v220 = vld [vmem:[%s1 + $0x1d8] sm:$0xff]
  %v221 = vld [vmem:[%s1 + $0x1e0] sm:$0xff]
  %v222 = vld [vmem:[%s1 + $0x1e8] sm:$0xff]
  %v223 = vld [vmem:[%s1 + $0x1f0] sm:$0xff]
  %v224 = vld [vmem:[%s1 + $0x1f8] sm:$0xff]
  %v225 = vld [vmem:[%s1 + $0x200] sm:$0xff]
  %v226 = vld [vmem:[%s1 + $0x208] sm:$0xff]
  %v227 = vld [vmem:[%s1 + $0x210] sm:$0xff]
  %v228 = vld [vmem:[%s1 + $0x218] sm:$0xff]
  %v229 = vld [vmem:[%s1 + $0x220] sm:$0xff]
  %v230 = vld [vmem:[%s1 + $0x228] sm:$0xff]
  %v231 = vld [vmem:[%s1 + $0x230] sm:$0xff]
  %v232 = vld [vmem:[%s1 + $0x238] sm:$0xff]
  %v233 = vld [vmem:[%s1 + $0x240] sm:$0xff]
  %v234 = vld [vmem:[%s1 + $0x248] sm:$0xff]
  %v235 = vld [vmem:[%s1 + $0x250] sm:$0xff]
  %v236 = vld [vmem:[%s1 + $0x258] sm:$0xff]
  %v237 = vld [vmem:[%s1 + $0x260] sm:$0xff]
  %v238 = vld [vmem:[%s1 + $0x268] sm:$0xff]
  %v239 = vld [vmem:[%s1 + $0x270] sm:$0xff]
  %v240 = vld [vmem:[%s1 + $0x278] sm:$0xff]
  %v241 = vld [vmem:[%s1 + $0x280] sm:$0xff]
  %v242 = vld [vmem:[%s1 + $0x288] sm:$0xff]
  %v243 = vld [vmem:[%s1 + $0x290] sm:$0xff]
  %v244 = vld [vmem:[%s1 + $0x298] sm:$0xff]
  %v245 = vld [vmem:[%s1 + $0x2a0] sm:$0xff]
  %v246 = vld [vmem:[%s1 + $0x2a8] sm:$0xff]
  %v247 = vld [vmem:[%s1 + $0x2b0] sm:$0xff]
  %v248 = vld [vmem:[%s1 + $0x2b8] sm:$0xff]
  %v249 = vld [vmem:[%s1 + $0x2c0] sm:$0xff]
  %v250 = vld [vmem:[%s1 + $0x2c8] sm:$0xff]
  %v251 = vld [vmem:[%s1 + $0x2d0] sm:$0xff]
  %v252 = vld [vmem:[%s1 + $0x2d8] sm:$0xff]
  %v253 = vld [vmem:[%s1 + $0x2e0] sm:$0xff]
  %v254 = vld [vmem:[%s1 + $0x2e8] sm:$0xff]
  %v255 = vld [vmem:[%s1 + $0x2f0] sm:$0xff]
  %v256 = vld [vmem:[%s1 + $0x2f8] sm:$0xff]
  %v257 = vld [vmem:[%s1 + $0x300] sm:$0xff]
  %v258 = vld [vmem:[%s1 + $0x308] sm:$0xff]
  %v259 = vld [vmem:[%s1 + $0x310] sm:$0xff]
  %v260 = vld [vmem:[%s1 + $0x318] sm:$0xff]
  %v261 = vld [vmem:[%s1 + $0x320] sm:$0xff]
  %v262 = vld [vmem:[%s1 + $0x328] sm:$0xff]
  %v263 = vld [vmem:[%s1 + $0x330] sm:$0xff]
  %v264 = vld [vmem:[%s1 + $0x338] sm:$0xff]
  %v265 = vld [vmem:[%s1 + $0x340] sm:$0xff]
  %v266 = vld [vmem:[%s1 + $0x348] sm:$0xff]
  %v267 = vld [vmem:[%s1 + $0x350] sm:$0xff]
  %v268 = vld [vmem:[%s1 + $0x358] sm:$0xff]
  %v269 = vld [vmem:[%s1 + $0x360] sm:$0xff]
  %v270 = vld [vmem:[%s1 + $0x368] sm:$0xff]
  %v271 = vld [vmem:[%s1 + $0x370] sm:$0xff]
  %v272 = vld [vmem:[%s1 + $0x378] sm:$0xff]
  %v273 = vld [vmem:[%s1 + $0x380] sm:$0xff]
  %v274 = vld [vmem:[%s1 + $0x388] sm:$0xff]
  %v275 = vld [vmem:[%s1 + $0x390] sm:$0xff]
  %v276 = vld [vmem:[%s1 + $0x398] sm:$0xff]
  %v277 = vld [vmem:[%s1 + $0x3a0] sm:$0xff]
  %v278 = vld [vmem:[%s1 + $0x3a8] sm:$0xff]
  %v279 = vld [vmem:[%s1 + $0x3b0] sm:$0xff]
  %v280 = vld [vmem:[%s1 + $0x3b8] sm:$0xff]
  %v281 = vld [vmem:[%s1 + $0x3c0] sm:$0xff]
  %v282 = vld [vmem:[%s1 + $0x3c8] sm:$0xff]
  %v283 = vld [vmem:[%s1 + $0x3d0] sm:$0xff]
  %v284 = vld [vmem:[%s1 + $0x3d8] sm:$0xff]
  %v285 = vld [vmem:[%s1 + $0x3e0] sm:$0xff]
  %v286 = vld [vmem:[%s1 + $0x3e8] sm:$0xff]
  %v287 = vld [vmem:[%s1 + $0x3f0] sm:$0xff]
  %v288 = vld [vmem:[%s1 + $0x3f8] sm:$0xff]
  %v289 = vld [vmem:[%s1 + $0x400] sm:$0xff]
  %v290 = vld [vmem:[%s1 + $0x408] sm:$0xff]
  %v291 = vld [vmem:[%s1 + $0x410] sm:$0xff]
  %v292 = vld [vmem:[%s1 + $0x418] sm:$0xff]
  %v293 = vld [vmem:[%s1 + $0x420] sm:$0xff]
  %v294 = vld [vmem:[%s1 + $0x428] sm:$0xff]
  %v295 = vld [vmem:[%s1 + $0x430] sm:$0xff]
  %v296 = vld [vmem:[%s1 + $0x438] sm:$0xff]
  %v297 = vld [vmem:[%s1 + $0x440] sm:$0xff]
  %v298 = vld [vmem:[%s1 + $0x448] sm:$0xff]
  %v299 = vld [vmem:[%s1 + $0x450] sm:$0xff]
  %v300 = vld [vmem:[%s1 + $0x458] sm:$0xff]
  %v301 = vld [vmem:[%s1 + $0x460] sm:$0xff]
  %v302 = vld [vmem:[%s1 + $0x468] sm:$0xff]
  %v303 = vld [vmem:[%s1 + $0x470] sm:$0xff]
  %v304 = vld [vmem:[%s1 + $0x478] sm:$0xff]
  %305 = vmatprep.subr.mxu0 0.0
  %306 = vmatpush1.msra.mxu0 %v161
  %307 = vmatprep.subr.mxu0 0.0
  %308 = vmatpush1.msra.mxu0 %v162
  %309 = vmatprep.subr.mxu0 0.0
  %310 = vmatpush1.msra.mxu0 %v163
  %311 = vmatprep.subr.mxu0 0.0
  %312 = vmatpush1.msra.mxu0 %v164
  %313 = vmatprep.subr.mxu0 0.0
  %314 = vmatpush1.msra.mxu0 %v165
  %315 = vmatprep.subr.mxu0 0.0
  %316 = vmatpush1.msra.mxu0 %v166
  %317 = vmatprep.subr.mxu0 0.0
  %318 = vmatpush1.msra.mxu0 %v167
  %319 = vmatprep.subr.mxu0 0.0
  %320 = vmatpush1.msra.mxu0 %v168
  %321 = vmatprep.subr.mxu0 0.0
  %322 = vmatpush1.msra.mxu0 %v169
  %323 = vmatprep.subr.mxu0 0.0
  %324 = vmatpush1.msra.mxu0 %v170
  %325 = vmatprep.subr.mxu0 0.0
  %326 = vmatpush1.msra.mxu0 %v171
  %327 = vmatprep.subr.mxu0 0.0
  %328 = vmatpush1.msra.mxu0 %v172
  %329 = vmatprep.subr.mxu0 0.0
  %330 = vmatpush1.msra.mxu0 %v173
  %331 = vmatprep.subr.mxu0 0.0
  %332 = vmatpush1.msra.mxu0 %v174
  %333 = vmatprep.subr.mxu0 0.0
  %334 = vmatpush1.msra.mxu0 %v175
  %335 = vmatprep.subr.mxu0 0.0
  %336 = vmatpush1.msra.mxu0 %v176
  %337 = vmatprep.subr.mxu0 0.0
  %338 = vmatpush1.msra.mxu0 %v177
  %339 = vmatprep.subr.mxu0 0.0
  %340 = vmatpush1.msra.mxu0 %v178
  %341 = vmatprep.subr.mxu0 0.0
  %342 = vmatpush1.msra.mxu0 %v179
  %343 = vmatprep.subr.mxu0 0.0
  %344 = vmatpush1.msra.mxu0 %v180
  %345 = vmatprep.subr.mxu0 0.0
  %346 = vmatpush1.msra.mxu0 %v181
  %347 = vmatprep.subr.mxu0 0.0
  %348 = vmatpush1.msra.mxu0 %v182
  %349 = vmatprep.subr.mxu0 0.0
  %350 = vmatpush1.msra.mxu0 %v183
  %351 = vmatprep.subr.mxu0 0.0
  %352 = vmatpush1.msra.mxu0 %v184
  %353 = vmatprep.subr.mxu0 0.0
  %354 = vmatpush1.msra.mxu0 %v185
  %355 = vmatprep.subr.mxu0 0.0
  %356 = vmatpush1.msra.mxu0 %v186
  %357 = vmatprep.subr.mxu0 0.0
  %358 = vmatpush1.msra.mxu0 %v187
  %359 = vmatprep.subr.mxu0 0.0
  %360 = vmatpush1.msra.mxu0 %v188
  %361 = vmatprep.subr.mxu0 0.0
  %362 = vmatpush1.msra.mxu0 %v189
  %363 = vmatprep.subr.mxu0 0.0
  %364 = vmatpush1.msra.mxu0 %v190
  %365 = vmatprep.subr.mxu0 0.0
  %366 = vmatpush1.msra.mxu0 %v191
  %367 = vmatprep.subr.mxu0 0.0
  %368 = vmatpush1.msra.mxu0 %v192
  %369 = vmatprep.mubr.f32.mxu0 %v18
  %370 = vmatmul.mubr.f32.gmra.mrb[0].mxu0 %v17
  %v371 = vpop.f32.mrb[0].mxu0
  %v372 = vadd.f32 0.0, %v371
  %v373 = vpop.f32.mrb[0].mxu0
  %374 = vmatprep.mubr.f32.mxu0 %v27
  %375 = vmatmul.mubr.f32.gmra.mrb[0].mxu0 %v26
  %v376 = vpop.f32.mrb[0].mxu0
  %v377 = vadd.f32 0.0, %v376
  %v378 = vpop.f32.mrb[0].mxu0
  %379 = vmatprep.mubr.f32.mxu0 %v36
  %380 = vmatmul.mubr.f32.gmra.mrb[0].mxu0 %v35
  %v381 = vpop.f32.mrb[0].mxu0
  %v382 = vadd.f32 0.0, %v381
  %v383 = vpop.f32.mrb[0].mxu0
  %384 = vmatprep.mubr.f32.mxu0 %v45
  %385 = vmatmul.mubr.f32.gmra.mrb[0].mxu0 %v44
  %v386 = vpop.f32.mrb[0].mxu0
  %v387 = vadd.f32 0.0, %v386
  %v388 = vpop.f32.mrb[0].mxu0
  %389 = vmatprep.mubr.f32.mxu0 %v54
  %390 = vmatmul.mubr.f32.gmra.mrb[0].mxu0 %v53
  %v391 = vpop.f32.mrb[0].mxu0
  %v392 = vadd.f32 0.0, %v391
  %v393 = vpop.f32.mrb[0].mxu0
  %394 = vmatprep.mubr.f32.mxu0 %v63
  %395 = vmatmul.mubr.f32.gmra.mrb[0].mxu0 %v62
  %v396 = vpop.f32.mrb[0].mxu0
  %v397 = vadd.f32 0.0, %v396
  %v398 = vpop.f32.mrb[0].mxu0
  %399 = vmatprep.mubr.f32.mxu0 %v72
  %400 = vmatmul.mubr.f32.gmra.mrb[0].mxu0 %v71
  %v401 = vpop.f32.mrb[0].mxu0
  %v402 = vadd.f32 0.0, %v401
  %v403 = vpop.f32.mrb[0].mxu0
  %404 = vmatprep.mubr.f32.mxu0 %v81
  %405 = vmatmul.mubr.f32.gmra.mrb[0].mxu0 %v80
  %v406 = vpop.f32.mrb[0].mxu0
  %v407 = vadd.f32 0.0, %v406
  %v408 = vpop.f32.mrb[0].mxu0
  %409 = vmatprep.mubr.f32.mxu0 %v90
  %410 = vmatmul.mubr.f32.gmra.mrb[0].mxu0 %v89
  %v411 = vpop.f32.mrb[0].mxu0
  %v412 = vadd.f32 0.0, %v411
  %v413 = vpop.f32.mrb[0].mxu0
  %414 = vmatprep.mubr.f32.mxu0 %v99
  %415 = vmatmul.mubr.f32.gmra.mrb[0].mxu0 %v98
  %v416 = vpop.f32.mrb[0].mxu0
  %v417 = vadd.f32 0.0, %v416
  %v418 = vpop.f32.mrb[0].mxu0
  %419 = vmatprep.mubr.f32.mxu0 %v108
  %420 = vmatmul.mubr.f32.gmra.mrb[0].mxu0 %v107
  %v421 = vpop.f32.mrb[0].mxu0
  %v422 = vadd.f32 0.0, %v421
  %v423 = vpop.f32.mrb[0].mxu0
  %424 = vmatprep.mubr.f32.mxu0 %v117
  %425 = vmatmul.mubr.f32.gmra.mrb[0].mxu0 %v116
  %v426 = vpop.f32.mrb[0].mxu0
  %v427 = vadd.f32 0.0, %v426
  %v428 = vpop.f32.mrb[0].mxu0
  %429 = vmatprep.mubr.f32.mxu0 %v126
  %430 = vmatmul.mubr.f32.gmra.mrb[0].mxu0 %v125
  %v431 = vpop.f32.mrb[0].mxu0
  %v432 = vadd.f32 0.0, %v431
  %v433 = vpop.f32.mrb[0].mxu0
  %434 = vmatprep.mubr.f32.mxu0 %v135
  %435 = vmatmul.mubr.f32.gmra.mrb[0].mxu0 %v134
  %v436 = vpop.f32.mrb[0].mxu0
  %v437 = vadd.f32 0.0, %v436
  %v438 = vpop.f32.mrb[0].mxu0
  %439 = vmatprep.mubr.f32.mxu0 %v144
  %440 = vmatmul.mubr.f32.gmra.mrb[0].mxu0 %v143
  %v441 = vpop.f32.mrb[0].mxu0
  %v442 = vadd.f32 0.0, %v441
  %v443 = vpop.f32.mrb[0].mxu0
  %444 = vmatprep.mubr.f32.mxu0 %v153
  %445 = vmatmul.mubr.f32.gmra.mrb[0].mxu0 %v152
  %v446 = vpop.f32.mrb[0].mxu0
  %v447 = vadd.f32 0.0, %v446
  %v448 = vpop.f32.mrb[0].mxu0
  %449 = vdwg.mxu0
  %450 = vmatprep.subr.mxu0 0.0
  %451 = vmatpush1.msra.mxu0 %v193
  %452 = vmatprep.subr.mxu0 0.0
  %453 = vmatpush1.msra.mxu0 %v194
  %454 = vmatprep.subr.mxu0 0.0
  %455 = vmatpush1.msra.mxu0 %v195
  %456 = vmatprep.subr.mxu0 0.0
  %457 = vmatpush1.msra.mxu0 %v196
  %458 = vmatprep.subr.mxu0 0.0
  %459 = vmatpush1.msra.mxu0 %v197
  %460 = vmatprep.subr.mxu0 0.0
  %461 = vmatpush1.msra.mxu0 %v198
  %462 = vmatprep.subr.mxu0 0.0
  %463 = vmatpush1.msra.mxu0 %v199
  %464 = vmatprep.subr.mxu0 0.0
  %465 = vmatpush1.msra.mxu0 %v200
  %466 = vmatprep.subr.mxu0 0.0
  %467 = vmatpush1.msra.mxu0 %v201
  %468 = vmatprep.subr.mxu0 0.0
  %469 = vmatpush1.msra.mxu0 %v202
  %470 = vmatprep.subr.mxu0 0.0
  %471 = vmatpush1.msra.mxu0 %v203
  %472 = vmatprep.subr.mxu0 0.0
  %473 = vmatpush1.msra.mxu0 %v204
  %474 = vmatprep.subr.mxu0 0.0
  %475 = vmatpush1.msra.mxu0 %v205
  %476 = vmatprep.subr.mxu0 0.0
  %477 = vmatpush1.msra.mxu0 %v206
  %478 = vmatprep.subr.mxu0 0.0
  %479 = vmatpush1.msra.mxu0 %v207
  %480 = vmatprep.subr.mxu0 0.0
  %481 = vmatpush1.msra.mxu0 %v208
  %482 = vmatprep.subr.mxu0 0.0
  %483 = vmatpush1.msra.mxu0 %v209
  %484 = vmatprep.subr.mxu0 0.0
  %485 = vmatpush1.msra.mxu0 %v210
  %486 = vmatprep.subr.mxu0 0.0
  %487 = vmatpush1.msra.mxu0 %v211
  %488 = vmatprep.subr.mxu0 0.0
  %489 = vmatpush1.msra.mxu0 %v212
  %490 = vmatprep.subr.mxu0 0.0
  %491 = vmatpush1.msra.mxu0 %v213
  %492 = vmatprep.subr.mxu0 0.0
  %493 = vmatpush1.msra.mxu0 %v214
  %494 = vmatprep.subr.mxu0 0.0
  %495 = vmatpush1.msra.mxu0 %v215
  %496 = vmatprep.subr.mxu0 0.0
  %497 = vmatpush1.msra.mxu0 %v216
  %498 = vmatprep.subr.mxu0 0.0
  %499 = vmatpush1.msra.mxu0 %v217
  %500 = vmatprep.subr.mxu0 0.0
  %501 = vmatpush1.msra.mxu0 %v218
  %502 = vmatprep.subr.mxu0 0.0
  %503 = vmatpush1.msra.mxu0 %v219
  %504 = vmatprep.subr.mxu0 0.0
  %505 = vmatpush1.msra.mxu0 %v220
  %506 = vmatprep.subr.mxu0 0.0
  %507 = vmatpush1.msra.mxu0 %v221
  %508 = vmatprep.subr.mxu0 0.0
  %509 = vmatpush1.msra.mxu0 %v222
  %510 = vmatprep.subr.mxu0 0.0
  %511 = vmatpush1.msra.mxu0 %v223
  %512 = vmatprep.subr.mxu0 0.0
  %513 = vmatpush1.msra.mxu0 %v224
  %514 = vmatprep.mubr.f32.mxu0 %v20
  %515 = vmatmul.mubr.f32.gmra.mrb[0].mxu0 %v19
  %v516 = vpop.f32.mrb[0].mxu0
  %v517 = vadd.f32 %v372, %v516
  %v518 = vpop.f32.mrb[0].mxu0
  %519 = vmatprep.mubr.f32.mxu0 %v29
  %520 = vmatmul.mubr.f32.gmra.mrb[0].mxu0 %v28
  %v521 = vpop.f32.mrb[0].mxu0
  %v522 = vadd.f32 %v377, %v521
  %v523 = vpop.f32.mrb[0].mxu0
  %524 = vmatprep.mubr.f32.mxu0 %v38
  %525 = vmatmul.mubr.f32.gmra.mrb[0].mxu0 %v37
  %v526 = vpop.f32.mrb[0].mxu0
  %v527 = vadd.f32 %v382, %v526
  %v528 = vpop.f32.mrb[0].mxu0
  %529 = vmatprep.mubr.f32.mxu0 %v47
  %530 = vmatmul.mubr.f32.gmra.mrb[0].mxu0 %v46
  %v531 = vpop.f32.mrb[0].mxu0
  %v532 = vadd.f32 %v387, %v531
  %v533 = vpop.f32.mrb[0].mxu0
  %534 = vmatprep.mubr.f32.mxu0 %v56
  %535 = vmatmul.mubr.f32.gmra.mrb[0].mxu0 %v55
  %v536 = vpop.f32.mrb[0].mxu0
  %v537 = vadd.f32 %v392, %v536
  %v538 = vpop.f32.mrb[0].mxu0
  %539 = vmatprep.mubr.f32.mxu0 %v65
  %540 = vmatmul.mubr.f32.gmra.mrb[0].mxu0 %v64
  %v541 = vpop.f32.mrb[0].mxu0
  %v542 = vadd.f32 %v397, %v541
  %v543 = vpop.f32.mrb[0].mxu0
  %544 = vmatprep.mubr.f32.mxu0 %v74
  %545 = vmatmul.mubr.f32.gmra.mrb[0].mxu0 %v73
  %v546 = vpop.f32.mrb[0].mxu0
  %v547 = vadd.f32 %v402, %v546
  %v548 = vpop.f32.mrb[0].mxu0
  %549 = vmatprep.mubr.f32.mxu0 %v83
  %550 = vmatmul.mubr.f32.gmra.mrb[0].mxu0 %v82
  %v551 = vpop.f32.mrb[0].mxu0
  %v552 = vadd.f32 %v407, %v551
  %v553 = vpop.f32.mrb[0].mxu0
  %554 = vmatprep.mubr.f32.mxu0 %v92
  %555 = vmatmul.mubr.f32.gmra.mrb[0].mxu0 %v91
  %v556 = vpop.f32.mrb[0].mxu0
  %v557 = vadd.f32 %v412, %v556
  %v558 = vpop.f32.mrb[0].mxu0
  %559 = vmatprep.mubr.f32.mxu0 %v101
  %560 = vmatmul.mubr.f32.gmra.mrb[0].mxu0 %v100
  %v561 = vpop.f32.mrb[0].mxu0
  %v562 = vadd.f32 %v417, %v561
  %v563 = vpop.f32.mrb[0].mxu0
  %564 = vmatprep.mubr.f32.mxu0 %v110
  %565 = vmatmul.mubr.f32.gmra.mrb[0].mxu0 %v109
  %v566 = vpop.f32.mrb[0].mxu0
  %v567 = vadd.f32 %v422, %v566
  %v568 = vpop.f32.mrb[0].mxu0
  %569 = vmatprep.mubr.f32.mxu0 %v119
  %570 = vmatmul.mubr.f32.gmra.mrb[0].mxu0 %v118
  %v571 = vpop.f32.mrb[0].mxu0
  %v572 = vadd.f32 %v427, %v571
  %v573 = vpop.f32.mrb[0].mxu0
  %574 = vmatprep.mubr.f32.mxu0 %v128
  %575 = vmatmul.mubr.f32.gmra.mrb[0].mxu0 %v127
  %v576 = vpop.f32.mrb[0].mxu0
  %v577 = vadd.f32 %v432, %v576
  %v578 = vpop.f32.mrb[0].mxu0
  %579 = vmatprep.mubr.f32.mxu0 %v137
  %580 = vmatmul.mubr.f32.gmra.mrb[0].mxu0 %v136
  %v581 = vpop.f32.mrb[0].mxu0
  %v582 = vadd.f32 %v437, %v581
  %v583 = vpop.f32.mrb[0].mxu0
  %584 = vmatprep.mubr.f32.mxu0 %v146
  %585 = vmatmul.mubr.f32.gmra.mrb[0].mxu0 %v145
  %v586 = vpop.f32.mrb[0].mxu0
  %v587 = vadd.f32 %v442, %v586
  %v588 = vpop.f32.mrb[0].mxu0
  %589 = vmatprep.mubr.f32.mxu0 %v155
  %590 = vmatmul.mubr.f32.gmra.mrb[0].mxu0 %v154
  %v591 = vpop.f32.mrb[0].mxu0
  %v592 = vadd.f32 %v447, %v591
  %v593 = vpop.f32.mrb[0].mxu0
  %594 = vdwg.mxu0
  %595 = vmatprep.subr.mxu0 0.0
  %596 = vmatpush1.msra.mxu0 %v225
  %597 = vmatprep.subr.mxu0 0.0
  %598 = vmatpush1.msra.mxu0 %v226
  %599 = vmatprep.subr.mxu0 0.0
  %600 = vmatpush1.msra.mxu0 %v227
  %601 = vmatprep.subr.mxu0 0.0
  %602 = vmatpush1.msra.mxu0 %v228
  %603 = vmatprep.subr.mxu0 0.0
  %604 = vmatpush1.msra.mxu0 %v229
  %605 = vmatprep.subr.mxu0 0.0
  %606 = vmatpush1.msra.mxu0 %v230
  %607 = vmatprep.subr.mxu0 0.0
  %608 = vmatpush1.msra.mxu0 %v231
  %609 = vmatprep.subr.mxu0 0.0
  %610 = vmatpush1.msra.mxu0 %v232
  %611 = vmatprep.subr.mxu0 0.0
  %612 = vmatpush1.msra.mxu0 %v233
  %613 = vmatprep.subr.mxu0 0.0
  %614 = vmatpush1.msra.mxu0 %v234
  %615 = vmatprep.subr.mxu0 0.0
  %616 = vmatpush1.msra.mxu0 %v235
  %617 = vmatprep.subr.mxu0 0.0
  %618 = vmatpush1.msra.mxu0 %v236
  %619 = vmatprep.subr.mxu0 0.0
  %620 = vmatpush1.msra.mxu0 %v237
  %621 = vmatprep.subr.mxu0 0.0
  %622 = vmatpush1.msra.mxu0 %v238
  %623 = vmatprep.subr.mxu0 0.0
  %624 = vmatpush1.msra.mxu0 %v239
  %625 = vmatprep.subr.mxu0 0.0
  %626 = vmatpush1.msra.mxu0 %v240
  %627 = vmatprep.subr.mxu0 0.0
  %628 = vmatpush1.msra.mxu0 %v241
  %629 = vmatprep.subr.mxu0 0.0
  %630 = vmatpush1.msra.mxu0 %v242
  %631 = vmatprep.subr.mxu0 0.0
  %632 = vmatpush1.msra.mxu0 %v243
  %633 = vmatprep.subr.mxu0 0.0
  %634 = vmatpush1.msra.mxu0 %v244
  %635 = vmatprep.subr.mxu0 0.0
  %636 = vmatpush1.msra.mxu0 %v245
  %637 = vmatprep.subr.mxu0 0.0
  %638 = vmatpush1.msra.mxu0 %v246
  %639 = vmatprep.subr.mxu0 0.0
  %640 = vmatpush1.msra.mxu0 %v247
  %641 = vmatprep.subr.mxu0 0.0
  %642 = vmatpush1.msra.mxu0 %v248
  %643 = vmatprep.subr.mxu0 0.0
  %644 = vmatpush1.msra.mxu0 %v249
  %645 = vmatprep.subr.mxu0 0.0
  %646 = vmatpush1.msra.mxu0 %v250
  %647 = vmatprep.subr.mxu0 0.0
  %648 = vmatpush1.msra.mxu0 %v251
  %649 = vmatprep.subr.mxu0 0.0
  %650 = vmatpush1.msra.mxu0 %v252
  %651 = vmatprep.subr.mxu0 0.0
  %652 = vmatpush1.msra.mxu0 %v253
  %653 = vmatprep.subr.mxu0 0.0
  %654 = vmatpush1.msra.mxu0 %v254
  %655 = vmatprep.subr.mxu0 0.0
  %656 = vmatpush1.msra.mxu0 %v255
  %657 = vmatprep.subr.mxu0 0.0
  %658 = vmatpush1.msra.mxu0 %v256
  %659 = vmatprep.mubr.f32.mxu0 %v22
  %660 = vmatmul.mubr.f32.gmra.mrb[0].mxu0 %v21
  %v661 = vpop.f32.mrb[0].mxu0
  %v662 = vadd.f32 %v517, %v661
  %v663 = vpop.f32.mrb[0].mxu0
  %664 = vmatprep.mubr.f32.mxu0 %v31
  %665 = vmatmul.mubr.f32.gmra.mrb[0].mxu0 %v30
  %v666 = vpop.f32.mrb[0].mxu0
  %v667 = vadd.f32 %v522, %v666
  %v668 = vpop.f32.mrb[0].mxu0
  %669 = vmatprep.mubr.f32.mxu0 %v40
  %670 = vmatmul.mubr.f32.gmra.mrb[0].mxu0 %v39
  %v671 = vpop.f32.mrb[0].mxu0
  %v672 = vadd.f32 %v527, %v671
  %v673 = vpop.f32.mrb[0].mxu0
  %674 = vmatprep.mubr.f32.mxu0 %v49
  %675 = vmatmul.mubr.f32.gmra.mrb[0].mxu0 %v48
  %v676 = vpop.f32.mrb[0].mxu0
  %v677 = vadd.f32 %v532, %v676
  %v678 = vpop.f32.mrb[0].mxu0
  %679 = vmatprep.mubr.f32.mxu0 %v58
  %680 = vmatmul.mubr.f32.gmra.mrb[0].mxu0 %v57
  %v681 = vpop.f32.mrb[0].mxu0
  %v682 = vadd.f32 %v537, %v681
  %v683 = vpop.f32.mrb[0].mxu0
  %684 = vmatprep.mubr.f32.mxu0 %v67
  %685 = vmatmul.mubr.f32.gmra.mrb[0].mxu0 %v66
  %v686 = vpop.f32.mrb[0].mxu0
  %v687 = vadd.f32 %v542, %v686
  %v688 = vpop.f32.mrb[0].mxu0
  %689 = vmatprep.mubr.f32.mxu0 %v76
  %690 = vmatmul.mubr.f32.gmra.mrb[0].mxu0 %v75
  %v691 = vpop.f32.mrb[0].mxu0
  %v692 = vadd.f32 %v547, %v691
  %v693 = vpop.f32.mrb[0].mxu0
  %694 = vmatprep.mubr.f32.mxu0 %v85
  %695 = vmatmul.mubr.f32.gmra.mrb[0].mxu0 %v84
  %v696 = vpop.f32.mrb[0].mxu0
  %v697 = vadd.f32 %v552, %v696
  %v698 = vpop.f32.mrb[0].mxu0
  %699 = vmatprep.mubr.f32.mxu0 %v94
  %700 = vmatmul.mubr.f32.gmra.mrb[0].mxu0 %v93
  %v701 = vpop.f32.mrb[0].mxu0
  %v702 = vadd.f32 %v557, %v701
  %v703 = vpop.f32.mrb[0].mxu0
  %704 = vmatprep.mubr.f32.mxu0 %v103
  %705 = vmatmul.mubr.f32.gmra.mrb[0].mxu0 %v102
  %v706 = vpop.f32.mrb[0].mxu0
  %v707 = vadd.f32 %v562, %v706
  %v708 = vpop.f32.mrb[0].mxu0
  %709 = vmatprep.mubr.f32.mxu0 %v112
  %710 = vmatmul.mubr.f32.gmra.mrb[0].mxu0 %v111
  %v711 = vpop.f32.mrb[0].mxu0
  %v712 = vadd.f32 %v567, %v711
  %v713 = vpop.f32.mrb[0].mxu0
  %714 = vmatprep.mubr.f32.mxu0 %v121
  %715 = vmatmul.mubr.f32.gmra.mrb[0].mxu0 %v120
  %v716 = vpop.f32.mrb[0].mxu0
  %v717 = vadd.f32 %v572, %v716
  %v718 = vpop.f32.mrb[0].mxu0
  %719 = vmatprep.mubr.f32.mxu0 %v130
  %720 = vmatmul.mubr.f32.gmra.mrb[0].mxu0 %v129
  %v721 = vpop.f32.mrb[0].mxu0
  %v722 = vadd.f32 %v577, %v721
  %v723 = vpop.f32.mrb[0].mxu0
  %724 = vmatprep.mubr.f32.mxu0 %v139
  %725 = vmatmul.mubr.f32.gmra.mrb[0].mxu0 %v138
  %v726 = vpop.f32.mrb[0].mxu0
  %v727 = vadd.f32 %v582, %v726
  %v728 = vpop.f32.mrb[0].mxu0
  %729 = vmatprep.mubr.f32.mxu0 %v148
  %730 = vmatmul.mubr.f32.gmra.mrb[0].mxu0 %v147
  %v731 = vpop.f32.mrb[0].mxu0
  %v732 = vadd.f32 %v587, %v731
  %v733 = vpop.f32.mrb[0].mxu0
  %734 = vmatprep.mubr.f32.mxu0 %v157
  %735 = vmatmul.mubr.f32.gmra.mrb[0].mxu0 %v156
  %v736 = vpop.f32.mrb[0].mxu0
  %v737 = vadd.f32 %v592, %v736
  %v738 = vpop.f32.mrb[0].mxu0
  %739 = vdwg.mxu0
  %740 = vmatprep.subr.mxu0 0.0
  %741 = vmatpush1.msra.mxu0 %v257
  %742 = vmatprep.subr.mxu0 0.0
  %743 = vmatpush1.msra.mxu0 %v258
  %744 = vmatprep.subr.mxu0 0.0
  %745 = vmatpush1.msra.mxu0 %v259
  %746 = vmatprep.subr.mxu0 0.0
  %747 = vmatpush1.msra.mxu0 %v260
  %748 = vmatprep.subr.mxu0 0.0
  %749 = vmatpush1.msra.mxu0 %v261
  %750 = vmatprep.subr.mxu0 0.0
  %751 = vmatpush1.msra.mxu0 %v262
  %752 = vmatprep.subr.mxu0 0.0
  %753 = vmatpush1.msra.mxu0 %v263
  %754 = vmatprep.subr.mxu0 0.0
  %755 = vmatpush1.msra.mxu0 %v264
  %756 = vmatprep.subr.mxu0 0.0
  %757 = vmatpush1.msra.mxu0 %v265
  %758 = vmatprep.subr.mxu0 0.0
  %759 = vmatpush1.msra.mxu0 %v266
  %760 = vmatprep.subr.mxu0 0.0
  %761 = vmatpush1.msra.mxu0 %v267
  %762 = vmatprep.subr.mxu0 0.0
  %763 = vmatpush1.msra.mxu0 %v268
  %764 = vmatprep.subr.mxu0 0.0
  %765 = vmatpush1.msra.mxu0 %v269
  %766 = vmatprep.subr.mxu0 0.0
  %767 = vmatpush1.msra.mxu0 %v270
  %768 = vmatprep.subr.mxu0 0.0
  %769 = vmatpush1.msra.mxu0 %v271
  %770 = vmatprep.subr.mxu0 0.0
  %771 = vmatpush1.msra.mxu0 %v272
  %772 = vmatprep.subr.mxu0 0.0
  %773 = vmatpush1.msra.mxu0 %v273
  %774 = vmatprep.subr.mxu0 0.0
  %775 = vmatpush1.msra.mxu0 %v274
  %776 = vmatprep.subr.mxu0 0.0
  %777 = vmatpush1.msra.mxu0 %v275
  %778 = vmatprep.subr.mxu0 0.0
  %779 = vmatpush1.msra.mxu0 %v276
  %780 = vmatprep.subr.mxu0 0.0
  %781 = vmatpush1.msra.mxu0 %v277
  %782 = vmatprep.subr.mxu0 0.0
  %783 = vmatpush1.msra.mxu0 %v278
  %784 = vmatprep.subr.mxu0 0.0
  %785 = vmatpush1.msra.mxu0 %v279
  %786 = vmatprep.subr.mxu0 0.0
  %787 = vmatpush1.msra.mxu0 %v280
  %788 = vmatprep.subr.mxu0 0.0
  %789 = vmatpush1.msra.mxu0 %v281
  %790 = vmatprep.subr.mxu0 0.0
  %791 = vmatpush1.msra.mxu0 %v282
  %792 = vmatprep.subr.mxu0 0.0
  %793 = vmatpush1.msra.mxu0 %v283
  %794 = vmatprep.subr.mxu0 0.0
  %795 = vmatpush1.msra.mxu0 %v284
  %796 = vmatprep.subr.mxu0 0.0
  %797 = vmatpush1.msra.mxu0 %v285
  %798 = vmatprep.subr.mxu0 0.0
  %799 = vmatpush1.msra.mxu0 %v286
  %800 = vmatprep.subr.mxu0 0.0
  %801 = vmatpush1.msra.mxu0 %v287
  %802 = vmatprep.subr.mxu0 0.0
  %803 = vmatpush1.msra.mxu0 %v288
  %804 = vmatprep.mubr.f32.mxu0 %v24
  %805 = vmatmul.mubr.f32.gmra.mrb[0].mxu0 %v23
  %v806 = vpop.f32.mrb[0].mxu0
  %v807 = vadd.f32 %v662, %v806
  %v808 = vpop.f32.mrb[0].mxu0
  %809 = vmatprep.mubr.f32.mxu0 %v33
  %810 = vmatmul.mubr.f32.gmra.mrb[0].mxu0 %v32
  %v811 = vpop.f32.mrb[0].mxu0
  %v812 = vadd.f32 %v667, %v811
  %v813 = vpop.f32.mrb[0].mxu0
  %814 = vmatprep.mubr.f32.mxu0 %v42
  %815 = vmatmul.mubr.f32.gmra.mrb[0].mxu0 %v41
  %v816 = vpop.f32.mrb[0].mxu0
  %v817 = vadd.f32 %v672, %v816
  %v818 = vpop.f32.mrb[0].mxu0
  %819 = vmatprep.mubr.f32.mxu0 %v51
  %820 = vmatmul.mubr.f32.gmra.mrb[0].mxu0 %v50
  %v821 = vpop.f32.mrb[0].mxu0
  %v822 = vadd.f32 %v677, %v821
  %v823 = vpop.f32.mrb[0].mxu0
  %824 = vmatprep.mubr.f32.mxu0 %v60
  %825 = vmatmul.mubr.f32.gmra.mrb[0].mxu0 %v59
  %v826 = vpop.f32.mrb[0].mxu0
  %v827 = vadd.f32 %v682, %v826
  %v828 = vpop.f32.mrb[0].mxu0
  %829 = vmatprep.mubr.f32.mxu0 %v69
  %830 = vmatmul.mubr.f32.gmra.mrb[0].mxu0 %v68
  %v831 = vpop.f32.mrb[0].mxu0
  %v832 = vadd.f32 %v687, %v831
  %v833 = vpop.f32.mrb[0].mxu0
  %834 = vmatprep.mubr.f32.mxu0 %v78
  %835 = vmatmul.mubr.f32.gmra.mrb[0].mxu0 %v77
  %v836 = vpop.f32.mrb[0].mxu0
  %v837 = vadd.f32 %v692, %v836
  %v838 = vpop.f32.mrb[0].mxu0
  %839 = vmatprep.mubr.f32.mxu0 %v87
  %840 = vmatmul.mubr.f32.gmra.mrb[0].mxu0 %v86
  %v841 = vpop.f32.mrb[0].mxu0
  %v842 = vadd.f32 %v697, %v841
  %v843 = vpop.f32.mrb[0].mxu0
  %844 = vmatprep.mubr.f32.mxu0 %v96
  %845 = vmatmul.mubr.f32.gmra.mrb[0].mxu0 %v95
  %v846 = vpop.f32.mrb[0].mxu0
  %v847 = vadd.f32 %v702, %v846
  %v848 = vpop.f32.mrb[0].mxu0
  %849 = vmatprep.mubr.f32.mxu0 %v105
  %850 = vmatmul.mubr.f32.gmra.mrb[0].mxu0 %v104
  %v851 = vpop.f32.mrb[0].mxu0
  %v852 = vadd.f32 %v707, %v851
  %v853 = vpop.f32.mrb[0].mxu0
  %854 = vmatprep.mubr.f32.mxu0 %v114
  %855 = vmatmul.mubr.f32.gmra.mrb[0].mxu0 %v113
  %v856 = vpop.f32.mrb[0].mxu0
  %v857 = vadd.f32 %v712, %v856
  %v858 = vpop.f32.mrb[0].mxu0
  %859 = vmatprep.mubr.f32.mxu0 %v123
  %860 = vmatmul.mubr.f32.gmra.mrb[0].mxu0 %v122
  %v861 = vpop.f32.mrb[0].mxu0
  %v862 = vadd.f32 %v717, %v861
  %v863 = vpop.f32.mrb[0].mxu0
  %864 = vmatprep.mubr.f32.mxu0 %v132
  %865 = vmatmul.mubr.f32.gmra.mrb[0].mxu0 %v131
  %v866 = vpop.f32.mrb[0].mxu0
  %v867 = vadd.f32 %v722, %v866
  %v868 = vpop.f32.mrb[0].mxu0
  %869 = vmatprep.mubr.f32.mxu0 %v141
  %870 = vmatmul.mubr.f32.gmra.mrb[0].mxu0 %v140
  %v871 = vpop.f32.mrb[0].mxu0
  %v872 = vadd.f32 %v727, %v871
  %v873 = vpop.f32.mrb[0].mxu0
  %874 = vmatprep.mubr.f32.mxu0 %v150
  %875 = vmatmul.mubr.f32.gmra.mrb[0].mxu0 %v149
  %v876 = vpop.f32.mrb[0].mxu0
  %v877 = vadd.f32 %v732, %v876
  %v878 = vpop.f32.mrb[0].mxu0
  %879 = vmatprep.mubr.f32.mxu0 %v159
  %880 = vmatmul.mubr.f32.gmra.mrb[0].mxu0 %v158
  %v881 = vpop.f32.mrb[0].mxu0
  %v882 = vadd.f32 %v737, %v881
  %v883 = vpop.f32.mrb[0].mxu0
  %884 = vdwg.mxu0
  %885 = vmatprep.subr.mxu0 0.0
  %886 = vmatpush1.msra.mxu0 %v289
  %887 = vmatprep.subr.mxu0 0.0
  %888 = vmatpush1.msra.mxu0 %v290
  %889 = vmatprep.subr.mxu0 0.0
  %890 = vmatpush1.msra.mxu0 %v291
  %891 = vmatprep.subr.mxu0 0.0
  %892 = vmatpush1.msra.mxu0 %v292
  %893 = vmatprep.subr.mxu0 0.0
  %894 = vmatpush1.msra.mxu0 %v293
  %895 = vmatprep.subr.mxu0 0.0
  %896 = vmatpush1.msra.mxu0 %v294
  %897 = vmatprep.subr.mxu0 0.0
  %898 = vmatpush1.msra.mxu0 %v295
  %899 = vmatprep.subr.mxu0 0.0
  %900 = vmatpush1.msra.mxu0 %v296
  %901 = vmatprep.subr.mxu0 0.0
  %902 = vmatpush1.msra.mxu0 %v297
  %903 = vmatprep.subr.mxu0 0.0
  %904 = vmatpush1.msra.mxu0 %v298
  %905 = vmatprep.subr.mxu0 0.0
  %906 = vmatpush1.msra.mxu0 %v299
  %907 = vmatprep.subr.mxu0 0.0
  %908 = vmatpush1.msra.mxu0 %v300
  %909 = vmatprep.subr.mxu0 0.0
  %910 = vmatpush1.msra.mxu0 %v301
  %911 = vmatprep.subr.mxu0 0.0
  %912 = vmatpush1.msra.mxu0 %v302
  %913 = vmatprep.subr.mxu0 0.0
  %914 = vmatpush1.msra.mxu0 %v303
  %915 = vmatprep.subr.mxu0 0.0
  %916 = vmatpush1.msra.mxu0 %v304
  %917 = vmatprep.subr.mxu0 0.0
  %918 = vmatpush1.msra.mxu0 0.0
  %919 = vmatprep.subr.mxu0 0.0
  %920 = vmatpush1.msra.mxu0 0.0
  %921 = vmatprep.subr.mxu0 0.0
  %922 = vmatpush1.msra.mxu0 0.0
  %923 = vmatprep.subr.mxu0 0.0
  %924 = vmatpush1.msra.mxu0 0.0
  %925 = vmatprep.subr.mxu0 0.0
  %926 = vmatpush1.msra.mxu0 0.0
  %927 = vmatprep.subr.mxu0 0.0
  %928 = vmatpush1.msra.mxu0 0.0
  %929 = vmatprep.subr.mxu0 0.0
  %930 = vmatpush1.msra.mxu0 0.0
  %931 = vmatprep.subr.mxu0 0.0
  %932 = vmatpush1.msra.mxu0 0.0
  %933 = vmatprep.subr.mxu0 0.0
  %934 = vmatpush1.msra.mxu0 0.0
  %935 = vmatprep.subr.mxu0 0.0
  %936 = vmatpush1.msra.mxu0 0.0
  %937 = vmatprep.subr.mxu0 0.0
  %938 = vmatpush1.msra.mxu0 0.0
  %939 = vmatprep.subr.mxu0 0.0
  %940 = vmatpush1.msra.mxu0 0.0
  %941 = vmatprep.subr.mxu0 0.0
  %942 = vmatpush1.msra.mxu0 0.0
  %943 = vmatprep.subr.mxu0 0.0
  %944 = vmatpush1.msra.mxu0 0.0
  %945 = vmatprep.subr.mxu0 0.0
  %946 = vmatpush1.msra.mxu0 0.0
  %947 = vmatprep.subr.mxu0 0.0
  %948 = vmatpush1.msra.mxu0 0.0
  %949 = vmatprep.mubr.f32.mxu0 0.0
  %950 = vmatmul.mubr.f32.gmra.mrb[0].mxu0 %v25
  %v951 = vpop.f32.mrb[0].mxu0
  %v952 = vadd.f32 %v807, %v951
  %v953 = vpop.f32.mrb[0].mxu0
  %954 = vmatprep.mubr.f32.mxu0 0.0
  %955 = vmatmul.mubr.f32.gmra.mrb[0].mxu0 %v34
  %v956 = vpop.f32.mrb[0].mxu0
  %v957 = vadd.f32 %v812, %v956
  %v958 = vpop.f32.mrb[0].mxu0
  %959 = vmatprep.mubr.f32.mxu0 0.0
  %960 = vmatmul.mubr.f32.gmra.mrb[0].mxu0 %v43
  %v961 = vpop.f32.mrb[0].mxu0
  %v962 = vadd.f32 %v817, %v961
  %v963 = vpop.f32.mrb[0].mxu0
  %964 = vmatprep.mubr.f32.mxu0 0.0
  %965 = vmatmul.mubr.f32.gmra.mrb[0].mxu0 %v52
  %v966 = vpop.f32.mrb[0].mxu0
  %v967 = vadd.f32 %v822, %v966
  %v968 = vpop.f32.mrb[0].mxu0
  %969 = vmatprep.mubr.f32.mxu0 0.0
  %970 = vmatmul.mubr.f32.gmra.mrb[0].mxu0 %v61
  %v971 = vpop.f32.mrb[0].mxu0
  %v972 = vadd.f32 %v827, %v971
  %v973 = vpop.f32.mrb[0].mxu0
  %974 = vmatprep.mubr.f32.mxu0 0.0
  %975 = vmatmul.mubr.f32.gmra.mrb[0].mxu0 %v70
  %v976 = vpop.f32.mrb[0].mxu0
  %v977 = vadd.f32 %v832, %v976
  %v978 = vpop.f32.mrb[0].mxu0
  %979 = vmatprep.mubr.f32.mxu0 0.0
  %980 = vmatmul.mubr.f32.gmra.mrb[0].mxu0 %v79
  %v981 = vpop.f32.mrb[0].mxu0
  %v982 = vadd.f32 %v837, %v981
  %v983 = vpop.f32.mrb[0].mxu0
  %984 = vmatprep.mubr.f32.mxu0 0.0
  %985 = vmatmul.mubr.f32.gmra.mrb[0].mxu0 %v88
  %v986 = vpop.f32.mrb[0].mxu0
  %v987 = vadd.f32 %v842, %v986
  %v988 = vpop.f32.mrb[0].mxu0
  %989 = vmatprep.mubr.f32.mxu0 0.0
  %990 = vmatmul.mubr.f32.gmra.mrb[0].mxu0 %v97
  %v991 = vpop.f32.mrb[0].mxu0
  %v992 = vadd.f32 %v847, %v991
  %v993 = vpop.f32.mrb[0].mxu0
  %994 = vmatprep.mubr.f32.mxu0 0.0
  %995 = vmatmul.mubr.f32.gmra.mrb[0].mxu0 %v106
  %v996 = vpop.f32.mrb[0].mxu0
  %v997 = vadd.f32 %v852, %v996
  %v998 = vpop.f32.mrb[0].mxu0
  %999 = vmatprep.mubr.f32.mxu0 0.0
  %1000 = vmatmul.mubr.f32.gmra.mrb[0].mxu0 %v115
  %v1001 = vpop.f32.mrb[0].mxu0
  %v1002 = vadd.f32 %v857, %v1001
  %v1003 = vpop.f32.mrb[0].mxu0
  %1004 = vmatprep.mubr.f32.mxu0 0.0
  %1005 = vmatmul.mubr.f32.gmra.mrb[0].mxu0 %v124
  %v1006 = vpop.f32.mrb[0].mxu0
  %v1007 = vadd.f32 %v862, %v1006
  %v1008 = vpop.f32.mrb[0].mxu0
  %1009 = vmatprep.mubr.f32.mxu0 0.0
  %1010 = vmatmul.mubr.f32.gmra.mrb[0].mxu0 %v133
  %v1011 = vpop.f32.mrb[0].mxu0
  %v1012 = vadd.f32 %v867, %v1011
  %v1013 = vpop.f32.mrb[0].mxu0
  %1014 = vmatprep.mubr.f32.mxu0 0.0
  %1015 = vmatmul.mubr.f32.gmra.mrb[0].mxu0 %v142
  %v1016 = vpop.f32.mrb[0].mxu0
  %v1017 = vadd.f32 %v872, %v1016
  %v1018 = vpop.f32.mrb[0].mxu0
  %1019 = vmatprep.mubr.f32.mxu0 0.0
  %1020 = vmatmul.mubr.f32.gmra.mrb[0].mxu0 %v151
  %v1021 = vpop.f32.mrb[0].mxu0
  %v1022 = vadd.f32 %v877, %v1021
  %v1023 = vpop.f32.mrb[0].mxu0
  %1024 = vmatprep.mubr.f32.mxu0 0.0
  %1025 = vmatmul.mubr.f32.gmra.mrb[0].mxu0 %v160
  %v1026 = vpop.f32.mrb[0].mxu0
  %v1027 = vadd.f32 %v882, %v1026
  %v1028 = vpop.f32.mrb[0].mxu0
  %1029 = vdwg.mxu0
  %v1030 = vld [vmem:[%s2] sm:$0x1]
  %v1032 = vlaneseq
  %v1033 = vshrl.u32 %v1032, 7
  %v1034 = vsub.s32 0, %v1033
  %v1035 = vrot.slane %v1030, %v1034
  %v1037 = vmul.f32 %v952, %v1035
  %v1038 = vmul.f32 %v957, %v1035
  %v1039 = vmul.f32 %v962, %v1035
  %v1040 = vmul.f32 %v967, %v1035
  %v1041 = vmul.f32 %v972, %v1035
  %v1042 = vmul.f32 %v977, %v1035
  %v1043 = vmul.f32 %v982, %v1035
  %v1044 = vmul.f32 %v987, %v1035
  %v1045 = vmul.f32 %v992, %v1035
  %v1046 = vmul.f32 %v997, %v1035
  %v1047 = vmul.f32 %v1002, %v1035
  %v1048 = vmul.f32 %v1007, %v1035
  %v1049 = vmul.f32 %v1012, %v1035
  %v1050 = vmul.f32 %v1017, %v1035
  %v1051 = vmul.f32 %v1022, %v1035
  %v1052 = vmul.f32 %v1027, %v1035
  %v1053 = vld [vmem:[%s3] sm:$0x1]
  %v1055 = vlaneseq
  %v1056 = vshrl.u32 %v1055, 7
  %v1057 = vsub.s32 0, %v1056
  %v1058 = vrot.slane %v1053, %v1057
  %v1060 = vadd.f32 %v1037, %v1058
  %v1061 = vadd.f32 %v1038, %v1058
  %v1062 = vadd.f32 %v1039, %v1058
  %v1063 = vadd.f32 %v1040, %v1058
  %v1064 = vadd.f32 %v1041, %v1058
  %v1065 = vadd.f32 %v1042, %v1058
  %v1066 = vadd.f32 %v1043, %v1058
  %v1067 = vadd.f32 %v1044, %v1058
  %v1068 = vadd.f32 %v1045, %v1058
  %v1069 = vadd.f32 %v1046, %v1058
  %v1070 = vadd.f32 %v1047, %v1058
  %v1071 = vadd.f32 %v1048, %v1058
  %v1072 = vadd.f32 %v1049, %v1058
  %v1073 = vadd.f32 %v1050, %v1058
  %v1074 = vadd.f32 %v1051, %v1058
  %v1075 = vadd.f32 %v1052, %v1058
  %v1076 = vmax.f32 %v1060, 0.0
  %v1077 = vmax.f32 %v1061, 0.0
  %v1078 = vmax.f32 %v1062, 0.0
  %v1079 = vmax.f32 %v1063, 0.0
  %v1080 = vmax.f32 %v1064, 0.0
  %v1081 = vmax.f32 %v1065, 0.0
  %v1082 = vmax.f32 %v1066, 0.0
  %v1083 = vmax.f32 %v1067, 0.0
  %v1084 = vmax.f32 %v1068, 0.0
  %v1085 = vmax.f32 %v1069, 0.0
  %v1086 = vmax.f32 %v1070, 0.0
  %v1087 = vmax.f32 %v1071, 0.0
  %v1088 = vmax.f32 %v1072, 0.0
  %v1089 = vmax.f32 %v1073, 0.0
  %v1090 = vmax.f32 %v1074, 0.0
  %v1091 = vmax.f32 %v1075, 0.0
  %1092 = vst [vmem:[%s4] sm:$0xff] %v1076
  %1093 = vst [vmem:[%s4 + $0x8] sm:$0xff] %v1077
  %1094 = vst [vmem:[%s4 + $0x10] sm:$0xff] %v1078
  %1095 = vst [vmem:[%s4 + $0x18] sm:$0xff] %v1079
  %1096 = vst [vmem:[%s4 + $0x20] sm:$0xff] %v1080
  %1097 = vst [vmem:[%s4 + $0x28] sm:$0xff] %v1081
  %1098 = vst [vmem:[%s4 + $0x30] sm:$0xff] %v1082
  %1099 = vst [vmem:[%s4 + $0x38] sm:$0xff] %v1083
  %1100 = vst [vmem:[%s4 + $0x40] sm:$0xff] %v1084
  %1101 = vst [vmem:[%s4 + $0x48] sm:$0xff] %v1085
  %1102 = vst [vmem:[%s4 + $0x50] sm:$0xff] %v1086
  %1103 = vst [vmem:[%s4 + $0x58] sm:$0xff] %v1087
  %1104 = vst [vmem:[%s4 + $0x60] sm:$0xff] %v1088
  %1105 = vst [vmem:[%s4 + $0x68] sm:$0xff] %v1089
  %1106 = vst [vmem:[%s4 + $0x70] sm:$0xff] %v1090
  %1107 = vst [vmem:[%s4 + $0x78] sm:$0xff] %v1091
  // Predicated region
  $region18: #{_lambda_.28} parent=0 // pred_check
    _
  $region19: #{_lambda_.28} parent=0 // pred_check_branch
    %1109 = sbr.rel (0) target = $region21
  $region20: #{_lambda_.28} parent=0 // pred_region
    _
  $region21: #{_lambda_.28} parent=0 // pred_fallthru
    _
  // Predicated region
  $region22: #{_lambda_.28} parent=0 // pred_check
    _
  $region23: #{_lambda_.28} parent=0 // pred_check_branch
    %1111 = sbr.rel (0) target = $region25
  $region24: #{_lambda_.28} parent=0 // pred_region
    _
  $region25: #{_lambda_.28} parent=0 // pred_fallthru
    _

// kernel: _lambda_.29
$region0: #{_lambda_.29}
  #allocation0 [shape = 'u32[]', space=smem, size = 0x4, offset = 0x4, fixed_abs, tag = 'smem constant byte address 0x4 - core index']
  #allocation1 [shape = 'u32[144,128]{1,0:T(1,128)}', space=vmem, size = 0x12000, scoped, tag = 'internal scratch']
  %s0 = inlined_call_operand.vmem [shape: f32[128,128], index: 0, kind: input, shape index: {}]
  %s1 = inlined_call_operand.vmem [shape: f32[128,256], index: 1, kind: input, shape index: {}]
  %s2 = inlined_call_operand.vmem [shape: f32[128,128], index: 2, kind: input, shape index: {}]
  %s3 = inlined_call_operand.vmem [shape: f32[128,256], index: 3, kind: output, shape index: {}]
  %s4 = sld [smem:[#allocation0]]
  $region22: #{_lambda_.29} parent=0
    _
  %s6 = ssub.s32 1, %s4
  %s7 = scalar_select 0, %s6, %s4
  // Predicated region
  $region2: #{_lambda_.29} parent=0 // pred_check
    _
  $region3: #{_lambda_.29} parent=0 // pred_check_branch
    %9 = sbr.rel (0) target = $region5
  $region4: #{_lambda_.29} parent=0 // pred_region
    _
  $region5: #{_lambda_.29} parent=0 // pred_fallthru
    _
  // Predicated region
  $region6: #{_lambda_.29} parent=0 // pred_check
    _
  $region7: #{_lambda_.29} parent=0 // pred_check_branch
    %11 = sbr.rel (0) target = $region9
  $region8: #{_lambda_.29} parent=0 // pred_region
    _
  $region9: #{_lambda_.29} parent=0 // pred_fallthru
    _
  // Predicated region
  $region10: #{_lambda_.29} parent=0 // pred_check
    _
  $region11: #{_lambda_.29} parent=0 // pred_check_branch
    %13 = sbr.rel (0) target = $region13
  $region12: #{_lambda_.29} parent=0 // pred_region
    _
  $region13: #{_lambda_.29} parent=0 // pred_fallthru
    _
  %v14 = vld [vmem:[%s0] sm:$0xff]
  %v15 = vld [vmem:[%s0 + $0x8] sm:$0xff]
  %v16 = vld [vmem:[%s0 + $0x10] sm:$0xff]
  %v17 = vld [vmem:[%s0 + $0x18] sm:$0xff]
  %v18 = vld [vmem:[%s0 + $0x20] sm:$0xff]
  %v19 = vld [vmem:[%s0 + $0x28] sm:$0xff]
  %v20 = vld [vmem:[%s0 + $0x30] sm:$0xff]
  %v21 = vld [vmem:[%s0 + $0x38] sm:$0xff]
  %v22 = vld [vmem:[%s0 + $0x40] sm:$0xff]
  %v23 = vld [vmem:[%s0 + $0x48] sm:$0xff]
  %v24 = vld [vmem:[%s0 + $0x50] sm:$0xff]
  %v25 = vld [vmem:[%s0 + $0x58] sm:$0xff]
  %v26 = vld [vmem:[%s0 + $0x60] sm:$0xff]
  %v27 = vld [vmem:[%s0 + $0x68] sm:$0xff]
  %v28 = vld [vmem:[%s0 + $0x70] sm:$0xff]
  %v29 = vld [vmem:[%s0 + $0x78] sm:$0xff]
  %v30 = vld [vmem:[%s1] sm:$0xff]
  %v31 = vld [vmem:[%s1 + $0x8] sm:$0xff]
  %v32 = vld [vmem:[%s1 + $0x10] sm:$0xff]
  %v33 = vld [vmem:[%s1 + $0x18] sm:$0xff]
  %v34 = vld [vmem:[%s1 + $0x20] sm:$0xff]
  %v35 = vld [vmem:[%s1 + $0x28] sm:$0xff]
  %v36 = vld [vmem:[%s1 + $0x30] sm:$0xff]
  %v37 = vld [vmem:[%s1 + $0x38] sm:$0xff]
  %v38 = vld [vmem:[%s1 + $0x40] sm:$0xff]
  %v39 = vld [vmem:[%s1 + $0x48] sm:$0xff]
  %v40 = vld [vmem:[%s1 + $0x50] sm:$0xff]
  %v41 = vld [vmem:[%s1 + $0x58] sm:$0xff]
  %v42 = vld [vmem:[%s1 + $0x60] sm:$0xff]
  %v43 = vld [vmem:[%s1 + $0x68] sm:$0xff]
  %v44 = vld [vmem:[%s1 + $0x70] sm:$0xff]
  %v45 = vld [vmem:[%s1 + $0x78] sm:$0xff]
  %v46 = vld [vmem:[%s1 + $0x80] sm:$0xff]
  %v47 = vld [vmem:[%s1 + $0x88] sm:$0xff]
  %v48 = vld [vmem:[%s1 + $0x90] sm:$0xff]
  %v49 = vld [vmem:[%s1 + $0x98] sm:$0xff]
  %v50 = vld [vmem:[%s1 + $0xa0] sm:$0xff]
  %v51 = vld [vmem:[%s1 + $0xa8] sm:$0xff]
  %v52 = vld [vmem:[%s1 + $0xb0] sm:$0xff]
  %v53 = vld [vmem:[%s1 + $0xb8] sm:$0xff]
  %v54 = vld [vmem:[%s1 + $0xc0] sm:$0xff]
  %v55 = vld [vmem:[%s1 + $0xc8] sm:$0xff]
  %v56 = vld [vmem:[%s1 + $0xd0] sm:$0xff]
  %v57 = vld [vmem:[%s1 + $0xd8] sm:$0xff]
  %v58 = vld [vmem:[%s1 + $0xe0] sm:$0xff]
  %v59 = vld [vmem:[%s1 + $0xe8] sm:$0xff]
  %v60 = vld [vmem:[%s1 + $0xf0] sm:$0xff]
  %v61 = vld [vmem:[%s1 + $0xf8] sm:$0xff]
  %62 = vmatprep.subr.mxu0 %v31
  %63 = vmatpush1.msra.mxu0 %v30
  %64 = vmatprep.subr.mxu0 %v33
  %65 = vmatpush1.msra.mxu0 %v32
  %66 = vmatprep.subr.mxu0 %v35
  %67 = vmatpush1.msra.mxu0 %v34
  %68 = vmatprep.subr.mxu0 %v37
  %69 = vmatpush1.msra.mxu0 %v36
  %70 = vmatprep.subr.mxu0 %v39
  %71 = vmatpush1.msra.mxu0 %v38
  %72 = vmatprep.subr.mxu0 %v41
  %73 = vmatpush1.msra.mxu0 %v40
  %74 = vmatprep.subr.mxu0 %v43
  %75 = vmatpush1.msra.mxu0 %v42
  %76 = vmatprep.subr.mxu0 %v45
  %77 = vmatpush1.msra.mxu0 %v44
  %78 = vmatprep.subr.mxu0 %v47
  %79 = vmatpush1.msra.mxu0 %v46
  %80 = vmatprep.subr.mxu0 %v49
  %81 = vmatpush1.msra.mxu0 %v48
  %82 = vmatprep.subr.mxu0 %v51
  %83 = vmatpush1.msra.mxu0 %v50
  %84 = vmatprep.subr.mxu0 %v53
  %85 = vmatpush1.msra.mxu0 %v52
  %86 = vmatprep.subr.mxu0 %v55
  %87 = vmatpush1.msra.mxu0 %v54
  %88 = vmatprep.subr.mxu0 %v57
  %89 = vmatpush1.msra.mxu0 %v56
  %90 = vmatprep.subr.mxu0 %v59
  %91 = vmatpush1.msra.mxu0 %v58
  %92 = vmatprep.subr.mxu0 %v61
  %93 = vmatpush1.msra.mxu0 %v60
  %94 = vmatprep.subr.mxu0 0.0
  %95 = vmatpush1.msra.mxu0 0.0
  %96 = vmatprep.subr.mxu0 0.0
  %97 = vmatpush1.msra.mxu0 0.0
  %98 = vmatprep.subr.mxu0 0.0
  %99 = vmatpush1.msra.mxu0 0.0
  %100 = vmatprep.subr.mxu0 0.0
  %101 = vmatpush1.msra.mxu0 0.0
  %102 = vmatprep.subr.mxu0 0.0
  %103 = vmatpush1.msra.mxu0 0.0
  %104 = vmatprep.subr.mxu0 0.0
  %105 = vmatpush1.msra.mxu0 0.0
  %106 = vmatprep.subr.mxu0 0.0
  %107 = vmatpush1.msra.mxu0 0.0
  %108 = vmatprep.subr.mxu0 0.0
  %109 = vmatpush1.msra.mxu0 0.0
  %110 = vmatprep.subr.mxu0 0.0
  %111 = vmatpush1.msra.mxu0 0.0
  %112 = vmatprep.subr.mxu0 0.0
  %113 = vmatpush1.msra.mxu0 0.0
  %114 = vmatprep.subr.mxu0 0.0
  %115 = vmatpush1.msra.mxu0 0.0
  %116 = vmatprep.subr.mxu0 0.0
  %117 = vmatpush1.msra.mxu0 0.0
  %118 = vmatprep.subr.mxu0 0.0
  %119 = vmatpush1.msra.mxu0 0.0
  %120 = vmatprep.subr.mxu0 0.0
  %121 = vmatpush1.msra.mxu0 0.0
  %122 = vmatprep.subr.mxu0 0.0
  %123 = vmatpush1.msra.mxu0 0.0
  %124 = vmatprep.subr.mxu0 0.0
  %125 = vmatpush1.msra.mxu0 0.0
  %126 = vmatprep.mubr.f32.mxu0 0.0
  %127 = vmatmul.mubr.f32.gmra.mrb[0].mxu0 %v14
  %v128 = vpop.f32.mrb[0].mxu0
  %v129 = vadd.f32 0.0, %v128
  %v130 = vpop.f32.mrb[0].mxu0
  %v131 = vadd.f32 0.0, %v130
  %132 = vmatprep.mubr.f32.mxu0 0.0
  %133 = vmatmul.mubr.f32.gmra.mrb[0].mxu0 %v15
  %v134 = vpop.f32.mrb[0].mxu0
  %v135 = vadd.f32 0.0, %v134
  %v136 = vpop.f32.mrb[0].mxu0
  %v137 = vadd.f32 0.0, %v136
  %138 = vmatprep.mubr.f32.mxu0 0.0
  %139 = vmatmul.mubr.f32.gmra.mrb[0].mxu0 %v16
  %v140 = vpop.f32.mrb[0].mxu0
  %v141 = vadd.f32 0.0, %v140
  %v142 = vpop.f32.mrb[0].mxu0
  %v143 = vadd.f32 0.0, %v142
  %144 = vmatprep.mubr.f32.mxu0 0.0
  %145 = vmatmul.mubr.f32.gmra.mrb[0].mxu0 %v17
  %v146 = vpop.f32.mrb[0].mxu0
  %v147 = vadd.f32 0.0, %v146
  %v148 = vpop.f32.mrb[0].mxu0
  %v149 = vadd.f32 0.0, %v148
  %150 = vmatprep.mubr.f32.mxu0 0.0
  %151 = vmatmul.mubr.f32.gmra.mrb[0].mxu0 %v18
  %v152 = vpop.f32.mrb[0].mxu0
  %v153 = vadd.f32 0.0, %v152
  %v154 = vpop.f32.mrb[0].mxu0
  %v155 = vadd.f32 0.0, %v154
  %156 = vmatprep.mubr.f32.mxu0 0.0
  %157 = vmatmul.mubr.f32.gmra.mrb[0].mxu0 %v19
  %v158 = vpop.f32.mrb[0].mxu0
  %v159 = vadd.f32 0.0, %v158
  %v160 = vpop.f32.mrb[0].mxu0
  %v161 = vadd.f32 0.0, %v160
  %162 = vmatprep.mubr.f32.mxu0 0.0
  %163 = vmatmul.mubr.f32.gmra.mrb[0].mxu0 %v20
  %v164 = vpop.f32.mrb[0].mxu0
  %v165 = vadd.f32 0.0, %v164
  %v166 = vpop.f32.mrb[0].mxu0
  %v167 = vadd.f32 0.0, %v166
  %168 = vmatprep.mubr.f32.mxu0 0.0
  %169 = vmatmul.mubr.f32.gmra.mrb[0].mxu0 %v21
  %v170 = vpop.f32.mrb[0].mxu0
  %v171 = vadd.f32 0.0, %v170
  %v172 = vpop.f32.mrb[0].mxu0
  %v173 = vadd.f32 0.0, %v172
  %174 = vmatprep.mubr.f32.mxu0 0.0
  %175 = vmatmul.mubr.f32.gmra.mrb[0].mxu0 %v22
  %v176 = vpop.f32.mrb[0].mxu0
  %v177 = vadd.f32 0.0, %v176
  %v178 = vpop.f32.mrb[0].mxu0
  %v179 = vadd.f32 0.0, %v178
  %180 = vmatprep.mubr.f32.mxu0 0.0
  %181 = vmatmul.mubr.f32.gmra.mrb[0].mxu0 %v23
  %v182 = vpop.f32.mrb[0].mxu0
  %v183 = vadd.f32 0.0, %v182
  %v184 = vpop.f32.mrb[0].mxu0
  %v185 = vadd.f32 0.0, %v184
  %186 = vmatprep.mubr.f32.mxu0 0.0
  %187 = vmatmul.mubr.f32.gmra.mrb[0].mxu0 %v24
  %v188 = vpop.f32.mrb[0].mxu0
  %v189 = vadd.f32 0.0, %v188
  %v190 = vpop.f32.mrb[0].mxu0
  %v191 = vadd.f32 0.0, %v190
  %192 = vmatprep.mubr.f32.mxu0 0.0
  %193 = vmatmul.mubr.f32.gmra.mrb[0].mxu0 %v25
  %v194 = vpop.f32.mrb[0].mxu0
  %v195 = vadd.f32 0.0, %v194
  %v196 = vpop.f32.mrb[0].mxu0
  %v197 = vadd.f32 0.0, %v196
  %198 = vmatprep.mubr.f32.mxu0 0.0
  %199 = vmatmul.mubr.f32.gmra.mrb[0].mxu0 %v26
  %v200 = vpop.f32.mrb[0].mxu0
  %v201 = vadd.f32 0.0, %v200
  %v202 = vpop.f32.mrb[0].mxu0
  %v203 = vadd.f32 0.0, %v202
  %204 = vmatprep.mubr.f32.mxu0 0.0
  %205 = vmatmul.mubr.f32.gmra.mrb[0].mxu0 %v27
  %v206 = vpop.f32.mrb[0].mxu0
  %v207 = vadd.f32 0.0, %v206
  %v208 = vpop.f32.mrb[0].mxu0
  %v209 = vadd.f32 0.0, %v208
  %210 = vmatprep.mubr.f32.mxu0 0.0
  %211 = vmatmul.mubr.f32.gmra.mrb[0].mxu0 %v28
  %v212 = vpop.f32.mrb[0].mxu0
  %v213 = vadd.f32 0.0, %v212
  %v214 = vpop.f32.mrb[0].mxu0
  %v215 = vadd.f32 0.0, %v214
  %216 = vmatprep.mubr.f32.mxu0 0.0
  %217 = vmatmul.mubr.f32.gmra.mrb[0].mxu0 %v29
  %v218 = vpop.f32.mrb[0].mxu0
  %v219 = vadd.f32 0.0, %v218
  %v220 = vpop.f32.mrb[0].mxu0
  %v221 = vadd.f32 0.0, %v220
  %222 = vdwg.mxu0
  %v223 = vld [vmem:[%s2] sm:$0xff]
  %v224 = vld [vmem:[%s2 + $0x8] sm:$0xff]
  %v225 = vld [vmem:[%s2 + $0x10] sm:$0xff]
  %v226 = vld [vmem:[%s2 + $0x18] sm:$0xff]
  %v227 = vld [vmem:[%s2 + $0x20] sm:$0xff]
  %v228 = vld [vmem:[%s2 + $0x28] sm:$0xff]
  %v229 = vld [vmem:[%s2 + $0x30] sm:$0xff]
  %v230 = vld [vmem:[%s2 + $0x38] sm:$0xff]
  %v231 = vld [vmem:[%s2 + $0x40] sm:$0xff]
  %v232 = vld [vmem:[%s2 + $0x48] sm:$0xff]
  %v233 = vld [vmem:[%s2 + $0x50] sm:$0xff]
  %v234 = vld [vmem:[%s2 + $0x58] sm:$0xff]
  %v235 = vld [vmem:[%s2 + $0x60] sm:$0xff]
  %v236 = vld [vmem:[%s2 + $0x68] sm:$0xff]
  %v237 = vld [vmem:[%s2 + $0x70] sm:$0xff]
  %v238 = vld [vmem:[%s2 + $0x78] sm:$0xff]
  %v239 = vadd.f32 %v129, %v223
  %v240 = vadd.f32 %v135, %v224
  %v241 = vadd.f32 %v141, %v225
  %v242 = vadd.f32 %v147, %v226
  %v243 = vadd.f32 %v153, %v227
  %v244 = vadd.f32 %v159, %v228
  %v245 = vadd.f32 %v165, %v229
  %v246 = vadd.f32 %v171, %v230
  %v247 = vadd.f32 %v177, %v231
  %v248 = vadd.f32 %v183, %v232
  %v249 = vadd.f32 %v189, %v233
  %v250 = vadd.f32 %v195, %v234
  %v251 = vadd.f32 %v201, %v235
  %v252 = vadd.f32 %v207, %v236
  %v253 = vadd.f32 %v213, %v237
  %v254 = vadd.f32 %v219, %v238
  %255 = vst [vmem:[%s3] sm:$0xff] %v239
  %256 = vst [vmem:[%s3 + $0x10] sm:$0xff] %v240
  %257 = vst [vmem:[%s3 + $0x20] sm:$0xff] %v241
  %258 = vst [vmem:[%s3 + $0x30] sm:$0xff] %v242
  %259 = vst [vmem:[%s3 + $0x40] sm:$0xff] %v243
  %260 = vst [vmem:[%s3 + $0x50] sm:$0xff] %v244
  %261 = vst [vmem:[%s3 + $0x60] sm:$0xff] %v245
  %262 = vst [vmem:[%s3 + $0x70] sm:$0xff] %v246
  %263 = vst [vmem:[%s3 + $0x80] sm:$0xff] %v247
  %264 = vst [vmem:[%s3 + $0x90] sm:$0xff] %v248
  %265 = vst [vmem:[%s3 + $0xa0] sm:$0xff] %v249
  %266 = vst [vmem:[%s3 + $0xb0] sm:$0xff] %v250
  %267 = vst [vmem:[%s3 + $0xc0] sm:$0xff] %v251
  %268 = vst [vmem:[%s3 + $0xd0] sm:$0xff] %v252
  %269 = vst [vmem:[%s3 + $0xe0] sm:$0xff] %v253
  %270 = vst [vmem:[%s3 + $0xf0] sm:$0xff] %v254
  %271 = vst [vmem:[%s3 + $0x8] sm:$0xff] %v131
  %272 = vst [vmem:[%s3 + $0x18] sm:$0xff] %v137
  %273 = vst [vmem:[%s3 + $0x28] sm:$0xff] %v143
  %274 = vst [vmem:[%s3 + $0x38] sm:$0xff] %v149
  %275 = vst [vmem:[%s3 + $0x48] sm:$0xff] %v155
  %276 = vst [vmem:[%s3 + $0x58] sm:$0xff] %v161
  %277 = vst [vmem:[%s3 + $0x68] sm:$0xff] %v167
  %278 = vst [vmem:[%s3 + $0x78] sm:$0xff] %v173
  %279 = vst [vmem:[%s3 + $0x88] sm:$0xff] %v179
  %280 = vst [vmem:[%s3 + $0x98] sm:$0xff] %v185
  %281 = vst [vmem:[%s3 + $0xa8] sm:$0xff] %v191
  %282 = vst [vmem:[%s3 + $0xb8] sm:$0xff] %v197
  %283 = vst [vmem:[%s3 + $0xc8] sm:$0xff] %v203
  %284 = vst [vmem:[%s3 + $0xd8] sm:$0xff] %v209
  %285 = vst [vmem:[%s3 + $0xe8] sm:$0xff] %v215
  %286 = vst [vmem:[%s3 + $0xf8] sm:$0xff] %v221
  // Predicated region
  $region14: #{_lambda_.29} parent=0 // pred_check
    _
  $region15: #{_lambda_.29} parent=0 // pred_check_branch
    %288 = sbr.rel (0) target = $region17
  $region16: #{_lambda_.29} parent=0 // pred_region
    _
  $region17: #{_lambda_.29} parent=0 // pred_fallthru
    _
  // Predicated region
  $region18: #{_lambda_.29} parent=0 // pred_check
    _
  $region19: #{_lambda_.29} parent=0 // pred_check_branch
    %290 = sbr.rel (0) target = $region21
  $region20: #{_lambda_.29} parent=0 // pred_region
    _
  $region21: #{_lambda_.29} parent=0 // pred_fallthru
    _

// kernel: _lambda_.31
$region0: #{_lambda_.31}
  #allocation0 [shape = 'u32[]', space=smem, size = 0x4, offset = 0x4, fixed_abs, tag = 'smem constant byte address 0x4 - core index']
  #allocation1 [shape = 'u32[144,128]{1,0:T(1,128)}', space=vmem, size = 0x12000, scoped, tag = 'internal scratch']
  %s0 = inlined_call_operand.vmem [shape: f32[128,384], index: 0, kind: input, shape index: {}]
  %s1 = inlined_call_operand.vmem [shape: f32[384,128], index: 1, kind: input, shape index: {}]
  %s2 = inlined_call_operand.vmem [shape: f32[1,384], index: 2, kind: input, shape index: {}]
  %s3 = inlined_call_operand.vmem [shape: f32[1,384], index: 3, kind: input, shape index: {}]
  %s4 = inlined_call_operand.vmem [shape: f32[1,128], index: 4, kind: input, shape index: {}]
  %s5 = inlined_call_operand.vmem [shape: f32[1,128], index: 5, kind: input, shape index: {}]
  %s6 = inlined_call_operand.vmem [shape: f32[128,128], index: 6, kind: output, shape index: {}]
  %s7 = sld [smem:[#allocation0]]
  $region34: #{_lambda_.31} parent=0
    _
  %s9 = ssub.s32 1, %s7
  %s10 = scalar_select 0, %s9, %s7
  // Predicated region
  $region2: #{_lambda_.31} parent=0 // pred_check
    _
  $region3: #{_lambda_.31} parent=0 // pred_check_branch
    %12 = sbr.rel (0) target = $region5
  $region4: #{_lambda_.31} parent=0 // pred_region
    _
  $region5: #{_lambda_.31} parent=0 // pred_fallthru
    _
  // Predicated region
  $region6: #{_lambda_.31} parent=0 // pred_check
    _
  $region7: #{_lambda_.31} parent=0 // pred_check_branch
    %14 = sbr.rel (0) target = $region9
  $region8: #{_lambda_.31} parent=0 // pred_region
    _
  $region9: #{_lambda_.31} parent=0 // pred_fallthru
    _
  // Predicated region
  $region10: #{_lambda_.31} parent=0 // pred_check
    _
  $region11: #{_lambda_.31} parent=0 // pred_check_branch
    %16 = sbr.rel (0) target = $region13
  $region12: #{_lambda_.31} parent=0 // pred_region
    _
  $region13: #{_lambda_.31} parent=0 // pred_fallthru
    _
  // Predicated region
  $region14: #{_lambda_.31} parent=0 // pred_check
    _
  $region15: #{_lambda_.31} parent=0 // pred_check_branch
    %18 = sbr.rel (0) target = $region17
  $region16: #{_lambda_.31} parent=0 // pred_region
    _
  $region17: #{_lambda_.31} parent=0 // pred_fallthru
    _
  // Predicated region
  $region18: #{_lambda_.31} parent=0 // pred_check
    _
  $region19: #{_lambda_.31} parent=0 // pred_check_branch
    %20 = sbr.rel (0) target = $region21
  $region20: #{_lambda_.31} parent=0 // pred_region
    _
  $region21: #{_lambda_.31} parent=0 // pred_fallthru
    _
  // Predicated region
  $region22: #{_lambda_.31} parent=0 // pred_check
    _
  $region23: #{_lambda_.31} parent=0 // pred_check_branch
    %22 = sbr.rel (0) target = $region25
  $region24: #{_lambda_.31} parent=0 // pred_region
    _
  $region25: #{_lambda_.31} parent=0 // pred_fallthru
    _
  %v23 = vld [vmem:[%s0] sm:$0xff]
  %v24 = vld [vmem:[%s0 + $0x8] sm:$0xff]
  %v25 = vld [vmem:[%s0 + $0x10] sm:$0xff]
  %v26 = vld [vmem:[%s0 + $0x18] sm:$0xff]
  %v27 = vld [vmem:[%s0 + $0x20] sm:$0xff]
  %v28 = vld [vmem:[%s0 + $0x28] sm:$0xff]
  %v29 = vld [vmem:[%s0 + $0x30] sm:$0xff]
  %v30 = vld [vmem:[%s0 + $0x38] sm:$0xff]
  %v31 = vld [vmem:[%s0 + $0x40] sm:$0xff]
  %v32 = vld [vmem:[%s0 + $0x48] sm:$0xff]
  %v33 = vld [vmem:[%s0 + $0x50] sm:$0xff]
  %v34 = vld [vmem:[%s0 + $0x58] sm:$0xff]
  %v35 = vld [vmem:[%s0 + $0x60] sm:$0xff]
  %v36 = vld [vmem:[%s0 + $0x68] sm:$0xff]
  %v37 = vld [vmem:[%s0 + $0x70] sm:$0xff]
  %v38 = vld [vmem:[%s0 + $0x78] sm:$0xff]
  %v39 = vld [vmem:[%s0 + $0x80] sm:$0xff]
  %v40 = vld [vmem:[%s0 + $0x88] sm:$0xff]
  %v41 = vld [vmem:[%s0 + $0x90] sm:$0xff]
  %v42 = vld [vmem:[%s0 + $0x98] sm:$0xff]
  %v43 = vld [vmem:[%s0 + $0xa0] sm:$0xff]
  %v44 = vld [vmem:[%s0 + $0xa8] sm:$0xff]
  %v45 = vld [vmem:[%s0 + $0xb0] sm:$0xff]
  %v46 = vld [vmem:[%s0 + $0xb8] sm:$0xff]
  %v47 = vld [vmem:[%s0 + $0xc0] sm:$0xff]
  %v48 = vld [vmem:[%s0 + $0xc8] sm:$0xff]
  %v49 = vld [vmem:[%s0 + $0xd0] sm:$0xff]
  %v50 = vld [vmem:[%s0 + $0xd8] sm:$0xff]
  %v51 = vld [vmem:[%s0 + $0xe0] sm:$0xff]
  %v52 = vld [vmem:[%s0 + $0xe8] sm:$0xff]
  %v53 = vld [vmem:[%s0 + $0xf0] sm:$0xff]
  %v54 = vld [vmem:[%s0 + $0xf8] sm:$0xff]
  %v55 = vld [vmem:[%s0 + $0x100] sm:$0xff]
  %v56 = vld [vmem:[%s0 + $0x108] sm:$0xff]
  %v57 = vld [vmem:[%s0 + $0x110] sm:$0xff]
  %v58 = vld [vmem:[%s0 + $0x118] sm:$0xff]
  %v59 = vld [vmem:[%s0 + $0x120] sm:$0xff]
  %v60 = vld [vmem:[%s0 + $0x128] sm:$0xff]
  %v61 = vld [vmem:[%s0 + $0x130] sm:$0xff]
  %v62 = vld [vmem:[%s0 + $0x138] sm:$0xff]
  %v63 = vld [vmem:[%s0 + $0x140] sm:$0xff]
  %v64 = vld [vmem:[%s0 + $0x148] sm:$0xff]
  %v65 = vld [vmem:[%s0 + $0x150] sm:$0xff]
  %v66 = vld [vmem:[%s0 + $0x158] sm:$0xff]
  %v67 = vld [vmem:[%s0 + $0x160] sm:$0xff]
  %v68 = vld [vmem:[%s0 + $0x168] sm:$0xff]
  %v69 = vld [vmem:[%s0 + $0x170] sm:$0xff]
  %v70 = vld [vmem:[%s0 + $0x178] sm:$0xff]
  %v71 = vld [vmem:[%s2] sm:$0x7]
  %v73 = vlaneseq
  %v74 = vshrl.u32 %v73, 7
  %v75 = vsub.s32 0, %v74
  %v76 = vrot.slane %v71, %v75
  %v77 = vlaneseq
  %v78 = vshrl.u32 %v77, 7
  %v79 = vsub.s32 1, %v78
  %v80 = vrot.slane %v71, %v79
  %v81 = vlaneseq
  %v82 = vshrl.u32 %v81, 7
  %v83 = vsub.s32 2, %v82
  %v84 = vrot.slane %v71, %v83
  %v88 = vmul.f32 %v23, %v76
  %v89 = vmul.f32 %v24, %v80
  %v90 = vmul.f32 %v25, %v84
  %v91 = vmul.f32 %v26, %v76
  %v92 = vmul.f32 %v27, %v80
  %v93 = vmul.f32 %v28, %v84
  %v94 = vmul.f32 %v29, %v76
  %v95 = vmul.f32 %v30, %v80
  %v96 = vmul.f32 %v31, %v84
  %v97 = vmul.f32 %v32, %v76
  %v98 = vmul.f32 %v33, %v80
  %v99 = vmul.f32 %v34, %v84
  %v100 = vmul.f32 %v35, %v76
  %v101 = vmul.f32 %v36, %v80
  %v102 = vmul.f32 %v37, %v84
  %v103 = vmul.f32 %v38, %v76
  %v104 = vmul.f32 %v39, %v80
  %v105 = vmul.f32 %v40, %v84
  %v106 = vmul.f32 %v41, %v76
  %v107 = vmul.f32 %v42, %v80
  %v108 = vmul.f32 %v43, %v84
  %v109 = vmul.f32 %v44, %v76
  %v110 = vmul.f32 %v45, %v80
  %v111 = vmul.f32 %v46, %v84
  %v112 = vmul.f32 %v47, %v76
  %v113 = vmul.f32 %v48, %v80
  %v114 = vmul.f32 %v49, %v84
  %v115 = vmul.f32 %v50, %v76
  %v116 = vmul.f32 %v51, %v80
  %v117 = vmul.f32 %v52, %v84
  %v118 = vmul.f32 %v53, %v76
  %v119 = vmul.f32 %v54, %v80
  %v120 = vmul.f32 %v55, %v84
  %v121 = vmul.f32 %v56, %v76
  %v122 = vmul.f32 %v57, %v80
  %v123 = vmul.f32 %v58, %v84
  %v124 = vmul.f32 %v59, %v76
  %v125 = vmul.f32 %v60, %v80
  %v126 = vmul.f32 %v61, %v84
  %v127 = vmul.f32 %v62, %v76
  %v128 = vmul.f32 %v63, %v80
  %v129 = vmul.f32 %v64, %v84
  %v130 = vmul.f32 %v65, %v76
  %v131 = vmul.f32 %v66, %v80
  %v132 = vmul.f32 %v67, %v84
  %v133 = vmul.f32 %v68, %v76
  %v134 = vmul.f32 %v69, %v80
  %v135 = vmul.f32 %v70, %v84
  %v136 = vld [vmem:[%s3] sm:$0x7]
  %v138 = vlaneseq
  %v139 = vshrl.u32 %v138, 7
  %v140 = vsub.s32 0, %v139
  %v141 = vrot.slane %v136, %v140
  %v142 = vlaneseq
  %v143 = vshrl.u32 %v142, 7
  %v144 = vsub.s32 1, %v143
  %v145 = vrot.slane %v136, %v144
  %v146 = vlaneseq
  %v147 = vshrl.u32 %v146, 7
  %v148 = vsub.s32 2, %v147
  %v149 = vrot.slane %v136, %v148
  %v153 = vadd.f32 %v88, %v141
  %v154 = vadd.f32 %v89, %v145
  %v155 = vadd.f32 %v90, %v149
  %v156 = vadd.f32 %v91, %v141
  %v157 = vadd.f32 %v92, %v145
  %v158 = vadd.f32 %v93, %v149
  %v159 = vadd.f32 %v94, %v141
  %v160 = vadd.f32 %v95, %v145
  %v161 = vadd.f32 %v96, %v149
  %v162 = vadd.f32 %v97, %v141
  %v163 = vadd.f32 %v98, %v145
  %v164 = vadd.f32 %v99, %v149
  %v165 = vadd.f32 %v100, %v141
  %v166 = vadd.f32 %v101, %v145
  %v167 = vadd.f32 %v102, %v149
  %v168 = vadd.f32 %v103, %v141
  %v169 = vadd.f32 %v104, %v145
  %v170 = vadd.f32 %v105, %v149
  %v171 = vadd.f32 %v106, %v141
  %v172 = vadd.f32 %v107, %v145
  %v173 = vadd.f32 %v108, %v149
  %v174 = vadd.f32 %v109, %v141
  %v175 = vadd.f32 %v110, %v145
  %v176 = vadd.f32 %v111, %v149
  %v177 = vadd.f32 %v112, %v141
  %v178 = vadd.f32 %v113, %v145
  %v179 = vadd.f32 %v114, %v149
  %v180 = vadd.f32 %v115, %v141
  %v181 = vadd.f32 %v116, %v145
  %v182 = vadd.f32 %v117, %v149
  %v183 = vadd.f32 %v118, %v141
  %v184 = vadd.f32 %v119, %v145
  %v185 = vadd.f32 %v120, %v149
  %v186 = vadd.f32 %v121, %v141
  %v187 = vadd.f32 %v122, %v145
  %v188 = vadd.f32 %v123, %v149
  %v189 = vadd.f32 %v124, %v141
  %v190 = vadd.f32 %v125, %v145
  %v191 = vadd.f32 %v126, %v149
  %v192 = vadd.f32 %v127, %v141
  %v193 = vadd.f32 %v128, %v145
  %v194 = vadd.f32 %v129, %v149
  %v195 = vadd.f32 %v130, %v141
  %v196 = vadd.f32 %v131, %v145
  %v197 = vadd.f32 %v132, %v149
  %v198 = vadd.f32 %v133, %v141
  %v199 = vadd.f32 %v134, %v145
  %v200 = vadd.f32 %v135, %v149
  %v201 = vmax.f32 %v153, 0.0
  %v202 = vmax.f32 %v154, 0.0
  %v203 = vmax.f32 %v155, 0.0
  %v204 = vmax.f32 %v156, 0.0
  %v205 = vmax.f32 %v157, 0.0
  %v206 = vmax.f32 %v158, 0.0
  %v207 = vmax.f32 %v159, 0.0
  %v208 = vmax.f32 %v160, 0.0
  %v209 = vmax.f32 %v161, 0.0
  %v210 = vmax.f32 %v162, 0.0
  %v211 = vmax.f32 %v163, 0.0
  %v212 = vmax.f32 %v164, 0.0
  %v213 = vmax.f32 %v165, 0.0
  %v214 = vmax.f32 %v166, 0.0
  %v215 = vmax.f32 %v167, 0.0
  %v216 = vmax.f32 %v168, 0.0
  %v217 = vmax.f32 %v169, 0.0
  %v218 = vmax.f32 %v170, 0.0
  %v219 = vmax.f32 %v171, 0.0
  %v220 = vmax.f32 %v172, 0.0
  %v221 = vmax.f32 %v173, 0.0
  %v222 = vmax.f32 %v174, 0.0
  %v223 = vmax.f32 %v175, 0.0
  %v224 = vmax.f32 %v176, 0.0
  %v225 = vmax.f32 %v177, 0.0
  %v226 = vmax.f32 %v178, 0.0
  %v227 = vmax.f32 %v179, 0.0
  %v228 = vmax.f32 %v180, 0.0
  %v229 = vmax.f32 %v181, 0.0
  %v230 = vmax.f32 %v182, 0.0
  %v231 = vmax.f32 %v183, 0.0
  %v232 = vmax.f32 %v184, 0.0
  %v233 = vmax.f32 %v185, 0.0
  %v234 = vmax.f32 %v186, 0.0
  %v235 = vmax.f32 %v187, 0.0
  %v236 = vmax.f32 %v188, 0.0
  %v237 = vmax.f32 %v189, 0.0
  %v238 = vmax.f32 %v190, 0.0
  %v239 = vmax.f32 %v191, 0.0
  %v240 = vmax.f32 %v192, 0.0
  %v241 = vmax.f32 %v193, 0.0
  %v242 = vmax.f32 %v194, 0.0
  %v243 = vmax.f32 %v195, 0.0
  %v244 = vmax.f32 %v196, 0.0
  %v245 = vmax.f32 %v197, 0.0
  %v246 = vmax.f32 %v198, 0.0
  %v247 = vmax.f32 %v199, 0.0
  %v248 = vmax.f32 %v200, 0.0
  %v249 = vld [vmem:[%s1] sm:$0xff]
  %v250 = vld [vmem:[%s1 + $0x8] sm:$0xff]
  %v251 = vld [vmem:[%s1 + $0x10] sm:$0xff]
  %v252 = vld [vmem:[%s1 + $0x18] sm:$0xff]
  %v253 = vld [vmem:[%s1 + $0x20] sm:$0xff]
  %v254 = vld [vmem:[%s1 + $0x28] sm:$0xff]
  %v255 = vld [vmem:[%s1 + $0x30] sm:$0xff]
  %v256 = vld [vmem:[%s1 + $0x38] sm:$0xff]
  %v257 = vld [vmem:[%s1 + $0x40] sm:$0xff]
  %v258 = vld [vmem:[%s1 + $0x48] sm:$0xff]
  %v259 = vld [vmem:[%s1 + $0x50] sm:$0xff]
  %v260 = vld [vmem:[%s1 + $0x58] sm:$0xff]
  %v261 = vld [vmem:[%s1 + $0x60] sm:$0xff]
  %v262 = vld [vmem:[%s1 + $0x68] sm:$0xff]
  %v263 = vld [vmem:[%s1 + $0x70] sm:$0xff]
  %v264 = vld [vmem:[%s1 + $0x78] sm:$0xff]
  %v265 = vld [vmem:[%s1 + $0x80] sm:$0xff]
  %v266 = vld [vmem:[%s1 + $0x88] sm:$0xff]
  %v267 = vld [vmem:[%s1 + $0x90] sm:$0xff]
  %v268 = vld [vmem:[%s1 + $0x98] sm:$0xff]
  %v269 = vld [vmem:[%s1 + $0xa0] sm:$0xff]
  %v270 = vld [vmem:[%s1 + $0xa8] sm:$0xff]
  %v271 = vld [vmem:[%s1 + $0xb0] sm:$0xff]
  %v272 = vld [vmem:[%s1 + $0xb8] sm:$0xff]
  %v273 = vld [vmem:[%s1 + $0xc0] sm:$0xff]
  %v274 = vld [vmem:[%s1 + $0xc8] sm:$0xff]
  %v275 = vld [vmem:[%s1 + $0xd0] sm:$0xff]
  %v276 = vld [vmem:[%s1 + $0xd8] sm:$0xff]
  %v277 = vld [vmem:[%s1 + $0xe0] sm:$0xff]
  %v278 = vld [vmem:[%s1 + $0xe8] sm:$0xff]
  %v279 = vld [vmem:[%s1 + $0xf0] sm:$0xff]
  %v280 = vld [vmem:[%s1 + $0xf8] sm:$0xff]
  %v281 = vld [vmem:[%s1 + $0x100] sm:$0xff]
  %v282 = vld [vmem:[%s1 + $0x108] sm:$0xff]
  %v283 = vld [vmem:[%s1 + $0x110] sm:$0xff]
  %v284 = vld [vmem:[%s1 + $0x118] sm:$0xff]
  %v285 = vld [vmem:[%s1 + $0x120] sm:$0xff]
  %v286 = vld [vmem:[%s1 + $0x128] sm:$0xff]
  %v287 = vld [vmem:[%s1 + $0x130] sm:$0xff]
  %v288 = vld [vmem:[%s1 + $0x138] sm:$0xff]
  %v289 = vld [vmem:[%s1 + $0x140] sm:$0xff]
  %v290 = vld [vmem:[%s1 + $0x148] sm:$0xff]
  %v291 = vld [vmem:[%s1 + $0x150] sm:$0xff]
  %v292 = vld [vmem:[%s1 + $0x158] sm:$0xff]
  %v293 = vld [vmem:[%s1 + $0x160] sm:$0xff]
  %v294 = vld [vmem:[%s1 + $0x168] sm:$0xff]
  %v295 = vld [vmem:[%s1 + $0x170] sm:$0xff]
  %v296 = vld [vmem:[%s1 + $0x178] sm:$0xff]
  %297 = vmatprep.subr.mxu0 0.0
  %298 = vmatpush1.msra.mxu0 %v249
  %299 = vmatprep.subr.mxu0 0.0
  %300 = vmatpush1.msra.mxu0 %v250
  %301 = vmatprep.subr.mxu0 0.0
  %302 = vmatpush1.msra.mxu0 %v251
  %303 = vmatprep.subr.mxu0 0.0
  %304 = vmatpush1.msra.mxu0 %v252
  %305 = vmatprep.subr.mxu0 0.0
  %306 = vmatpush1.msra.mxu0 %v253
  %307 = vmatprep.subr.mxu0 0.0
  %308 = vmatpush1.msra.mxu0 %v254
  %309 = vmatprep.subr.mxu0 0.0
  %310 = vmatpush1.msra.mxu0 %v255
  %311 = vmatprep.subr.mxu0 0.0
  %312 = vmatpush1.msra.mxu0 %v256
  %313 = vmatprep.subr.mxu0 0.0
  %314 = vmatpush1.msra.mxu0 %v257
  %315 = vmatprep.subr.mxu0 0.0
  %316 = vmatpush1.msra.mxu0 %v258
  %317 = vmatprep.subr.mxu0 0.0
  %318 = vmatpush1.msra.mxu0 %v259
  %319 = vmatprep.subr.mxu0 0.0
  %320 = vmatpush1.msra.mxu0 %v260
  %321 = vmatprep.subr.mxu0 0.0
  %322 = vmatpush1.msra.mxu0 %v261
  %323 = vmatprep.subr.mxu0 0.0
  %324 = vmatpush1.msra.mxu0 %v262
  %325 = vmatprep.subr.mxu0 0.0
  %326 = vmatpush1.msra.mxu0 %v263
  %327 = vmatprep.subr.mxu0 0.0
  %328 = vmatpush1.msra.mxu0 %v264
  %329 = vmatprep.subr.mxu0 0.0
  %330 = vmatpush1.msra.mxu0 %v265
  %331 = vmatprep.subr.mxu0 0.0
  %332 = vmatpush1.msra.mxu0 %v266
  %333 = vmatprep.subr.mxu0 0.0
  %334 = vmatpush1.msra.mxu0 %v267
  %335 = vmatprep.subr.mxu0 0.0
  %336 = vmatpush1.msra.mxu0 %v268
  %337 = vmatprep.subr.mxu0 0.0
  %338 = vmatpush1.msra.mxu0 %v269
  %339 = vmatprep.subr.mxu0 0.0
  %340 = vmatpush1.msra.mxu0 %v270
  %341 = vmatprep.subr.mxu0 0.0
  %342 = vmatpush1.msra.mxu0 %v271
  %343 = vmatprep.subr.mxu0 0.0
  %344 = vmatpush1.msra.mxu0 %v272
  %345 = vmatprep.subr.mxu0 0.0
  %346 = vmatpush1.msra.mxu0 %v273
  %347 = vmatprep.subr.mxu0 0.0
  %348 = vmatpush1.msra.mxu0 %v274
  %349 = vmatprep.subr.mxu0 0.0
  %350 = vmatpush1.msra.mxu0 %v275
  %351 = vmatprep.subr.mxu0 0.0
  %352 = vmatpush1.msra.mxu0 %v276
  %353 = vmatprep.subr.mxu0 0.0
  %354 = vmatpush1.msra.mxu0 %v277
  %355 = vmatprep.subr.mxu0 0.0
  %356 = vmatpush1.msra.mxu0 %v278
  %357 = vmatprep.subr.mxu0 0.0
  %358 = vmatpush1.msra.mxu0 %v279
  %359 = vmatprep.subr.mxu0 0.0
  %360 = vmatpush1.msra.mxu0 %v280
  %361 = vmatprep.mubr.f32.mxu0 %v202
  %362 = vmatmul.mubr.f32.gmra.mrb[0].mxu0 %v201
  %v363 = vpop.f32.mrb[0].mxu0
  %v364 = vadd.f32 0.0, %v363
  %v365 = vpop.f32.mrb[0].mxu0
  %366 = vmatprep.mubr.f32.mxu0 %v205
  %367 = vmatmul.mubr.f32.gmra.mrb[0].mxu0 %v204
  %v368 = vpop.f32.mrb[0].mxu0
  %v369 = vadd.f32 0.0, %v368
  %v370 = vpop.f32.mrb[0].mxu0
  %371 = vmatprep.mubr.f32.mxu0 %v208
  %372 = vmatmul.mubr.f32.gmra.mrb[0].mxu0 %v207
  %v373 = vpop.f32.mrb[0].mxu0
  %v374 = vadd.f32 0.0, %v373
  %v375 = vpop.f32.mrb[0].mxu0
  %376 = vmatprep.mubr.f32.mxu0 %v211
  %377 = vmatmul.mubr.f32.gmra.mrb[0].mxu0 %v210
  %v378 = vpop.f32.mrb[0].mxu0
  %v379 = vadd.f32 0.0, %v378
  %v380 = vpop.f32.mrb[0].mxu0
  %381 = vmatprep.mubr.f32.mxu0 %v214
  %382 = vmatmul.mubr.f32.gmra.mrb[0].mxu0 %v213
  %v383 = vpop.f32.mrb[0].mxu0
  %v384 = vadd.f32 0.0, %v383
  %v385 = vpop.f32.mrb[0].mxu0
  %386 = vmatprep.mubr.f32.mxu0 %v217
  %387 = vmatmul.mubr.f32.gmra.mrb[0].mxu0 %v216
  %v388 = vpop.f32.mrb[0].mxu0
  %v389 = vadd.f32 0.0, %v388
  %v390 = vpop.f32.mrb[0].mxu0
  %391 = vmatprep.mubr.f32.mxu0 %v220
  %392 = vmatmul.mubr.f32.gmra.mrb[0].mxu0 %v219
  %v393 = vpop.f32.mrb[0].mxu0
  %v394 = vadd.f32 0.0, %v393
  %v395 = vpop.f32.mrb[0].mxu0
  %396 = vmatprep.mubr.f32.mxu0 %v223
  %397 = vmatmul.mubr.f32.gmra.mrb[0].mxu0 %v222
  %v398 = vpop.f32.mrb[0].mxu0
  %v399 = vadd.f32 0.0, %v398
  %v400 = vpop.f32.mrb[0].mxu0
  %401 = vmatprep.mubr.f32.mxu0 %v226
  %402 = vmatmul.mubr.f32.gmra.mrb[0].mxu0 %v225
  %v403 = vpop.f32.mrb[0].mxu0
  %v404 = vadd.f32 0.0, %v403
  %v405 = vpop.f32.mrb[0].mxu0
  %406 = vmatprep.mubr.f32.mxu0 %v229
  %407 = vmatmul.mubr.f32.gmra.mrb[0].mxu0 %v228
  %v408 = vpop.f32.mrb[0].mxu0
  %v409 = vadd.f32 0.0, %v408
  %v410 = vpop.f32.mrb[0].mxu0
  %411 = vmatprep.mubr.f32.mxu0 %v232
  %412 = vmatmul.mubr.f32.gmra.mrb[0].mxu0 %v231
  %v413 = vpop.f32.mrb[0].mxu0
  %v414 = vadd.f32 0.0, %v413
  %v415 = vpop.f32.mrb[0].mxu0
  %416 = vmatprep.mubr.f32.mxu0 %v235
  %417 = vmatmul.mubr.f32.gmra.mrb[0].mxu0 %v234
  %v418 = vpop.f32.mrb[0].mxu0
  %v419 = vadd.f32 0.0, %v418
  %v420 = vpop.f32.mrb[0].mxu0
  %421 = vmatprep.mubr.f32.mxu0 %v238
  %422 = vmatmul.mubr.f32.gmra.mrb[0].mxu0 %v237
  %v423 = vpop.f32.mrb[0].mxu0
  %v424 = vadd.f32 0.0, %v423
  %v425 = vpop.f32.mrb[0].mxu0
  %426 = vmatprep.mubr.f32.mxu0 %v241
  %427 = vmatmul.mubr.f32.gmra.mrb[0].mxu0 %v240
  %v428 = vpop.f32.mrb[0].mxu0
  %v429 = vadd.f32 0.0, %v428
  %v430 = vpop.f32.mrb[0].mxu0
  %431 = vmatprep.mubr.f32.mxu0 %v244
  %432 = vmatmul.mubr.f32.gmra.mrb[0].mxu0 %v243
  %v433 = vpop.f32.mrb[0].mxu0
  %v434 = vadd.f32 0.0, %v433
  %v435 = vpop.f32.mrb[0].mxu0
  %436 = vmatprep.mubr.f32.mxu0 %v247
  %437 = vmatmul.mubr.f32.gmra.mrb[0].mxu0 %v246
  %v438 = vpop.f32.mrb[0].mxu0
  %v439 = vadd.f32 0.0, %v438
  %v440 = vpop.f32.mrb[0].mxu0
  %441 = vdwg.mxu0
  %442 = vmatprep.subr.mxu0 0.0
  %443 = vmatpush1.msra.mxu0 %v281
  %444 = vmatprep.subr.mxu0 0.0
  %445 = vmatpush1.msra.mxu0 %v282
  %446 = vmatprep.subr.mxu0 0.0
  %447 = vmatpush1.msra.mxu0 %v283
  %448 = vmatprep.subr.mxu0 0.0
  %449 = vmatpush1.msra.mxu0 %v284
  %450 = vmatprep.subr.mxu0 0.0
  %451 = vmatpush1.msra.mxu0 %v285
  %452 = vmatprep.subr.mxu0 0.0
  %453 = vmatpush1.msra.mxu0 %v286
  %454 = vmatprep.subr.mxu0 0.0
  %455 = vmatpush1.msra.mxu0 %v287
  %456 = vmatprep.subr.mxu0 0.0
  %457 = vmatpush1.msra.mxu0 %v288
  %458 = vmatprep.subr.mxu0 0.0
  %459 = vmatpush1.msra.mxu0 %v289
  %460 = vmatprep.subr.mxu0 0.0
  %461 = vmatpush1.msra.mxu0 %v290
  %462 = vmatprep.subr.mxu0 0.0
  %463 = vmatpush1.msra.mxu0 %v291
  %464 = vmatprep.subr.mxu0 0.0
  %465 = vmatpush1.msra.mxu0 %v292
  %466 = vmatprep.subr.mxu0 0.0
  %467 = vmatpush1.msra.mxu0 %v293
  %468 = vmatprep.subr.mxu0 0.0
  %469 = vmatpush1.msra.mxu0 %v294
  %470 = vmatprep.subr.mxu0 0.0
  %471 = vmatpush1.msra.mxu0 %v295
  %472 = vmatprep.subr.mxu0 0.0
  %473 = vmatpush1.msra.mxu0 %v296
  %474 = vmatprep.subr.mxu0 0.0
  %475 = vmatpush1.msra.mxu0 0.0
  %476 = vmatprep.subr.mxu0 0.0
  %477 = vmatpush1.msra.mxu0 0.0
  %478 = vmatprep.subr.mxu0 0.0
  %479 = vmatpush1.msra.mxu0 0.0
  %480 = vmatprep.subr.mxu0 0.0
  %481 = vmatpush1.msra.mxu0 0.0
  %482 = vmatprep.subr.mxu0 0.0
  %483 = vmatpush1.msra.mxu0 0.0
  %484 = vmatprep.subr.mxu0 0.0
  %485 = vmatpush1.msra.mxu0 0.0
  %486 = vmatprep.subr.mxu0 0.0
  %487 = vmatpush1.msra.mxu0 0.0
  %488 = vmatprep.subr.mxu0 0.0
  %489 = vmatpush1.msra.mxu0 0.0
  %490 = vmatprep.subr.mxu0 0.0
  %491 = vmatpush1.msra.mxu0 0.0
  %492 = vmatprep.subr.mxu0 0.0
  %493 = vmatpush1.msra.mxu0 0.0
  %494 = vmatprep.subr.mxu0 0.0
  %495 = vmatpush1.msra.mxu0 0.0
  %496 = vmatprep.subr.mxu0 0.0
  %497 = vmatpush1.msra.mxu0 0.0
  %498 = vmatprep.subr.mxu0 0.0
  %499 = vmatpush1.msra.mxu0 0.0
  %500 = vmatprep.subr.mxu0 0.0
  %501 = vmatpush1.msra.mxu0 0.0
  %502 = vmatprep.subr.mxu0 0.0
  %503 = vmatpush1.msra.mxu0 0.0
  %504 = vmatprep.subr.mxu0 0.0
  %505 = vmatpush1.msra.mxu0 0.0
  %506 = vmatprep.mubr.f32.mxu0 0.0
  %507 = vmatmul.mubr.f32.gmra.mrb[0].mxu0 %v203
  %v508 = vpop.f32.mrb[0].mxu0
  %v509 = vadd.f32 %v364, %v508
  %v510 = vpop.f32.mrb[0].mxu0
  %511 = vmatprep.mubr.f32.mxu0 0.0
  %512 = vmatmul.mubr.f32.gmra.mrb[0].mxu0 %v206
  %v513 = vpop.f32.mrb[0].mxu0
  %v514 = vadd.f32 %v369, %v513
  %v515 = vpop.f32.mrb[0].mxu0
  %516 = vmatprep.mubr.f32.mxu0 0.0
  %517 = vmatmul.mubr.f32.gmra.mrb[0].mxu0 %v209
  %v518 = vpop.f32.mrb[0].mxu0
  %v519 = vadd.f32 %v374, %v518
  %v520 = vpop.f32.mrb[0].mxu0
  %521 = vmatprep.mubr.f32.mxu0 0.0
  %522 = vmatmul.mubr.f32.gmra.mrb[0].mxu0 %v212
  %v523 = vpop.f32.mrb[0].mxu0
  %v524 = vadd.f32 %v379, %v523
  %v525 = vpop.f32.mrb[0].mxu0
  %526 = vmatprep.mubr.f32.mxu0 0.0
  %527 = vmatmul.mubr.f32.gmra.mrb[0].mxu0 %v215
  %v528 = vpop.f32.mrb[0].mxu0
  %v529 = vadd.f32 %v384, %v528
  %v530 = vpop.f32.mrb[0].mxu0
  %531 = vmatprep.mubr.f32.mxu0 0.0
  %532 = vmatmul.mubr.f32.gmra.mrb[0].mxu0 %v218
  %v533 = vpop.f32.mrb[0].mxu0
  %v534 = vadd.f32 %v389, %v533
  %v535 = vpop.f32.mrb[0].mxu0
  %536 = vmatprep.mubr.f32.mxu0 0.0
  %537 = vmatmul.mubr.f32.gmra.mrb[0].mxu0 %v221
  %v538 = vpop.f32.mrb[0].mxu0
  %v539 = vadd.f32 %v394, %v538
  %v540 = vpop.f32.mrb[0].mxu0
  %541 = vmatprep.mubr.f32.mxu0 0.0
  %542 = vmatmul.mubr.f32.gmra.mrb[0].mxu0 %v224
  %v543 = vpop.f32.mrb[0].mxu0
  %v544 = vadd.f32 %v399, %v543
  %v545 = vpop.f32.mrb[0].mxu0
  %546 = vmatprep.mubr.f32.mxu0 0.0
  %547 = vmatmul.mubr.f32.gmra.mrb[0].mxu0 %v227
  %v548 = vpop.f32.mrb[0].mxu0
  %v549 = vadd.f32 %v404, %v548
  %v550 = vpop.f32.mrb[0].mxu0
  %551 = vmatprep.mubr.f32.mxu0 0.0
  %552 = vmatmul.mubr.f32.gmra.mrb[0].mxu0 %v230
  %v553 = vpop.f32.mrb[0].mxu0
  %v554 = vadd.f32 %v409, %v553
  %v555 = vpop.f32.mrb[0].mxu0
  %556 = vmatprep.mubr.f32.mxu0 0.0
  %557 = vmatmul.mubr.f32.gmra.mrb[0].mxu0 %v233
  %v558 = vpop.f32.mrb[0].mxu0
  %v559 = vadd.f32 %v414, %v558
  %v560 = vpop.f32.mrb[0].mxu0
  %561 = vmatprep.mubr.f32.mxu0 0.0
  %562 = vmatmul.mubr.f32.gmra.mrb[0].mxu0 %v236
  %v563 = vpop.f32.mrb[0].mxu0
  %v564 = vadd.f32 %v419, %v563
  %v565 = vpop.f32.mrb[0].mxu0
  %566 = vmatprep.mubr.f32.mxu0 0.0
  %567 = vmatmul.mubr.f32.gmra.mrb[0].mxu0 %v239
  %v568 = vpop.f32.mrb[0].mxu0
  %v569 = vadd.f32 %v424, %v568
  %v570 = vpop.f32.mrb[0].mxu0
  %571 = vmatprep.mubr.f32.mxu0 0.0
  %572 = vmatmul.mubr.f32.gmra.mrb[0].mxu0 %v242
  %v573 = vpop.f32.mrb[0].mxu0
  %v574 = vadd.f32 %v429, %v573
  %v575 = vpop.f32.mrb[0].mxu0
  %576 = vmatprep.mubr.f32.mxu0 0.0
  %577 = vmatmul.mubr.f32.gmra.mrb[0].mxu0 %v245
  %v578 = vpop.f32.mrb[0].mxu0
  %v579 = vadd.f32 %v434, %v578
  %v580 = vpop.f32.mrb[0].mxu0
  %581 = vmatprep.mubr.f32.mxu0 0.0
  %582 = vmatmul.mubr.f32.gmra.mrb[0].mxu0 %v248
  %v583 = vpop.f32.mrb[0].mxu0
  %v584 = vadd.f32 %v439, %v583
  %v585 = vpop.f32.mrb[0].mxu0
  %586 = vdwg.mxu0
  %v587 = vld [vmem:[%s4] sm:$0x1]
  %v589 = vlaneseq
  %v590 = vshrl.u32 %v589, 7
  %v591 = vsub.s32 0, %v590
  %v592 = vrot.slane %v587, %v591
  %v594 = vmul.f32 %v509, %v592
  %v595 = vmul.f32 %v514, %v592
  %v596 = vmul.f32 %v519, %v592
  %v597 = vmul.f32 %v524, %v592
  %v598 = vmul.f32 %v529, %v592
  %v599 = vmul.f32 %v534, %v592
  %v600 = vmul.f32 %v539, %v592
  %v601 = vmul.f32 %v544, %v592
  %v602 = vmul.f32 %v549, %v592
  %v603 = vmul.f32 %v554, %v592
  %v604 = vmul.f32 %v559, %v592
  %v605 = vmul.f32 %v564, %v592
  %v606 = vmul.f32 %v569, %v592
  %v607 = vmul.f32 %v574, %v592
  %v608 = vmul.f32 %v579, %v592
  %v609 = vmul.f32 %v584, %v592
  %v610 = vld [vmem:[%s5] sm:$0x1]
  %v612 = vlaneseq
  %v613 = vshrl.u32 %v612, 7
  %v614 = vsub.s32 0, %v613
  %v615 = vrot.slane %v610, %v614
  %v617 = vadd.f32 %v594, %v615
  %v618 = vadd.f32 %v595, %v615
  %v619 = vadd.f32 %v596, %v615
  %v620 = vadd.f32 %v597, %v615
  %v621 = vadd.f32 %v598, %v615
  %v622 = vadd.f32 %v599, %v615
  %v623 = vadd.f32 %v600, %v615
  %v624 = vadd.f32 %v601, %v615
  %v625 = vadd.f32 %v602, %v615
  %v626 = vadd.f32 %v603, %v615
  %v627 = vadd.f32 %v604, %v615
  %v628 = vadd.f32 %v605, %v615
  %v629 = vadd.f32 %v606, %v615
  %v630 = vadd.f32 %v607, %v615
  %v631 = vadd.f32 %v608, %v615
  %v632 = vadd.f32 %v609, %v615
  %v633 = vmax.f32 %v617, 0.0
  %v634 = vmax.f32 %v618, 0.0
  %v635 = vmax.f32 %v619, 0.0
  %v636 = vmax.f32 %v620, 0.0
  %v637 = vmax.f32 %v621, 0.0
  %v638 = vmax.f32 %v622, 0.0
  %v639 = vmax.f32 %v623, 0.0
  %v640 = vmax.f32 %v624, 0.0
  %v641 = vmax.f32 %v625, 0.0
  %v642 = vmax.f32 %v626, 0.0
  %v643 = vmax.f32 %v627, 0.0
  %v644 = vmax.f32 %v628, 0.0
  %v645 = vmax.f32 %v629, 0.0
  %v646 = vmax.f32 %v630, 0.0
  %v647 = vmax.f32 %v631, 0.0
  %v648 = vmax.f32 %v632, 0.0
  %649 = vst [vmem:[%s6] sm:$0xff] %v633
  %650 = vst [vmem:[%s6 + $0x8] sm:$0xff] %v634
  %651 = vst [vmem:[%s6 + $0x10] sm:$0xff] %v635
  %652 = vst [vmem:[%s6 + $0x18] sm:$0xff] %v636
  %653 = vst [vmem:[%s6 + $0x20] sm:$0xff] %v637
  %654 = vst [vmem:[%s6 + $0x28] sm:$0xff] %v638
  %655 = vst [vmem:[%s6 + $0x30] sm:$0xff] %v639
  %656 = vst [vmem:[%s6 + $0x38] sm:$0xff] %v640
  %657 = vst [vmem:[%s6 + $0x40] sm:$0xff] %v641
  %658 = vst [vmem:[%s6 + $0x48] sm:$0xff] %v642
  %659 = vst [vmem:[%s6 + $0x50] sm:$0xff] %v643
  %660 = vst [vmem:[%s6 + $0x58] sm:$0xff] %v644
  %661 = vst [vmem:[%s6 + $0x60] sm:$0xff] %v645
  %662 = vst [vmem:[%s6 + $0x68] sm:$0xff] %v646
  %663 = vst [vmem:[%s6 + $0x70] sm:$0xff] %v647
  %664 = vst [vmem:[%s6 + $0x78] sm:$0xff] %v648
  // Predicated region
  $region26: #{_lambda_.31} parent=0 // pred_check
    _
  $region27: #{_lambda_.31} parent=0 // pred_check_branch
    %666 = sbr.rel (0) target = $region29
  $region28: #{_lambda_.31} parent=0 // pred_region
    _
  $region29: #{_lambda_.31} parent=0 // pred_fallthru
    _
  // Predicated region
  $region30: #{_lambda_.31} parent=0 // pred_check
    _
  $region31: #{_lambda_.31} parent=0 // pred_check_branch
    %668 = sbr.rel (0) target = $region33
  $region32: #{_lambda_.31} parent=0 // pred_region
    _
  $region33: #{_lambda_.31} parent=0 // pred_fallthru
    _

// kernel: _lambda_.32
$region0: #{_lambda_.32}
  #allocation0 [shape = 'u32[]', space=smem, size = 0x4, offset = 0x4, fixed_abs, tag = 'smem constant byte address 0x4 - core index']
  #allocation1 [shape = 'u32[144,128]{1,0:T(1,128)}', space=vmem, size = 0x12000, scoped, tag = 'internal scratch']
  %s0 = inlined_call_operand.vmem [shape: f32[32,1152], index: 0, kind: input, shape index: {}]
  %s1 = inlined_call_operand.vmem [shape: f32[1152,128], index: 1, kind: input, shape index: {}]
  %s2 = inlined_call_operand.vmem [shape: f32[1,128], index: 2, kind: input, shape index: {}]
  %s3 = inlined_call_operand.vmem [shape: f32[1,128], index: 3, kind: input, shape index: {}]
  %s4 = inlined_call_operand.vmem [shape: f32[32,128], index: 4, kind: output, shape index: {}]
  %s5 = sld [smem:[#allocation0]]
  $region26: #{_lambda_.32} parent=0
    _
  %s7 = ssub.s32 1, %s5
  %s8 = scalar_select 0, %s7, %s5
  // Predicated region
  $region2: #{_lambda_.32} parent=0 // pred_check
    _
  $region3: #{_lambda_.32} parent=0 // pred_check_branch
    %10 = sbr.rel (0) target = $region5
  $region4: #{_lambda_.32} parent=0 // pred_region
    _
  $region5: #{_lambda_.32} parent=0 // pred_fallthru
    _
  // Predicated region
  $region6: #{_lambda_.32} parent=0 // pred_check
    _
  $region7: #{_lambda_.32} parent=0 // pred_check_branch
    %12 = sbr.rel (0) target = $region9
  $region8: #{_lambda_.32} parent=0 // pred_region
    _
  $region9: #{_lambda_.32} parent=0 // pred_fallthru
    _
  // Predicated region
  $region10: #{_lambda_.32} parent=0 // pred_check
    _
  $region11: #{_lambda_.32} parent=0 // pred_check_branch
    %14 = sbr.rel (0) target = $region13
  $region12: #{_lambda_.32} parent=0 // pred_region
    _
  $region13: #{_lambda_.32} parent=0 // pred_fallthru
    _
  // Predicated region
  $region14: #{_lambda_.32} parent=0 // pred_check
    _
  $region15: #{_lambda_.32} parent=0 // pred_check_branch
    %16 = sbr.rel (0) target = $region17
  $region16: #{_lambda_.32} parent=0 // pred_region
    _
  $region17: #{_lambda_.32} parent=0 // pred_fallthru
    _
  %v17 = vld [vmem:[%s0] sm:$0xff]
  %v18 = vld [vmem:[%s0 + $0x8] sm:$0xff]
  %v19 = vld [vmem:[%s0 + $0x10] sm:$0xff]
  %v20 = vld [vmem:[%s0 + $0x18] sm:$0xff]
  %v21 = vld [vmem:[%s0 + $0x20] sm:$0xff]
  %v22 = vld [vmem:[%s0 + $0x28] sm:$0xff]
  %v23 = vld [vmem:[%s0 + $0x30] sm:$0xff]
  %v24 = vld [vmem:[%s0 + $0x38] sm:$0xff]
  %v25 = vld [vmem:[%s0 + $0x40] sm:$0xff]
  %v26 = vld [vmem:[%s0 + $0x48] sm:$0xff]
  %v27 = vld [vmem:[%s0 + $0x50] sm:$0xff]
  %v28 = vld [vmem:[%s0 + $0x58] sm:$0xff]
  %v29 = vld [vmem:[%s0 + $0x60] sm:$0xff]
  %v30 = vld [vmem:[%s0 + $0x68] sm:$0xff]
  %v31 = vld [vmem:[%s0 + $0x70] sm:$0xff]
  %v32 = vld [vmem:[%s0 + $0x78] sm:$0xff]
  %v33 = vld [vmem:[%s0 + $0x80] sm:$0xff]
  %v34 = vld [vmem:[%s0 + $0x88] sm:$0xff]
  %v35 = vld [vmem:[%s0 + $0x90] sm:$0xff]
  %v36 = vld [vmem:[%s0 + $0x98] sm:$0xff]
  %v37 = vld [vmem:[%s0 + $0xa0] sm:$0xff]
  %v38 = vld [vmem:[%s0 + $0xa8] sm:$0xff]
  %v39 = vld [vmem:[%s0 + $0xb0] sm:$0xff]
  %v40 = vld [vmem:[%s0 + $0xb8] sm:$0xff]
  %v41 = vld [vmem:[%s0 + $0xc0] sm:$0xff]
  %v42 = vld [vmem:[%s0 + $0xc8] sm:$0xff]
  %v43 = vld [vmem:[%s0 + $0xd0] sm:$0xff]
  %v44 = vld [vmem:[%s0 + $0xd8] sm:$0xff]
  %v45 = vld [vmem:[%s0 + $0xe0] sm:$0xff]
  %v46 = vld [vmem:[%s0 + $0xe8] sm:$0xff]
  %v47 = vld [vmem:[%s0 + $0xf0] sm:$0xff]
  %v48 = vld [vmem:[%s0 + $0xf8] sm:$0xff]
  %v49 = vld [vmem:[%s0 + $0x100] sm:$0xff]
  %v50 = vld [vmem:[%s0 + $0x108] sm:$0xff]
  %v51 = vld [vmem:[%s0 + $0x110] sm:$0xff]
  %v52 = vld [vmem:[%s0 + $0x118] sm:$0xff]
  %v53 = vld [vmem:[%s1] sm:$0xff]
  %v54 = vld [vmem:[%s1 + $0x8] sm:$0xff]
  %v55 = vld [vmem:[%s1 + $0x10] sm:$0xff]
  %v56 = vld [vmem:[%s1 + $0x18] sm:$0xff]
  %v57 = vld [vmem:[%s1 + $0x20] sm:$0xff]
  %v58 = vld [vmem:[%s1 + $0x28] sm:$0xff]
  %v59 = vld [vmem:[%s1 + $0x30] sm:$0xff]
  %v60 = vld [vmem:[%s1 + $0x38] sm:$0xff]
  %v61 = vld [vmem:[%s1 + $0x40] sm:$0xff]
  %v62 = vld [vmem:[%s1 + $0x48] sm:$0xff]
  %v63 = vld [vmem:[%s1 + $0x50] sm:$0xff]
  %v64 = vld [vmem:[%s1 + $0x58] sm:$0xff]
  %v65 = vld [vmem:[%s1 + $0x60] sm:$0xff]
  %v66 = vld [vmem:[%s1 + $0x68] sm:$0xff]
  %v67 = vld [vmem:[%s1 + $0x70] sm:$0xff]
  %v68 = vld [vmem:[%s1 + $0x78] sm:$0xff]
  %v69 = vld [vmem:[%s1 + $0x80] sm:$0xff]
  %v70 = vld [vmem:[%s1 + $0x88] sm:$0xff]
  %v71 = vld [vmem:[%s1 + $0x90] sm:$0xff]
  %v72 = vld [vmem:[%s1 + $0x98] sm:$0xff]
  %v73 = vld [vmem:[%s1 + $0xa0] sm:$0xff]
  %v74 = vld [vmem:[%s1 + $0xa8] sm:$0xff]
  %v75 = vld [vmem:[%s1 + $0xb0] sm:$0xff]
  %v76 = vld [vmem:[%s1 + $0xb8] sm:$0xff]
  %v77 = vld [vmem:[%s1 + $0xc0] sm:$0xff]
  %v78 = vld [vmem:[%s1 + $0xc8] sm:$0xff]
  %v79 = vld [vmem:[%s1 + $0xd0] sm:$0xff]
  %v80 = vld [vmem:[%s1 + $0xd8] sm:$0xff]
  %v81 = vld [vmem:[%s1 + $0xe0] sm:$0xff]
  %v82 = vld [vmem:[%s1 + $0xe8] sm:$0xff]
  %v83 = vld [vmem:[%s1 + $0xf0] sm:$0xff]
  %v84 = vld [vmem:[%s1 + $0xf8] sm:$0xff]
  %v85 = vld [vmem:[%s1 + $0x100] sm:$0xff]
  %v86 = vld [vmem:[%s1 + $0x108] sm:$0xff]
  %v87 = vld [vmem:[%s1 + $0x110] sm:$0xff]
  %v88 = vld [vmem:[%s1 + $0x118] sm:$0xff]
  %v89 = vld [vmem:[%s1 + $0x120] sm:$0xff]
  %v90 = vld [vmem:[%s1 + $0x128] sm:$0xff]
  %v91 = vld [vmem:[%s1 + $0x130] sm:$0xff]
  %v92 = vld [vmem:[%s1 + $0x138] sm:$0xff]
  %v93 = vld [vmem:[%s1 + $0x140] sm:$0xff]
  %v94 = vld [vmem:[%s1 + $0x148] sm:$0xff]
  %v95 = vld [vmem:[%s1 + $0x150] sm:$0xff]
  %v96 = vld [vmem:[%s1 + $0x158] sm:$0xff]
  %v97 = vld [vmem:[%s1 + $0x160] sm:$0xff]
  %v98 = vld [vmem:[%s1 + $0x168] sm:$0xff]
  %v99 = vld [vmem:[%s1 + $0x170] sm:$0xff]
  %v100 = vld [vmem:[%s1 + $0x178] sm:$0xff]
  %v101 = vld [vmem:[%s1 + $0x180] sm:$0xff]
  %v102 = vld [vmem:[%s1 + $0x188] sm:$0xff]
  %v103 = vld [vmem:[%s1 + $0x190] sm:$0xff]
  %v104 = vld [vmem:[%s1 + $0x198] sm:$0xff]
  %v105 = vld [vmem:[%s1 + $0x1a0] sm:$0xff]
  %v106 = vld [vmem:[%s1 + $0x1a8] sm:$0xff]
  %v107 = vld [vmem:[%s1 + $0x1b0] sm:$0xff]
  %v108 = vld [vmem:[%s1 + $0x1b8] sm:$0xff]
  %v109 = vld [vmem:[%s1 + $0x1c0] sm:$0xff]
  %v110 = vld [vmem:[%s1 + $0x1c8] sm:$0xff]
  %v111 = vld [vmem:[%s1 + $0x1d0] sm:$0xff]
  %v112 = vld [vmem:[%s1 + $0x1d8] sm:$0xff]
  %v113 = vld [vmem:[%s1 + $0x1e0] sm:$0xff]
  %v114 = vld [vmem:[%s1 + $0x1e8] sm:$0xff]
  %v115 = vld [vmem:[%s1 + $0x1f0] sm:$0xff]
  %v116 = vld [vmem:[%s1 + $0x1f8] sm:$0xff]
  %v117 = vld [vmem:[%s1 + $0x200] sm:$0xff]
  %v118 = vld [vmem:[%s1 + $0x208] sm:$0xff]
  %v119 = vld [vmem:[%s1 + $0x210] sm:$0xff]
  %v120 = vld [vmem:[%s1 + $0x218] sm:$0xff]
  %v121 = vld [vmem:[%s1 + $0x220] sm:$0xff]
  %v122 = vld [vmem:[%s1 + $0x228] sm:$0xff]
  %v123 = vld [vmem:[%s1 + $0x230] sm:$0xff]
  %v124 = vld [vmem:[%s1 + $0x238] sm:$0xff]
  %v125 = vld [vmem:[%s1 + $0x240] sm:$0xff]
  %v126 = vld [vmem:[%s1 + $0x248] sm:$0xff]
  %v127 = vld [vmem:[%s1 + $0x250] sm:$0xff]
  %v128 = vld [vmem:[%s1 + $0x258] sm:$0xff]
  %v129 = vld [vmem:[%s1 + $0x260] sm:$0xff]
  %v130 = vld [vmem:[%s1 + $0x268] sm:$0xff]
  %v131 = vld [vmem:[%s1 + $0x270] sm:$0xff]
  %v132 = vld [vmem:[%s1 + $0x278] sm:$0xff]
  %v133 = vld [vmem:[%s1 + $0x280] sm:$0xff]
  %v134 = vld [vmem:[%s1 + $0x288] sm:$0xff]
  %v135 = vld [vmem:[%s1 + $0x290] sm:$0xff]
  %v136 = vld [vmem:[%s1 + $0x298] sm:$0xff]
  %v137 = vld [vmem:[%s1 + $0x2a0] sm:$0xff]
  %v138 = vld [vmem:[%s1 + $0x2a8] sm:$0xff]
  %v139 = vld [vmem:[%s1 + $0x2b0] sm:$0xff]
  %v140 = vld [vmem:[%s1 + $0x2b8] sm:$0xff]
  %v141 = vld [vmem:[%s1 + $0x2c0] sm:$0xff]
  %v142 = vld [vmem:[%s1 + $0x2c8] sm:$0xff]
  %v143 = vld [vmem:[%s1 + $0x2d0] sm:$0xff]
  %v144 = vld [vmem:[%s1 + $0x2d8] sm:$0xff]
  %v145 = vld [vmem:[%s1 + $0x2e0] sm:$0xff]
  %v146 = vld [vmem:[%s1 + $0x2e8] sm:$0xff]
  %v147 = vld [vmem:[%s1 + $0x2f0] sm:$0xff]
  %v148 = vld [vmem:[%s1 + $0x2f8] sm:$0xff]
  %v149 = vld [vmem:[%s1 + $0x300] sm:$0xff]
  %v150 = vld [vmem:[%s1 + $0x308] sm:$0xff]
  %v151 = vld [vmem:[%s1 + $0x310] sm:$0xff]
  %v152 = vld [vmem:[%s1 + $0x318] sm:$0xff]
  %v153 = vld [vmem:[%s1 + $0x320] sm:$0xff]
  %v154 = vld [vmem:[%s1 + $0x328] sm:$0xff]
  %v155 = vld [vmem:[%s1 + $0x330] sm:$0xff]
  %v156 = vld [vmem:[%s1 + $0x338] sm:$0xff]
  %v157 = vld [vmem:[%s1 + $0x340] sm:$0xff]
  %v158 = vld [vmem:[%s1 + $0x348] sm:$0xff]
  %v159 = vld [vmem:[%s1 + $0x350] sm:$0xff]
  %v160 = vld [vmem:[%s1 + $0x358] sm:$0xff]
  %v161 = vld [vmem:[%s1 + $0x360] sm:$0xff]
  %v162 = vld [vmem:[%s1 + $0x368] sm:$0xff]
  %v163 = vld [vmem:[%s1 + $0x370] sm:$0xff]
  %v164 = vld [vmem:[%s1 + $0x378] sm:$0xff]
  %v165 = vld [vmem:[%s1 + $0x380] sm:$0xff]
  %v166 = vld [vmem:[%s1 + $0x388] sm:$0xff]
  %v167 = vld [vmem:[%s1 + $0x390] sm:$0xff]
  %v168 = vld [vmem:[%s1 + $0x398] sm:$0xff]
  %v169 = vld [vmem:[%s1 + $0x3a0] sm:$0xff]
  %v170 = vld [vmem:[%s1 + $0x3a8] sm:$0xff]
  %v171 = vld [vmem:[%s1 + $0x3b0] sm:$0xff]
  %v172 = vld [vmem:[%s1 + $0x3b8] sm:$0xff]
  %v173 = vld [vmem:[%s1 + $0x3c0] sm:$0xff]
  %v174 = vld [vmem:[%s1 + $0x3c8] sm:$0xff]
  %v175 = vld [vmem:[%s1 + $0x3d0] sm:$0xff]
  %v176 = vld [vmem:[%s1 + $0x3d8] sm:$0xff]
  %v177 = vld [vmem:[%s1 + $0x3e0] sm:$0xff]
  %v178 = vld [vmem:[%s1 + $0x3e8] sm:$0xff]
  %v179 = vld [vmem:[%s1 + $0x3f0] sm:$0xff]
  %v180 = vld [vmem:[%s1 + $0x3f8] sm:$0xff]
  %v181 = vld [vmem:[%s1 + $0x400] sm:$0xff]
  %v182 = vld [vmem:[%s1 + $0x408] sm:$0xff]
  %v183 = vld [vmem:[%s1 + $0x410] sm:$0xff]
  %v184 = vld [vmem:[%s1 + $0x418] sm:$0xff]
  %v185 = vld [vmem:[%s1 + $0x420] sm:$0xff]
  %v186 = vld [vmem:[%s1 + $0x428] sm:$0xff]
  %v187 = vld [vmem:[%s1 + $0x430] sm:$0xff]
  %v188 = vld [vmem:[%s1 + $0x438] sm:$0xff]
  %v189 = vld [vmem:[%s1 + $0x440] sm:$0xff]
  %v190 = vld [vmem:[%s1 + $0x448] sm:$0xff]
  %v191 = vld [vmem:[%s1 + $0x450] sm:$0xff]
  %v192 = vld [vmem:[%s1 + $0x458] sm:$0xff]
  %v193 = vld [vmem:[%s1 + $0x460] sm:$0xff]
  %v194 = vld [vmem:[%s1 + $0x468] sm:$0xff]
  %v195 = vld [vmem:[%s1 + $0x470] sm:$0xff]
  %v196 = vld [vmem:[%s1 + $0x478] sm:$0xff]
  %197 = vmatprep.subr.mxu0 0.0
  %198 = vmatpush1.msra.mxu0 %v53
  %199 = vmatprep.subr.mxu0 0.0
  %200 = vmatpush1.msra.mxu0 %v54
  %201 = vmatprep.subr.mxu0 0.0
  %202 = vmatpush1.msra.mxu0 %v55
  %203 = vmatprep.subr.mxu0 0.0
  %204 = vmatpush1.msra.mxu0 %v56
  %205 = vmatprep.subr.mxu0 0.0
  %206 = vmatpush1.msra.mxu0 %v57
  %207 = vmatprep.subr.mxu0 0.0
  %208 = vmatpush1.msra.mxu0 %v58
  %209 = vmatprep.subr.mxu0 0.0
  %210 = vmatpush1.msra.mxu0 %v59
  %211 = vmatprep.subr.mxu0 0.0
  %212 = vmatpush1.msra.mxu0 %v60
  %213 = vmatprep.subr.mxu0 0.0
  %214 = vmatpush1.msra.mxu0 %v61
  %215 = vmatprep.subr.mxu0 0.0
  %216 = vmatpush1.msra.mxu0 %v62
  %217 = vmatprep.subr.mxu0 0.0
  %218 = vmatpush1.msra.mxu0 %v63
  %219 = vmatprep.subr.mxu0 0.0
  %220 = vmatpush1.msra.mxu0 %v64
  %221 = vmatprep.subr.mxu0 0.0
  %222 = vmatpush1.msra.mxu0 %v65
  %223 = vmatprep.subr.mxu0 0.0
  %224 = vmatpush1.msra.mxu0 %v66
  %225 = vmatprep.subr.mxu0 0.0
  %226 = vmatpush1.msra.mxu0 %v67
  %227 = vmatprep.subr.mxu0 0.0
  %228 = vmatpush1.msra.mxu0 %v68
  %229 = vmatprep.subr.mxu0 0.0
  %230 = vmatpush1.msra.mxu0 %v69
  %231 = vmatprep.subr.mxu0 0.0
  %232 = vmatpush1.msra.mxu0 %v70
  %233 = vmatprep.subr.mxu0 0.0
  %234 = vmatpush1.msra.mxu0 %v71
  %235 = vmatprep.subr.mxu0 0.0
  %236 = vmatpush1.msra.mxu0 %v72
  %237 = vmatprep.subr.mxu0 0.0
  %238 = vmatpush1.msra.mxu0 %v73
  %239 = vmatprep.subr.mxu0 0.0
  %240 = vmatpush1.msra.mxu0 %v74
  %241 = vmatprep.subr.mxu0 0.0
  %242 = vmatpush1.msra.mxu0 %v75
  %243 = vmatprep.subr.mxu0 0.0
  %244 = vmatpush1.msra.mxu0 %v76
  %245 = vmatprep.subr.mxu0 0.0
  %246 = vmatpush1.msra.mxu0 %v77
  %247 = vmatprep.subr.mxu0 0.0
  %248 = vmatpush1.msra.mxu0 %v78
  %249 = vmatprep.subr.mxu0 0.0
  %250 = vmatpush1.msra.mxu0 %v79
  %251 = vmatprep.subr.mxu0 0.0
  %252 = vmatpush1.msra.mxu0 %v80
  %253 = vmatprep.subr.mxu0 0.0
  %254 = vmatpush1.msra.mxu0 %v81
  %255 = vmatprep.subr.mxu0 0.0
  %256 = vmatpush1.msra.mxu0 %v82
  %257 = vmatprep.subr.mxu0 0.0
  %258 = vmatpush1.msra.mxu0 %v83
  %259 = vmatprep.subr.mxu0 0.0
  %260 = vmatpush1.msra.mxu0 %v84
  %261 = vmatprep.mubr.f32.mxu0 %v18
  %262 = vmatmul.mubr.f32.gmra.mrb[0].mxu0 %v17
  %v263 = vpop.f32.mrb[0].mxu0
  %v264 = vadd.f32 0.0, %v263
  %v265 = vpop.f32.mrb[0].mxu0
  %266 = vmatprep.mubr.f32.mxu0 %v27
  %267 = vmatmul.mubr.f32.gmra.mrb[0].mxu0 %v26
  %v268 = vpop.f32.mrb[0].mxu0
  %v269 = vadd.f32 0.0, %v268
  %v270 = vpop.f32.mrb[0].mxu0
  %271 = vmatprep.mubr.f32.mxu0 %v36
  %272 = vmatmul.mubr.f32.gmra.mrb[0].mxu0 %v35
  %v273 = vpop.f32.mrb[0].mxu0
  %v274 = vadd.f32 0.0, %v273
  %v275 = vpop.f32.mrb[0].mxu0
  %276 = vmatprep.mubr.f32.mxu0 %v45
  %277 = vmatmul.mubr.f32.gmra.mrb[0].mxu0 %v44
  %v278 = vpop.f32.mrb[0].mxu0
  %v279 = vadd.f32 0.0, %v278
  %v280 = vpop.f32.mrb[0].mxu0
  %281 = vdwg.mxu0
  %282 = vmatprep.subr.mxu0 0.0
  %283 = vmatpush1.msra.mxu0 %v85
  %284 = vmatprep.subr.mxu0 0.0
  %285 = vmatpush1.msra.mxu0 %v86
  %286 = vmatprep.subr.mxu0 0.0
  %287 = vmatpush1.msra.mxu0 %v87
  %288 = vmatprep.subr.mxu0 0.0
  %289 = vmatpush1.msra.mxu0 %v88
  %290 = vmatprep.subr.mxu0 0.0
  %291 = vmatpush1.msra.mxu0 %v89
  %292 = vmatprep.subr.mxu0 0.0
  %293 = vmatpush1.msra.mxu0 %v90
  %294 = vmatprep.subr.mxu0 0.0
  %295 = vmatpush1.msra.mxu0 %v91
  %296 = vmatprep.subr.mxu0 0.0
  %297 = vmatpush1.msra.mxu0 %v92
  %298 = vmatprep.subr.mxu0 0.0
  %299 = vmatpush1.msra.mxu0 %v93
  %300 = vmatprep.subr.mxu0 0.0
  %301 = vmatpush1.msra.mxu0 %v94
  %302 = vmatprep.subr.mxu0 0.0
  %303 = vmatpush1.msra.mxu0 %v95
  %304 = vmatprep.subr.mxu0 0.0
  %305 = vmatpush1.msra.mxu0 %v96
  %306 = vmatprep.subr.mxu0 0.0
  %307 = vmatpush1.msra.mxu0 %v97
  %308 = vmatprep.subr.mxu0 0.0
  %309 = vmatpush1.msra.mxu0 %v98
  %310 = vmatprep.subr.mxu0 0.0
  %311 = vmatpush1.msra.mxu0 %v99
  %312 = vmatprep.subr.mxu0 0.0
  %313 = vmatpush1.msra.mxu0 %v100
  %314 = vmatprep.subr.mxu0 0.0
  %315 = vmatpush1.msra.mxu0 %v101
  %316 = vmatprep.subr.mxu0 0.0
  %317 = vmatpush1.msra.mxu0 %v102
  %318 = vmatprep.subr.mxu0 0.0
  %319 = vmatpush1.msra.mxu0 %v103
  %320 = vmatprep.subr.mxu0 0.0
  %321 = vmatpush1.msra.mxu0 %v104
  %322 = vmatprep.subr.mxu0 0.0
  %323 = vmatpush1.msra.mxu0 %v105
  %324 = vmatprep.subr.mxu0 0.0
  %325 = vmatpush1.msra.mxu0 %v106
  %326 = vmatprep.subr.mxu0 0.0
  %327 = vmatpush1.msra.mxu0 %v107
  %328 = vmatprep.subr.mxu0 0.0
  %329 = vmatpush1.msra.mxu0 %v108
  %330 = vmatprep.subr.mxu0 0.0
  %331 = vmatpush1.msra.mxu0 %v109
  %332 = vmatprep.subr.mxu0 0.0
  %333 = vmatpush1.msra.mxu0 %v110
  %334 = vmatprep.subr.mxu0 0.0
  %335 = vmatpush1.msra.mxu0 %v111
  %336 = vmatprep.subr.mxu0 0.0
  %337 = vmatpush1.msra.mxu0 %v112
  %338 = vmatprep.subr.mxu0 0.0
  %339 = vmatpush1.msra.mxu0 %v113
  %340 = vmatprep.subr.mxu0 0.0
  %341 = vmatpush1.msra.mxu0 %v114
  %342 = vmatprep.subr.mxu0 0.0
  %343 = vmatpush1.msra.mxu0 %v115
  %344 = vmatprep.subr.mxu0 0.0
  %345 = vmatpush1.msra.mxu0 %v116
  %346 = vmatprep.mubr.f32.mxu0 %v20
  %347 = vmatmul.mubr.f32.gmra.mrb[0].mxu0 %v19
  %v348 = vpop.f32.mrb[0].mxu0
  %v349 = vadd.f32 %v264, %v348
  %v350 = vpop.f32.mrb[0].mxu0
  %351 = vmatprep.mubr.f32.mxu0 %v29
  %352 = vmatmul.mubr.f32.gmra.mrb[0].mxu0 %v28
  %v353 = vpop.f32.mrb[0].mxu0
  %v354 = vadd.f32 %v269, %v353
  %v355 = vpop.f32.mrb[0].mxu0
  %356 = vmatprep.mubr.f32.mxu0 %v38
  %357 = vmatmul.mubr.f32.gmra.mrb[0].mxu0 %v37
  %v358 = vpop.f32.mrb[0].mxu0
  %v359 = vadd.f32 %v274, %v358
  %v360 = vpop.f32.mrb[0].mxu0
  %361 = vmatprep.mubr.f32.mxu0 %v47
  %362 = vmatmul.mubr.f32.gmra.mrb[0].mxu0 %v46
  %v363 = vpop.f32.mrb[0].mxu0
  %v364 = vadd.f32 %v279, %v363
  %v365 = vpop.f32.mrb[0].mxu0
  %366 = vdwg.mxu0
  %367 = vmatprep.subr.mxu0 0.0
  %368 = vmatpush1.msra.mxu0 %v117
  %369 = vmatprep.subr.mxu0 0.0
  %370 = vmatpush1.msra.mxu0 %v118
  %371 = vmatprep.subr.mxu0 0.0
  %372 = vmatpush1.msra.mxu0 %v119
  %373 = vmatprep.subr.mxu0 0.0
  %374 = vmatpush1.msra.mxu0 %v120
  %375 = vmatprep.subr.mxu0 0.0
  %376 = vmatpush1.msra.mxu0 %v121
  %377 = vmatprep.subr.mxu0 0.0
  %378 = vmatpush1.msra.mxu0 %v122
  %379 = vmatprep.subr.mxu0 0.0
  %380 = vmatpush1.msra.mxu0 %v123
  %381 = vmatprep.subr.mxu0 0.0
  %382 = vmatpush1.msra.mxu0 %v124
  %383 = vmatprep.subr.mxu0 0.0
  %384 = vmatpush1.msra.mxu0 %v125
  %385 = vmatprep.subr.mxu0 0.0
  %386 = vmatpush1.msra.mxu0 %v126
  %387 = vmatprep.subr.mxu0 0.0
  %388 = vmatpush1.msra.mxu0 %v127
  %389 = vmatprep.subr.mxu0 0.0
  %390 = vmatpush1.msra.mxu0 %v128
  %391 = vmatprep.subr.mxu0 0.0
  %392 = vmatpush1.msra.mxu0 %v129
  %393 = vmatprep.subr.mxu0 0.0
  %394 = vmatpush1.msra.mxu0 %v130
  %395 = vmatprep.subr.mxu0 0.0
  %396 = vmatpush1.msra.mxu0 %v131
  %397 = vmatprep.subr.mxu0 0.0
  %398 = vmatpush1.msra.mxu0 %v132
  %399 = vmatprep.subr.mxu0 0.0
  %400 = vmatpush1.msra.mxu0 %v133
  %401 = vmatprep.subr.mxu0 0.0
  %402 = vmatpush1.msra.mxu0 %v134
  %403 = vmatprep.subr.mxu0 0.0
  %404 = vmatpush1.msra.mxu0 %v135
  %405 = vmatprep.subr.mxu0 0.0
  %406 = vmatpush1.msra.mxu0 %v136
  %407 = vmatprep.subr.mxu0 0.0
  %408 = vmatpush1.msra.mxu0 %v137
  %409 = vmatprep.subr.mxu0 0.0
  %410 = vmatpush1.msra.mxu0 %v138
  %411 = vmatprep.subr.mxu0 0.0
  %412 = vmatpush1.msra.mxu0 %v139
  %413 = vmatprep.subr.mxu0 0.0
  %414 = vmatpush1.msra.mxu0 %v140
  %415 = vmatprep.subr.mxu0 0.0
  %416 = vmatpush1.msra.mxu0 %v141
  %417 = vmatprep.subr.mxu0 0.0
  %418 = vmatpush1.msra.mxu0 %v142
  %419 = vmatprep.subr.mxu0 0.0
  %420 = vmatpush1.msra.mxu0 %v143
  %421 = vmatprep.subr.mxu0 0.0
  %422 = vmatpush1.msra.mxu0 %v144
  %423 = vmatprep.subr.mxu0 0.0
  %424 = vmatpush1.msra.mxu0 %v145
  %425 = vmatprep.subr.mxu0 0.0
  %426 = vmatpush1.msra.mxu0 %v146
  %427 = vmatprep.subr.mxu0 0.0
  %428 = vmatpush1.msra.mxu0 %v147
  %429 = vmatprep.subr.mxu0 0.0
  %430 = vmatpush1.msra.mxu0 %v148
  %431 = vmatprep.mubr.f32.mxu0 %v22
  %432 = vmatmul.mubr.f32.gmra.mrb[0].mxu0 %v21
  %v433 = vpop.f32.mrb[0].mxu0
  %v434 = vadd.f32 %v349, %v433
  %v435 = vpop.f32.mrb[0].mxu0
  %436 = vmatprep.mubr.f32.mxu0 %v31
  %437 = vmatmul.mubr.f32.gmra.mrb[0].mxu0 %v30
  %v438 = vpop.f32.mrb[0].mxu0
  %v439 = vadd.f32 %v354, %v438
  %v440 = vpop.f32.mrb[0].mxu0
  %441 = vmatprep.mubr.f32.mxu0 %v40
  %442 = vmatmul.mubr.f32.gmra.mrb[0].mxu0 %v39
  %v443 = vpop.f32.mrb[0].mxu0
  %v444 = vadd.f32 %v359, %v443
  %v445 = vpop.f32.mrb[0].mxu0
  %446 = vmatprep.mubr.f32.mxu0 %v49
  %447 = vmatmul.mubr.f32.gmra.mrb[0].mxu0 %v48
  %v448 = vpop.f32.mrb[0].mxu0
  %v449 = vadd.f32 %v364, %v448
  %v450 = vpop.f32.mrb[0].mxu0
  %451 = vdwg.mxu0
  %452 = vmatprep.subr.mxu0 0.0
  %453 = vmatpush1.msra.mxu0 %v149
  %454 = vmatprep.subr.mxu0 0.0
  %455 = vmatpush1.msra.mxu0 %v150
  %456 = vmatprep.subr.mxu0 0.0
  %457 = vmatpush1.msra.mxu0 %v151
  %458 = vmatprep.subr.mxu0 0.0
  %459 = vmatpush1.msra.mxu0 %v152
  %460 = vmatprep.subr.mxu0 0.0
  %461 = vmatpush1.msra.mxu0 %v153
  %462 = vmatprep.subr.mxu0 0.0
  %463 = vmatpush1.msra.mxu0 %v154
  %464 = vmatprep.subr.mxu0 0.0
  %465 = vmatpush1.msra.mxu0 %v155
  %466 = vmatprep.subr.mxu0 0.0
  %467 = vmatpush1.msra.mxu0 %v156
  %468 = vmatprep.subr.mxu0 0.0
  %469 = vmatpush1.msra.mxu0 %v157
  %470 = vmatprep.subr.mxu0 0.0
  %471 = vmatpush1.msra.mxu0 %v158
  %472 = vmatprep.subr.mxu0 0.0
  %473 = vmatpush1.msra.mxu0 %v159
  %474 = vmatprep.subr.mxu0 0.0
  %475 = vmatpush1.msra.mxu0 %v160
  %476 = vmatprep.subr.mxu0 0.0
  %477 = vmatpush1.msra.mxu0 %v161
  %478 = vmatprep.subr.mxu0 0.0
  %479 = vmatpush1.msra.mxu0 %v162
  %480 = vmatprep.subr.mxu0 0.0
  %481 = vmatpush1.msra.mxu0 %v163
  %482 = vmatprep.subr.mxu0 0.0
  %483 = vmatpush1.msra.mxu0 %v164
  %484 = vmatprep.subr.mxu0 0.0
  %485 = vmatpush1.msra.mxu0 %v165
  %486 = vmatprep.subr.mxu0 0.0
  %487 = vmatpush1.msra.mxu0 %v166
  %488 = vmatprep.subr.mxu0 0.0
  %489 = vmatpush1.msra.mxu0 %v167
  %490 = vmatprep.subr.mxu0 0.0
  %491 = vmatpush1.msra.mxu0 %v168
  %492 = vmatprep.subr.mxu0 0.0
  %493 = vmatpush1.msra.mxu0 %v169
  %494 = vmatprep.subr.mxu0 0.0
  %495 = vmatpush1.msra.mxu0 %v170
  %496 = vmatprep.subr.mxu0 0.0
  %497 = vmatpush1.msra.mxu0 %v171
  %498 = vmatprep.subr.mxu0 0.0
  %499 = vmatpush1.msra.mxu0 %v172
  %500 = vmatprep.subr.mxu0 0.0
  %501 = vmatpush1.msra.mxu0 %v173
  %502 = vmatprep.subr.mxu0 0.0
  %503 = vmatpush1.msra.mxu0 %v174
  %504 = vmatprep.subr.mxu0 0.0
  %505 = vmatpush1.msra.mxu0 %v175
  %506 = vmatprep.subr.mxu0 0.0
  %507 = vmatpush1.msra.mxu0 %v176
  %508 = vmatprep.subr.mxu0 0.0
  %509 = vmatpush1.msra.mxu0 %v177
  %510 = vmatprep.subr.mxu0 0.0
  %511 = vmatpush1.msra.mxu0 %v178
  %512 = vmatprep.subr.mxu0 0.0
  %513 = vmatpush1.msra.mxu0 %v179
  %514 = vmatprep.subr.mxu0 0.0
  %515 = vmatpush1.msra.mxu0 %v180
  %516 = vmatprep.mubr.f32.mxu0 %v24
  %517 = vmatmul.mubr.f32.gmra.mrb[0].mxu0 %v23
  %v518 = vpop.f32.mrb[0].mxu0
  %v519 = vadd.f32 %v434, %v518
  %v520 = vpop.f32.mrb[0].mxu0
  %521 = vmatprep.mubr.f32.mxu0 %v33
  %522 = vmatmul.mubr.f32.gmra.mrb[0].mxu0 %v32
  %v523 = vpop.f32.mrb[0].mxu0
  %v524 = vadd.f32 %v439, %v523
  %v525 = vpop.f32.mrb[0].mxu0
  %526 = vmatprep.mubr.f32.mxu0 %v42
  %527 = vmatmul.mubr.f32.gmra.mrb[0].mxu0 %v41
  %v528 = vpop.f32.mrb[0].mxu0
  %v529 = vadd.f32 %v444, %v528
  %v530 = vpop.f32.mrb[0].mxu0
  %531 = vmatprep.mubr.f32.mxu0 %v51
  %532 = vmatmul.mubr.f32.gmra.mrb[0].mxu0 %v50
  %v533 = vpop.f32.mrb[0].mxu0
  %v534 = vadd.f32 %v449, %v533
  %v535 = vpop.f32.mrb[0].mxu0
  %536 = vdwg.mxu0
  %537 = vmatprep.subr.mxu0 0.0
  %538 = vmatpush1.msra.mxu0 %v181
  %539 = vmatprep.subr.mxu0 0.0
  %540 = vmatpush1.msra.mxu0 %v182
  %541 = vmatprep.subr.mxu0 0.0
  %542 = vmatpush1.msra.mxu0 %v183
  %543 = vmatprep.subr.mxu0 0.0
  %544 = vmatpush1.msra.mxu0 %v184
  %545 = vmatprep.subr.mxu0 0.0
  %546 = vmatpush1.msra.mxu0 %v185
  %547 = vmatprep.subr.mxu0 0.0
  %548 = vmatpush1.msra.mxu0 %v186
  %549 = vmatprep.subr.mxu0 0.0
  %550 = vmatpush1.msra.mxu0 %v187
  %551 = vmatprep.subr.mxu0 0.0
  %552 = vmatpush1.msra.mxu0 %v188
  %553 = vmatprep.subr.mxu0 0.0
  %554 = vmatpush1.msra.mxu0 %v189
  %555 = vmatprep.subr.mxu0 0.0
  %556 = vmatpush1.msra.mxu0 %v190
  %557 = vmatprep.subr.mxu0 0.0
  %558 = vmatpush1.msra.mxu0 %v191
  %559 = vmatprep.subr.mxu0 0.0
  %560 = vmatpush1.msra.mxu0 %v192
  %561 = vmatprep.subr.mxu0 0.0
  %562 = vmatpush1.msra.mxu0 %v193
  %563 = vmatprep.subr.mxu0 0.0
  %564 = vmatpush1.msra.mxu0 %v194
  %565 = vmatprep.subr.mxu0 0.0
  %566 = vmatpush1.msra.mxu0 %v195
  %567 = vmatprep.subr.mxu0 0.0
  %568 = vmatpush1.msra.mxu0 %v196
  %569 = vmatprep.subr.mxu0 0.0
  %570 = vmatpush1.msra.mxu0 0.0
  %571 = vmatprep.subr.mxu0 0.0
  %572 = vmatpush1.msra.mxu0 0.0
  %573 = vmatprep.subr.mxu0 0.0
  %574 = vmatpush1.msra.mxu0 0.0
  %575 = vmatprep.subr.mxu0 0.0
  %576 = vmatpush1.msra.mxu0 0.0
  %577 = vmatprep.subr.mxu0 0.0
  %578 = vmatpush1.msra.mxu0 0.0
  %579 = vmatprep.subr.mxu0 0.0
  %580 = vmatpush1.msra.mxu0 0.0
  %581 = vmatprep.subr.mxu0 0.0
  %582 = vmatpush1.msra.mxu0 0.0
  %583 = vmatprep.subr.mxu0 0.0
  %584 = vmatpush1.msra.mxu0 0.0
  %585 = vmatprep.subr.mxu0 0.0
  %586 = vmatpush1.msra.mxu0 0.0
  %587 = vmatprep.subr.mxu0 0.0
  %588 = vmatpush1.msra.mxu0 0.0
  %589 = vmatprep.subr.mxu0 0.0
  %590 = vmatpush1.msra.mxu0 0.0
  %591 = vmatprep.subr.mxu0 0.0
  %592 = vmatpush1.msra.mxu0 0.0
  %593 = vmatprep.subr.mxu0 0.0
  %594 = vmatpush1.msra.mxu0 0.0
  %595 = vmatprep.subr.mxu0 0.0
  %596 = vmatpush1.msra.mxu0 0.0
  %597 = vmatprep.subr.mxu0 0.0
  %598 = vmatpush1.msra.mxu0 0.0
  %599 = vmatprep.subr.mxu0 0.0
  %600 = vmatpush1.msra.mxu0 0.0
  %601 = vmatprep.mubr.f32.mxu0 0.0
  %602 = vmatmul.mubr.f32.gmra.mrb[0].mxu0 %v25
  %v603 = vpop.f32.mrb[0].mxu0
  %v604 = vadd.f32 %v519, %v603
  %v605 = vpop.f32.mrb[0].mxu0
  %606 = vmatprep.mubr.f32.mxu0 0.0
  %607 = vmatmul.mubr.f32.gmra.mrb[0].mxu0 %v34
  %v608 = vpop.f32.mrb[0].mxu0
  %v609 = vadd.f32 %v524, %v608
  %v610 = vpop.f32.mrb[0].mxu0
  %611 = vmatprep.mubr.f32.mxu0 0.0
  %612 = vmatmul.mubr.f32.gmra.mrb[0].mxu0 %v43
  %v613 = vpop.f32.mrb[0].mxu0
  %v614 = vadd.f32 %v529, %v613
  %v615 = vpop.f32.mrb[0].mxu0
  %616 = vmatprep.mubr.f32.mxu0 0.0
  %617 = vmatmul.mubr.f32.gmra.mrb[0].mxu0 %v52
  %v618 = vpop.f32.mrb[0].mxu0
  %v619 = vadd.f32 %v534, %v618
  %v620 = vpop.f32.mrb[0].mxu0
  %621 = vdwg.mxu0
  %v622 = vld [vmem:[%s2] sm:$0x1]
  %v624 = vlaneseq
  %v625 = vshrl.u32 %v624, 7
  %v626 = vsub.s32 0, %v625
  %v627 = vrot.slane %v622, %v626
  %v629 = vmul.f32 %v604, %v627
  %v630 = vmul.f32 %v609, %v627
  %v631 = vmul.f32 %v614, %v627
  %v632 = vmul.f32 %v619, %v627
  %v633 = vld [vmem:[%s3] sm:$0x1]
  %v635 = vlaneseq
  %v636 = vshrl.u32 %v635, 7
  %v637 = vsub.s32 0, %v636
  %v638 = vrot.slane %v633, %v637
  %v640 = vadd.f32 %v629, %v638
  %v641 = vadd.f32 %v630, %v638
  %v642 = vadd.f32 %v631, %v638
  %v643 = vadd.f32 %v632, %v638
  %v644 = vmax.f32 %v640, 0.0
  %v645 = vmax.f32 %v641, 0.0
  %v646 = vmax.f32 %v642, 0.0
  %v647 = vmax.f32 %v643, 0.0
  %648 = vst [vmem:[%s4] sm:$0xff] %v644
  %649 = vst [vmem:[%s4 + $0x8] sm:$0xff] %v645
  %650 = vst [vmem:[%s4 + $0x10] sm:$0xff] %v646
  %651 = vst [vmem:[%s4 + $0x18] sm:$0xff] %v647
  // Predicated region
  $region18: #{_lambda_.32} parent=0 // pred_check
    _
  $region19: #{_lambda_.32} parent=0 // pred_check_branch
    %653 = sbr.rel (0) target = $region21
  $region20: #{_lambda_.32} parent=0 // pred_region
    _
  $region21: #{_lambda_.32} parent=0 // pred_fallthru
    _
  // Predicated region
  $region22: #{_lambda_.32} parent=0 // pred_check
    _
  $region23: #{_lambda_.32} parent=0 // pred_check_branch
    %655 = sbr.rel (0) target = $region25
  $region24: #{_lambda_.32} parent=0 // pred_region
    _
  $region25: #{_lambda_.32} parent=0 // pred_fallthru
    _

// kernel: _lambda_.30
$region0: #{_lambda_.30}
  #allocation0 [shape = 'u32[]', space=smem, size = 0x4, offset = 0x4, fixed_abs, tag = 'smem constant byte address 0x4 - core index']
  #allocation1 [shape = 'u32[144,128]{1,0:T(1,128)}', space=vmem, size = 0x12000, scoped, tag = 'internal scratch']
  %s0 = inlined_call_operand.vmem [shape: f32[32,384], index: 0, kind: input, shape index: {}]
  %s1 = inlined_call_operand.vmem [shape: f32[384,256], index: 1, kind: input, shape index: {}]
  %s2 = inlined_call_operand.vmem [shape: f32[1,384], index: 2, kind: input, shape index: {}]
  %s3 = inlined_call_operand.vmem [shape: f32[1,384], index: 3, kind: input, shape index: {}]
  %s4 = inlined_call_operand.vmem [shape: f32[32,256], index: 4, kind: output, shape index: {}]
  %s5 = sld [smem:[#allocation0]]
  $region26: #{_lambda_.30} parent=0
    _
  %s7 = ssub.s32 1, %s5
  %s8 = scalar_select 0, %s7, %s5
  // Predicated region
  $region2: #{_lambda_.30} parent=0 // pred_check
    _
  $region3: #{_lambda_.30} parent=0 // pred_check_branch
    %10 = sbr.rel (0) target = $region5
  $region4: #{_lambda_.30} parent=0 // pred_region
    _
  $region5: #{_lambda_.30} parent=0 // pred_fallthru
    _
  // Predicated region
  $region6: #{_lambda_.30} parent=0 // pred_check
    _
  $region7: #{_lambda_.30} parent=0 // pred_check_branch
    %12 = sbr.rel (0) target = $region9
  $region8: #{_lambda_.30} parent=0 // pred_region
    _
  $region9: #{_lambda_.30} parent=0 // pred_fallthru
    _
  // Predicated region
  $region10: #{_lambda_.30} parent=0 // pred_check
    _
  $region11: #{_lambda_.30} parent=0 // pred_check_branch
    %14 = sbr.rel (0) target = $region13
  $region12: #{_lambda_.30} parent=0 // pred_region
    _
  $region13: #{_lambda_.30} parent=0 // pred_fallthru
    _
  // Predicated region
  $region14: #{_lambda_.30} parent=0 // pred_check
    _
  $region15: #{_lambda_.30} parent=0 // pred_check_branch
    %16 = sbr.rel (0) target = $region17
  $region16: #{_lambda_.30} parent=0 // pred_region
    _
  $region17: #{_lambda_.30} parent=0 // pred_fallthru
    _
  %v17 = vld [vmem:[%s0] sm:$0xff]
  %v18 = vld [vmem:[%s0 + $0x8] sm:$0xff]
  %v19 = vld [vmem:[%s0 + $0x10] sm:$0xff]
  %v20 = vld [vmem:[%s0 + $0x18] sm:$0xff]
  %v21 = vld [vmem:[%s0 + $0x20] sm:$0xff]
  %v22 = vld [vmem:[%s0 + $0x28] sm:$0xff]
  %v23 = vld [vmem:[%s0 + $0x30] sm:$0xff]
  %v24 = vld [vmem:[%s0 + $0x38] sm:$0xff]
  %v25 = vld [vmem:[%s0 + $0x40] sm:$0xff]
  %v26 = vld [vmem:[%s0 + $0x48] sm:$0xff]
  %v27 = vld [vmem:[%s0 + $0x50] sm:$0xff]
  %v28 = vld [vmem:[%s0 + $0x58] sm:$0xff]
  %v29 = vld [vmem:[%s2] sm:$0x7]
  %v31 = vlaneseq
  %v32 = vshrl.u32 %v31, 7
  %v33 = vsub.s32 0, %v32
  %v34 = vrot.slane %v29, %v33
  %v35 = vlaneseq
  %v36 = vshrl.u32 %v35, 7
  %v37 = vsub.s32 1, %v36
  %v38 = vrot.slane %v29, %v37
  %v39 = vlaneseq
  %v40 = vshrl.u32 %v39, 7
  %v41 = vsub.s32 2, %v40
  %v42 = vrot.slane %v29, %v41
  %v46 = vmul.f32 %v17, %v34
  %v47 = vmul.f32 %v18, %v38
  %v48 = vmul.f32 %v19, %v42
  %v49 = vmul.f32 %v20, %v34
  %v50 = vmul.f32 %v21, %v38
  %v51 = vmul.f32 %v22, %v42
  %v52 = vmul.f32 %v23, %v34
  %v53 = vmul.f32 %v24, %v38
  %v54 = vmul.f32 %v25, %v42
  %v55 = vmul.f32 %v26, %v34
  %v56 = vmul.f32 %v27, %v38
  %v57 = vmul.f32 %v28, %v42
  %v58 = vld [vmem:[%s3] sm:$0x7]
  %v60 = vlaneseq
  %v61 = vshrl.u32 %v60, 7
  %v62 = vsub.s32 0, %v61
  %v63 = vrot.slane %v58, %v62
  %v64 = vlaneseq
  %v65 = vshrl.u32 %v64, 7
  %v66 = vsub.s32 1, %v65
  %v67 = vrot.slane %v58, %v66
  %v68 = vlaneseq
  %v69 = vshrl.u32 %v68, 7
  %v70 = vsub.s32 2, %v69
  %v71 = vrot.slane %v58, %v70
  %v75 = vadd.f32 %v46, %v63
  %v76 = vadd.f32 %v47, %v67
  %v77 = vadd.f32 %v48, %v71
  %v78 = vadd.f32 %v49, %v63
  %v79 = vadd.f32 %v50, %v67
  %v80 = vadd.f32 %v51, %v71
  %v81 = vadd.f32 %v52, %v63
  %v82 = vadd.f32 %v53, %v67
  %v83 = vadd.f32 %v54, %v71
  %v84 = vadd.f32 %v55, %v63
  %v85 = vadd.f32 %v56, %v67
  %v86 = vadd.f32 %v57, %v71
  %v87 = vmax.f32 %v75, 0.0
  %v88 = vmax.f32 %v76, 0.0
  %v89 = vmax.f32 %v77, 0.0
  %v90 = vmax.f32 %v78, 0.0
  %v91 = vmax.f32 %v79, 0.0
  %v92 = vmax.f32 %v80, 0.0
  %v93 = vmax.f32 %v81, 0.0
  %v94 = vmax.f32 %v82, 0.0
  %v95 = vmax.f32 %v83, 0.0
  %v96 = vmax.f32 %v84, 0.0
  %v97 = vmax.f32 %v85, 0.0
  %v98 = vmax.f32 %v86, 0.0
  %v99 = vld [vmem:[%s1] sm:$0xff]
  %v100 = vld [vmem:[%s1 + $0x8] sm:$0xff]
  %v101 = vld [vmem:[%s1 + $0x10] sm:$0xff]
  %v102 = vld [vmem:[%s1 + $0x18] sm:$0xff]
  %v103 = vld [vmem:[%s1 + $0x20] sm:$0xff]
  %v104 = vld [vmem:[%s1 + $0x28] sm:$0xff]
  %v105 = vld [vmem:[%s1 + $0x30] sm:$0xff]
  %v106 = vld [vmem:[%s1 + $0x38] sm:$0xff]
  %v107 = vld [vmem:[%s1 + $0x40] sm:$0xff]
  %v108 = vld [vmem:[%s1 + $0x48] sm:$0xff]
  %v109 = vld [vmem:[%s1 + $0x50] sm:$0xff]
  %v110 = vld [vmem:[%s1 + $0x58] sm:$0xff]
  %v111 = vld [vmem:[%s1 + $0x60] sm:$0xff]
  %v112 = vld [vmem:[%s1 + $0x68] sm:$0xff]
  %v113 = vld [vmem:[%s1 + $0x70] sm:$0xff]
  %v114 = vld [vmem:[%s1 + $0x78] sm:$0xff]
  %v115 = vld [vmem:[%s1 + $0x80] sm:$0xff]
  %v116 = vld [vmem:[%s1 + $0x88] sm:$0xff]
  %v117 = vld [vmem:[%s1 + $0x90] sm:$0xff]
  %v118 = vld [vmem:[%s1 + $0x98] sm:$0xff]
  %v119 = vld [vmem:[%s1 + $0xa0] sm:$0xff]
  %v120 = vld [vmem:[%s1 + $0xa8] sm:$0xff]
  %v121 = vld [vmem:[%s1 + $0xb0] sm:$0xff]
  %v122 = vld [vmem:[%s1 + $0xb8] sm:$0xff]
  %v123 = vld [vmem:[%s1 + $0xc0] sm:$0xff]
  %v124 = vld [vmem:[%s1 + $0xc8] sm:$0xff]
  %v125 = vld [vmem:[%s1 + $0xd0] sm:$0xff]
  %v126 = vld [vmem:[%s1 + $0xd8] sm:$0xff]
  %v127 = vld [vmem:[%s1 + $0xe0] sm:$0xff]
  %v128 = vld [vmem:[%s1 + $0xe8] sm:$0xff]
  %v129 = vld [vmem:[%s1 + $0xf0] sm:$0xff]
  %v130 = vld [vmem:[%s1 + $0xf8] sm:$0xff]
  %v131 = vld [vmem:[%s1 + $0x100] sm:$0xff]
  %v132 = vld [vmem:[%s1 + $0x108] sm:$0xff]
  %v133 = vld [vmem:[%s1 + $0x110] sm:$0xff]
  %v134 = vld [vmem:[%s1 + $0x118] sm:$0xff]
  %v135 = vld [vmem:[%s1 + $0x120] sm:$0xff]
  %v136 = vld [vmem:[%s1 + $0x128] sm:$0xff]
  %v137 = vld [vmem:[%s1 + $0x130] sm:$0xff]
  %v138 = vld [vmem:[%s1 + $0x138] sm:$0xff]
  %v139 = vld [vmem:[%s1 + $0x140] sm:$0xff]
  %v140 = vld [vmem:[%s1 + $0x148] sm:$0xff]
  %v141 = vld [vmem:[%s1 + $0x150] sm:$0xff]
  %v142 = vld [vmem:[%s1 + $0x158] sm:$0xff]
  %v143 = vld [vmem:[%s1 + $0x160] sm:$0xff]
  %v144 = vld [vmem:[%s1 + $0x168] sm:$0xff]
  %v145 = vld [vmem:[%s1 + $0x170] sm:$0xff]
  %v146 = vld [vmem:[%s1 + $0x178] sm:$0xff]
  %v147 = vld [vmem:[%s1 + $0x180] sm:$0xff]
  %v148 = vld [vmem:[%s1 + $0x188] sm:$0xff]
  %v149 = vld [vmem:[%s1 + $0x190] sm:$0xff]
  %v150 = vld [vmem:[%s1 + $0x198] sm:$0xff]
  %v151 = vld [vmem:[%s1 + $0x1a0] sm:$0xff]
  %v152 = vld [vmem:[%s1 + $0x1a8] sm:$0xff]
  %v153 = vld [vmem:[%s1 + $0x1b0] sm:$0xff]
  %v154 = vld [vmem:[%s1 + $0x1b8] sm:$0xff]
  %v155 = vld [vmem:[%s1 + $0x1c0] sm:$0xff]
  %v156 = vld [vmem:[%s1 + $0x1c8] sm:$0xff]
  %v157 = vld [vmem:[%s1 + $0x1d0] sm:$0xff]
  %v158 = vld [vmem:[%s1 + $0x1d8] sm:$0xff]
  %v159 = vld [vmem:[%s1 + $0x1e0] sm:$0xff]
  %v160 = vld [vmem:[%s1 + $0x1e8] sm:$0xff]
  %v161 = vld [vmem:[%s1 + $0x1f0] sm:$0xff]
  %v162 = vld [vmem:[%s1 + $0x1f8] sm:$0xff]
  %v163 = vld [vmem:[%s1 + $0x200] sm:$0xff]
  %v164 = vld [vmem:[%s1 + $0x208] sm:$0xff]
  %v165 = vld [vmem:[%s1 + $0x210] sm:$0xff]
  %v166 = vld [vmem:[%s1 + $0x218] sm:$0xff]
  %v167 = vld [vmem:[%s1 + $0x220] sm:$0xff]
  %v168 = vld [vmem:[%s1 + $0x228] sm:$0xff]
  %v169 = vld [vmem:[%s1 + $0x230] sm:$0xff]
  %v170 = vld [vmem:[%s1 + $0x238] sm:$0xff]
  %v171 = vld [vmem:[%s1 + $0x240] sm:$0xff]
  %v172 = vld [vmem:[%s1 + $0x248] sm:$0xff]
  %v173 = vld [vmem:[%s1 + $0x250] sm:$0xff]
  %v174 = vld [vmem:[%s1 + $0x258] sm:$0xff]
  %v175 = vld [vmem:[%s1 + $0x260] sm:$0xff]
  %v176 = vld [vmem:[%s1 + $0x268] sm:$0xff]
  %v177 = vld [vmem:[%s1 + $0x270] sm:$0xff]
  %v178 = vld [vmem:[%s1 + $0x278] sm:$0xff]
  %v179 = vld [vmem:[%s1 + $0x280] sm:$0xff]
  %v180 = vld [vmem:[%s1 + $0x288] sm:$0xff]
  %v181 = vld [vmem:[%s1 + $0x290] sm:$0xff]
  %v182 = vld [vmem:[%s1 + $0x298] sm:$0xff]
  %v183 = vld [vmem:[%s1 + $0x2a0] sm:$0xff]
  %v184 = vld [vmem:[%s1 + $0x2a8] sm:$0xff]
  %v185 = vld [vmem:[%s1 + $0x2b0] sm:$0xff]
  %v186 = vld [vmem:[%s1 + $0x2b8] sm:$0xff]
  %v187 = vld [vmem:[%s1 + $0x2c0] sm:$0xff]
  %v188 = vld [vmem:[%s1 + $0x2c8] sm:$0xff]
  %v189 = vld [vmem:[%s1 + $0x2d0] sm:$0xff]
  %v190 = vld [vmem:[%s1 + $0x2d8] sm:$0xff]
  %v191 = vld [vmem:[%s1 + $0x2e0] sm:$0xff]
  %v192 = vld [vmem:[%s1 + $0x2e8] sm:$0xff]
  %v193 = vld [vmem:[%s1 + $0x2f0] sm:$0xff]
  %v194 = vld [vmem:[%s1 + $0x2f8] sm:$0xff]
  %195 = vmatprep.subr.mxu0 %v100
  %196 = vmatpush1.msra.mxu0 %v99
  %197 = vmatprep.subr.mxu0 %v102
  %198 = vmatpush1.msra.mxu0 %v101
  %199 = vmatprep.subr.mxu0 %v104
  %200 = vmatpush1.msra.mxu0 %v103
  %201 = vmatprep.subr.mxu0 %v106
  %202 = vmatpush1.msra.mxu0 %v105
  %203 = vmatprep.subr.mxu0 %v108
  %204 = vmatpush1.msra.mxu0 %v107
  %205 = vmatprep.subr.mxu0 %v110
  %206 = vmatpush1.msra.mxu0 %v109
  %207 = vmatprep.subr.mxu0 %v112
  %208 = vmatpush1.msra.mxu0 %v111
  %209 = vmatprep.subr.mxu0 %v114
  %210 = vmatpush1.msra.mxu0 %v113
  %211 = vmatprep.subr.mxu0 %v116
  %212 = vmatpush1.msra.mxu0 %v115
  %213 = vmatprep.subr.mxu0 %v118
  %214 = vmatpush1.msra.mxu0 %v117
  %215 = vmatprep.subr.mxu0 %v120
  %216 = vmatpush1.msra.mxu0 %v119
  %217 = vmatprep.subr.mxu0 %v122
  %218 = vmatpush1.msra.mxu0 %v121
  %219 = vmatprep.subr.mxu0 %v124
  %220 = vmatpush1.msra.mxu0 %v123
  %221 = vmatprep.subr.mxu0 %v126
  %222 = vmatpush1.msra.mxu0 %v125
  %223 = vmatprep.subr.mxu0 %v128
  %224 = vmatpush1.msra.mxu0 %v127
  %225 = vmatprep.subr.mxu0 %v130
  %226 = vmatpush1.msra.mxu0 %v129
  %227 = vmatprep.subr.mxu0 %v132
  %228 = vmatpush1.msra.mxu0 %v131
  %229 = vmatprep.subr.mxu0 %v134
  %230 = vmatpush1.msra.mxu0 %v133
  %231 = vmatprep.subr.mxu0 %v136
  %232 = vmatpush1.msra.mxu0 %v135
  %233 = vmatprep.subr.mxu0 %v138
  %234 = vmatpush1.msra.mxu0 %v137
  %235 = vmatprep.subr.mxu0 %v140
  %236 = vmatpush1.msra.mxu0 %v139
  %237 = vmatprep.subr.mxu0 %v142
  %238 = vmatpush1.msra.mxu0 %v141
  %239 = vmatprep.subr.mxu0 %v144
  %240 = vmatpush1.msra.mxu0 %v143
  %241 = vmatprep.subr.mxu0 %v146
  %242 = vmatpush1.msra.mxu0 %v145
  %243 = vmatprep.subr.mxu0 %v148
  %244 = vmatpush1.msra.mxu0 %v147
  %245 = vmatprep.subr.mxu0 %v150
  %246 = vmatpush1.msra.mxu0 %v149
  %247 = vmatprep.subr.mxu0 %v152
  %248 = vmatpush1.msra.mxu0 %v151
  %249 = vmatprep.subr.mxu0 %v154
  %250 = vmatpush1.msra.mxu0 %v153
  %251 = vmatprep.subr.mxu0 %v156
  %252 = vmatpush1.msra.mxu0 %v155
  %253 = vmatprep.subr.mxu0 %v158
  %254 = vmatpush1.msra.mxu0 %v157
  %255 = vmatprep.subr.mxu0 %v160
  %256 = vmatpush1.msra.mxu0 %v159
  %257 = vmatprep.subr.mxu0 %v162
  %258 = vmatpush1.msra.mxu0 %v161
  %259 = vmatprep.mubr.f32.mxu0 %v88
  %260 = vmatmul.mubr.f32.gmra.mrb[0].mxu0 %v87
  %v261 = vpop.f32.mrb[0].mxu0
  %v262 = vadd.f32 0.0, %v261
  %v263 = vpop.f32.mrb[0].mxu0
  %v264 = vadd.f32 0.0, %v263
  %265 = vmatprep.mubr.f32.mxu0 %v91
  %266 = vmatmul.mubr.f32.gmra.mrb[0].mxu0 %v90
  %v267 = vpop.f32.mrb[0].mxu0
  %v268 = vadd.f32 0.0, %v267
  %v269 = vpop.f32.mrb[0].mxu0
  %v270 = vadd.f32 0.0, %v269
  %271 = vmatprep.mubr.f32.mxu0 %v94
  %272 = vmatmul.mubr.f32.gmra.mrb[0].mxu0 %v93
  %v273 = vpop.f32.mrb[0].mxu0
  %v274 = vadd.f32 0.0, %v273
  %v275 = vpop.f32.mrb[0].mxu0
  %v276 = vadd.f32 0.0, %v275
  %277 = vmatprep.mubr.f32.mxu0 %v97
  %278 = vmatmul.mubr.f32.gmra.mrb[0].mxu0 %v96
  %v279 = vpop.f32.mrb[0].mxu0
  %v280 = vadd.f32 0.0, %v279
  %v281 = vpop.f32.mrb[0].mxu0
  %v282 = vadd.f32 0.0, %v281
  %283 = vdwg.mxu0
  %284 = vmatprep.subr.mxu0 %v164
  %285 = vmatpush1.msra.mxu0 %v163
  %286 = vmatprep.subr.mxu0 %v166
  %287 = vmatpush1.msra.mxu0 %v165
  %288 = vmatprep.subr.mxu0 %v168
  %289 = vmatpush1.msra.mxu0 %v167
  %290 = vmatprep.subr.mxu0 %v170
  %291 = vmatpush1.msra.mxu0 %v169
  %292 = vmatprep.subr.mxu0 %v172
  %293 = vmatpush1.msra.mxu0 %v171
  %294 = vmatprep.subr.mxu0 %v174
  %295 = vmatpush1.msra.mxu0 %v173
  %296 = vmatprep.subr.mxu0 %v176
  %297 = vmatpush1.msra.mxu0 %v175
  %298 = vmatprep.subr.mxu0 %v178
  %299 = vmatpush1.msra.mxu0 %v177
  %300 = vmatprep.subr.mxu0 %v180
  %301 = vmatpush1.msra.mxu0 %v179
  %302 = vmatprep.subr.mxu0 %v182
  %303 = vmatpush1.msra.mxu0 %v181
  %304 = vmatprep.subr.mxu0 %v184
  %305 = vmatpush1.msra.mxu0 %v183
  %306 = vmatprep.subr.mxu0 %v186
  %307 = vmatpush1.msra.mxu0 %v185
  %308 = vmatprep.subr.mxu0 %v188
  %309 = vmatpush1.msra.mxu0 %v187
  %310 = vmatprep.subr.mxu0 %v190
  %311 = vmatpush1.msra.mxu0 %v189
  %312 = vmatprep.subr.mxu0 %v192
  %313 = vmatpush1.msra.mxu0 %v191
  %314 = vmatprep.subr.mxu0 %v194
  %315 = vmatpush1.msra.mxu0 %v193
  %316 = vmatprep.subr.mxu0 0.0
  %317 = vmatpush1.msra.mxu0 0.0
  %318 = vmatprep.subr.mxu0 0.0
  %319 = vmatpush1.msra.mxu0 0.0
  %320 = vmatprep.subr.mxu0 0.0
  %321 = vmatpush1.msra.mxu0 0.0
  %322 = vmatprep.subr.mxu0 0.0
  %323 = vmatpush1.msra.mxu0 0.0
  %324 = vmatprep.subr.mxu0 0.0
  %325 = vmatpush1.msra.mxu0 0.0
  %326 = vmatprep.subr.mxu0 0.0
  %327 = vmatpush1.msra.mxu0 0.0
  %328 = vmatprep.subr.mxu0 0.0
  %329 = vmatpush1.msra.mxu0 0.0
  %330 = vmatprep.subr.mxu0 0.0
  %331 = vmatpush1.msra.mxu0 0.0
  %332 = vmatprep.subr.mxu0 0.0
  %333 = vmatpush1.msra.mxu0 0.0
  %334 = vmatprep.subr.mxu0 0.0
  %335 = vmatpush1.msra.mxu0 0.0
  %336 = vmatprep.subr.mxu0 0.0
  %337 = vmatpush1.msra.mxu0 0.0
  %338 = vmatprep.subr.mxu0 0.0
  %339 = vmatpush1.msra.mxu0 0.0
  %340 = vmatprep.subr.mxu0 0.0
  %341 = vmatpush1.msra.mxu0 0.0
  %342 = vmatprep.subr.mxu0 0.0
  %343 = vmatpush1.msra.mxu0 0.0
  %344 = vmatprep.subr.mxu0 0.0
  %345 = vmatpush1.msra.mxu0 0.0
  %346 = vmatprep.subr.mxu0 0.0
  %347 = vmatpush1.msra.mxu0 0.0
  %348 = vmatprep.mubr.f32.mxu0 0.0
  %349 = vmatmul.mubr.f32.gmra.mrb[0].mxu0 %v89
  %v350 = vpop.f32.mrb[0].mxu0
  %v351 = vadd.f32 %v262, %v350
  %v352 = vpop.f32.mrb[0].mxu0
  %v353 = vadd.f32 %v264, %v352
  %354 = vmatprep.mubr.f32.mxu0 0.0
  %355 = vmatmul.mubr.f32.gmra.mrb[0].mxu0 %v92
  %v356 = vpop.f32.mrb[0].mxu0
  %v357 = vadd.f32 %v268, %v356
  %v358 = vpop.f32.mrb[0].mxu0
  %v359 = vadd.f32 %v270, %v358
  %360 = vmatprep.mubr.f32.mxu0 0.0
  %361 = vmatmul.mubr.f32.gmra.mrb[0].mxu0 %v95
  %v362 = vpop.f32.mrb[0].mxu0
  %v363 = vadd.f32 %v274, %v362
  %v364 = vpop.f32.mrb[0].mxu0
  %v365 = vadd.f32 %v276, %v364
  %366 = vmatprep.mubr.f32.mxu0 0.0
  %367 = vmatmul.mubr.f32.gmra.mrb[0].mxu0 %v98
  %v368 = vpop.f32.mrb[0].mxu0
  %v369 = vadd.f32 %v280, %v368
  %v370 = vpop.f32.mrb[0].mxu0
  %v371 = vadd.f32 %v282, %v370
  %372 = vdwg.mxu0
  %373 = vst [vmem:[%s4] sm:$0xff] %v351
  %374 = vst [vmem:[%s4 + $0x8] sm:$0xff] %v353
  %375 = vst [vmem:[%s4 + $0x10] sm:$0xff] %v357
  %376 = vst [vmem:[%s4 + $0x18] sm:$0xff] %v359
  %377 = vst [vmem:[%s4 + $0x20] sm:$0xff] %v363
  %378 = vst [vmem:[%s4 + $0x28] sm:$0xff] %v365
  %379 = vst [vmem:[%s4 + $0x30] sm:$0xff] %v369
  %380 = vst [vmem:[%s4 + $0x38] sm:$0xff] %v371
  // Predicated region
  $region18: #{_lambda_.30} parent=0 // pred_check
    _
  $region19: #{_lambda_.30} parent=0 // pred_check_branch
    %382 = sbr.rel (0) target = $region21
  $region20: #{_lambda_.30} parent=0 // pred_region
    _
  $region21: #{_lambda_.30} parent=0 // pred_fallthru
    _
  // Predicated region
  $region22: #{_lambda_.30} parent=0 // pred_check
    _
  $region23: #{_lambda_.30} parent=0 // pred_check_branch
    %384 = sbr.rel (0) target = $region25
  $region24: #{_lambda_.30} parent=0 // pred_region
    _
  $region25: #{_lambda_.30} parent=0 // pred_fallthru
    _

// kernel: _lambda_.33
$region0: #{_lambda_.33}
  #allocation0 [shape = 'u32[]', space=smem, size = 0x4, offset = 0x4, fixed_abs, tag = 'smem constant byte address 0x4 - core index']
  #allocation1 [shape = 'u32[144,128]{1,0:T(1,128)}', space=vmem, size = 0x12000, scoped, tag = 'internal scratch']
  %s0 = inlined_call_operand.vmem [shape: f32[32,128], index: 0, kind: input, shape index: {}]
  %s1 = inlined_call_operand.vmem [shape: f32[128,256], index: 1, kind: input, shape index: {}]
  %s2 = inlined_call_operand.vmem [shape: f32[32,128], index: 2, kind: input, shape index: {}]
  %s3 = inlined_call_operand.vmem [shape: f32[32,256], index: 3, kind: output, shape index: {}]
  %s4 = sld [smem:[#allocation0]]
  $region22: #{_lambda_.33} parent=0
    _
  %s6 = ssub.s32 1, %s4
  %s7 = scalar_select 0, %s6, %s4
  // Predicated region
  $region2: #{_lambda_.33} parent=0 // pred_check
    _
  $region3: #{_lambda_.33} parent=0 // pred_check_branch
    %9 = sbr.rel (0) target = $region5
  $region4: #{_lambda_.33} parent=0 // pred_region
    _
  $region5: #{_lambda_.33} parent=0 // pred_fallthru
    _
  // Predicated region
  $region6: #{_lambda_.33} parent=0 // pred_check
    _
  $region7: #{_lambda_.33} parent=0 // pred_check_branch
    %11 = sbr.rel (0) target = $region9
  $region8: #{_lambda_.33} parent=0 // pred_region
    _
  $region9: #{_lambda_.33} parent=0 // pred_fallthru
    _
  // Predicated region
  $region10: #{_lambda_.33} parent=0 // pred_check
    _
  $region11: #{_lambda_.33} parent=0 // pred_check_branch
    %13 = sbr.rel (0) target = $region13
  $region12: #{_lambda_.33} parent=0 // pred_region
    _
  $region13: #{_lambda_.33} parent=0 // pred_fallthru
    _
  %v14 = vld [vmem:[%s0] sm:$0xff]
  %v15 = vld [vmem:[%s0 + $0x8] sm:$0xff]
  %v16 = vld [vmem:[%s0 + $0x10] sm:$0xff]
  %v17 = vld [vmem:[%s0 + $0x18] sm:$0xff]
  %v18 = vld [vmem:[%s1] sm:$0xff]
  %v19 = vld [vmem:[%s1 + $0x8] sm:$0xff]
  %v20 = vld [vmem:[%s1 + $0x10] sm:$0xff]
  %v21 = vld [vmem:[%s1 + $0x18] sm:$0xff]
  %v22 = vld [vmem:[%s1 + $0x20] sm:$0xff]
  %v23 = vld [vmem:[%s1 + $0x28] sm:$0xff]
  %v24 = vld [vmem:[%s1 + $0x30] sm:$0xff]
  %v25 = vld [vmem:[%s1 + $0x38] sm:$0xff]
  %v26 = vld [vmem:[%s1 + $0x40] sm:$0xff]
  %v27 = vld [vmem:[%s1 + $0x48] sm:$0xff]
  %v28 = vld [vmem:[%s1 + $0x50] sm:$0xff]
  %v29 = vld [vmem:[%s1 + $0x58] sm:$0xff]
  %v30 = vld [vmem:[%s1 + $0x60] sm:$0xff]
  %v31 = vld [vmem:[%s1 + $0x68] sm:$0xff]
  %v32 = vld [vmem:[%s1 + $0x70] sm:$0xff]
  %v33 = vld [vmem:[%s1 + $0x78] sm:$0xff]
  %v34 = vld [vmem:[%s1 + $0x80] sm:$0xff]
  %v35 = vld [vmem:[%s1 + $0x88] sm:$0xff]
  %v36 = vld [vmem:[%s1 + $0x90] sm:$0xff]
  %v37 = vld [vmem:[%s1 + $0x98] sm:$0xff]
  %v38 = vld [vmem:[%s1 + $0xa0] sm:$0xff]
  %v39 = vld [vmem:[%s1 + $0xa8] sm:$0xff]
  %v40 = vld [vmem:[%s1 + $0xb0] sm:$0xff]
  %v41 = vld [vmem:[%s1 + $0xb8] sm:$0xff]
  %v42 = vld [vmem:[%s1 + $0xc0] sm:$0xff]
  %v43 = vld [vmem:[%s1 + $0xc8] sm:$0xff]
  %v44 = vld [vmem:[%s1 + $0xd0] sm:$0xff]
  %v45 = vld [vmem:[%s1 + $0xd8] sm:$0xff]
  %v46 = vld [vmem:[%s1 + $0xe0] sm:$0xff]
  %v47 = vld [vmem:[%s1 + $0xe8] sm:$0xff]
  %v48 = vld [vmem:[%s1 + $0xf0] sm:$0xff]
  %v49 = vld [vmem:[%s1 + $0xf8] sm:$0xff]
  %50 = vmatprep.subr.mxu0 %v19
  %51 = vmatpush1.msra.mxu0 %v18
  %52 = vmatprep.subr.mxu0 %v21
  %53 = vmatpush1.msra.mxu0 %v20
  %54 = vmatprep.subr.mxu0 %v23
  %55 = vmatpush1.msra.mxu0 %v22
  %56 = vmatprep.subr.mxu0 %v25
  %57 = vmatpush1.msra.mxu0 %v24
  %58 = vmatprep.subr.mxu0 %v27
  %59 = vmatpush1.msra.mxu0 %v26
  %60 = vmatprep.subr.mxu0 %v29
  %61 = vmatpush1.msra.mxu0 %v28
  %62 = vmatprep.subr.mxu0 %v31
  %63 = vmatpush1.msra.mxu0 %v30
  %64 = vmatprep.subr.mxu0 %v33
  %65 = vmatpush1.msra.mxu0 %v32
  %66 = vmatprep.subr.mxu0 %v35
  %67 = vmatpush1.msra.mxu0 %v34
  %68 = vmatprep.subr.mxu0 %v37
  %69 = vmatpush1.msra.mxu0 %v36
  %70 = vmatprep.subr.mxu0 %v39
  %71 = vmatpush1.msra.mxu0 %v38
  %72 = vmatprep.subr.mxu0 %v41
  %73 = vmatpush1.msra.mxu0 %v40
  %74 = vmatprep.subr.mxu0 %v43
  %75 = vmatpush1.msra.mxu0 %v42
  %76 = vmatprep.subr.mxu0 %v45
  %77 = vmatpush1.msra.mxu0 %v44
  %78 = vmatprep.subr.mxu0 %v47
  %79 = vmatpush1.msra.mxu0 %v46
  %80 = vmatprep.subr.mxu0 %v49
  %81 = vmatpush1.msra.mxu0 %v48
  %82 = vmatprep.subr.mxu0 0.0
  %83 = vmatpush1.msra.mxu0 0.0
  %84 = vmatprep.subr.mxu0 0.0
  %85 = vmatpush1.msra.mxu0 0.0
  %86 = vmatprep.subr.mxu0 0.0
  %87 = vmatpush1.msra.mxu0 0.0
  %88 = vmatprep.subr.mxu0 0.0
  %89 = vmatpush1.msra.mxu0 0.0
  %90 = vmatprep.subr.mxu0 0.0
  %91 = vmatpush1.msra.mxu0 0.0
  %92 = vmatprep.subr.mxu0 0.0
  %93 = vmatpush1.msra.mxu0 0.0
  %94 = vmatprep.subr.mxu0 0.0
  %95 = vmatpush1.msra.mxu0 0.0
  %96 = vmatprep.subr.mxu0 0.0
  %97 = vmatpush1.msra.mxu0 0.0
  %98 = vmatprep.subr.mxu0 0.0
  %99 = vmatpush1.msra.mxu0 0.0
  %100 = vmatprep.subr.mxu0 0.0
  %101 = vmatpush1.msra.mxu0 0.0
  %102 = vmatprep.subr.mxu0 0.0
  %103 = vmatpush1.msra.mxu0 0.0
  %104 = vmatprep.subr.mxu0 0.0
  %105 = vmatpush1.msra.mxu0 0.0
  %106 = vmatprep.subr.mxu0 0.0
  %107 = vmatpush1.msra.mxu0 0.0
  %108 = vmatprep.subr.mxu0 0.0
  %109 = vmatpush1.msra.mxu0 0.0
  %110 = vmatprep.subr.mxu0 0.0
  %111 = vmatpush1.msra.mxu0 0.0
  %112 = vmatprep.subr.mxu0 0.0
  %113 = vmatpush1.msra.mxu0 0.0
  %114 = vmatprep.mubr.f32.mxu0 0.0
  %115 = vmatmul.mubr.f32.gmra.mrb[0].mxu0 %v14
  %v116 = vpop.f32.mrb[0].mxu0
  %v117 = vadd.f32 0.0, %v116
  %v118 = vpop.f32.mrb[0].mxu0
  %v119 = vadd.f32 0.0, %v118
  %120 = vmatprep.mubr.f32.mxu0 0.0
  %121 = vmatmul.mubr.f32.gmra.mrb[0].mxu0 %v15
  %v122 = vpop.f32.mrb[0].mxu0
  %v123 = vadd.f32 0.0, %v122
  %v124 = vpop.f32.mrb[0].mxu0
  %v125 = vadd.f32 0.0, %v124
  %126 = vmatprep.mubr.f32.mxu0 0.0
  %127 = vmatmul.mubr.f32.gmra.mrb[0].mxu0 %v16
  %v128 = vpop.f32.mrb[0].mxu0
  %v129 = vadd.f32 0.0, %v128
  %v130 = vpop.f32.mrb[0].mxu0
  %v131 = vadd.f32 0.0, %v130
  %132 = vmatprep.mubr.f32.mxu0 0.0
  %133 = vmatmul.mubr.f32.gmra.mrb[0].mxu0 %v17
  %v134 = vpop.f32.mrb[0].mxu0
  %v135 = vadd.f32 0.0, %v134
  %v136 = vpop.f32.mrb[0].mxu0
  %v137 = vadd.f32 0.0, %v136
  %138 = vdwg.mxu0
  %v139 = vld [vmem:[%s2] sm:$0xff]
  %v140 = vld [vmem:[%s2 + $0x8] sm:$0xff]
  %v141 = vld [vmem:[%s2 + $0x10] sm:$0xff]
  %v142 = vld [vmem:[%s2 + $0x18] sm:$0xff]
  %v143 = vadd.f32 %v117, %v139
  %v144 = vadd.f32 %v123, %v140
  %v145 = vadd.f32 %v129, %v141
  %v146 = vadd.f32 %v135, %v142
  %147 = vst [vmem:[%s3] sm:$0xff] %v143
  %148 = vst [vmem:[%s3 + $0x10] sm:$0xff] %v144
  %149 = vst [vmem:[%s3 + $0x20] sm:$0xff] %v145
  %150 = vst [vmem:[%s3 + $0x30] sm:$0xff] %v146
  %151 = vst [vmem:[%s3 + $0x8] sm:$0xff] %v119
  %152 = vst [vmem:[%s3 + $0x18] sm:$0xff] %v125
  %153 = vst [vmem:[%s3 + $0x28] sm:$0xff] %v131
  %154 = vst [vmem:[%s3 + $0x38] sm:$0xff] %v137
  // Predicated region
  $region14: #{_lambda_.33} parent=0 // pred_check
    _
  $region15: #{_lambda_.33} parent=0 // pred_check_branch
    %156 = sbr.rel (0) target = $region17
  $region16: #{_lambda_.33} parent=0 // pred_region
    _
  $region17: #{_lambda_.33} parent=0 // pred_fallthru
    _
  // Predicated region
  $region18: #{_lambda_.33} parent=0 // pred_check
    _
  $region19: #{_lambda_.33} parent=0 // pred_check_branch
    %158 = sbr.rel (0) target = $region21
  $region20: #{_lambda_.33} parent=0 // pred_region
    _
  $region21: #{_lambda_.33} parent=0 // pred_fallthru
    _

// kernel: _lambda_.35
$region0: #{_lambda_.35}
  #allocation0 [shape = 'u32[]', space=smem, size = 0x4, offset = 0x4, fixed_abs, tag = 'smem constant byte address 0x4 - core index']
  #allocation1 [shape = 'u32[144,128]{1,0:T(1,128)}', space=vmem, size = 0x12000, scoped, tag = 'internal scratch']
  %s0 = inlined_call_operand.vmem [shape: f32[32,384], index: 0, kind: input, shape index: {}]
  %s1 = inlined_call_operand.vmem [shape: f32[384,128], index: 1, kind: input, shape index: {}]
  %s2 = inlined_call_operand.vmem [shape: f32[1,384], index: 2, kind: input, shape index: {}]
  %s3 = inlined_call_operand.vmem [shape: f32[1,384], index: 3, kind: input, shape index: {}]
  %s4 = inlined_call_operand.vmem [shape: f32[1,128], index: 4, kind: input, shape index: {}]
  %s5 = inlined_call_operand.vmem [shape: f32[1,128], index: 5, kind: input, shape index: {}]
  %s6 = inlined_call_operand.vmem [shape: f32[32,128], index: 6, kind: output, shape index: {}]
  %s7 = sld [smem:[#allocation0]]
  $region34: #{_lambda_.35} parent=0
    _
  %s9 = ssub.s32 1, %s7
  %s10 = scalar_select 0, %s9, %s7
  // Predicated region
  $region2: #{_lambda_.35} parent=0 // pred_check
    _
  $region3: #{_lambda_.35} parent=0 // pred_check_branch
    %12 = sbr.rel (0) target = $region5
  $region4: #{_lambda_.35} parent=0 // pred_region
    _
  $region5: #{_lambda_.35} parent=0 // pred_fallthru
    _
  // Predicated region
  $region6: #{_lambda_.35} parent=0 // pred_check
    _
  $region7: #{_lambda_.35} parent=0 // pred_check_branch
    %14 = sbr.rel (0) target = $region9
  $region8: #{_lambda_.35} parent=0 // pred_region
    _
  $region9: #{_lambda_.35} parent=0 // pred_fallthru
    _
  // Predicated region
  $region10: #{_lambda_.35} parent=0 // pred_check
    _
  $region11: #{_lambda_.35} parent=0 // pred_check_branch
    %16 = sbr.rel (0) target = $region13
  $region12: #{_lambda_.35} parent=0 // pred_region
    _
  $region13: #{_lambda_.35} parent=0 // pred_fallthru
    _
  // Predicated region
  $region14: #{_lambda_.35} parent=0 // pred_check
    _
  $region15: #{_lambda_.35} parent=0 // pred_check_branch
    %18 = sbr.rel (0) target = $region17
  $region16: #{_lambda_.35} parent=0 // pred_region
    _
  $region17: #{_lambda_.35} parent=0 // pred_fallthru
    _
  // Predicated region
  $region18: #{_lambda_.35} parent=0 // pred_check
    _
  $region19: #{_lambda_.35} parent=0 // pred_check_branch
    %20 = sbr.rel (0) target = $region21
  $region20: #{_lambda_.35} parent=0 // pred_region
    _
  $region21: #{_lambda_.35} parent=0 // pred_fallthru
    _
  // Predicated region
  $region22: #{_lambda_.35} parent=0 // pred_check
    _
  $region23: #{_lambda_.35} parent=0 // pred_check_branch
    %22 = sbr.rel (0) target = $region25
  $region24: #{_lambda_.35} parent=0 // pred_region
    _
  $region25: #{_lambda_.35} parent=0 // pred_fallthru
    _
  %v23 = vld [vmem:[%s0] sm:$0xff]
  %v24 = vld [vmem:[%s0 + $0x8] sm:$0xff]
  %v25 = vld [vmem:[%s0 + $0x10] sm:$0xff]
  %v26 = vld [vmem:[%s0 + $0x18] sm:$0xff]
  %v27 = vld [vmem:[%s0 + $0x20] sm:$0xff]
  %v28 = vld [vmem:[%s0 + $0x28] sm:$0xff]
  %v29 = vld [vmem:[%s0 + $0x30] sm:$0xff]
  %v30 = vld [vmem:[%s0 + $0x38] sm:$0xff]
  %v31 = vld [vmem:[%s0 + $0x40] sm:$0xff]
  %v32 = vld [vmem:[%s0 + $0x48] sm:$0xff]
  %v33 = vld [vmem:[%s0 + $0x50] sm:$0xff]
  %v34 = vld [vmem:[%s0 + $0x58] sm:$0xff]
  %v35 = vld [vmem:[%s2] sm:$0x7]
  %v37 = vlaneseq
  %v38 = vshrl.u32 %v37, 7
  %v39 = vsub.s32 0, %v38
  %v40 = vrot.slane %v35, %v39
  %v41 = vlaneseq
  %v42 = vshrl.u32 %v41, 7
  %v43 = vsub.s32 1, %v42
  %v44 = vrot.slane %v35, %v43
  %v45 = vlaneseq
  %v46 = vshrl.u32 %v45, 7
  %v47 = vsub.s32 2, %v46
  %v48 = vrot.slane %v35, %v47
  %v52 = vmul.f32 %v23, %v40
  %v53 = vmul.f32 %v24, %v44
  %v54 = vmul.f32 %v25, %v48
  %v55 = vmul.f32 %v26, %v40
  %v56 = vmul.f32 %v27, %v44
  %v57 = vmul.f32 %v28, %v48
  %v58 = vmul.f32 %v29, %v40
  %v59 = vmul.f32 %v30, %v44
  %v60 = vmul.f32 %v31, %v48
  %v61 = vmul.f32 %v32, %v40
  %v62 = vmul.f32 %v33, %v44
  %v63 = vmul.f32 %v34, %v48
  %v64 = vld [vmem:[%s3] sm:$0x7]
  %v66 = vlaneseq
  %v67 = vshrl.u32 %v66, 7
  %v68 = vsub.s32 0, %v67
  %v69 = vrot.slane %v64, %v68
  %v70 = vlaneseq
  %v71 = vshrl.u32 %v70, 7
  %v72 = vsub.s32 1, %v71
  %v73 = vrot.slane %v64, %v72
  %v74 = vlaneseq
  %v75 = vshrl.u32 %v74, 7
  %v76 = vsub.s32 2, %v75
  %v77 = vrot.slane %v64, %v76
  %v81 = vadd.f32 %v52, %v69
  %v82 = vadd.f32 %v53, %v73
  %v83 = vadd.f32 %v54, %v77
  %v84 = vadd.f32 %v55, %v69
  %v85 = vadd.f32 %v56, %v73
  %v86 = vadd.f32 %v57, %v77
  %v87 = vadd.f32 %v58, %v69
  %v88 = vadd.f32 %v59, %v73
  %v89 = vadd.f32 %v60, %v77
  %v90 = vadd.f32 %v61, %v69
  %v91 = vadd.f32 %v62, %v73
  %v92 = vadd.f32 %v63, %v77
  %v93 = vmax.f32 %v81, 0.0
  %v94 = vmax.f32 %v82, 0.0
  %v95 = vmax.f32 %v83, 0.0
  %v96 = vmax.f32 %v84, 0.0
  %v97 = vmax.f32 %v85, 0.0
  %v98 = vmax.f32 %v86, 0.0
  %v99 = vmax.f32 %v87, 0.0
  %v100 = vmax.f32 %v88, 0.0
  %v101 = vmax.f32 %v89, 0.0
  %v102 = vmax.f32 %v90, 0.0
  %v103 = vmax.f32 %v91, 0.0
  %v104 = vmax.f32 %v92, 0.0
  %v105 = vld [vmem:[%s1] sm:$0xff]
  %v106 = vld [vmem:[%s1 + $0x8] sm:$0xff]
  %v107 = vld [vmem:[%s1 + $0x10] sm:$0xff]
  %v108 = vld [vmem:[%s1 + $0x18] sm:$0xff]
  %v109 = vld [vmem:[%s1 + $0x20] sm:$0xff]
  %v110 = vld [vmem:[%s1 + $0x28] sm:$0xff]
  %v111 = vld [vmem:[%s1 + $0x30] sm:$0xff]
  %v112 = vld [vmem:[%s1 + $0x38] sm:$0xff]
  %v113 = vld [vmem:[%s1 + $0x40] sm:$0xff]
  %v114 = vld [vmem:[%s1 + $0x48] sm:$0xff]
  %v115 = vld [vmem:[%s1 + $0x50] sm:$0xff]
  %v116 = vld [vmem:[%s1 + $0x58] sm:$0xff]
  %v117 = vld [vmem:[%s1 + $0x60] sm:$0xff]
  %v118 = vld [vmem:[%s1 + $0x68] sm:$0xff]
  %v119 = vld [vmem:[%s1 + $0x70] sm:$0xff]
  %v120 = vld [vmem:[%s1 + $0x78] sm:$0xff]
  %v121 = vld [vmem:[%s1 + $0x80] sm:$0xff]
  %v122 = vld [vmem:[%s1 + $0x88] sm:$0xff]
  %v123 = vld [vmem:[%s1 + $0x90] sm:$0xff]
  %v124 = vld [vmem:[%s1 + $0x98] sm:$0xff]
  %v125 = vld [vmem:[%s1 + $0xa0] sm:$0xff]
  %v126 = vld [vmem:[%s1 + $0xa8] sm:$0xff]
  %v127 = vld [vmem:[%s1 + $0xb0] sm:$0xff]
  %v128 = vld [vmem:[%s1 + $0xb8] sm:$0xff]
  %v129 = vld [vmem:[%s1 + $0xc0] sm:$0xff]
  %v130 = vld [vmem:[%s1 + $0xc8] sm:$0xff]
  %v131 = vld [vmem:[%s1 + $0xd0] sm:$0xff]
  %v132 = vld [vmem:[%s1 + $0xd8] sm:$0xff]
  %v133 = vld [vmem:[%s1 + $0xe0] sm:$0xff]
  %v134 = vld [vmem:[%s1 + $0xe8] sm:$0xff]
  %v135 = vld [vmem:[%s1 + $0xf0] sm:$0xff]
  %v136 = vld [vmem:[%s1 + $0xf8] sm:$0xff]
  %v137 = vld [vmem:[%s1 + $0x100] sm:$0xff]
  %v138 = vld [vmem:[%s1 + $0x108] sm:$0xff]
  %v139 = vld [vmem:[%s1 + $0x110] sm:$0xff]
  %v140 = vld [vmem:[%s1 + $0x118] sm:$0xff]
  %v141 = vld [vmem:[%s1 + $0x120] sm:$0xff]
  %v142 = vld [vmem:[%s1 + $0x128] sm:$0xff]
  %v143 = vld [vmem:[%s1 + $0x130] sm:$0xff]
  %v144 = vld [vmem:[%s1 + $0x138] sm:$0xff]
  %v145 = vld [vmem:[%s1 + $0x140] sm:$0xff]
  %v146 = vld [vmem:[%s1 + $0x148] sm:$0xff]
  %v147 = vld [vmem:[%s1 + $0x150] sm:$0xff]
  %v148 = vld [vmem:[%s1 + $0x158] sm:$0xff]
  %v149 = vld [vmem:[%s1 + $0x160] sm:$0xff]
  %v150 = vld [vmem:[%s1 + $0x168] sm:$0xff]
  %v151 = vld [vmem:[%s1 + $0x170] sm:$0xff]
  %v152 = vld [vmem:[%s1 + $0x178] sm:$0xff]
  %153 = vmatprep.subr.mxu0 0.0
  %154 = vmatpush1.msra.mxu0 %v105
  %155 = vmatprep.subr.mxu0 0.0
  %156 = vmatpush1.msra.mxu0 %v106
  %157 = vmatprep.subr.mxu0 0.0
  %158 = vmatpush1.msra.mxu0 %v107
  %159 = vmatprep.subr.mxu0 0.0
  %160 = vmatpush1.msra.mxu0 %v108
  %161 = vmatprep.subr.mxu0 0.0
  %162 = vmatpush1.msra.mxu0 %v109
  %163 = vmatprep.subr.mxu0 0.0
  %164 = vmatpush1.msra.mxu0 %v110
  %165 = vmatprep.subr.mxu0 0.0
  %166 = vmatpush1.msra.mxu0 %v111
  %167 = vmatprep.subr.mxu0 0.0
  %168 = vmatpush1.msra.mxu0 %v112
  %169 = vmatprep.subr.mxu0 0.0
  %170 = vmatpush1.msra.mxu0 %v113
  %171 = vmatprep.subr.mxu0 0.0
  %172 = vmatpush1.msra.mxu0 %v114
  %173 = vmatprep.subr.mxu0 0.0
  %174 = vmatpush1.msra.mxu0 %v115
  %175 = vmatprep.subr.mxu0 0.0
  %176 = vmatpush1.msra.mxu0 %v116
  %177 = vmatprep.subr.mxu0 0.0
  %178 = vmatpush1.msra.mxu0 %v117
  %179 = vmatprep.subr.mxu0 0.0
  %180 = vmatpush1.msra.mxu0 %v118
  %181 = vmatprep.subr.mxu0 0.0
  %182 = vmatpush1.msra.mxu0 %v119
  %183 = vmatprep.subr.mxu0 0.0
  %184 = vmatpush1.msra.mxu0 %v120
  %185 = vmatprep.subr.mxu0 0.0
  %186 = vmatpush1.msra.mxu0 %v121
  %187 = vmatprep.subr.mxu0 0.0
  %188 = vmatpush1.msra.mxu0 %v122
  %189 = vmatprep.subr.mxu0 0.0
  %190 = vmatpush1.msra.mxu0 %v123
  %191 = vmatprep.subr.mxu0 0.0
  %192 = vmatpush1.msra.mxu0 %v124
  %193 = vmatprep.subr.mxu0 0.0
  %194 = vmatpush1.msra.mxu0 %v125
  %195 = vmatprep.subr.mxu0 0.0
  %196 = vmatpush1.msra.mxu0 %v126
  %197 = vmatprep.subr.mxu0 0.0
  %198 = vmatpush1.msra.mxu0 %v127
  %199 = vmatprep.subr.mxu0 0.0
  %200 = vmatpush1.msra.mxu0 %v128
  %201 = vmatprep.subr.mxu0 0.0
  %202 = vmatpush1.msra.mxu0 %v129
  %203 = vmatprep.subr.mxu0 0.0
  %204 = vmatpush1.msra.mxu0 %v130
  %205 = vmatprep.subr.mxu0 0.0
  %206 = vmatpush1.msra.mxu0 %v131
  %207 = vmatprep.subr.mxu0 0.0
  %208 = vmatpush1.msra.mxu0 %v132
  %209 = vmatprep.subr.mxu0 0.0
  %210 = vmatpush1.msra.mxu0 %v133
  %211 = vmatprep.subr.mxu0 0.0
  %212 = vmatpush1.msra.mxu0 %v134
  %213 = vmatprep.subr.mxu0 0.0
  %214 = vmatpush1.msra.mxu0 %v135
  %215 = vmatprep.subr.mxu0 0.0
  %216 = vmatpush1.msra.mxu0 %v136
  %217 = vmatprep.mubr.f32.mxu0 %v94
  %218 = vmatmul.mubr.f32.gmra.mrb[0].mxu0 %v93
  %v219 = vpop.f32.mrb[0].mxu0
  %v220 = vadd.f32 0.0, %v219
  %v221 = vpop.f32.mrb[0].mxu0
  %222 = vmatprep.mubr.f32.mxu0 %v97
  %223 = vmatmul.mubr.f32.gmra.mrb[0].mxu0 %v96
  %v224 = vpop.f32.mrb[0].mxu0
  %v225 = vadd.f32 0.0, %v224
  %v226 = vpop.f32.mrb[0].mxu0
  %227 = vmatprep.mubr.f32.mxu0 %v100
  %228 = vmatmul.mubr.f32.gmra.mrb[0].mxu0 %v99
  %v229 = vpop.f32.mrb[0].mxu0
  %v230 = vadd.f32 0.0, %v229
  %v231 = vpop.f32.mrb[0].mxu0
  %232 = vmatprep.mubr.f32.mxu0 %v103
  %233 = vmatmul.mubr.f32.gmra.mrb[0].mxu0 %v102
  %v234 = vpop.f32.mrb[0].mxu0
  %v235 = vadd.f32 0.0, %v234
  %v236 = vpop.f32.mrb[0].mxu0
  %237 = vdwg.mxu0
  %238 = vmatprep.subr.mxu0 0.0
  %239 = vmatpush1.msra.mxu0 %v137
  %240 = vmatprep.subr.mxu0 0.0
  %241 = vmatpush1.msra.mxu0 %v138
  %242 = vmatprep.subr.mxu0 0.0
  %243 = vmatpush1.msra.mxu0 %v139
  %244 = vmatprep.subr.mxu0 0.0
  %245 = vmatpush1.msra.mxu0 %v140
  %246 = vmatprep.subr.mxu0 0.0
  %247 = vmatpush1.msra.mxu0 %v141
  %248 = vmatprep.subr.mxu0 0.0
  %249 = vmatpush1.msra.mxu0 %v142
  %250 = vmatprep.subr.mxu0 0.0
  %251 = vmatpush1.msra.mxu0 %v143
  %252 = vmatprep.subr.mxu0 0.0
  %253 = vmatpush1.msra.mxu0 %v144
  %254 = vmatprep.subr.mxu0 0.0
  %255 = vmatpush1.msra.mxu0 %v145
  %256 = vmatprep.subr.mxu0 0.0
  %257 = vmatpush1.msra.mxu0 %v146
  %258 = vmatprep.subr.mxu0 0.0
  %259 = vmatpush1.msra.mxu0 %v147
  %260 = vmatprep.subr.mxu0 0.0
  %261 = vmatpush1.msra.mxu0 %v148
  %262 = vmatprep.subr.mxu0 0.0
  %263 = vmatpush1.msra.mxu0 %v149
  %264 = vmatprep.subr.mxu0 0.0
  %265 = vmatpush1.msra.mxu0 %v150
  %266 = vmatprep.subr.mxu0 0.0
  %267 = vmatpush1.msra.mxu0 %v151
  %268 = vmatprep.subr.mxu0 0.0
  %269 = vmatpush1.msra.mxu0 %v152
  %270 = vmatprep.subr.mxu0 0.0
  %271 = vmatpush1.msra.mxu0 0.0
  %272 = vmatprep.subr.mxu0 0.0
  %273 = vmatpush1.msra.mxu0 0.0
  %274 = vmatprep.subr.mxu0 0.0
  %275 = vmatpush1.msra.mxu0 0.0
  %276 = vmatprep.subr.mxu0 0.0
  %277 = vmatpush1.msra.mxu0 0.0
  %278 = vmatprep.subr.mxu0 0.0
  %279 = vmatpush1.msra.mxu0 0.0
  %280 = vmatprep.subr.mxu0 0.0
  %281 = vmatpush1.msra.mxu0 0.0
  %282 = vmatprep.subr.mxu0 0.0
  %283 = vmatpush1.msra.mxu0 0.0
  %284 = vmatprep.subr.mxu0 0.0
  %285 = vmatpush1.msra.mxu0 0.0
  %286 = vmatprep.subr.mxu0 0.0
  %287 = vmatpush1.msra.mxu0 0.0
  %288 = vmatprep.subr.mxu0 0.0
  %289 = vmatpush1.msra.mxu0 0.0
  %290 = vmatprep.subr.mxu0 0.0
  %291 = vmatpush1.msra.mxu0 0.0
  %292 = vmatprep.subr.mxu0 0.0
  %293 = vmatpush1.msra.mxu0 0.0
  %294 = vmatprep.subr.mxu0 0.0
  %295 = vmatpush1.msra.mxu0 0.0
  %296 = vmatprep.subr.mxu0 0.0
  %297 = vmatpush1.msra.mxu0 0.0
  %298 = vmatprep.subr.mxu0 0.0
  %299 = vmatpush1.msra.mxu0 0.0
  %300 = vmatprep.subr.mxu0 0.0
  %301 = vmatpush1.msra.mxu0 0.0
  %302 = vmatprep.mubr.f32.mxu0 0.0
  %303 = vmatmul.mubr.f32.gmra.mrb[0].mxu0 %v95
  %v304 = vpop.f32.mrb[0].mxu0
  %v305 = vadd.f32 %v220, %v304
  %v306 = vpop.f32.mrb[0].mxu0
  %307 = vmatprep.mubr.f32.mxu0 0.0
  %308 = vmatmul.mubr.f32.gmra.mrb[0].mxu0 %v98
  %v309 = vpop.f32.mrb[0].mxu0
  %v310 = vadd.f32 %v225, %v309
  %v311 = vpop.f32.mrb[0].mxu0
  %312 = vmatprep.mubr.f32.mxu0 0.0
  %313 = vmatmul.mubr.f32.gmra.mrb[0].mxu0 %v101
  %v314 = vpop.f32.mrb[0].mxu0
  %v315 = vadd.f32 %v230, %v314
  %v316 = vpop.f32.mrb[0].mxu0
  %317 = vmatprep.mubr.f32.mxu0 0.0
  %318 = vmatmul.mubr.f32.gmra.mrb[0].mxu0 %v104
  %v319 = vpop.f32.mrb[0].mxu0
  %v320 = vadd.f32 %v235, %v319
  %v321 = vpop.f32.mrb[0].mxu0
  %322 = vdwg.mxu0
  %v323 = vld [vmem:[%s4] sm:$0x1]
  %v325 = vlaneseq
  %v326 = vshrl.u32 %v325, 7
  %v327 = vsub.s32 0, %v326
  %v328 = vrot.slane %v323, %v327
  %v330 = vmul.f32 %v305, %v328
  %v331 = vmul.f32 %v310, %v328
  %v332 = vmul.f32 %v315, %v328
  %v333 = vmul.f32 %v320, %v328
  %v334 = vld [vmem:[%s5] sm:$0x1]
  %v336 = vlaneseq
  %v337 = vshrl.u32 %v336, 7
  %v338 = vsub.s32 0, %v337
  %v339 = vrot.slane %v334, %v338
  %v341 = vadd.f32 %v330, %v339
  %v342 = vadd.f32 %v331, %v339
  %v343 = vadd.f32 %v332, %v339
  %v344 = vadd.f32 %v333, %v339
  %v345 = vmax.f32 %v341, 0.0
  %v346 = vmax.f32 %v342, 0.0
  %v347 = vmax.f32 %v343, 0.0
  %v348 = vmax.f32 %v344, 0.0
  %349 = vst [vmem:[%s6] sm:$0xff] %v345
  %350 = vst [vmem:[%s6 + $0x8] sm:$0xff] %v346
  %351 = vst [vmem:[%s6 + $0x10] sm:$0xff] %v347
  %352 = vst [vmem:[%s6 + $0x18] sm:$0xff] %v348
  // Predicated region
  $region26: #{_lambda_.35} parent=0 // pred_check
    _
  $region27: #{_lambda_.35} parent=0 // pred_check_branch
    %354 = sbr.rel (0) target = $region29
  $region28: #{_lambda_.35} parent=0 // pred_region
    _
  $region29: #{_lambda_.35} parent=0 // pred_fallthru
    _
  // Predicated region
  $region30: #{_lambda_.35} parent=0 // pred_check
    _
  $region31: #{_lambda_.35} parent=0 // pred_check_branch
    %356 = sbr.rel (0) target = $region33
  $region32: #{_lambda_.35} parent=0 // pred_region
    _
  $region33: #{_lambda_.35} parent=0 // pred_fallthru
    _

// kernel: _lambda_.42
$region0: #{_lambda_.42}
  #allocation0 [shape = 'u32[]', space=smem, size = 0x4, offset = 0x4, fixed_abs, tag = 'smem constant byte address 0x4 - core index']
  #allocation1 [shape = 'u32[144,128]{1,0:T(1,128)}', space=vmem, size = 0x12000, scoped, tag = 'internal scratch']
  %s0 = inlined_call_operand.vmem [shape: f32[32,512], index: 0, kind: input, shape index: {}]
  %s1 = inlined_call_operand.vmem [shape: f32[512,128], index: 1, kind: input, shape index: {}]
  %s2 = inlined_call_operand.vmem [shape: f32[1,512], index: 2, kind: input, shape index: {}]
  %s3 = inlined_call_operand.vmem [shape: f32[1,512], index: 3, kind: input, shape index: {}]
  %s4 = inlined_call_operand.vmem [shape: f32[1,128], index: 4, kind: input, shape index: {}]
  %s5 = inlined_call_operand.vmem [shape: f32[1,128], index: 5, kind: input, shape index: {}]
  %s6 = inlined_call_operand.vmem [shape: f32[32,128], index: 6, kind: output, shape index: {}]
  %s7 = sld [smem:[#allocation0]]
  $region34: #{_lambda_.42} parent=0
    _
  %s9 = ssub.s32 1, %s7
  %s10 = scalar_select 0, %s9, %s7
  // Predicated region
  $region2: #{_lambda_.42} parent=0 // pred_check
    _
  $region3: #{_lambda_.42} parent=0 // pred_check_branch
    %12 = sbr.rel (0) target = $region5
  $region4: #{_lambda_.42} parent=0 // pred_region
    _
  $region5: #{_lambda_.42} parent=0 // pred_fallthru
    _
  // Predicated region
  $region6: #{_lambda_.42} parent=0 // pred_check
    _
  $region7: #{_lambda_.42} parent=0 // pred_check_branch
    %14 = sbr.rel (0) target = $region9
  $region8: #{_lambda_.42} parent=0 // pred_region
    _
  $region9: #{_lambda_.42} parent=0 // pred_fallthru
    _
  // Predicated region
  $region10: #{_lambda_.42} parent=0 // pred_check
    _
  $region11: #{_lambda_.42} parent=0 // pred_check_branch
    %16 = sbr.rel (0) target = $region13
  $region12: #{_lambda_.42} parent=0 // pred_region
    _
  $region13: #{_lambda_.42} parent=0 // pred_fallthru
    _
  // Predicated region
  $region14: #{_lambda_.42} parent=0 // pred_check
    _
  $region15: #{_lambda_.42} parent=0 // pred_check_branch
    %18 = sbr.rel (0) target = $region17
  $region16: #{_lambda_.42} parent=0 // pred_region
    _
  $region17: #{_lambda_.42} parent=0 // pred_fallthru
    _
  // Predicated region
  $region18: #{_lambda_.42} parent=0 // pred_check
    _
  $region19: #{_lambda_.42} parent=0 // pred_check_branch
    %20 = sbr.rel (0) target = $region21
  $region20: #{_lambda_.42} parent=0 // pred_region
    _
  $region21: #{_lambda_.42} parent=0 // pred_fallthru
    _
  // Predicated region
  $region22: #{_lambda_.42} parent=0 // pred_check
    _
  $region23: #{_lambda_.42} parent=0 // pred_check_branch
    %22 = sbr.rel (0) target = $region25
  $region24: #{_lambda_.42} parent=0 // pred_region
    _
  $region25: #{_lambda_.42} parent=0 // pred_fallthru
    _
  %v23 = vld [vmem:[%s0] sm:$0xff]
  %v24 = vld [vmem:[%s0 + $0x8] sm:$0xff]
  %v25 = vld [vmem:[%s0 + $0x10] sm:$0xff]
  %v26 = vld [vmem:[%s0 + $0x18] sm:$0xff]
  %v27 = vld [vmem:[%s0 + $0x20] sm:$0xff]
  %v28 = vld [vmem:[%s0 + $0x28] sm:$0xff]
  %v29 = vld [vmem:[%s0 + $0x30] sm:$0xff]
  %v30 = vld [vmem:[%s0 + $0x38] sm:$0xff]
  %v31 = vld [vmem:[%s0 + $0x40] sm:$0xff]
  %v32 = vld [vmem:[%s0 + $0x48] sm:$0xff]
  %v33 = vld [vmem:[%s0 + $0x50] sm:$0xff]
  %v34 = vld [vmem:[%s0 + $0x58] sm:$0xff]
  %v35 = vld [vmem:[%s0 + $0x60] sm:$0xff]
  %v36 = vld [vmem:[%s0 + $0x68] sm:$0xff]
  %v37 = vld [vmem:[%s0 + $0x70] sm:$0xff]
  %v38 = vld [vmem:[%s0 + $0x78] sm:$0xff]
  %v39 = vld [vmem:[%s2] sm:$0xf]
  %v41 = vlaneseq
  %v42 = vshrl.u32 %v41, 7
  %v43 = vsub.s32 0, %v42
  %v44 = vrot.slane %v39, %v43
  %v45 = vlaneseq
  %v46 = vshrl.u32 %v45, 7
  %v47 = vsub.s32 1, %v46
  %v48 = vrot.slane %v39, %v47
  %v49 = vlaneseq
  %v50 = vshrl.u32 %v49, 7
  %v51 = vsub.s32 2, %v50
  %v52 = vrot.slane %v39, %v51
  %v53 = vlaneseq
  %v54 = vshrl.u32 %v53, 7
  %v55 = vsub.s32 3, %v54
  %v56 = vrot.slane %v39, %v55
  %v61 = vmul.f32 %v23, %v44
  %v62 = vmul.f32 %v24, %v48
  %v63 = vmul.f32 %v25, %v52
  %v64 = vmul.f32 %v26, %v56
  %v65 = vmul.f32 %v27, %v44
  %v66 = vmul.f32 %v28, %v48
  %v67 = vmul.f32 %v29, %v52
  %v68 = vmul.f32 %v30, %v56
  %v69 = vmul.f32 %v31, %v44
  %v70 = vmul.f32 %v32, %v48
  %v71 = vmul.f32 %v33, %v52
  %v72 = vmul.f32 %v34, %v56
  %v73 = vmul.f32 %v35, %v44
  %v74 = vmul.f32 %v36, %v48
  %v75 = vmul.f32 %v37, %v52
  %v76 = vmul.f32 %v38, %v56
  %v77 = vld [vmem:[%s3] sm:$0xf]
  %v79 = vlaneseq
  %v80 = vshrl.u32 %v79, 7
  %v81 = vsub.s32 0, %v80
  %v82 = vrot.slane %v77, %v81
  %v83 = vlaneseq
  %v84 = vshrl.u32 %v83, 7
  %v85 = vsub.s32 1, %v84
  %v86 = vrot.slane %v77, %v85
  %v87 = vlaneseq
  %v88 = vshrl.u32 %v87, 7
  %v89 = vsub.s32 2, %v88
  %v90 = vrot.slane %v77, %v89
  %v91 = vlaneseq
  %v92 = vshrl.u32 %v91, 7
  %v93 = vsub.s32 3, %v92
  %v94 = vrot.slane %v77, %v93
  %v99 = vadd.f32 %v61, %v82
  %v100 = vadd.f32 %v62, %v86
  %v101 = vadd.f32 %v63, %v90
  %v102 = vadd.f32 %v64, %v94
  %v103 = vadd.f32 %v65, %v82
  %v104 = vadd.f32 %v66, %v86
  %v105 = vadd.f32 %v67, %v90
  %v106 = vadd.f32 %v68, %v94
  %v107 = vadd.f32 %v69, %v82
  %v108 = vadd.f32 %v70, %v86
  %v109 = vadd.f32 %v71, %v90
  %v110 = vadd.f32 %v72, %v94
  %v111 = vadd.f32 %v73, %v82
  %v112 = vadd.f32 %v74, %v86
  %v113 = vadd.f32 %v75, %v90
  %v114 = vadd.f32 %v76, %v94
  %v115 = vmax.f32 %v99, 0.0
  %v116 = vmax.f32 %v100, 0.0
  %v117 = vmax.f32 %v101, 0.0
  %v118 = vmax.f32 %v102, 0.0
  %v119 = vmax.f32 %v103, 0.0
  %v120 = vmax.f32 %v104, 0.0
  %v121 = vmax.f32 %v105, 0.0
  %v122 = vmax.f32 %v106, 0.0
  %v123 = vmax.f32 %v107, 0.0
  %v124 = vmax.f32 %v108, 0.0
  %v125 = vmax.f32 %v109, 0.0
  %v126 = vmax.f32 %v110, 0.0
  %v127 = vmax.f32 %v111, 0.0
  %v128 = vmax.f32 %v112, 0.0
  %v129 = vmax.f32 %v113, 0.0
  %v130 = vmax.f32 %v114, 0.0
  %v131 = vld [vmem:[%s1] sm:$0xff]
  %v132 = vld [vmem:[%s1 + $0x8] sm:$0xff]
  %v133 = vld [vmem:[%s1 + $0x10] sm:$0xff]
  %v134 = vld [vmem:[%s1 + $0x18] sm:$0xff]
  %v135 = vld [vmem:[%s1 + $0x20] sm:$0xff]
  %v136 = vld [vmem:[%s1 + $0x28] sm:$0xff]
  %v137 = vld [vmem:[%s1 + $0x30] sm:$0xff]
  %v138 = vld [vmem:[%s1 + $0x38] sm:$0xff]
  %v139 = vld [vmem:[%s1 + $0x40] sm:$0xff]
  %v140 = vld [vmem:[%s1 + $0x48] sm:$0xff]
  %v141 = vld [vmem:[%s1 + $0x50] sm:$0xff]
  %v142 = vld [vmem:[%s1 + $0x58] sm:$0xff]
  %v143 = vld [vmem:[%s1 + $0x60] sm:$0xff]
  %v144 = vld [vmem:[%s1 + $0x68] sm:$0xff]
  %v145 = vld [vmem:[%s1 + $0x70] sm:$0xff]
  %v146 = vld [vmem:[%s1 + $0x78] sm:$0xff]
  %v147 = vld [vmem:[%s1 + $0x80] sm:$0xff]
  %v148 = vld [vmem:[%s1 + $0x88] sm:$0xff]
  %v149 = vld [vmem:[%s1 + $0x90] sm:$0xff]
  %v150 = vld [vmem:[%s1 + $0x98] sm:$0xff]
  %v151 = vld [vmem:[%s1 + $0xa0] sm:$0xff]
  %v152 = vld [vmem:[%s1 + $0xa8] sm:$0xff]
  %v153 = vld [vmem:[%s1 + $0xb0] sm:$0xff]
  %v154 = vld [vmem:[%s1 + $0xb8] sm:$0xff]
  %v155 = vld [vmem:[%s1 + $0xc0] sm:$0xff]
  %v156 = vld [vmem:[%s1 + $0xc8] sm:$0xff]
  %v157 = vld [vmem:[%s1 + $0xd0] sm:$0xff]
  %v158 = vld [vmem:[%s1 + $0xd8] sm:$0xff]
  %v159 = vld [vmem:[%s1 + $0xe0] sm:$0xff]
  %v160 = vld [vmem:[%s1 + $0xe8] sm:$0xff]
  %v161 = vld [vmem:[%s1 + $0xf0] sm:$0xff]
  %v162 = vld [vmem:[%s1 + $0xf8] sm:$0xff]
  %v163 = vld [vmem:[%s1 + $0x100] sm:$0xff]
  %v164 = vld [vmem:[%s1 + $0x108] sm:$0xff]
  %v165 = vld [vmem:[%s1 + $0x110] sm:$0xff]
  %v166 = vld [vmem:[%s1 + $0x118] sm:$0xff]
  %v167 = vld [vmem:[%s1 + $0x120] sm:$0xff]
  %v168 = vld [vmem:[%s1 + $0x128] sm:$0xff]
  %v169 = vld [vmem:[%s1 + $0x130] sm:$0xff]
  %v170 = vld [vmem:[%s1 + $0x138] sm:$0xff]
  %v171 = vld [vmem:[%s1 + $0x140] sm:$0xff]
  %v172 = vld [vmem:[%s1 + $0x148] sm:$0xff]
  %v173 = vld [vmem:[%s1 + $0x150] sm:$0xff]
  %v174 = vld [vmem:[%s1 + $0x158] sm:$0xff]
  %v175 = vld [vmem:[%s1 + $0x160] sm:$0xff]
  %v176 = vld [vmem:[%s1 + $0x168] sm:$0xff]
  %v177 = vld [vmem:[%s1 + $0x170] sm:$0xff]
  %v178 = vld [vmem:[%s1 + $0x178] sm:$0xff]
  %v179 = vld [vmem:[%s1 + $0x180] sm:$0xff]
  %v180 = vld [vmem:[%s1 + $0x188] sm:$0xff]
  %v181 = vld [vmem:[%s1 + $0x190] sm:$0xff]
  %v182 = vld [vmem:[%s1 + $0x198] sm:$0xff]
  %v183 = vld [vmem:[%s1 + $0x1a0] sm:$0xff]
  %v184 = vld [vmem:[%s1 + $0x1a8] sm:$0xff]
  %v185 = vld [vmem:[%s1 + $0x1b0] sm:$0xff]
  %v186 = vld [vmem:[%s1 + $0x1b8] sm:$0xff]
  %v187 = vld [vmem:[%s1 + $0x1c0] sm:$0xff]
  %v188 = vld [vmem:[%s1 + $0x1c8] sm:$0xff]
  %v189 = vld [vmem:[%s1 + $0x1d0] sm:$0xff]
  %v190 = vld [vmem:[%s1 + $0x1d8] sm:$0xff]
  %v191 = vld [vmem:[%s1 + $0x1e0] sm:$0xff]
  %v192 = vld [vmem:[%s1 + $0x1e8] sm:$0xff]
  %v193 = vld [vmem:[%s1 + $0x1f0] sm:$0xff]
  %v194 = vld [vmem:[%s1 + $0x1f8] sm:$0xff]
  %195 = vmatprep.subr.mxu0 0.0
  %196 = vmatpush1.msra.mxu0 %v131
  %197 = vmatprep.subr.mxu0 0.0
  %198 = vmatpush1.msra.mxu0 %v132
  %199 = vmatprep.subr.mxu0 0.0
  %200 = vmatpush1.msra.mxu0 %v133
  %201 = vmatprep.subr.mxu0 0.0
  %202 = vmatpush1.msra.mxu0 %v134
  %203 = vmatprep.subr.mxu0 0.0
  %204 = vmatpush1.msra.mxu0 %v135
  %205 = vmatprep.subr.mxu0 0.0
  %206 = vmatpush1.msra.mxu0 %v136
  %207 = vmatprep.subr.mxu0 0.0
  %208 = vmatpush1.msra.mxu0 %v137
  %209 = vmatprep.subr.mxu0 0.0
  %210 = vmatpush1.msra.mxu0 %v138
  %211 = vmatprep.subr.mxu0 0.0
  %212 = vmatpush1.msra.mxu0 %v139
  %213 = vmatprep.subr.mxu0 0.0
  %214 = vmatpush1.msra.mxu0 %v140
  %215 = vmatprep.subr.mxu0 0.0
  %216 = vmatpush1.msra.mxu0 %v141
  %217 = vmatprep.subr.mxu0 0.0
  %218 = vmatpush1.msra.mxu0 %v142
  %219 = vmatprep.subr.mxu0 0.0
  %220 = vmatpush1.msra.mxu0 %v143
  %221 = vmatprep.subr.mxu0 0.0
  %222 = vmatpush1.msra.mxu0 %v144
  %223 = vmatprep.subr.mxu0 0.0
  %224 = vmatpush1.msra.mxu0 %v145
  %225 = vmatprep.subr.mxu0 0.0
  %226 = vmatpush1.msra.mxu0 %v146
  %227 = vmatprep.subr.mxu0 0.0
  %228 = vmatpush1.msra.mxu0 %v147
  %229 = vmatprep.subr.mxu0 0.0
  %230 = vmatpush1.msra.mxu0 %v148
  %231 = vmatprep.subr.mxu0 0.0
  %232 = vmatpush1.msra.mxu0 %v149
  %233 = vmatprep.subr.mxu0 0.0
  %234 = vmatpush1.msra.mxu0 %v150
  %235 = vmatprep.subr.mxu0 0.0
  %236 = vmatpush1.msra.mxu0 %v151
  %237 = vmatprep.subr.mxu0 0.0
  %238 = vmatpush1.msra.mxu0 %v152
  %239 = vmatprep.subr.mxu0 0.0
  %240 = vmatpush1.msra.mxu0 %v153
  %241 = vmatprep.subr.mxu0 0.0
  %242 = vmatpush1.msra.mxu0 %v154
  %243 = vmatprep.subr.mxu0 0.0
  %244 = vmatpush1.msra.mxu0 %v155
  %245 = vmatprep.subr.mxu0 0.0
  %246 = vmatpush1.msra.mxu0 %v156
  %247 = vmatprep.subr.mxu0 0.0
  %248 = vmatpush1.msra.mxu0 %v157
  %249 = vmatprep.subr.mxu0 0.0
  %250 = vmatpush1.msra.mxu0 %v158
  %251 = vmatprep.subr.mxu0 0.0
  %252 = vmatpush1.msra.mxu0 %v159
  %253 = vmatprep.subr.mxu0 0.0
  %254 = vmatpush1.msra.mxu0 %v160
  %255 = vmatprep.subr.mxu0 0.0
  %256 = vmatpush1.msra.mxu0 %v161
  %257 = vmatprep.subr.mxu0 0.0
  %258 = vmatpush1.msra.mxu0 %v162
  %259 = vmatprep.mubr.f32.mxu0 %v116
  %260 = vmatmul.mubr.f32.gmra.mrb[0].mxu0 %v115
  %v261 = vpop.f32.mrb[0].mxu0
  %v262 = vadd.f32 0.0, %v261
  %v263 = vpop.f32.mrb[0].mxu0
  %264 = vmatprep.mubr.f32.mxu0 %v120
  %265 = vmatmul.mubr.f32.gmra.mrb[0].mxu0 %v119
  %v266 = vpop.f32.mrb[0].mxu0
  %v267 = vadd.f32 0.0, %v266
  %v268 = vpop.f32.mrb[0].mxu0
  %269 = vmatprep.mubr.f32.mxu0 %v124
  %270 = vmatmul.mubr.f32.gmra.mrb[0].mxu0 %v123
  %v271 = vpop.f32.mrb[0].mxu0
  %v272 = vadd.f32 0.0, %v271
  %v273 = vpop.f32.mrb[0].mxu0
  %274 = vmatprep.mubr.f32.mxu0 %v128
  %275 = vmatmul.mubr.f32.gmra.mrb[0].mxu0 %v127
  %v276 = vpop.f32.mrb[0].mxu0
  %v277 = vadd.f32 0.0, %v276
  %v278 = vpop.f32.mrb[0].mxu0
  %279 = vdwg.mxu0
  %280 = vmatprep.subr.mxu0 0.0
  %281 = vmatpush1.msra.mxu0 %v163
  %282 = vmatprep.subr.mxu0 0.0
  %283 = vmatpush1.msra.mxu0 %v164
  %284 = vmatprep.subr.mxu0 0.0
  %285 = vmatpush1.msra.mxu0 %v165
  %286 = vmatprep.subr.mxu0 0.0
  %287 = vmatpush1.msra.mxu0 %v166
  %288 = vmatprep.subr.mxu0 0.0
  %289 = vmatpush1.msra.mxu0 %v167
  %290 = vmatprep.subr.mxu0 0.0
  %291 = vmatpush1.msra.mxu0 %v168
  %292 = vmatprep.subr.mxu0 0.0
  %293 = vmatpush1.msra.mxu0 %v169
  %294 = vmatprep.subr.mxu0 0.0
  %295 = vmatpush1.msra.mxu0 %v170
  %296 = vmatprep.subr.mxu0 0.0
  %297 = vmatpush1.msra.mxu0 %v171
  %298 = vmatprep.subr.mxu0 0.0
  %299 = vmatpush1.msra.mxu0 %v172
  %300 = vmatprep.subr.mxu0 0.0
  %301 = vmatpush1.msra.mxu0 %v173
  %302 = vmatprep.subr.mxu0 0.0
  %303 = vmatpush1.msra.mxu0 %v174
  %304 = vmatprep.subr.mxu0 0.0
  %305 = vmatpush1.msra.mxu0 %v175
  %306 = vmatprep.subr.mxu0 0.0
  %307 = vmatpush1.msra.mxu0 %v176
  %308 = vmatprep.subr.mxu0 0.0
  %309 = vmatpush1.msra.mxu0 %v177
  %310 = vmatprep.subr.mxu0 0.0
  %311 = vmatpush1.msra.mxu0 %v178
  %312 = vmatprep.subr.mxu0 0.0
  %313 = vmatpush1.msra.mxu0 %v179
  %314 = vmatprep.subr.mxu0 0.0
  %315 = vmatpush1.msra.mxu0 %v180
  %316 = vmatprep.subr.mxu0 0.0
  %317 = vmatpush1.msra.mxu0 %v181
  %318 = vmatprep.subr.mxu0 0.0
  %319 = vmatpush1.msra.mxu0 %v182
  %320 = vmatprep.subr.mxu0 0.0
  %321 = vmatpush1.msra.mxu0 %v183
  %322 = vmatprep.subr.mxu0 0.0
  %323 = vmatpush1.msra.mxu0 %v184
  %324 = vmatprep.subr.mxu0 0.0
  %325 = vmatpush1.msra.mxu0 %v185
  %326 = vmatprep.subr.mxu0 0.0
  %327 = vmatpush1.msra.mxu0 %v186
  %328 = vmatprep.subr.mxu0 0.0
  %329 = vmatpush1.msra.mxu0 %v187
  %330 = vmatprep.subr.mxu0 0.0
  %331 = vmatpush1.msra.mxu0 %v188
  %332 = vmatprep.subr.mxu0 0.0
  %333 = vmatpush1.msra.mxu0 %v189
  %334 = vmatprep.subr.mxu0 0.0
  %335 = vmatpush1.msra.mxu0 %v190
  %336 = vmatprep.subr.mxu0 0.0
  %337 = vmatpush1.msra.mxu0 %v191
  %338 = vmatprep.subr.mxu0 0.0
  %339 = vmatpush1.msra.mxu0 %v192
  %340 = vmatprep.subr.mxu0 0.0
  %341 = vmatpush1.msra.mxu0 %v193
  %342 = vmatprep.subr.mxu0 0.0
  %343 = vmatpush1.msra.mxu0 %v194
  %344 = vmatprep.mubr.f32.mxu0 %v118
  %345 = vmatmul.mubr.f32.gmra.mrb[0].mxu0 %v117
  %v346 = vpop.f32.mrb[0].mxu0
  %v347 = vadd.f32 %v262, %v346
  %v348 = vpop.f32.mrb[0].mxu0
  %349 = vmatprep.mubr.f32.mxu0 %v122
  %350 = vmatmul.mubr.f32.gmra.mrb[0].mxu0 %v121
  %v351 = vpop.f32.mrb[0].mxu0
  %v352 = vadd.f32 %v267, %v351
  %v353 = vpop.f32.mrb[0].mxu0
  %354 = vmatprep.mubr.f32.mxu0 %v126
  %355 = vmatmul.mubr.f32.gmra.mrb[0].mxu0 %v125
  %v356 = vpop.f32.mrb[0].mxu0
  %v357 = vadd.f32 %v272, %v356
  %v358 = vpop.f32.mrb[0].mxu0
  %359 = vmatprep.mubr.f32.mxu0 %v130
  %360 = vmatmul.mubr.f32.gmra.mrb[0].mxu0 %v129
  %v361 = vpop.f32.mrb[0].mxu0
  %v362 = vadd.f32 %v277, %v361
  %v363 = vpop.f32.mrb[0].mxu0
  %364 = vdwg.mxu0
  %v365 = vld [vmem:[%s4] sm:$0x1]
  %v367 = vlaneseq
  %v368 = vshrl.u32 %v367, 7
  %v369 = vsub.s32 0, %v368
  %v370 = vrot.slane %v365, %v369
  %v372 = vmul.f32 %v347, %v370
  %v373 = vmul.f32 %v352, %v370
  %v374 = vmul.f32 %v357, %v370
  %v375 = vmul.f32 %v362, %v370
  %v376 = vld [vmem:[%s5] sm:$0x1]
  %v378 = vlaneseq
  %v379 = vshrl.u32 %v378, 7
  %v380 = vsub.s32 0, %v379
  %v381 = vrot.slane %v376, %v380
  %v383 = vadd.f32 %v372, %v381
  %v384 = vadd.f32 %v373, %v381
  %v385 = vadd.f32 %v374, %v381
  %v386 = vadd.f32 %v375, %v381
  %v387 = vmax.f32 %v383, 0.0
  %v388 = vmax.f32 %v384, 0.0
  %v389 = vmax.f32 %v385, 0.0
  %v390 = vmax.f32 %v386, 0.0
  %391 = vst [vmem:[%s6] sm:$0xff] %v387
  %392 = vst [vmem:[%s6 + $0x8] sm:$0xff] %v388
  %393 = vst [vmem:[%s6 + $0x10] sm:$0xff] %v389
  %394 = vst [vmem:[%s6 + $0x18] sm:$0xff] %v390
  // Predicated region
  $region26: #{_lambda_.42} parent=0 // pred_check
    _
  $region27: #{_lambda_.42} parent=0 // pred_check_branch
    %396 = sbr.rel (0) target = $region29
  $region28: #{_lambda_.42} parent=0 // pred_region
    _
  $region29: #{_lambda_.42} parent=0 // pred_fallthru
    _
  // Predicated region
  $region30: #{_lambda_.42} parent=0 // pred_check
    _
  $region31: #{_lambda_.42} parent=0 // pred_check_branch
    %398 = sbr.rel (0) target = $region33
  $region32: #{_lambda_.42} parent=0 // pred_region
    _
  $region33: #{_lambda_.42} parent=0 // pred_fallthru
    _

// kernel: _lambda_.43
$region0: #{_lambda_.43}
  #allocation0 [shape = 'u32[]', space=smem, size = 0x4, offset = 0x4, fixed_abs, tag = 'smem constant byte address 0x4 - core index']
  #allocation1 [shape = 'u32[144,128]{1,0:T(1,128)}', space=vmem, size = 0x12000, scoped, tag = 'internal scratch']
  %s0 = inlined_call_operand.hbm [shape: f32[32,1152], index: 0, kind: input, shape index: {}]
  %s1 = inlined_call_operand.vmem [shape: f32[1152,128], index: 1, kind: input, shape index: {}]
  %s2 = inlined_call_operand.vmem [shape: f32[1,128], index: 2, kind: input, shape index: {}]
  %s3 = inlined_call_operand.vmem [shape: f32[1,128], index: 3, kind: input, shape index: {}]
  %s4 = inlined_call_operand.vmem [shape: f32[32,128], index: 4, kind: output, shape index: {}]
  %s5 = sld [smem:[#allocation0]]
  $region30: #{_lambda_.43} parent=0
    _
  %s7 = ssub.s32 1, %s5
  %s8 = scalar_select 0, %s7, %s5
  $region1: #{_lambda_.43} parent=0
    #allocation2 [shape = 'u8[147456]{0}', space=vmem, size = 0x24000, scoped, tag = 'input window, operand 0, single buffered']
    #allocation3 [shape = 's32[1]{0}', space=sflag, size = 0x4, scoped, tag = 'scoped memory for _lambda_.43']
    %9 = vsyncpa [#allocation3], 0
    // Predicated region
    $region2: #{_lambda_.43} parent=1 // pred_check
      _
    $region3: #{_lambda_.43} parent=1 // pred_check_branch
      %11 = sbr.rel (0) target = $region5
    $region4: #{_lambda_.43} parent=1 // pred_region
      %s13 = ssub.s32 4608, 4608
      %14 = vsyncadd [#allocation3], %s13
      %s15 = sshll.u32 [#allocation2], 4
      %s16 = int_to_ptr.vmem [resolvable:$true] %s15
      %21 = dma.hbm_to_vmem [thread:$0]  %s0, 4608, %s16, [#allocation3], 1152, 1152, 72
    $region5: #{_lambda_.43} parent=1 // pred_fallthru
      _
    // Predicated region
    $region6: #{_lambda_.43} parent=1 // pred_check
      _
    $region7: #{_lambda_.43} parent=1 // pred_check_branch
      %23 = sbr.rel (0) target = $region9
    $region8: #{_lambda_.43} parent=1 // pred_region
      _
    $region9: #{_lambda_.43} parent=1 // pred_fallthru
      _
    // Predicated region
    $region10: #{_lambda_.43} parent=1 // pred_check
      _
    $region11: #{_lambda_.43} parent=1 // pred_check_branch
      %25 = sbr.rel (0) target = $region13
    $region12: #{_lambda_.43} parent=1 // pred_region
      _
    $region13: #{_lambda_.43} parent=1 // pred_fallthru
      _
    // Predicated region
    $region14: #{_lambda_.43} parent=1 // pred_check
      _
    $region15: #{_lambda_.43} parent=1 // pred_check_branch
      %27 = sbr.rel (0) target = $region17
    $region16: #{_lambda_.43} parent=1 // pred_region
      _
    $region17: #{_lambda_.43} parent=1 // pred_fallthru
      _
    // Predicated region
    $region18: #{_lambda_.43} parent=1 // pred_check
      _
    $region19: #{_lambda_.43} parent=1 // pred_check_branch
      %29 = sbr.rel (0) target = $region21
    $region20: #{_lambda_.43} parent=1 // pred_region
      %30 = dma.done [#allocation3], 4608
    $region21: #{_lambda_.43} parent=1 // pred_fallthru
      _
    %v31 = vld [vmem:[#allocation2] sm:$0xff]
    %v32 = vld [vmem:[#allocation2 + $0x8] sm:$0xff]
    %v33 = vld [vmem:[#allocation2 + $0x10] sm:$0xff]
    %v34 = vld [vmem:[#allocation2 + $0x18] sm:$0xff]
    %v35 = vld [vmem:[#allocation2 + $0x20] sm:$0xff]
    %v36 = vld [vmem:[#allocation2 + $0x28] sm:$0xff]
    %v37 = vld [vmem:[#allocation2 + $0x30] sm:$0xff]
    %v38 = vld [vmem:[#allocation2 + $0x38] sm:$0xff]
    %v39 = vld [vmem:[#allocation2 + $0x40] sm:$0xff]
    %v40 = vld [vmem:[#allocation2 + $0x48] sm:$0xff]
    %v41 = vld [vmem:[#allocation2 + $0x50] sm:$0xff]
    %v42 = vld [vmem:[#allocation2 + $0x58] sm:$0xff]
    %v43 = vld [vmem:[#allocation2 + $0x60] sm:$0xff]
    %v44 = vld [vmem:[#allocation2 + $0x68] sm:$0xff]
    %v45 = vld [vmem:[#allocation2 + $0x70] sm:$0xff]
    %v46 = vld [vmem:[#allocation2 + $0x78] sm:$0xff]
    %v47 = vld [vmem:[#allocation2 + $0x80] sm:$0xff]
    %v48 = vld [vmem:[#allocation2 + $0x88] sm:$0xff]
    %v49 = vld [vmem:[#allocation2 + $0x90] sm:$0xff]
    %v50 = vld [vmem:[#allocation2 + $0x98] sm:$0xff]
    %v51 = vld [vmem:[#allocation2 + $0xa0] sm:$0xff]
    %v52 = vld [vmem:[#allocation2 + $0xa8] sm:$0xff]
    %v53 = vld [vmem:[#allocation2 + $0xb0] sm:$0xff]
    %v54 = vld [vmem:[#allocation2 + $0xb8] sm:$0xff]
    %v55 = vld [vmem:[#allocation2 + $0xc0] sm:$0xff]
    %v56 = vld [vmem:[#allocation2 + $0xc8] sm:$0xff]
    %v57 = vld [vmem:[#allocation2 + $0xd0] sm:$0xff]
    %v58 = vld [vmem:[#allocation2 + $0xd8] sm:$0xff]
    %v59 = vld [vmem:[#allocation2 + $0xe0] sm:$0xff]
    %v60 = vld [vmem:[#allocation2 + $0xe8] sm:$0xff]
    %v61 = vld [vmem:[#allocation2 + $0xf0] sm:$0xff]
    %v62 = vld [vmem:[#allocation2 + $0xf8] sm:$0xff]
    %v63 = vld [vmem:[#allocation2 + $0x100] sm:$0xff]
    %v64 = vld [vmem:[#allocation2 + $0x108] sm:$0xff]
    %v65 = vld [vmem:[#allocation2 + $0x110] sm:$0xff]
    %v66 = vld [vmem:[#allocation2 + $0x118] sm:$0xff]
    %v67 = vld [vmem:[%s1] sm:$0xff]
    %v68 = vld [vmem:[%s1 + $0x8] sm:$0xff]
    %v69 = vld [vmem:[%s1 + $0x10] sm:$0xff]
    %v70 = vld [vmem:[%s1 + $0x18] sm:$0xff]
    %v71 = vld [vmem:[%s1 + $0x20] sm:$0xff]
    %v72 = vld [vmem:[%s1 + $0x28] sm:$0xff]
    %v73 = vld [vmem:[%s1 + $0x30] sm:$0xff]
    %v74 = vld [vmem:[%s1 + $0x38] sm:$0xff]
    %v75 = vld [vmem:[%s1 + $0x40] sm:$0xff]
    %v76 = vld [vmem:[%s1 + $0x48] sm:$0xff]
    %v77 = vld [vmem:[%s1 + $0x50] sm:$0xff]
    %v78 = vld [vmem:[%s1 + $0x58] sm:$0xff]
    %v79 = vld [vmem:[%s1 + $0x60] sm:$0xff]
    %v80 = vld [vmem:[%s1 + $0x68] sm:$0xff]
    %v81 = vld [vmem:[%s1 + $0x70] sm:$0xff]
    %v82 = vld [vmem:[%s1 + $0x78] sm:$0xff]
    %v83 = vld [vmem:[%s1 + $0x80] sm:$0xff]
    %v84 = vld [vmem:[%s1 + $0x88] sm:$0xff]
    %v85 = vld [vmem:[%s1 + $0x90] sm:$0xff]
    %v86 = vld [vmem:[%s1 + $0x98] sm:$0xff]
    %v87 = vld [vmem:[%s1 + $0xa0] sm:$0xff]
    %v88 = vld [vmem:[%s1 + $0xa8] sm:$0xff]
    %v89 = vld [vmem:[%s1 + $0xb0] sm:$0xff]
    %v90 = vld [vmem:[%s1 + $0xb8] sm:$0xff]
    %v91 = vld [vmem:[%s1 + $0xc0] sm:$0xff]
    %v92 = vld [vmem:[%s1 + $0xc8] sm:$0xff]
    %v93 = vld [vmem:[%s1 + $0xd0] sm:$0xff]
    %v94 = vld [vmem:[%s1 + $0xd8] sm:$0xff]
    %v95 = vld [vmem:[%s1 + $0xe0] sm:$0xff]
    %v96 = vld [vmem:[%s1 + $0xe8] sm:$0xff]
    %v97 = vld [vmem:[%s1 + $0xf0] sm:$0xff]
    %v98 = vld [vmem:[%s1 + $0xf8] sm:$0xff]
    %v99 = vld [vmem:[%s1 + $0x100] sm:$0xff]
    %v100 = vld [vmem:[%s1 + $0x108] sm:$0xff]
    %v101 = vld [vmem:[%s1 + $0x110] sm:$0xff]
    %v102 = vld [vmem:[%s1 + $0x118] sm:$0xff]
    %v103 = vld [vmem:[%s1 + $0x120] sm:$0xff]
    %v104 = vld [vmem:[%s1 + $0x128] sm:$0xff]
    %v105 = vld [vmem:[%s1 + $0x130] sm:$0xff]
    %v106 = vld [vmem:[%s1 + $0x138] sm:$0xff]
    %v107 = vld [vmem:[%s1 + $0x140] sm:$0xff]
    %v108 = vld [vmem:[%s1 + $0x148] sm:$0xff]
    %v109 = vld [vmem:[%s1 + $0x150] sm:$0xff]
    %v110 = vld [vmem:[%s1 + $0x158] sm:$0xff]
    %v111 = vld [vmem:[%s1 + $0x160] sm:$0xff]
    %v112 = vld [vmem:[%s1 + $0x168] sm:$0xff]
    %v113 = vld [vmem:[%s1 + $0x170] sm:$0xff]
    %v114 = vld [vmem:[%s1 + $0x178] sm:$0xff]
    %v115 = vld [vmem:[%s1 + $0x180] sm:$0xff]
    %v116 = vld [vmem:[%s1 + $0x188] sm:$0xff]
    %v117 = vld [vmem:[%s1 + $0x190] sm:$0xff]
    %v118 = vld [vmem:[%s1 + $0x198] sm:$0xff]
    %v119 = vld [vmem:[%s1 + $0x1a0] sm:$0xff]
    %v120 = vld [vmem:[%s1 + $0x1a8] sm:$0xff]
    %v121 = vld [vmem:[%s1 + $0x1b0] sm:$0xff]
    %v122 = vld [vmem:[%s1 + $0x1b8] sm:$0xff]
    %v123 = vld [vmem:[%s1 + $0x1c0] sm:$0xff]
    %v124 = vld [vmem:[%s1 + $0x1c8] sm:$0xff]
    %v125 = vld [vmem:[%s1 + $0x1d0] sm:$0xff]
    %v126 = vld [vmem:[%s1 + $0x1d8] sm:$0xff]
    %v127 = vld [vmem:[%s1 + $0x1e0] sm:$0xff]
    %v128 = vld [vmem:[%s1 + $0x1e8] sm:$0xff]
    %v129 = vld [vmem:[%s1 + $0x1f0] sm:$0xff]
    %v130 = vld [vmem:[%s1 + $0x1f8] sm:$0xff]
    %v131 = vld [vmem:[%s1 + $0x200] sm:$0xff]
    %v132 = vld [vmem:[%s1 + $0x208] sm:$0xff]
    %v133 = vld [vmem:[%s1 + $0x210] sm:$0xff]
    %v134 = vld [vmem:[%s1 + $0x218] sm:$0xff]
    %v135 = vld [vmem:[%s1 + $0x220] sm:$0xff]
    %v136 = vld [vmem:[%s1 + $0x228] sm:$0xff]
    %v137 = vld [vmem:[%s1 + $0x230] sm:$0xff]
    %v138 = vld [vmem:[%s1 + $0x238] sm:$0xff]
    %v139 = vld [vmem:[%s1 + $0x240] sm:$0xff]
    %v140 = vld [vmem:[%s1 + $0x248] sm:$0xff]
    %v141 = vld [vmem:[%s1 + $0x250] sm:$0xff]
    %v142 = vld [vmem:[%s1 + $0x258] sm:$0xff]
    %v143 = vld [vmem:[%s1 + $0x260] sm:$0xff]
    %v144 = vld [vmem:[%s1 + $0x268] sm:$0xff]
    %v145 = vld [vmem:[%s1 + $0x270] sm:$0xff]
    %v146 = vld [vmem:[%s1 + $0x278] sm:$0xff]
    %v147 = vld [vmem:[%s1 + $0x280] sm:$0xff]
    %v148 = vld [vmem:[%s1 + $0x288] sm:$0xff]
    %v149 = vld [vmem:[%s1 + $0x290] sm:$0xff]
    %v150 = vld [vmem:[%s1 + $0x298] sm:$0xff]
    %v151 = vld [vmem:[%s1 + $0x2a0] sm:$0xff]
    %v152 = vld [vmem:[%s1 + $0x2a8] sm:$0xff]
    %v153 = vld [vmem:[%s1 + $0x2b0] sm:$0xff]
    %v154 = vld [vmem:[%s1 + $0x2b8] sm:$0xff]
    %v155 = vld [vmem:[%s1 + $0x2c0] sm:$0xff]
    %v156 = vld [vmem:[%s1 + $0x2c8] sm:$0xff]
    %v157 = vld [vmem:[%s1 + $0x2d0] sm:$0xff]
    %v158 = vld [vmem:[%s1 + $0x2d8] sm:$0xff]
    %v159 = vld [vmem:[%s1 + $0x2e0] sm:$0xff]
    %v160 = vld [vmem:[%s1 + $0x2e8] sm:$0xff]
    %v161 = vld [vmem:[%s1 + $0x2f0] sm:$0xff]
    %v162 = vld [vmem:[%s1 + $0x2f8] sm:$0xff]
    %v163 = vld [vmem:[%s1 + $0x300] sm:$0xff]
    %v164 = vld [vmem:[%s1 + $0x308] sm:$0xff]
    %v165 = vld [vmem:[%s1 + $0x310] sm:$0xff]
    %v166 = vld [vmem:[%s1 + $0x318] sm:$0xff]
    %v167 = vld [vmem:[%s1 + $0x320] sm:$0xff]
    %v168 = vld [vmem:[%s1 + $0x328] sm:$0xff]
    %v169 = vld [vmem:[%s1 + $0x330] sm:$0xff]
    %v170 = vld [vmem:[%s1 + $0x338] sm:$0xff]
    %v171 = vld [vmem:[%s1 + $0x340] sm:$0xff]
    %v172 = vld [vmem:[%s1 + $0x348] sm:$0xff]
    %v173 = vld [vmem:[%s1 + $0x350] sm:$0xff]
    %v174 = vld [vmem:[%s1 + $0x358] sm:$0xff]
    %v175 = vld [vmem:[%s1 + $0x360] sm:$0xff]
    %v176 = vld [vmem:[%s1 + $0x368] sm:$0xff]
    %v177 = vld [vmem:[%s1 + $0x370] sm:$0xff]
    %v178 = vld [vmem:[%s1 + $0x378] sm:$0xff]
    %v179 = vld [vmem:[%s1 + $0x380] sm:$0xff]
    %v180 = vld [vmem:[%s1 + $0x388] sm:$0xff]
    %v181 = vld [vmem:[%s1 + $0x390] sm:$0xff]
    %v182 = vld [vmem:[%s1 + $0x398] sm:$0xff]
    %v183 = vld [vmem:[%s1 + $0x3a0] sm:$0xff]
    %v184 = vld [vmem:[%s1 + $0x3a8] sm:$0xff]
    %v185 = vld [vmem:[%s1 + $0x3b0] sm:$0xff]
    %v186 = vld [vmem:[%s1 + $0x3b8] sm:$0xff]
    %v187 = vld [vmem:[%s1 + $0x3c0] sm:$0xff]
    %v188 = vld [vmem:[%s1 + $0x3c8] sm:$0xff]
    %v189 = vld [vmem:[%s1 + $0x3d0] sm:$0xff]
    %v190 = vld [vmem:[%s1 + $0x3d8] sm:$0xff]
    %v191 = vld [vmem:[%s1 + $0x3e0] sm:$0xff]
    %v192 = vld [vmem:[%s1 + $0x3e8] sm:$0xff]
    %v193 = vld [vmem:[%s1 + $0x3f0] sm:$0xff]
    %v194 = vld [vmem:[%s1 + $0x3f8] sm:$0xff]
    %v195 = vld [vmem:[%s1 + $0x400] sm:$0xff]
    %v196 = vld [vmem:[%s1 + $0x408] sm:$0xff]
    %v197 = vld [vmem:[%s1 + $0x410] sm:$0xff]
    %v198 = vld [vmem:[%s1 + $0x418] sm:$0xff]
    %v199 = vld [vmem:[%s1 + $0x420] sm:$0xff]
    %v200 = vld [vmem:[%s1 + $0x428] sm:$0xff]
    %v201 = vld [vmem:[%s1 + $0x430] sm:$0xff]
    %v202 = vld [vmem:[%s1 + $0x438] sm:$0xff]
    %v203 = vld [vmem:[%s1 + $0x440] sm:$0xff]
    %v204 = vld [vmem:[%s1 + $0x448] sm:$0xff]
    %v205 = vld [vmem:[%s1 + $0x450] sm:$0xff]
    %v206 = vld [vmem:[%s1 + $0x458] sm:$0xff]
    %v207 = vld [vmem:[%s1 + $0x460] sm:$0xff]
    %v208 = vld [vmem:[%s1 + $0x468] sm:$0xff]
    %v209 = vld [vmem:[%s1 + $0x470] sm:$0xff]
    %v210 = vld [vmem:[%s1 + $0x478] sm:$0xff]
    %211 = vmatprep.subr.mxu0 0.0
    %212 = vmatpush1.msra.mxu0 %v67
    %213 = vmatprep.subr.mxu0 0.0
    %214 = vmatpush1.msra.mxu0 %v68
    %215 = vmatprep.subr.mxu0 0.0
    %216 = vmatpush1.msra.mxu0 %v69
    %217 = vmatprep.subr.mxu0 0.0
    %218 = vmatpush1.msra.mxu0 %v70
    %219 = vmatprep.subr.mxu0 0.0
    %220 = vmatpush1.msra.mxu0 %v71
    %221 = vmatprep.subr.mxu0 0.0
    %222 = vmatpush1.msra.mxu0 %v72
    %223 = vmatprep.subr.mxu0 0.0
    %224 = vmatpush1.msra.mxu0 %v73
    %225 = vmatprep.subr.mxu0 0.0
    %226 = vmatpush1.msra.mxu0 %v74
    %227 = vmatprep.subr.mxu0 0.0
    %228 = vmatpush1.msra.mxu0 %v75
    %229 = vmatprep.subr.mxu0 0.0
    %230 = vmatpush1.msra.mxu0 %v76
    %231 = vmatprep.subr.mxu0 0.0
    %232 = vmatpush1.msra.mxu0 %v77
    %233 = vmatprep.subr.mxu0 0.0
    %234 = vmatpush1.msra.mxu0 %v78
    %235 = vmatprep.subr.mxu0 0.0
    %236 = vmatpush1.msra.mxu0 %v79
    %237 = vmatprep.subr.mxu0 0.0
    %238 = vmatpush1.msra.mxu0 %v80
    %239 = vmatprep.subr.mxu0 0.0
    %240 = vmatpush1.msra.mxu0 %v81
    %241 = vmatprep.subr.mxu0 0.0
    %242 = vmatpush1.msra.mxu0 %v82
    %243 = vmatprep.subr.mxu0 0.0
    %244 = vmatpush1.msra.mxu0 %v83
    %245 = vmatprep.subr.mxu0 0.0
    %246 = vmatpush1.msra.mxu0 %v84
    %247 = vmatprep.subr.mxu0 0.0
    %248 = vmatpush1.msra.mxu0 %v85
    %249 = vmatprep.subr.mxu0 0.0
    %250 = vmatpush1.msra.mxu0 %v86
    %251 = vmatprep.subr.mxu0 0.0
    %252 = vmatpush1.msra.mxu0 %v87
    %253 = vmatprep.subr.mxu0 0.0
    %254 = vmatpush1.msra.mxu0 %v88
    %255 = vmatprep.subr.mxu0 0.0
    %256 = vmatpush1.msra.mxu0 %v89
    %257 = vmatprep.subr.mxu0 0.0
    %258 = vmatpush1.msra.mxu0 %v90
    %259 = vmatprep.subr.mxu0 0.0
    %260 = vmatpush1.msra.mxu0 %v91
    %261 = vmatprep.subr.mxu0 0.0
    %262 = vmatpush1.msra.mxu0 %v92
    %263 = vmatprep.subr.mxu0 0.0
    %264 = vmatpush1.msra.mxu0 %v93
    %265 = vmatprep.subr.mxu0 0.0
    %266 = vmatpush1.msra.mxu0 %v94
    %267 = vmatprep.subr.mxu0 0.0
    %268 = vmatpush1.msra.mxu0 %v95
    %269 = vmatprep.subr.mxu0 0.0
    %270 = vmatpush1.msra.mxu0 %v96
    %271 = vmatprep.subr.mxu0 0.0
    %272 = vmatpush1.msra.mxu0 %v97
    %273 = vmatprep.subr.mxu0 0.0
    %274 = vmatpush1.msra.mxu0 %v98
    %275 = vmatprep.mubr.f32.mxu0 %v32
    %276 = vmatmul.mubr.f32.gmra.mrb[0].mxu0 %v31
    %v277 = vpop.f32.mrb[0].mxu0
    %v278 = vadd.f32 0.0, %v277
    %v279 = vpop.f32.mrb[0].mxu0
    %280 = vmatprep.mubr.f32.mxu0 %v41
    %281 = vmatmul.mubr.f32.gmra.mrb[0].mxu0 %v40
    %v282 = vpop.f32.mrb[0].mxu0
    %v283 = vadd.f32 0.0, %v282
    %v284 = vpop.f32.mrb[0].mxu0
    %285 = vmatprep.mubr.f32.mxu0 %v50
    %286 = vmatmul.mubr.f32.gmra.mrb[0].mxu0 %v49
    %v287 = vpop.f32.mrb[0].mxu0
    %v288 = vadd.f32 0.0, %v287
    %v289 = vpop.f32.mrb[0].mxu0
    %290 = vmatprep.mubr.f32.mxu0 %v59
    %291 = vmatmul.mubr.f32.gmra.mrb[0].mxu0 %v58
    %v292 = vpop.f32.mrb[0].mxu0
    %v293 = vadd.f32 0.0, %v292
    %v294 = vpop.f32.mrb[0].mxu0
    %295 = vdwg.mxu0
    %296 = vmatprep.subr.mxu0 0.0
    %297 = vmatpush1.msra.mxu0 %v99
    %298 = vmatprep.subr.mxu0 0.0
    %299 = vmatpush1.msra.mxu0 %v100
    %300 = vmatprep.subr.mxu0 0.0
    %301 = vmatpush1.msra.mxu0 %v101
    %302 = vmatprep.subr.mxu0 0.0
    %303 = vmatpush1.msra.mxu0 %v102
    %304 = vmatprep.subr.mxu0 0.0
    %305 = vmatpush1.msra.mxu0 %v103
    %306 = vmatprep.subr.mxu0 0.0
    %307 = vmatpush1.msra.mxu0 %v104
    %308 = vmatprep.subr.mxu0 0.0
    %309 = vmatpush1.msra.mxu0 %v105
    %310 = vmatprep.subr.mxu0 0.0
    %311 = vmatpush1.msra.mxu0 %v106
    %312 = vmatprep.subr.mxu0 0.0
    %313 = vmatpush1.msra.mxu0 %v107
    %314 = vmatprep.subr.mxu0 0.0
    %315 = vmatpush1.msra.mxu0 %v108
    %316 = vmatprep.subr.mxu0 0.0
    %317 = vmatpush1.msra.mxu0 %v109
    %318 = vmatprep.subr.mxu0 0.0
    %319 = vmatpush1.msra.mxu0 %v110
    %320 = vmatprep.subr.mxu0 0.0
    %321 = vmatpush1.msra.mxu0 %v111
    %322 = vmatprep.subr.mxu0 0.0
    %323 = vmatpush1.msra.mxu0 %v112
    %324 = vmatprep.subr.mxu0 0.0
    %325 = vmatpush1.msra.mxu0 %v113
    %326 = vmatprep.subr.mxu0 0.0
    %327 = vmatpush1.msra.mxu0 %v114
    %328 = vmatprep.subr.mxu0 0.0
    %329 = vmatpush1.msra.mxu0 %v115
    %330 = vmatprep.subr.mxu0 0.0
    %331 = vmatpush1.msra.mxu0 %v116
    %332 = vmatprep.subr.mxu0 0.0
    %333 = vmatpush1.msra.mxu0 %v117
    %334 = vmatprep.subr.mxu0 0.0
    %335 = vmatpush1.msra.mxu0 %v118
    %336 = vmatprep.subr.mxu0 0.0
    %337 = vmatpush1.msra.mxu0 %v119
    %338 = vmatprep.subr.mxu0 0.0
    %339 = vmatpush1.msra.mxu0 %v120
    %340 = vmatprep.subr.mxu0 0.0
    %341 = vmatpush1.msra.mxu0 %v121
    %342 = vmatprep.subr.mxu0 0.0
    %343 = vmatpush1.msra.mxu0 %v122
    %344 = vmatprep.subr.mxu0 0.0
    %345 = vmatpush1.msra.mxu0 %v123
    %346 = vmatprep.subr.mxu0 0.0
    %347 = vmatpush1.msra.mxu0 %v124
    %348 = vmatprep.subr.mxu0 0.0
    %349 = vmatpush1.msra.mxu0 %v125
    %350 = vmatprep.subr.mxu0 0.0
    %351 = vmatpush1.msra.mxu0 %v126
    %352 = vmatprep.subr.mxu0 0.0
    %353 = vmatpush1.msra.mxu0 %v127
    %354 = vmatprep.subr.mxu0 0.0
    %355 = vmatpush1.msra.mxu0 %v128
    %356 = vmatprep.subr.mxu0 0.0
    %357 = vmatpush1.msra.mxu0 %v129
    %358 = vmatprep.subr.mxu0 0.0
    %359 = vmatpush1.msra.mxu0 %v130
    %360 = vmatprep.mubr.f32.mxu0 %v34
    %361 = vmatmul.mubr.f32.gmra.mrb[0].mxu0 %v33
    %v362 = vpop.f32.mrb[0].mxu0
    %v363 = vadd.f32 %v278, %v362
    %v364 = vpop.f32.mrb[0].mxu0
    %365 = vmatprep.mubr.f32.mxu0 %v43
    %366 = vmatmul.mubr.f32.gmra.mrb[0].mxu0 %v42
    %v367 = vpop.f32.mrb[0].mxu0
    %v368 = vadd.f32 %v283, %v367
    %v369 = vpop.f32.mrb[0].mxu0
    %370 = vmatprep.mubr.f32.mxu0 %v52
    %371 = vmatmul.mubr.f32.gmra.mrb[0].mxu0 %v51
    %v372 = vpop.f32.mrb[0].mxu0
    %v373 = vadd.f32 %v288, %v372
    %v374 = vpop.f32.mrb[0].mxu0
    %375 = vmatprep.mubr.f32.mxu0 %v61
    %376 = vmatmul.mubr.f32.gmra.mrb[0].mxu0 %v60
    %v377 = vpop.f32.mrb[0].mxu0
    %v378 = vadd.f32 %v293, %v377
    %v379 = vpop.f32.mrb[0].mxu0
    %380 = vdwg.mxu0
    %381 = vmatprep.subr.mxu0 0.0
    %382 = vmatpush1.msra.mxu0 %v131
    %383 = vmatprep.subr.mxu0 0.0
    %384 = vmatpush1.msra.mxu0 %v132
    %385 = vmatprep.subr.mxu0 0.0
    %386 = vmatpush1.msra.mxu0 %v133
    %387 = vmatprep.subr.mxu0 0.0
    %388 = vmatpush1.msra.mxu0 %v134
    %389 = vmatprep.subr.mxu0 0.0
    %390 = vmatpush1.msra.mxu0 %v135
    %391 = vmatprep.subr.mxu0 0.0
    %392 = vmatpush1.msra.mxu0 %v136
    %393 = vmatprep.subr.mxu0 0.0
    %394 = vmatpush1.msra.mxu0 %v137
    %395 = vmatprep.subr.mxu0 0.0
    %396 = vmatpush1.msra.mxu0 %v138
    %397 = vmatprep.subr.mxu0 0.0
    %398 = vmatpush1.msra.mxu0 %v139
    %399 = vmatprep.subr.mxu0 0.0
    %400 = vmatpush1.msra.mxu0 %v140
    %401 = vmatprep.subr.mxu0 0.0
    %402 = vmatpush1.msra.mxu0 %v141
    %403 = vmatprep.subr.mxu0 0.0
    %404 = vmatpush1.msra.mxu0 %v142
    %405 = vmatprep.subr.mxu0 0.0
    %406 = vmatpush1.msra.mxu0 %v143
    %407 = vmatprep.subr.mxu0 0.0
    %408 = vmatpush1.msra.mxu0 %v144
    %409 = vmatprep.subr.mxu0 0.0
    %410 = vmatpush1.msra.mxu0 %v145
    %411 = vmatprep.subr.mxu0 0.0
    %412 = vmatpush1.msra.mxu0 %v146
    %413 = vmatprep.subr.mxu0 0.0
    %414 = vmatpush1.msra.mxu0 %v147
    %415 = vmatprep.subr.mxu0 0.0
    %416 = vmatpush1.msra.mxu0 %v148
    %417 = vmatprep.subr.mxu0 0.0
    %418 = vmatpush1.msra.mxu0 %v149
    %419 = vmatprep.subr.mxu0 0.0
    %420 = vmatpush1.msra.mxu0 %v150
    %421 = vmatprep.subr.mxu0 0.0
    %422 = vmatpush1.msra.mxu0 %v151
    %423 = vmatprep.subr.mxu0 0.0
    %424 = vmatpush1.msra.mxu0 %v152
    %425 = vmatprep.subr.mxu0 0.0
    %426 = vmatpush1.msra.mxu0 %v153
    %427 = vmatprep.subr.mxu0 0.0
    %428 = vmatpush1.msra.mxu0 %v154
    %429 = vmatprep.subr.mxu0 0.0
    %430 = vmatpush1.msra.mxu0 %v155
    %431 = vmatprep.subr.mxu0 0.0
    %432 = vmatpush1.msra.mxu0 %v156
    %433 = vmatprep.subr.mxu0 0.0
    %434 = vmatpush1.msra.mxu0 %v157
    %435 = vmatprep.subr.mxu0 0.0
    %436 = vmatpush1.msra.mxu0 %v158
    %437 = vmatprep.subr.mxu0 0.0
    %438 = vmatpush1.msra.mxu0 %v159
    %439 = vmatprep.subr.mxu0 0.0
    %440 = vmatpush1.msra.mxu0 %v160
    %441 = vmatprep.subr.mxu0 0.0
    %442 = vmatpush1.msra.mxu0 %v161
    %443 = vmatprep.subr.mxu0 0.0
    %444 = vmatpush1.msra.mxu0 %v162
    %445 = vmatprep.mubr.f32.mxu0 %v36
    %446 = vmatmul.mubr.f32.gmra.mrb[0].mxu0 %v35
    %v447 = vpop.f32.mrb[0].mxu0
    %v448 = vadd.f32 %v363, %v447
    %v449 = vpop.f32.mrb[0].mxu0
    %450 = vmatprep.mubr.f32.mxu0 %v45
    %451 = vmatmul.mubr.f32.gmra.mrb[0].mxu0 %v44
    %v452 = vpop.f32.mrb[0].mxu0
    %v453 = vadd.f32 %v368, %v452
    %v454 = vpop.f32.mrb[0].mxu0
    %455 = vmatprep.mubr.f32.mxu0 %v54
    %456 = vmatmul.mubr.f32.gmra.mrb[0].mxu0 %v53
    %v457 = vpop.f32.mrb[0].mxu0
    %v458 = vadd.f32 %v373, %v457
    %v459 = vpop.f32.mrb[0].mxu0
    %460 = vmatprep.mubr.f32.mxu0 %v63
    %461 = vmatmul.mubr.f32.gmra.mrb[0].mxu0 %v62
    %v462 = vpop.f32.mrb[0].mxu0
    %v463 = vadd.f32 %v378, %v462
    %v464 = vpop.f32.mrb[0].mxu0
    %465 = vdwg.mxu0
    %466 = vmatprep.subr.mxu0 0.0
    %467 = vmatpush1.msra.mxu0 %v163
    %468 = vmatprep.subr.mxu0 0.0
    %469 = vmatpush1.msra.mxu0 %v164
    %470 = vmatprep.subr.mxu0 0.0
    %471 = vmatpush1.msra.mxu0 %v165
    %472 = vmatprep.subr.mxu0 0.0
    %473 = vmatpush1.msra.mxu0 %v166
    %474 = vmatprep.subr.mxu0 0.0
    %475 = vmatpush1.msra.mxu0 %v167
    %476 = vmatprep.subr.mxu0 0.0
    %477 = vmatpush1.msra.mxu0 %v168
    %478 = vmatprep.subr.mxu0 0.0
    %479 = vmatpush1.msra.mxu0 %v169
    %480 = vmatprep.subr.mxu0 0.0
    %481 = vmatpush1.msra.mxu0 %v170
    %482 = vmatprep.subr.mxu0 0.0
    %483 = vmatpush1.msra.mxu0 %v171
    %484 = vmatprep.subr.mxu0 0.0
    %485 = vmatpush1.msra.mxu0 %v172
    %486 = vmatprep.subr.mxu0 0.0
    %487 = vmatpush1.msra.mxu0 %v173
    %488 = vmatprep.subr.mxu0 0.0
    %489 = vmatpush1.msra.mxu0 %v174
    %490 = vmatprep.subr.mxu0 0.0
    %491 = vmatpush1.msra.mxu0 %v175
    %492 = vmatprep.subr.mxu0 0.0
    %493 = vmatpush1.msra.mxu0 %v176
    %494 = vmatprep.subr.mxu0 0.0
    %495 = vmatpush1.msra.mxu0 %v177
    %496 = vmatprep.subr.mxu0 0.0
    %497 = vmatpush1.msra.mxu0 %v178
    %498 = vmatprep.subr.mxu0 0.0
    %499 = vmatpush1.msra.mxu0 %v179
    %500 = vmatprep.subr.mxu0 0.0
    %501 = vmatpush1.msra.mxu0 %v180
    %502 = vmatprep.subr.mxu0 0.0
    %503 = vmatpush1.msra.mxu0 %v181
    %504 = vmatprep.subr.mxu0 0.0
    %505 = vmatpush1.msra.mxu0 %v182
    %506 = vmatprep.subr.mxu0 0.0
    %507 = vmatpush1.msra.mxu0 %v183
    %508 = vmatprep.subr.mxu0 0.0
    %509 = vmatpush1.msra.mxu0 %v184
    %510 = vmatprep.subr.mxu0 0.0
    %511 = vmatpush1.msra.mxu0 %v185
    %512 = vmatprep.subr.mxu0 0.0
    %513 = vmatpush1.msra.mxu0 %v186
    %514 = vmatprep.subr.mxu0 0.0
    %515 = vmatpush1.msra.mxu0 %v187
    %516 = vmatprep.subr.mxu0 0.0
    %517 = vmatpush1.msra.mxu0 %v188
    %518 = vmatprep.subr.mxu0 0.0
    %519 = vmatpush1.msra.mxu0 %v189
    %520 = vmatprep.subr.mxu0 0.0
    %521 = vmatpush1.msra.mxu0 %v190
    %522 = vmatprep.subr.mxu0 0.0
    %523 = vmatpush1.msra.mxu0 %v191
    %524 = vmatprep.subr.mxu0 0.0
    %525 = vmatpush1.msra.mxu0 %v192
    %526 = vmatprep.subr.mxu0 0.0
    %527 = vmatpush1.msra.mxu0 %v193
    %528 = vmatprep.subr.mxu0 0.0
    %529 = vmatpush1.msra.mxu0 %v194
    %530 = vmatprep.mubr.f32.mxu0 %v38
    %531 = vmatmul.mubr.f32.gmra.mrb[0].mxu0 %v37
    %v532 = vpop.f32.mrb[0].mxu0
    %v533 = vadd.f32 %v448, %v532
    %v534 = vpop.f32.mrb[0].mxu0
    %535 = vmatprep.mubr.f32.mxu0 %v47
    %536 = vmatmul.mubr.f32.gmra.mrb[0].mxu0 %v46
    %v537 = vpop.f32.mrb[0].mxu0
    %v538 = vadd.f32 %v453, %v537
    %v539 = vpop.f32.mrb[0].mxu0
    %540 = vmatprep.mubr.f32.mxu0 %v56
    %541 = vmatmul.mubr.f32.gmra.mrb[0].mxu0 %v55
    %v542 = vpop.f32.mrb[0].mxu0
    %v543 = vadd.f32 %v458, %v542
    %v544 = vpop.f32.mrb[0].mxu0
    %545 = vmatprep.mubr.f32.mxu0 %v65
    %546 = vmatmul.mubr.f32.gmra.mrb[0].mxu0 %v64
    %v547 = vpop.f32.mrb[0].mxu0
    %v548 = vadd.f32 %v463, %v547
    %v549 = vpop.f32.mrb[0].mxu0
    %550 = vdwg.mxu0
    %551 = vmatprep.subr.mxu0 0.0
    %552 = vmatpush1.msra.mxu0 %v195
    %553 = vmatprep.subr.mxu0 0.0
    %554 = vmatpush1.msra.mxu0 %v196
    %555 = vmatprep.subr.mxu0 0.0
    %556 = vmatpush1.msra.mxu0 %v197
    %557 = vmatprep.subr.mxu0 0.0
    %558 = vmatpush1.msra.mxu0 %v198
    %559 = vmatprep.subr.mxu0 0.0
    %560 = vmatpush1.msra.mxu0 %v199
    %561 = vmatprep.subr.mxu0 0.0
    %562 = vmatpush1.msra.mxu0 %v200
    %563 = vmatprep.subr.mxu0 0.0
    %564 = vmatpush1.msra.mxu0 %v201
    %565 = vmatprep.subr.mxu0 0.0
    %566 = vmatpush1.msra.mxu0 %v202
    %567 = vmatprep.subr.mxu0 0.0
    %568 = vmatpush1.msra.mxu0 %v203
    %569 = vmatprep.subr.mxu0 0.0
    %570 = vmatpush1.msra.mxu0 %v204
    %571 = vmatprep.subr.mxu0 0.0
    %572 = vmatpush1.msra.mxu0 %v205
    %573 = vmatprep.subr.mxu0 0.0
    %574 = vmatpush1.msra.mxu0 %v206
    %575 = vmatprep.subr.mxu0 0.0
    %576 = vmatpush1.msra.mxu0 %v207
    %577 = vmatprep.subr.mxu0 0.0
    %578 = vmatpush1.msra.mxu0 %v208
    %579 = vmatprep.subr.mxu0 0.0
    %580 = vmatpush1.msra.mxu0 %v209
    %581 = vmatprep.subr.mxu0 0.0
    %582 = vmatpush1.msra.mxu0 %v210
    %583 = vmatprep.subr.mxu0 0.0
    %584 = vmatpush1.msra.mxu0 0.0
    %585 = vmatprep.subr.mxu0 0.0
    %586 = vmatpush1.msra.mxu0 0.0
    %587 = vmatprep.subr.mxu0 0.0
    %588 = vmatpush1.msra.mxu0 0.0
    %589 = vmatprep.subr.mxu0 0.0
    %590 = vmatpush1.msra.mxu0 0.0
    %591 = vmatprep.subr.mxu0 0.0
    %592 = vmatpush1.msra.mxu0 0.0
    %593 = vmatprep.subr.mxu0 0.0
    %594 = vmatpush1.msra.mxu0 0.0
    %595 = vmatprep.subr.mxu0 0.0
    %596 = vmatpush1.msra.mxu0 0.0
    %597 = vmatprep.subr.mxu0 0.0
    %598 = vmatpush1.msra.mxu0 0.0
    %599 = vmatprep.subr.mxu0 0.0
    %600 = vmatpush1.msra.mxu0 0.0
    %601 = vmatprep.subr.mxu0 0.0
    %602 = vmatpush1.msra.mxu0 0.0
    %603 = vmatprep.subr.mxu0 0.0
    %604 = vmatpush1.msra.mxu0 0.0
    %605 = vmatprep.subr.mxu0 0.0
    %606 = vmatpush1.msra.mxu0 0.0
    %607 = vmatprep.subr.mxu0 0.0
    %608 = vmatpush1.msra.mxu0 0.0
    %609 = vmatprep.subr.mxu0 0.0
    %610 = vmatpush1.msra.mxu0 0.0
    %611 = vmatprep.subr.mxu0 0.0
    %612 = vmatpush1.msra.mxu0 0.0
    %613 = vmatprep.subr.mxu0 0.0
    %614 = vmatpush1.msra.mxu0 0.0
    %615 = vmatprep.mubr.f32.mxu0 0.0
    %616 = vmatmul.mubr.f32.gmra.mrb[0].mxu0 %v39
    %v617 = vpop.f32.mrb[0].mxu0
    %v618 = vadd.f32 %v533, %v617
    %v619 = vpop.f32.mrb[0].mxu0
    %620 = vmatprep.mubr.f32.mxu0 0.0
    %621 = vmatmul.mubr.f32.gmra.mrb[0].mxu0 %v48
    %v622 = vpop.f32.mrb[0].mxu0
    %v623 = vadd.f32 %v538, %v622
    %v624 = vpop.f32.mrb[0].mxu0
    %625 = vmatprep.mubr.f32.mxu0 0.0
    %626 = vmatmul.mubr.f32.gmra.mrb[0].mxu0 %v57
    %v627 = vpop.f32.mrb[0].mxu0
    %v628 = vadd.f32 %v543, %v627
    %v629 = vpop.f32.mrb[0].mxu0
    %630 = vmatprep.mubr.f32.mxu0 0.0
    %631 = vmatmul.mubr.f32.gmra.mrb[0].mxu0 %v66
    %v632 = vpop.f32.mrb[0].mxu0
    %v633 = vadd.f32 %v548, %v632
    %v634 = vpop.f32.mrb[0].mxu0
    %635 = vdwg.mxu0
    %v636 = vld [vmem:[%s2] sm:$0x1]
    %v638 = vlaneseq
    %v639 = vshrl.u32 %v638, 7
    %v640 = vsub.s32 0, %v639
    %v641 = vrot.slane %v636, %v640
    %v643 = vmul.f32 %v618, %v641
    %v644 = vmul.f32 %v623, %v641
    %v645 = vmul.f32 %v628, %v641
    %v646 = vmul.f32 %v633, %v641
    %v647 = vld [vmem:[%s3] sm:$0x1]
    %v649 = vlaneseq
    %v650 = vshrl.u32 %v649, 7
    %v651 = vsub.s32 0, %v650
    %v652 = vrot.slane %v647, %v651
    %v654 = vadd.f32 %v643, %v652
    %v655 = vadd.f32 %v644, %v652
    %v656 = vadd.f32 %v645, %v652
    %v657 = vadd.f32 %v646, %v652
    %v658 = vmax.f32 %v654, 0.0
    %v659 = vmax.f32 %v655, 0.0
    %v660 = vmax.f32 %v656, 0.0
    %v661 = vmax.f32 %v657, 0.0
    %662 = vst [vmem:[%s4] sm:$0xff] %v658
    %663 = vst [vmem:[%s4 + $0x8] sm:$0xff] %v659
    %664 = vst [vmem:[%s4 + $0x10] sm:$0xff] %v660
    %665 = vst [vmem:[%s4 + $0x18] sm:$0xff] %v661
    // Predicated region
    $region22: #{_lambda_.43} parent=1 // pred_check
      _
    $region23: #{_lambda_.43} parent=1 // pred_check_branch
      %667 = sbr.rel (0) target = $region25
    $region24: #{_lambda_.43} parent=1 // pred_region
      _
    $region25: #{_lambda_.43} parent=1 // pred_fallthru
      _
    // Predicated region
    $region26: #{_lambda_.43} parent=1 // pred_check
      _
    $region27: #{_lambda_.43} parent=1 // pred_check_branch
      %669 = sbr.rel (0) target = $region29
    $region28: #{_lambda_.43} parent=1 // pred_region
      _
    $region29: #{_lambda_.43} parent=1 // pred_fallthru
      _
    %670 = vsyncpa [#allocation3], 1

// kernel: _lambda_.41
$region0: #{_lambda_.41}
  #allocation0 [shape = 'u32[]', space=smem, size = 0x4, offset = 0x4, fixed_abs, tag = 'smem constant byte address 0x4 - core index']
  #allocation1 [shape = 'u32[144,128]{1,0:T(1,128)}', space=vmem, size = 0x12000, scoped, tag = 'internal scratch']
  %s0 = inlined_call_operand.vmem [shape: f32[32,512], index: 0, kind: input, shape index: {}]
  %s1 = inlined_call_operand.vmem [shape: f32[512,256], index: 1, kind: input, shape index: {}]
  %s2 = inlined_call_operand.vmem [shape: f32[1,512], index: 2, kind: input, shape index: {}]
  %s3 = inlined_call_operand.vmem [shape: f32[1,512], index: 3, kind: input, shape index: {}]
  %s4 = inlined_call_operand.vmem [shape: f32[32,256], index: 4, kind: output, shape index: {}]
  %s5 = sld [smem:[#allocation0]]
  $region26: #{_lambda_.41} parent=0
    _
  %s7 = ssub.s32 1, %s5
  %s8 = scalar_select 0, %s7, %s5
  // Predicated region
  $region2: #{_lambda_.41} parent=0 // pred_check
    _
  $region3: #{_lambda_.41} parent=0 // pred_check_branch
    %10 = sbr.rel (0) target = $region5
  $region4: #{_lambda_.41} parent=0 // pred_region
    _
  $region5: #{_lambda_.41} parent=0 // pred_fallthru
    _
  // Predicated region
  $region6: #{_lambda_.41} parent=0 // pred_check
    _
  $region7: #{_lambda_.41} parent=0 // pred_check_branch
    %12 = sbr.rel (0) target = $region9
  $region8: #{_lambda_.41} parent=0 // pred_region
    _
  $region9: #{_lambda_.41} parent=0 // pred_fallthru
    _
  // Predicated region
  $region10: #{_lambda_.41} parent=0 // pred_check
    _
  $region11: #{_lambda_.41} parent=0 // pred_check_branch
    %14 = sbr.rel (0) target = $region13
  $region12: #{_lambda_.41} parent=0 // pred_region
    _
  $region13: #{_lambda_.41} parent=0 // pred_fallthru
    _
  // Predicated region
  $region14: #{_lambda_.41} parent=0 // pred_check
    _
  $region15: #{_lambda_.41} parent=0 // pred_check_branch
    %16 = sbr.rel (0) target = $region17
  $region16: #{_lambda_.41} parent=0 // pred_region
    _
  $region17: #{_lambda_.41} parent=0 // pred_fallthru
    _
  %v17 = vld [vmem:[%s0] sm:$0xff]
  %v18 = vld [vmem:[%s0 + $0x8] sm:$0xff]
  %v19 = vld [vmem:[%s0 + $0x10] sm:$0xff]
  %v20 = vld [vmem:[%s0 + $0x18] sm:$0xff]
  %v21 = vld [vmem:[%s0 + $0x20] sm:$0xff]
  %v22 = vld [vmem:[%s0 + $0x28] sm:$0xff]
  %v23 = vld [vmem:[%s0 + $0x30] sm:$0xff]
  %v24 = vld [vmem:[%s0 + $0x38] sm:$0xff]
  %v25 = vld [vmem:[%s0 + $0x40] sm:$0xff]
  %v26 = vld [vmem:[%s0 + $0x48] sm:$0xff]
  %v27 = vld [vmem:[%s0 + $0x50] sm:$0xff]
  %v28 = vld [vmem:[%s0 + $0x58] sm:$0xff]
  %v29 = vld [vmem:[%s0 + $0x60] sm:$0xff]
  %v30 = vld [vmem:[%s0 + $0x68] sm:$0xff]
  %v31 = vld [vmem:[%s0 + $0x70] sm:$0xff]
  %v32 = vld [vmem:[%s0 + $0x78] sm:$0xff]
  %v33 = vld [vmem:[%s2] sm:$0xf]
  %v35 = vlaneseq
  %v36 = vshrl.u32 %v35, 7
  %v37 = vsub.s32 0, %v36
  %v38 = vrot.slane %v33, %v37
  %v39 = vlaneseq
  %v40 = vshrl.u32 %v39, 7
  %v41 = vsub.s32 1, %v40
  %v42 = vrot.slane %v33, %v41
  %v43 = vlaneseq
  %v44 = vshrl.u32 %v43, 7
  %v45 = vsub.s32 2, %v44
  %v46 = vrot.slane %v33, %v45
  %v47 = vlaneseq
  %v48 = vshrl.u32 %v47, 7
  %v49 = vsub.s32 3, %v48
  %v50 = vrot.slane %v33, %v49
  %v55 = vmul.f32 %v17, %v38
  %v56 = vmul.f32 %v18, %v42
  %v57 = vmul.f32 %v19, %v46
  %v58 = vmul.f32 %v20, %v50
  %v59 = vmul.f32 %v21, %v38
  %v60 = vmul.f32 %v22, %v42
  %v61 = vmul.f32 %v23, %v46
  %v62 = vmul.f32 %v24, %v50
  %v63 = vmul.f32 %v25, %v38
  %v64 = vmul.f32 %v26, %v42
  %v65 = vmul.f32 %v27, %v46
  %v66 = vmul.f32 %v28, %v50
  %v67 = vmul.f32 %v29, %v38
  %v68 = vmul.f32 %v30, %v42
  %v69 = vmul.f32 %v31, %v46
  %v70 = vmul.f32 %v32, %v50
  %v71 = vld [vmem:[%s3] sm:$0xf]
  %v73 = vlaneseq
  %v74 = vshrl.u32 %v73, 7
  %v75 = vsub.s32 0, %v74
  %v76 = vrot.slane %v71, %v75
  %v77 = vlaneseq
  %v78 = vshrl.u32 %v77, 7
  %v79 = vsub.s32 1, %v78
  %v80 = vrot.slane %v71, %v79
  %v81 = vlaneseq
  %v82 = vshrl.u32 %v81, 7
  %v83 = vsub.s32 2, %v82
  %v84 = vrot.slane %v71, %v83
  %v85 = vlaneseq
  %v86 = vshrl.u32 %v85, 7
  %v87 = vsub.s32 3, %v86
  %v88 = vrot.slane %v71, %v87
  %v93 = vadd.f32 %v55, %v76
  %v94 = vadd.f32 %v56, %v80
  %v95 = vadd.f32 %v57, %v84
  %v96 = vadd.f32 %v58, %v88
  %v97 = vadd.f32 %v59, %v76
  %v98 = vadd.f32 %v60, %v80
  %v99 = vadd.f32 %v61, %v84
  %v100 = vadd.f32 %v62, %v88
  %v101 = vadd.f32 %v63, %v76
  %v102 = vadd.f32 %v64, %v80
  %v103 = vadd.f32 %v65, %v84
  %v104 = vadd.f32 %v66, %v88
  %v105 = vadd.f32 %v67, %v76
  %v106 = vadd.f32 %v68, %v80
  %v107 = vadd.f32 %v69, %v84
  %v108 = vadd.f32 %v70, %v88
  %v109 = vmax.f32 %v93, 0.0
  %v110 = vmax.f32 %v94, 0.0
  %v111 = vmax.f32 %v95, 0.0
  %v112 = vmax.f32 %v96, 0.0
  %v113 = vmax.f32 %v97, 0.0
  %v114 = vmax.f32 %v98, 0.0
  %v115 = vmax.f32 %v99, 0.0
  %v116 = vmax.f32 %v100, 0.0
  %v117 = vmax.f32 %v101, 0.0
  %v118 = vmax.f32 %v102, 0.0
  %v119 = vmax.f32 %v103, 0.0
  %v120 = vmax.f32 %v104, 0.0
  %v121 = vmax.f32 %v105, 0.0
  %v122 = vmax.f32 %v106, 0.0
  %v123 = vmax.f32 %v107, 0.0
  %v124 = vmax.f32 %v108, 0.0
  %v125 = vld [vmem:[%s1] sm:$0xff]
  %v126 = vld [vmem:[%s1 + $0x8] sm:$0xff]
  %v127 = vld [vmem:[%s1 + $0x10] sm:$0xff]
  %v128 = vld [vmem:[%s1 + $0x18] sm:$0xff]
  %v129 = vld [vmem:[%s1 + $0x20] sm:$0xff]
  %v130 = vld [vmem:[%s1 + $0x28] sm:$0xff]
  %v131 = vld [vmem:[%s1 + $0x30] sm:$0xff]
  %v132 = vld [vmem:[%s1 + $0x38] sm:$0xff]
  %v133 = vld [vmem:[%s1 + $0x40] sm:$0xff]
  %v134 = vld [vmem:[%s1 + $0x48] sm:$0xff]
  %v135 = vld [vmem:[%s1 + $0x50] sm:$0xff]
  %v136 = vld [vmem:[%s1 + $0x58] sm:$0xff]
  %v137 = vld [vmem:[%s1 + $0x60] sm:$0xff]
  %v138 = vld [vmem:[%s1 + $0x68] sm:$0xff]
  %v139 = vld [vmem:[%s1 + $0x70] sm:$0xff]
  %v140 = vld [vmem:[%s1 + $0x78] sm:$0xff]
  %v141 = vld [vmem:[%s1 + $0x80] sm:$0xff]
  %v142 = vld [vmem:[%s1 + $0x88] sm:$0xff]
  %v143 = vld [vmem:[%s1 + $0x90] sm:$0xff]
  %v144 = vld [vmem:[%s1 + $0x98] sm:$0xff]
  %v145 = vld [vmem:[%s1 + $0xa0] sm:$0xff]
  %v146 = vld [vmem:[%s1 + $0xa8] sm:$0xff]
  %v147 = vld [vmem:[%s1 + $0xb0] sm:$0xff]
  %v148 = vld [vmem:[%s1 + $0xb8] sm:$0xff]
  %v149 = vld [vmem:[%s1 + $0xc0] sm:$0xff]
  %v150 = vld [vmem:[%s1 + $0xc8] sm:$0xff]
  %v151 = vld [vmem:[%s1 + $0xd0] sm:$0xff]
  %v152 = vld [vmem:[%s1 + $0xd8] sm:$0xff]
  %v153 = vld [vmem:[%s1 + $0xe0] sm:$0xff]
  %v154 = vld [vmem:[%s1 + $0xe8] sm:$0xff]
  %v155 = vld [vmem:[%s1 + $0xf0] sm:$0xff]
  %v156 = vld [vmem:[%s1 + $0xf8] sm:$0xff]
  %v157 = vld [vmem:[%s1 + $0x100] sm:$0xff]
  %v158 = vld [vmem:[%s1 + $0x108] sm:$0xff]
  %v159 = vld [vmem:[%s1 + $0x110] sm:$0xff]
  %v160 = vld [vmem:[%s1 + $0x118] sm:$0xff]
  %v161 = vld [vmem:[%s1 + $0x120] sm:$0xff]
  %v162 = vld [vmem:[%s1 + $0x128] sm:$0xff]
  %v163 = vld [vmem:[%s1 + $0x130] sm:$0xff]
  %v164 = vld [vmem:[%s1 + $0x138] sm:$0xff]
  %v165 = vld [vmem:[%s1 + $0x140] sm:$0xff]
  %v166 = vld [vmem:[%s1 + $0x148] sm:$0xff]
  %v167 = vld [vmem:[%s1 + $0x150] sm:$0xff]
  %v168 = vld [vmem:[%s1 + $0x158] sm:$0xff]
  %v169 = vld [vmem:[%s1 + $0x160] sm:$0xff]
  %v170 = vld [vmem:[%s1 + $0x168] sm:$0xff]
  %v171 = vld [vmem:[%s1 + $0x170] sm:$0xff]
  %v172 = vld [vmem:[%s1 + $0x178] sm:$0xff]
  %v173 = vld [vmem:[%s1 + $0x180] sm:$0xff]
  %v174 = vld [vmem:[%s1 + $0x188] sm:$0xff]
  %v175 = vld [vmem:[%s1 + $0x190] sm:$0xff]
  %v176 = vld [vmem:[%s1 + $0x198] sm:$0xff]
  %v177 = vld [vmem:[%s1 + $0x1a0] sm:$0xff]
  %v178 = vld [vmem:[%s1 + $0x1a8] sm:$0xff]
  %v179 = vld [vmem:[%s1 + $0x1b0] sm:$0xff]
  %v180 = vld [vmem:[%s1 + $0x1b8] sm:$0xff]
  %v181 = vld [vmem:[%s1 + $0x1c0] sm:$0xff]
  %v182 = vld [vmem:[%s1 + $0x1c8] sm:$0xff]
  %v183 = vld [vmem:[%s1 + $0x1d0] sm:$0xff]
  %v184 = vld [vmem:[%s1 + $0x1d8] sm:$0xff]
  %v185 = vld [vmem:[%s1 + $0x1e0] sm:$0xff]
  %v186 = vld [vmem:[%s1 + $0x1e8] sm:$0xff]
  %v187 = vld [vmem:[%s1 + $0x1f0] sm:$0xff]
  %v188 = vld [vmem:[%s1 + $0x1f8] sm:$0xff]
  %v189 = vld [vmem:[%s1 + $0x200] sm:$0xff]
  %v190 = vld [vmem:[%s1 + $0x208] sm:$0xff]
  %v191 = vld [vmem:[%s1 + $0x210] sm:$0xff]
  %v192 = vld [vmem:[%s1 + $0x218] sm:$0xff]
  %v193 = vld [vmem:[%s1 + $0x220] sm:$0xff]
  %v194 = vld [vmem:[%s1 + $0x228] sm:$0xff]
  %v195 = vld [vmem:[%s1 + $0x230] sm:$0xff]
  %v196 = vld [vmem:[%s1 + $0x238] sm:$0xff]
  %v197 = vld [vmem:[%s1 + $0x240] sm:$0xff]
  %v198 = vld [vmem:[%s1 + $0x248] sm:$0xff]
  %v199 = vld [vmem:[%s1 + $0x250] sm:$0xff]
  %v200 = vld [vmem:[%s1 + $0x258] sm:$0xff]
  %v201 = vld [vmem:[%s1 + $0x260] sm:$0xff]
  %v202 = vld [vmem:[%s1 + $0x268] sm:$0xff]
  %v203 = vld [vmem:[%s1 + $0x270] sm:$0xff]
  %v204 = vld [vmem:[%s1 + $0x278] sm:$0xff]
  %v205 = vld [vmem:[%s1 + $0x280] sm:$0xff]
  %v206 = vld [vmem:[%s1 + $0x288] sm:$0xff]
  %v207 = vld [vmem:[%s1 + $0x290] sm:$0xff]
  %v208 = vld [vmem:[%s1 + $0x298] sm:$0xff]
  %v209 = vld [vmem:[%s1 + $0x2a0] sm:$0xff]
  %v210 = vld [vmem:[%s1 + $0x2a8] sm:$0xff]
  %v211 = vld [vmem:[%s1 + $0x2b0] sm:$0xff]
  %v212 = vld [vmem:[%s1 + $0x2b8] sm:$0xff]
  %v213 = vld [vmem:[%s1 + $0x2c0] sm:$0xff]
  %v214 = vld [vmem:[%s1 + $0x2c8] sm:$0xff]
  %v215 = vld [vmem:[%s1 + $0x2d0] sm:$0xff]
  %v216 = vld [vmem:[%s1 + $0x2d8] sm:$0xff]
  %v217 = vld [vmem:[%s1 + $0x2e0] sm:$0xff]
  %v218 = vld [vmem:[%s1 + $0x2e8] sm:$0xff]
  %v219 = vld [vmem:[%s1 + $0x2f0] sm:$0xff]
  %v220 = vld [vmem:[%s1 + $0x2f8] sm:$0xff]
  %v221 = vld [vmem:[%s1 + $0x300] sm:$0xff]
  %v222 = vld [vmem:[%s1 + $0x308] sm:$0xff]
  %v223 = vld [vmem:[%s1 + $0x310] sm:$0xff]
  %v224 = vld [vmem:[%s1 + $0x318] sm:$0xff]
  %v225 = vld [vmem:[%s1 + $0x320] sm:$0xff]
  %v226 = vld [vmem:[%s1 + $0x328] sm:$0xff]
  %v227 = vld [vmem:[%s1 + $0x330] sm:$0xff]
  %v228 = vld [vmem:[%s1 + $0x338] sm:$0xff]
  %v229 = vld [vmem:[%s1 + $0x340] sm:$0xff]
  %v230 = vld [vmem:[%s1 + $0x348] sm:$0xff]
  %v231 = vld [vmem:[%s1 + $0x350] sm:$0xff]
  %v232 = vld [vmem:[%s1 + $0x358] sm:$0xff]
  %v233 = vld [vmem:[%s1 + $0x360] sm:$0xff]
  %v234 = vld [vmem:[%s1 + $0x368] sm:$0xff]
  %v235 = vld [vmem:[%s1 + $0x370] sm:$0xff]
  %v236 = vld [vmem:[%s1 + $0x378] sm:$0xff]
  %v237 = vld [vmem:[%s1 + $0x380] sm:$0xff]
  %v238 = vld [vmem:[%s1 + $0x388] sm:$0xff]
  %v239 = vld [vmem:[%s1 + $0x390] sm:$0xff]
  %v240 = vld [vmem:[%s1 + $0x398] sm:$0xff]
  %v241 = vld [vmem:[%s1 + $0x3a0] sm:$0xff]
  %v242 = vld [vmem:[%s1 + $0x3a8] sm:$0xff]
  %v243 = vld [vmem:[%s1 + $0x3b0] sm:$0xff]
  %v244 = vld [vmem:[%s1 + $0x3b8] sm:$0xff]
  %v245 = vld [vmem:[%s1 + $0x3c0] sm:$0xff]
  %v246 = vld [vmem:[%s1 + $0x3c8] sm:$0xff]
  %v247 = vld [vmem:[%s1 + $0x3d0] sm:$0xff]
  %v248 = vld [vmem:[%s1 + $0x3d8] sm:$0xff]
  %v249 = vld [vmem:[%s1 + $0x3e0] sm:$0xff]
  %v250 = vld [vmem:[%s1 + $0x3e8] sm:$0xff]
  %v251 = vld [vmem:[%s1 + $0x3f0] sm:$0xff]
  %v252 = vld [vmem:[%s1 + $0x3f8] sm:$0xff]
  %253 = vmatprep.subr.mxu0 %v126
  %254 = vmatpush1.msra.mxu0 %v125
  %255 = vmatprep.subr.mxu0 %v128
  %256 = vmatpush1.msra.mxu0 %v127
  %257 = vmatprep.subr.mxu0 %v130
  %258 = vmatpush1.msra.mxu0 %v129
  %259 = vmatprep.subr.mxu0 %v132
  %260 = vmatpush1.msra.mxu0 %v131
  %261 = vmatprep.subr.mxu0 %v134
  %262 = vmatpush1.msra.mxu0 %v133
  %263 = vmatprep.subr.mxu0 %v136
  %264 = vmatpush1.msra.mxu0 %v135
  %265 = vmatprep.subr.mxu0 %v138
  %266 = vmatpush1.msra.mxu0 %v137
  %267 = vmatprep.subr.mxu0 %v140
  %268 = vmatpush1.msra.mxu0 %v139
  %269 = vmatprep.subr.mxu0 %v142
  %270 = vmatpush1.msra.mxu0 %v141
  %271 = vmatprep.subr.mxu0 %v144
  %272 = vmatpush1.msra.mxu0 %v143
  %273 = vmatprep.subr.mxu0 %v146
  %274 = vmatpush1.msra.mxu0 %v145
  %275 = vmatprep.subr.mxu0 %v148
  %276 = vmatpush1.msra.mxu0 %v147
  %277 = vmatprep.subr.mxu0 %v150
  %278 = vmatpush1.msra.mxu0 %v149
  %279 = vmatprep.subr.mxu0 %v152
  %280 = vmatpush1.msra.mxu0 %v151
  %281 = vmatprep.subr.mxu0 %v154
  %282 = vmatpush1.msra.mxu0 %v153
  %283 = vmatprep.subr.mxu0 %v156
  %284 = vmatpush1.msra.mxu0 %v155
  %285 = vmatprep.subr.mxu0 %v158
  %286 = vmatpush1.msra.mxu0 %v157
  %287 = vmatprep.subr.mxu0 %v160
  %288 = vmatpush1.msra.mxu0 %v159
  %289 = vmatprep.subr.mxu0 %v162
  %290 = vmatpush1.msra.mxu0 %v161
  %291 = vmatprep.subr.mxu0 %v164
  %292 = vmatpush1.msra.mxu0 %v163
  %293 = vmatprep.subr.mxu0 %v166
  %294 = vmatpush1.msra.mxu0 %v165
  %295 = vmatprep.subr.mxu0 %v168
  %296 = vmatpush1.msra.mxu0 %v167
  %297 = vmatprep.subr.mxu0 %v170
  %298 = vmatpush1.msra.mxu0 %v169
  %299 = vmatprep.subr.mxu0 %v172
  %300 = vmatpush1.msra.mxu0 %v171
  %301 = vmatprep.subr.mxu0 %v174
  %302 = vmatpush1.msra.mxu0 %v173
  %303 = vmatprep.subr.mxu0 %v176
  %304 = vmatpush1.msra.mxu0 %v175
  %305 = vmatprep.subr.mxu0 %v178
  %306 = vmatpush1.msra.mxu0 %v177
  %307 = vmatprep.subr.mxu0 %v180
  %308 = vmatpush1.msra.mxu0 %v179
  %309 = vmatprep.subr.mxu0 %v182
  %310 = vmatpush1.msra.mxu0 %v181
  %311 = vmatprep.subr.mxu0 %v184
  %312 = vmatpush1.msra.mxu0 %v183
  %313 = vmatprep.subr.mxu0 %v186
  %314 = vmatpush1.msra.mxu0 %v185
  %315 = vmatprep.subr.mxu0 %v188
  %316 = vmatpush1.msra.mxu0 %v187
  %317 = vmatprep.mubr.f32.mxu0 %v110
  %318 = vmatmul.mubr.f32.gmra.mrb[0].mxu0 %v109
  %v319 = vpop.f32.mrb[0].mxu0
  %v320 = vadd.f32 0.0, %v319
  %v321 = vpop.f32.mrb[0].mxu0
  %v322 = vadd.f32 0.0, %v321
  %323 = vmatprep.mubr.f32.mxu0 %v114
  %324 = vmatmul.mubr.f32.gmra.mrb[0].mxu0 %v113
  %v325 = vpop.f32.mrb[0].mxu0
  %v326 = vadd.f32 0.0, %v325
  %v327 = vpop.f32.mrb[0].mxu0
  %v328 = vadd.f32 0.0, %v327
  %329 = vmatprep.mubr.f32.mxu0 %v118
  %330 = vmatmul.mubr.f32.gmra.mrb[0].mxu0 %v117
  %v331 = vpop.f32.mrb[0].mxu0
  %v332 = vadd.f32 0.0, %v331
  %v333 = vpop.f32.mrb[0].mxu0
  %v334 = vadd.f32 0.0, %v333
  %335 = vmatprep.mubr.f32.mxu0 %v122
  %336 = vmatmul.mubr.f32.gmra.mrb[0].mxu0 %v121
  %v337 = vpop.f32.mrb[0].mxu0
  %v338 = vadd.f32 0.0, %v337
  %v339 = vpop.f32.mrb[0].mxu0
  %v340 = vadd.f32 0.0, %v339
  %341 = vdwg.mxu0
  %342 = vmatprep.subr.mxu0 %v190
  %343 = vmatpush1.msra.mxu0 %v189
  %344 = vmatprep.subr.mxu0 %v192
  %345 = vmatpush1.msra.mxu0 %v191
  %346 = vmatprep.subr.mxu0 %v194
  %347 = vmatpush1.msra.mxu0 %v193
  %348 = vmatprep.subr.mxu0 %v196
  %349 = vmatpush1.msra.mxu0 %v195
  %350 = vmatprep.subr.mxu0 %v198
  %351 = vmatpush1.msra.mxu0 %v197
  %352 = vmatprep.subr.mxu0 %v200
  %353 = vmatpush1.msra.mxu0 %v199
  %354 = vmatprep.subr.mxu0 %v202
  %355 = vmatpush1.msra.mxu0 %v201
  %356 = vmatprep.subr.mxu0 %v204
  %357 = vmatpush1.msra.mxu0 %v203
  %358 = vmatprep.subr.mxu0 %v206
  %359 = vmatpush1.msra.mxu0 %v205
  %360 = vmatprep.subr.mxu0 %v208
  %361 = vmatpush1.msra.mxu0 %v207
  %362 = vmatprep.subr.mxu0 %v210
  %363 = vmatpush1.msra.mxu0 %v209
  %364 = vmatprep.subr.mxu0 %v212
  %365 = vmatpush1.msra.mxu0 %v211
  %366 = vmatprep.subr.mxu0 %v214
  %367 = vmatpush1.msra.mxu0 %v213
  %368 = vmatprep.subr.mxu0 %v216
  %369 = vmatpush1.msra.mxu0 %v215
  %370 = vmatprep.subr.mxu0 %v218
  %371 = vmatpush1.msra.mxu0 %v217
  %372 = vmatprep.subr.mxu0 %v220
  %373 = vmatpush1.msra.mxu0 %v219
  %374 = vmatprep.subr.mxu0 %v222
  %375 = vmatpush1.msra.mxu0 %v221
  %376 = vmatprep.subr.mxu0 %v224
  %377 = vmatpush1.msra.mxu0 %v223
  %378 = vmatprep.subr.mxu0 %v226
  %379 = vmatpush1.msra.mxu0 %v225
  %380 = vmatprep.subr.mxu0 %v228
  %381 = vmatpush1.msra.mxu0 %v227
  %382 = vmatprep.subr.mxu0 %v230
  %383 = vmatpush1.msra.mxu0 %v229
  %384 = vmatprep.subr.mxu0 %v232
  %385 = vmatpush1.msra.mxu0 %v231
  %386 = vmatprep.subr.mxu0 %v234
  %387 = vmatpush1.msra.mxu0 %v233
  %388 = vmatprep.subr.mxu0 %v236
  %389 = vmatpush1.msra.mxu0 %v235
  %390 = vmatprep.subr.mxu0 %v238
  %391 = vmatpush1.msra.mxu0 %v237
  %392 = vmatprep.subr.mxu0 %v240
  %393 = vmatpush1.msra.mxu0 %v239
  %394 = vmatprep.subr.mxu0 %v242
  %395 = vmatpush1.msra.mxu0 %v241
  %396 = vmatprep.subr.mxu0 %v244
  %397 = vmatpush1.msra.mxu0 %v243
  %398 = vmatprep.subr.mxu0 %v246
  %399 = vmatpush1.msra.mxu0 %v245
  %400 = vmatprep.subr.mxu0 %v248
  %401 = vmatpush1.msra.mxu0 %v247
  %402 = vmatprep.subr.mxu0 %v250
  %403 = vmatpush1.msra.mxu0 %v249
  %404 = vmatprep.subr.mxu0 %v252
  %405 = vmatpush1.msra.mxu0 %v251
  %406 = vmatprep.mubr.f32.mxu0 %v112
  %407 = vmatmul.mubr.f32.gmra.mrb[0].mxu0 %v111
  %v408 = vpop.f32.mrb[0].mxu0
  %v409 = vadd.f32 %v320, %v408
  %v410 = vpop.f32.mrb[0].mxu0
  %v411 = vadd.f32 %v322, %v410
  %412 = vmatprep.mubr.f32.mxu0 %v116
  %413 = vmatmul.mubr.f32.gmra.mrb[0].mxu0 %v115
  %v414 = vpop.f32.mrb[0].mxu0
  %v415 = vadd.f32 %v326, %v414
  %v416 = vpop.f32.mrb[0].mxu0
  %v417 = vadd.f32 %v328, %v416
  %418 = vmatprep.mubr.f32.mxu0 %v120
  %419 = vmatmul.mubr.f32.gmra.mrb[0].mxu0 %v119
  %v420 = vpop.f32.mrb[0].mxu0
  %v421 = vadd.f32 %v332, %v420
  %v422 = vpop.f32.mrb[0].mxu0
  %v423 = vadd.f32 %v334, %v422
  %424 = vmatprep.mubr.f32.mxu0 %v124
  %425 = vmatmul.mubr.f32.gmra.mrb[0].mxu0 %v123
  %v426 = vpop.f32.mrb[0].mxu0
  %v427 = vadd.f32 %v338, %v426
  %v428 = vpop.f32.mrb[0].mxu0
  %v429 = vadd.f32 %v340, %v428
  %430 = vdwg.mxu0
  %431 = vst [vmem:[%s4] sm:$0xff] %v409
  %432 = vst [vmem:[%s4 + $0x8] sm:$0xff] %v411
  %433 = vst [vmem:[%s4 + $0x10] sm:$0xff] %v415
  %434 = vst [vmem:[%s4 + $0x18] sm:$0xff] %v417
  %435 = vst [vmem:[%s4 + $0x20] sm:$0xff] %v421
  %436 = vst [vmem:[%s4 + $0x28] sm:$0xff] %v423
  %437 = vst [vmem:[%s4 + $0x30] sm:$0xff] %v427
  %438 = vst [vmem:[%s4 + $0x38] sm:$0xff] %v429
  // Predicated region
  $region18: #{_lambda_.41} parent=0 // pred_check
    _
  $region19: #{_lambda_.41} parent=0 // pred_check_branch
    %440 = sbr.rel (0) target = $region21
  $region20: #{_lambda_.41} parent=0 // pred_region
    _
  $region21: #{_lambda_.41} parent=0 // pred_fallthru
    _
  // Predicated region
  $region22: #{_lambda_.41} parent=0 // pred_check
    _
  $region23: #{_lambda_.41} parent=0 // pred_check_branch
    %442 = sbr.rel (0) target = $region25
  $region24: #{_lambda_.41} parent=0 // pred_region
    _
  $region25: #{_lambda_.41} parent=0 // pred_fallthru
    _

// kernel: _lambda_.45
$region0: #{_lambda_.45}
  #allocation0 [shape = 'u32[]', space=smem, size = 0x4, offset = 0x4, fixed_abs, tag = 'smem constant byte address 0x4 - core index']
  #allocation1 [shape = 'u32[144,128]{1,0:T(1,128)}', space=vmem, size = 0x12000, scoped, tag = 'internal scratch']
  %s0 = inlined_call_operand.vmem [shape: f32[32,384], index: 0, kind: input, shape index: {}]
  %s1 = inlined_call_operand.vmem [shape: f32[1,384], index: 1, kind: input, shape index: {}]
  %s2 = inlined_call_operand.vmem [shape: f32[1,384], index: 2, kind: input, shape index: {}]
  %s3 = inlined_call_operand.vmem [shape: f32[32,384], index: 3, kind: output, shape index: {}]
  %s4 = sld [smem:[#allocation0]]
  $region22: #{_lambda_.45} parent=0
    _
  %s6 = ssub.s32 1, %s4
  %s7 = scalar_select 0, %s6, %s4
  // Predicated region
  $region2: #{_lambda_.45} parent=0 // pred_check
    _
  $region3: #{_lambda_.45} parent=0 // pred_check_branch
    %9 = sbr.rel (0) target = $region5
  $region4: #{_lambda_.45} parent=0 // pred_region
    _
  $region5: #{_lambda_.45} parent=0 // pred_fallthru
    _
  // Predicated region
  $region6: #{_lambda_.45} parent=0 // pred_check
    _
  $region7: #{_lambda_.45} parent=0 // pred_check_branch
    %11 = sbr.rel (0) target = $region9
  $region8: #{_lambda_.45} parent=0 // pred_region
    _
  $region9: #{_lambda_.45} parent=0 // pred_fallthru
    _
  // Predicated region
  $region10: #{_lambda_.45} parent=0 // pred_check
    _
  $region11: #{_lambda_.45} parent=0 // pred_check_branch
    %13 = sbr.rel (0) target = $region13
  $region12: #{_lambda_.45} parent=0 // pred_region
    _
  $region13: #{_lambda_.45} parent=0 // pred_fallthru
    _
  %v14 = vld [vmem:[%s0] sm:$0xff]
  %v15 = vld [vmem:[%s0 + $0x8] sm:$0xff]
  %v16 = vld [vmem:[%s0 + $0x10] sm:$0xff]
  %v17 = vld [vmem:[%s0 + $0x18] sm:$0xff]
  %v18 = vld [vmem:[%s0 + $0x20] sm:$0xff]
  %v19 = vld [vmem:[%s0 + $0x28] sm:$0xff]
  %v20 = vld [vmem:[%s0 + $0x30] sm:$0xff]
  %v21 = vld [vmem:[%s0 + $0x38] sm:$0xff]
  %v22 = vld [vmem:[%s0 + $0x40] sm:$0xff]
  %v23 = vld [vmem:[%s0 + $0x48] sm:$0xff]
  %v24 = vld [vmem:[%s0 + $0x50] sm:$0xff]
  %v25 = vld [vmem:[%s0 + $0x58] sm:$0xff]
  %v26 = vld [vmem:[%s1] sm:$0x7]
  %v28 = vlaneseq
  %v29 = vshrl.u32 %v28, 7
  %v30 = vsub.s32 0, %v29
  %v31 = vrot.slane %v26, %v30
  %v32 = vlaneseq
  %v33 = vshrl.u32 %v32, 7
  %v34 = vsub.s32 1, %v33
  %v35 = vrot.slane %v26, %v34
  %v36 = vlaneseq
  %v37 = vshrl.u32 %v36, 7
  %v38 = vsub.s32 2, %v37
  %v39 = vrot.slane %v26, %v38
  %v43 = vmul.f32 %v14, %v31
  %v44 = vmul.f32 %v15, %v35
  %v45 = vmul.f32 %v16, %v39
  %v46 = vmul.f32 %v17, %v31
  %v47 = vmul.f32 %v18, %v35
  %v48 = vmul.f32 %v19, %v39
  %v49 = vmul.f32 %v20, %v31
  %v50 = vmul.f32 %v21, %v35
  %v51 = vmul.f32 %v22, %v39
  %v52 = vmul.f32 %v23, %v31
  %v53 = vmul.f32 %v24, %v35
  %v54 = vmul.f32 %v25, %v39
  %v55 = vld [vmem:[%s2] sm:$0x7]
  %v57 = vlaneseq
  %v58 = vshrl.u32 %v57, 7
  %v59 = vsub.s32 0, %v58
  %v60 = vrot.slane %v55, %v59
  %v61 = vlaneseq
  %v62 = vshrl.u32 %v61, 7
  %v63 = vsub.s32 1, %v62
  %v64 = vrot.slane %v55, %v63
  %v65 = vlaneseq
  %v66 = vshrl.u32 %v65, 7
  %v67 = vsub.s32 2, %v66
  %v68 = vrot.slane %v55, %v67
  %v72 = vadd.f32 %v43, %v60
  %v73 = vadd.f32 %v44, %v64
  %v74 = vadd.f32 %v45, %v68
  %v75 = vadd.f32 %v46, %v60
  %v76 = vadd.f32 %v47, %v64
  %v77 = vadd.f32 %v48, %v68
  %v78 = vadd.f32 %v49, %v60
  %v79 = vadd.f32 %v50, %v64
  %v80 = vadd.f32 %v51, %v68
  %v81 = vadd.f32 %v52, %v60
  %v82 = vadd.f32 %v53, %v64
  %v83 = vadd.f32 %v54, %v68
  %v84 = vmax.f32 %v72, 0.0
  %v85 = vmax.f32 %v73, 0.0
  %v86 = vmax.f32 %v74, 0.0
  %v87 = vmax.f32 %v75, 0.0
  %v88 = vmax.f32 %v76, 0.0
  %v89 = vmax.f32 %v77, 0.0
  %v90 = vmax.f32 %v78, 0.0
  %v91 = vmax.f32 %v79, 0.0
  %v92 = vmax.f32 %v80, 0.0
  %v93 = vmax.f32 %v81, 0.0
  %v94 = vmax.f32 %v82, 0.0
  %v95 = vmax.f32 %v83, 0.0
  %96 = vst [vmem:[%s3] sm:$0xff] %v84
  %97 = vst [vmem:[%s3 + $0x8] sm:$0xff] %v85
  %98 = vst [vmem:[%s3 + $0x10] sm:$0xff] %v86
  %99 = vst [vmem:[%s3 + $0x18] sm:$0xff] %v87
  %100 = vst [vmem:[%s3 + $0x20] sm:$0xff] %v88
  %101 = vst [vmem:[%s3 + $0x28] sm:$0xff] %v89
  %102 = vst [vmem:[%s3 + $0x30] sm:$0xff] %v90
  %103 = vst [vmem:[%s3 + $0x38] sm:$0xff] %v91
  %104 = vst [vmem:[%s3 + $0x40] sm:$0xff] %v92
  %105 = vst [vmem:[%s3 + $0x48] sm:$0xff] %v93
  %106 = vst [vmem:[%s3 + $0x50] sm:$0xff] %v94
  %107 = vst [vmem:[%s3 + $0x58] sm:$0xff] %v95
  // Predicated region
  $region14: #{_lambda_.45} parent=0 // pred_check
    _
  $region15: #{_lambda_.45} parent=0 // pred_check_branch
    %109 = sbr.rel (0) target = $region17
  $region16: #{_lambda_.45} parent=0 // pred_region
    _
  $region17: #{_lambda_.45} parent=0 // pred_fallthru
    _
  // Predicated region
  $region18: #{_lambda_.45} parent=0 // pred_check
    _
  $region19: #{_lambda_.45} parent=0 // pred_check_branch
    %111 = sbr.rel (0) target = $region21
  $region20: #{_lambda_.45} parent=0 // pred_region
    _
  $region21: #{_lambda_.45} parent=0 // pred_fallthru
    _

</llo_original>
